<compile_context>
chip_gen: v6e
topology: v6e:2x2x1
jax: 0.10.0
libtpu: 0.0.40
codegen_flags: <defaults>
</compile_context>

<pallas_src>
import math
import jax
import jax.numpy as jnp
from jax.experimental import pallas as pl
from jax.experimental.pallas import tpu as pltpu

HIDDEN = 256          # hidden_size (module default is 1024; small test size here)
NUM_HEADS = 8
HEAD_DIM = HIDDEN // NUM_HEADS


def image_adapter_kernel(x_ref, w1_ref, b1_ref, w2_ref, b2_ref,
                         wqkv_ref, bqkv_ref, wo_ref, bo_ref, o_ref):
    x = x_ref[...]                                            # (TN, H) f32
    xb = x.astype(jnp.bfloat16)

    # ---- mask_generator: Linear -> ReLU -> Linear -> Sigmoid ----
    h1 = jnp.dot(xb, w1_ref[...], preferred_element_type=jnp.float32) + b1_ref[...]
    h1 = jnp.maximum(h1, 0.0)
    logits = jnp.dot(h1.astype(jnp.bfloat16), w2_ref[...],
                     preferred_element_type=jnp.float32) + b2_ref[...]
    # sigmoid via EUP reciprocal (frees VPU divide slots)
    mask = pl.reciprocal(1.0 + jnp.exp(-logits), approx=True)
    mf = mask * x                                             # masked_feature (f32, residual path)
    mfb = mf.astype(jnp.bfloat16)

    tn = x.shape[0]

    # ---- MultiHeadAttention (attention across heads, per token) ----
    # scale / sqrt(head_dim) already folded into the q columns of wqkv/bqkv.
    qkv = jnp.dot(mfb, wqkv_ref[...], preferred_element_type=jnp.float32) + bqkv_ref[...]
    q = qkv[:, :HIDDEN]                    # vreg-aligned lane slices (offsets % 128 == 0)
    k = qkv[:, HIDDEN:2 * HIDDEN]
    v = qkv[:, 2 * HIDDEN:]

    q3 = q.reshape(tn, NUM_HEADS, HEAD_DIM)
    k3 = k.reshape(tn, NUM_HEADS, HEAD_DIM)
    v3 = v.reshape(tn, NUM_HEADS, HEAD_DIM)

    # TODO(synk): per-token 8x8 head attention kept as batched einsums (~1% of
    # flops); a fully 2-D relayout-free formulation isn't expressible as one matmul.
    scores = jnp.einsum('nhd,ngd->nhg', q3, k3,
                        preferred_element_type=jnp.float32)
    scores = scores - jnp.max(scores, axis=-1, keepdims=True)   # stable softmax
    p = jnp.exp(scores)
    attn = p * pl.reciprocal(jnp.sum(p, axis=-1, keepdims=True), approx=True)

    ws = jnp.einsum('nhg,ngd->nhd', attn, v3,
                    preferred_element_type=jnp.float32).reshape(tn, HIDDEN)

    adapted = jnp.dot(ws.astype(jnp.bfloat16), wo_ref[...],
                      preferred_element_type=jnp.float32) + bo_ref[...]
    o_ref[...] = adapted + mf                                  # residual with masked feature


def _kernel_operands(params):
    """Fold scale & 1/sqrt(head_dim) into the q projection, fuse q/k/v weights,
    cast matmul weights to bf16 (biases stay f32)."""
    # output column j = h*HEAD_DIM + d  ->  scale[d] / sqrt(HEAD_DIM)
    col_scale = (jnp.tile(params["scale"].reshape(HEAD_DIM), NUM_HEADS)
                 / math.sqrt(HEAD_DIM)).astype(jnp.float32)
    wq = params["wq"] * col_scale[None, :]
    bq = params["bq"] * col_scale[None, :]
    wqkv = jnp.concatenate([wq, params["wk"], params["wv"]], axis=1)   # (H, 3H)
    bqkv = jnp.concatenate([bq, params["bk"], params["bv"]], axis=1)   # (1, 3H)
    bf16 = lambda a: a.astype(jnp.bfloat16)
    f32 = lambda a: a.astype(jnp.float32)
    return [
        bf16(params["w1"]), f32(params["b1"]),
        bf16(params["w2"]), f32(params["b2"]),
        bf16(wqkv),         f32(bqkv),
        bf16(params["wo"]), f32(params["bo"]),
    ]


def image_adapter(feature, params, *, tile_n=256):
    """feature: (B, S, H) f32.  params: dict of pre-transposed (in, out) weights."""
    B, S, H = feature.shape
    assert H == HIDDEN
    x = feature.reshape(B * S, H).astype(jnp.float32)
    N = x.shape[0]

    # Shrink the tile for small inputs (keep the sublane multiple-of-8 rule);
    # large inputs keep tile_n=256 to fill the MXU M dimension.
    tile_n = min(tile_n, max(8, ((N + 7) // 8) * 8))

    # Pad the token axis up to a tile multiple (no divisibility requirement).
    n_tiles = int(pl.cdiv(N, tile_n))
    N_pad = n_tiles * tile_n
    if N_pad != N:
        x = jnp.pad(x, ((0, N_pad - N), (0, 0)))

    operands = _kernel_operands(params)

    def const_spec(arr):
        nd = arr.ndim
        return pl.BlockSpec(arr.shape, lambda i, _nd=nd: (0,) * _nd)

    grid_spec = pltpu.PrefetchScalarGridSpec(
        num_scalar_prefetch=0,
        grid=(n_tiles,),
        in_specs=[pl.BlockSpec((tile_n, H), lambda i: (i, 0))] +
                 [const_spec(a) for a in operands],
        out_specs=pl.BlockSpec((tile_n, H), lambda i: (i, 0)),
    )

    out = pl.pallas_call(
        image_adapter_kernel,
        out_shape=jax.ShapeDtypeStruct((N_pad, H), jnp.float32),
        grid_spec=grid_spec,
        compiler_params=pltpu.CompilerParams(
            dimension_semantics=("parallel",),
            vmem_limit_bytes=48 << 20),
    )(x, *operands)

    return out[:N].reshape(B, S, H)


def init_params(key):
    """Deterministic synthetic parameters.  Linear weights stored pre-transposed
    as (in_features, out_features) so the kernel computes x @ W + b
    (== PyTorch's x @ W^T + b)."""
    H, D = HIDDEN, HEAD_DIM
    ks = jax.random.split(key, 16)
    std = 0.02
    p = {
        "w1": jax.random.normal(ks[0], (H, H // 2), jnp.float32) * std,
        "b1": jax.random.normal(ks[1], (1, H // 2), jnp.float32) * std,
        "w2": jax.random.normal(ks[2], (H // 2, H), jnp.float32) * std,
        "b2": jax.random.normal(ks[3], (1, H), jnp.float32) * std,
        "wq": jax.random.normal(ks[4], (H, H), jnp.float32) * std,
        "bq": jax.random.normal(ks[5], (1, H), jnp.float32) * std,
        "wk": jax.random.normal(ks[6], (H, H), jnp.float32) * std,
        "bk": jax.random.normal(ks[7], (1, H), jnp.float32) * std,
        "wv": jax.random.normal(ks[8], (H, H), jnp.float32) * std,
        "bv": jax.random.normal(ks[9], (1, H), jnp.float32) * std,
        "scale": jax.random.normal(ks[10], (1, D), jnp.float32),  # nn.Parameter(randn(head_dim))
        "wo": jax.random.normal(ks[11], (H, H), jnp.float32) * std,
        "bo": jax.random.normal(ks[12], (1, H), jnp.float32) * std,
    }
    return p


def reference(feature, params):
    """Pure-JAX f32 reference mirroring the PyTorch forward, for correctness check."""
    B, S, H = feature.shape
    x = feature.reshape(B * S, H)
    h1 = jnp.maximum(x @ params["w1"] + params["b1"], 0.0)
    mask = jax.nn.sigmoid(h1 @ params["w2"] + params["b2"])
    mf = mask * x
    q = (mf @ params["wq"] + params["bq"]).reshape(-1, NUM_HEADS, HEAD_DIM)
    k = (mf @ params["wk"] + params["bk"]).reshape(-1, NUM_HEADS, HEAD_DIM)
    v = (mf @ params["wv"] + params["bv"]).reshape(-1, NUM_HEADS, HEAD_DIM)
    q = q * params["scale"].reshape(1, 1, HEAD_DIM)
    s = jnp.einsum('nhd,ngd->nhg', q, k) / math.sqrt(HEAD_DIM)
    attn = jax.nn.softmax(s, axis=-1)
    ws = jnp.einsum('nhg,ngd->nhd', attn, v).reshape(-1, H)
    out = ws @ params["wo"] + params["bo"] + mf
    return out.reshape(B, S, H)


if __name__ == "__main__":
    key = jax.random.PRNGKey(0)
    k_feat, k_param = jax.random.split(key)
    B, S = 2, 16
    feature = jax.random.normal(k_feat, (B, S, HIDDEN), jnp.float32)
    params = init_params(k_param)

    out = image_adapter(feature, params)
    out = jax.block_until_ready(out)

    ref = reference(feature, params)
    assert out.shape == (B, S, HIDDEN)
    max_err = float(jnp.max(jnp.abs(out - ref)))
    # bf16 MXU operands (f32 accumulation) + approx-EUP reciprocal => slightly
    # looser rtol than a pure-f32 kernel; still far tighter than any real bug.
    assert jnp.allclose(out, ref, rtol=5e-3, atol=2e-3), \
        f"mismatch vs reference (max |err| = {max_err})"

    print("KERNEL_OK")
</pallas_src>

<mosaic_0001>
module attributes {stable_mosaic.version = 11 : i64} {
  func.func @image_adapter_kernel(%arg0: i32, %arg1: memref<32x256xf32, #tpu.memory_space<vmem>>, %arg2: memref<256x128xbf16, #tpu.memory_space<vmem>>, %arg3: memref<1x128xf32, #tpu.memory_space<vmem>>, %arg4: memref<128x256xbf16, #tpu.memory_space<vmem>>, %arg5: memref<1x256xf32, #tpu.memory_space<vmem>>, %arg6: memref<256x768xbf16, #tpu.memory_space<vmem>>, %arg7: memref<1x768xf32, #tpu.memory_space<vmem>>, %arg8: memref<256x256xbf16, #tpu.memory_space<vmem>>, %arg9: memref<1x256xf32, #tpu.memory_space<vmem>>, %arg10: memref<32x256xf32, #tpu.memory_space<vmem>>) attributes {dimension_semantics = [#tpu.dimension_semantics<parallel>], iteration_bounds = array<i64: 1>, scalar_prefetch = 0 : i64, scratch_operands = 0 : i64, tpu.core_type = #tpu.core_type<tc>, window_params = [{transform_indices = @transform_0, window_bounds = array<i64: 32, 256>}, {pipeline_mode = #tpu.pipeline_mode<synchronous>, transform_indices = @transform_1, window_bounds = array<i64: 256, 128>}, {pipeline_mode = #tpu.pipeline_mode<synchronous>, transform_indices = @transform_2, window_bounds = array<i64: 1, 128>}, {pipeline_mode = #tpu.pipeline_mode<synchronous>, transform_indices = @transform_3, window_bounds = array<i64: 128, 256>}, {pipeline_mode = #tpu.pipeline_mode<synchronous>, transform_indices = @transform_4, window_bounds = array<i64: 1, 256>}, {pipeline_mode = #tpu.pipeline_mode<synchronous>, transform_indices = @transform_5, window_bounds = array<i64: 256, 768>}, {pipeline_mode = #tpu.pipeline_mode<synchronous>, transform_indices = @transform_6, window_bounds = array<i64: 1, 768>}, {pipeline_mode = #tpu.pipeline_mode<synchronous>, transform_indices = @transform_7, window_bounds = array<i64: 256, 256>}, {pipeline_mode = #tpu.pipeline_mode<synchronous>, transform_indices = @transform_8, window_bounds = array<i64: 1, 256>}, {transform_indices = @transform_9, window_bounds = array<i64: 32, 256>}]} {
    %c0 = arith.constant 0 : index
    %c0_0 = arith.constant 0 : index
    %0 = vector.load %arg1[%c0, %c0_0] : memref<32x256xf32, #tpu.memory_space<vmem>>, vector<32x256xf32>
    %1 = arith.truncf %0 : vector<32x256xf32> to vector<32x256xbf16>
    %c0_1 = arith.constant 0 : index
    %c0_2 = arith.constant 0 : index
    %2 = vector.load %arg2[%c0_1, %c0_2] : memref<256x128xbf16, #tpu.memory_space<vmem>>, vector<256x128xbf16>
    %cst = arith.constant dense<0.000000e+00> : vector<32x128xf32>
    %3 = tpu.matmul %1, %2, %cst {dimension_numbers = #tpu.dot_dimension_numbers<[1], [0], [0], [1], [0, 0, 1, 1], [], []>} : vector<32x256xbf16>, vector<256x128xbf16>, vector<32x128xf32> -> vector<32x128xf32>
    %c0_3 = arith.constant 0 : index
    %c0_4 = arith.constant 0 : index
    %4 = vector.load %arg3[%c0_3, %c0_4] : memref<1x128xf32, #tpu.memory_space<vmem>>, vector<1x128xf32>
    %5 = vector.broadcast %4 : vector<1x128xf32> to vector<32x128xf32>
    %6 = arith.addf %3, %5 : vector<32x128xf32>
    %cst_5 = arith.constant 0.000000e+00 : f32
    %7 = vector.broadcast %cst_5 : f32 to vector<32x128xf32>
    %8 = arith.maximumf %6, %7 : vector<32x128xf32>
    %9 = arith.truncf %8 : vector<32x128xf32> to vector<32x128xbf16>
    %c0_6 = arith.constant 0 : index
    %c0_7 = arith.constant 0 : index
    %10 = vector.load %arg4[%c0_6, %c0_7] : memref<128x256xbf16, #tpu.memory_space<vmem>>, vector<128x256xbf16>
    %cst_8 = arith.constant dense<0.000000e+00> : vector<32x256xf32>
    %11 = tpu.matmul %9, %10, %cst_8 {dimension_numbers = #tpu.dot_dimension_numbers<[1], [0], [0], [1], [0, 0, 1, 1], [], []>} : vector<32x128xbf16>, vector<128x256xbf16>, vector<32x256xf32> -> vector<32x256xf32>
    %c0_9 = arith.constant 0 : index
    %c0_10 = arith.constant 0 : index
    %12 = vector.load %arg5[%c0_9, %c0_10] : memref<1x256xf32, #tpu.memory_space<vmem>>, vector<1x256xf32>
    %13 = vector.broadcast %12 : vector<1x256xf32> to vector<32x256xf32>
    %14 = arith.addf %11, %13 : vector<32x256xf32>
    %cst_11 = arith.constant 0.000000e+00 : f32
    %15 = vector.broadcast %cst_11 : f32 to vector<32x256xf32>
    %16 = arith.subf %15, %14 : vector<32x256xf32>
    %17 = math.exp %16 : vector<32x256xf32>
    %cst_12 = arith.constant 1.000000e+00 : f32
    %18 = vector.broadcast %cst_12 : f32 to vector<32x256xf32>
    %19 = arith.addf %18, %17 : vector<32x256xf32>
    %20 = tpu.reciprocal %19 {approx = true} : vector<32x256xf32> -> vector<32x256xf32>
    %21 = arith.mulf %20, %0 : vector<32x256xf32>
    %22 = arith.truncf %21 : vector<32x256xf32> to vector<32x256xbf16>
    %c0_13 = arith.constant 0 : index
    %c0_14 = arith.constant 0 : index
    %23 = vector.load %arg6[%c0_13, %c0_14] : memref<256x768xbf16, #tpu.memory_space<vmem>>, vector<256x768xbf16>
    %cst_15 = arith.constant dense<0.000000e+00> : vector<32x768xf32>
    %24 = tpu.matmul %22, %23, %cst_15 {dimension_numbers = #tpu.dot_dimension_numbers<[1], [0], [0], [1], [0, 0, 1, 1], [], []>} : vector<32x256xbf16>, vector<256x768xbf16>, vector<32x768xf32> -> vector<32x768xf32>
    %c0_16 = arith.constant 0 : index
    %c0_17 = arith.constant 0 : index
    %25 = vector.load %arg7[%c0_16, %c0_17] : memref<1x768xf32, #tpu.memory_space<vmem>>, vector<1x768xf32>
    %26 = vector.broadcast %25 : vector<1x768xf32> to vector<32x768xf32>
    %27 = arith.addf %24, %26 : vector<32x768xf32>
    %28 = vector.extract_strided_slice %27 {offsets = [0, 0], sizes = [32, 256], strides = [1, 1]} : vector<32x768xf32> to vector<32x256xf32>
    %29 = vector.extract_strided_slice %27 {offsets = [0, 256], sizes = [32, 256], strides = [1, 1]} : vector<32x768xf32> to vector<32x256xf32>
    %30 = vector.extract_strided_slice %27 {offsets = [0, 512], sizes = [32, 256], strides = [1, 1]} : vector<32x768xf32> to vector<32x256xf32>
    %31 = vector.shape_cast %28 : vector<32x256xf32> to vector<32x8x32xf32>
    %32 = vector.shape_cast %29 : vector<32x256xf32> to vector<32x8x32xf32>
    %33 = vector.shape_cast %30 : vector<32x256xf32> to vector<32x8x32xf32>
    "tpu.trace_start"() <{level = 10 : i32, message = "nhd,ngd->nhg"}> : () -> ()
    %cst_18 = arith.constant dense<0.000000e+00> : vector<32x8x8xf32>
    %34 = tpu.matmul %31, %32, %cst_18 {dimension_numbers = #tpu.dot_dimension_numbers<[2], [2], [1], [1], [0, 0, 0, 1, 1, 1], [0], [0]>} : vector<32x8x32xf32>, vector<32x8x32xf32>, vector<32x8x8xf32> -> vector<32x8x8xf32>
    "tpu.trace_stop"() : () -> ()
    %cst_19 = arith.constant dense<0xFF800000> : vector<32x8xf32>
    %35 = vector.multi_reduction <maximumf>, %34, %cst_19 [2] : vector<32x8x8xf32> to vector<32x8xf32>
    %36 = vector.shape_cast %35 : vector<32x8xf32> to vector<32x8x1xf32>
    %37 = vector.broadcast %36 : vector<32x8x1xf32> to vector<32x8x8xf32>
    %38 = arith.subf %34, %37 : vector<32x8x8xf32>
    %39 = math.exp %38 : vector<32x8x8xf32>
    %cst_20 = arith.constant dense<0.000000e+00> : vector<32x8xf32>
    %40 = vector.multi_reduction <add>, %39, %cst_20 [2] : vector<32x8x8xf32> to vector<32x8xf32>
    %41 = vector.shape_cast %40 : vector<32x8xf32> to vector<32x8x1xf32>
    %42 = tpu.reciprocal %41 {approx = true} : vector<32x8x1xf32> -> vector<32x8x1xf32>
    %43 = vector.broadcast %42 : vector<32x8x1xf32> to vector<32x8x8xf32>
    %44 = arith.mulf %39, %43 : vector<32x8x8xf32>
    "tpu.trace_start"() <{level = 10 : i32, message = "nhg,ngd->nhd"}> : () -> ()
    %cst_21 = arith.constant dense<0.000000e+00> : vector<32x8x32xf32>
    %45 = tpu.matmul %44, %33, %cst_21 {dimension_numbers = #tpu.dot_dimension_numbers<[2], [1], [1], [2], [0, 0, 0, 1, 1, 2], [0], [0]>} : vector<32x8x8xf32>, vector<32x8x32xf32>, vector<32x8x32xf32> -> vector<32x8x32xf32>
    "tpu.trace_stop"() : () -> ()
    %46 = vector.shape_cast %45 : vector<32x8x32xf32> to vector<32x256xf32>
    %47 = arith.truncf %46 : vector<32x256xf32> to vector<32x256xbf16>
    %c0_22 = arith.constant 0 : index
    %c0_23 = arith.constant 0 : index
    %48 = vector.load %arg8[%c0_22, %c0_23] : memref<256x256xbf16, #tpu.memory_space<vmem>>, vector<256x256xbf16>
    %cst_24 = arith.constant dense<0.000000e+00> : vector<32x256xf32>
    %49 = tpu.matmul %47, %48, %cst_24 {dimension_numbers = #tpu.dot_dimension_numbers<[1], [0], [0], [1], [0, 0, 1, 1], [], []>} : vector<32x256xbf16>, vector<256x256xbf16>, vector<32x256xf32> -> vector<32x256xf32>
    %c0_25 = arith.constant 0 : index
    %c0_26 = arith.constant 0 : index
    %50 = vector.load %arg9[%c0_25, %c0_26] : memref<1x256xf32, #tpu.memory_space<vmem>>, vector<1x256xf32>
    %51 = vector.broadcast %50 : vector<1x256xf32> to vector<32x256xf32>
    %52 = arith.addf %49, %51 : vector<32x256xf32>
    %53 = arith.addf %52, %21 : vector<32x256xf32>
    %c0_27 = arith.constant 0 : index
    %c0_28 = arith.constant 0 : index
    %54 = vector.load %arg10[%c0_27, %c0_28] : memref<32x256xf32, #tpu.memory_space<vmem>>, vector<32x256xf32>
    tpu.vector_store %arg10[%c0_27, %c0_28], %53 {strides = array<i32>} : memref<32x256xf32, #tpu.memory_space<vmem>>, vector<32x256xf32>,
    return
  }
  func.func @transform_0(%arg0: i32) -> (i32, i32) {
    %c0_i32 = arith.constant 0 : i32
    %c0_i32_0 = arith.constant 0 : i32
    return %arg0, %c0_i32 : i32, i32
  }
  func.func @transform_1(%arg0: i32) -> (i32, i32) {
    %c0_i32 = arith.constant 0 : i32
    %c0_i32_0 = arith.constant 0 : i32
    %c0_i32_1 = arith.constant 0 : i32
    return %c0_i32, %c0_i32_0 : i32, i32
  }
  func.func @transform_2(%arg0: i32) -> (i32, i32) {
    %c0_i32 = arith.constant 0 : i32
    %c0_i32_0 = arith.constant 0 : i32
    %c0_i32_1 = arith.constant 0 : i32
    return %c0_i32, %c0_i32_0 : i32, i32
  }
  func.func @transform_3(%arg0: i32) -> (i32, i32) {
    %c0_i32 = arith.constant 0 : i32
    %c0_i32_0 = arith.constant 0 : i32
    %c0_i32_1 = arith.constant 0 : i32
    return %c0_i32, %c0_i32_0 : i32, i32
  }
  func.func @transform_4(%arg0: i32) -> (i32, i32) {
    %c0_i32 = arith.constant 0 : i32
    %c0_i32_0 = arith.constant 0 : i32
    %c0_i32_1 = arith.constant 0 : i32
    return %c0_i32, %c0_i32_0 : i32, i32
  }
  func.func @transform_5(%arg0: i32) -> (i32, i32) {
    %c0_i32 = arith.constant 0 : i32
    %c0_i32_0 = arith.constant 0 : i32
    %c0_i32_1 = arith.constant 0 : i32
    return %c0_i32, %c0_i32_0 : i32, i32
  }
  func.func @transform_6(%arg0: i32) -> (i32, i32) {
    %c0_i32 = arith.constant 0 : i32
    %c0_i32_0 = arith.constant 0 : i32
    %c0_i32_1 = arith.constant 0 : i32
    return %c0_i32, %c0_i32_0 : i32, i32
  }
  func.func @transform_7(%arg0: i32) -> (i32, i32) {
    %c0_i32 = arith.constant 0 : i32
    %c0_i32_0 = arith.constant 0 : i32
    %c0_i32_1 = arith.constant 0 : i32
    return %c0_i32, %c0_i32_0 : i32, i32
  }
  func.func @transform_8(%arg0: i32) -> (i32, i32) {
    %c0_i32 = arith.constant 0 : i32
    %c0_i32_0 = arith.constant 0 : i32
    %c0_i32_1 = arith.constant 0 : i32
    return %c0_i32, %c0_i32_0 : i32, i32
  }
  func.func @transform_9(%arg0: i32) -> (i32, i32) {
    %c0_i32 = arith.constant 0 : i32
    %c0_i32_0 = arith.constant 0 : i32
    return %arg0, %c0_i32 : i32, i32
  }
}

</mosaic_0001>

<llo_original>
// kernel: tpu_custom_call.1
$region0: #{tpu_custom_call.1}
  #allocation0 [shape = 'u32[]', space=smem, size = 0x4, offset = 0x4, fixed_abs, tag = 'smem constant byte address 0x4 - core index']
  #allocation1 [shape = 'u32[144,128]{1,0:T(1,128)}', space=vmem, size = 0x12000, scoped, tag = 'internal scratch']
  %s0 = inlined_call_operand.hbm [shape: f32[32,256], index: 0, kind: input, shape index: {}]
  %s1 = inlined_call_operand.hbm [shape: bf16[256,128], index: 1, kind: input, shape index: {}]
  %s2 = inlined_call_operand.hbm [shape: f32[1,128], index: 2, kind: input, shape index: {}]
  %s3 = inlined_call_operand.hbm [shape: bf16[128,256], index: 3, kind: input, shape index: {}]
  %s4 = inlined_call_operand.vmem [shape: f32[1,256], index: 4, kind: input, shape index: {}]
  %s5 = inlined_call_operand.hbm [shape: bf16[256,768], index: 5, kind: input, shape index: {}]
  %s6 = inlined_call_operand.vmem [shape: f32[1,768], index: 6, kind: input, shape index: {}]
  %s7 = inlined_call_operand.hbm [shape: bf16[256,256], index: 7, kind: input, shape index: {}]
  %s8 = inlined_call_operand.vmem [shape: f32[1,256], index: 8, kind: input, shape index: {}]
  %s9 = inlined_call_operand.hbm [shape: f32[32,256], index: 9, kind: output, shape index: {}]
  %s10 = sld [smem:[#allocation0]]
  $region70: #{tpu_custom_call.1} parent=0
    _
  %s12 = ssub.s32 1, %s10
  %s13 = scalar_select 0, %s12, %s10
  $region1: #{tpu_custom_call.1} parent=0
    #allocation2 [shape = 'u8[32768]{0}', space=vmem, size = 0x8000, scoped, tag = 'input window, operand 0, single buffered']
    #allocation3 [shape = 's32[1]{0}', space=sflag, size = 0x4, scoped, tag = 'scoped memory for tpu_custom_call.1']
    #allocation4 [shape = 's32[1]{0}', space=sflag, size = 0x4, scoped, tag = 'scoped memory for tpu_custom_call.1']
    #allocation5 [shape = 'u8[65536]{0}', space=vmem, size = 0x10000, scoped, tag = 'input window, operand 1, single buffered']
    #allocation6 [shape = 's32[1]{0}', space=sflag, size = 0x4, scoped, tag = 'scoped memory for tpu_custom_call.1']
    #allocation7 [shape = 'u8[512]{0}', space=vmem, size = 0x400, scoped, tag = 'input window, operand 2, single buffered']
    #allocation8 [shape = 'u8[65536]{0}', space=vmem, size = 0x10000, scoped, tag = 'input window, operand 3, single buffered']
    #allocation9 [shape = 's32[1]{0}', space=sflag, size = 0x4, scoped, tag = 'scoped memory for tpu_custom_call.1']
    #allocation10 [shape = 'u8[393216]{0}', space=vmem, size = 0x60000, scoped, tag = 'input window, operand 5, single buffered']
    #allocation11 [shape = 'u8[131072]{0}', space=vmem, size = 0x20000, scoped, tag = 'input window, operand 7, single buffered']
    #allocation12 [shape = 's32[1]{0}', space=sflag, size = 0x4, scoped, tag = 'scoped memory for tpu_custom_call.1']
    #allocation13 [shape = 'u8[32768]{0}', space=vmem, size = 0x8000, scoped, tag = 'output window, operand 0, single buffered']
    %14 = vsyncpa [#allocation3], 0
    %15 = vsyncpa [#allocation6], 0
    %16 = vsyncpa [#allocation9], 0
    %17 = vsyncpa [#allocation12], 0
    %18 = vsyncpa [#allocation4], 0
    // Predicated region
    $region2: #{tpu_custom_call.1} parent=1 // pred_check
      _
    $region3: #{tpu_custom_call.1} parent=1 // pred_check_branch
      %20 = sbr.rel (0) target = $region5
    $region4: #{tpu_custom_call.1} parent=1 // pred_region
      %s22 = ssub.s32 1024, 1024
      %23 = vsyncadd [#allocation3], %s22
      %s24 = sshll.u32 [#allocation2], 4
      %s25 = int_to_ptr.vmem [resolvable:$true] %s24
      %30 = dma.hbm_to_vmem [thread:$0]  %s0, 1024, %s25, [#allocation3], 256, 256, 16
    $region5: #{tpu_custom_call.1} parent=1 // pred_fallthru
      _
    // Predicated region
    $region6: #{tpu_custom_call.1} parent=1 // pred_check
      _
    $region7: #{tpu_custom_call.1} parent=1 // pred_check_branch
      %32 = sbr.rel (0) target = $region9
    $region8: #{tpu_custom_call.1} parent=1 // pred_region
      %s34 = ssub.s32 2048, 2048
      %35 = vsyncadd [#allocation6], %s34
      %s36 = sshll.u32 [#allocation5], 4
      %s37 = int_to_ptr.vmem [resolvable:$true] %s36
      %42 = dma.hbm_to_vmem [thread:$0]  %s1, 2048, %s37, [#allocation6], 64, 64, 4
    $region9: #{tpu_custom_call.1} parent=1 // pred_fallthru
      _
    // Predicated region
    $region10: #{tpu_custom_call.1} parent=1 // pred_check
      _
    $region11: #{tpu_custom_call.1} parent=1 // pred_check_branch
      %44 = sbr.rel (0) target = $region13
    $region12: #{tpu_custom_call.1} parent=1 // pred_region
      %s46 = ssub.s32 16, 16
      %47 = vsyncadd [#allocation6], %s46
      %s49 = sshll.u32 [#allocation7], 4
      %s50 = int_to_ptr.vmem [resolvable:$true] %s49
      %52 = dma.hbm_to_vmem [thread:$0]  %s2, 16, %s50, [#allocation6]
    $region13: #{tpu_custom_call.1} parent=1 // pred_fallthru
      _
    // Predicated region
    $region14: #{tpu_custom_call.1} parent=1 // pred_check
      _
    $region15: #{tpu_custom_call.1} parent=1 // pred_check_branch
      %54 = sbr.rel (0) target = $region17
    $region16: #{tpu_custom_call.1} parent=1 // pred_region
      %s56 = ssub.s32 2048, 2048
      %57 = vsyncadd [#allocation9], %s56
      %s58 = sshll.u32 [#allocation8], 4
      %s59 = int_to_ptr.vmem [resolvable:$true] %s58
      %64 = dma.hbm_to_vmem [thread:$0]  %s3, 2048, %s59, [#allocation9], 128, 128, 8
    $region17: #{tpu_custom_call.1} parent=1 // pred_fallthru
      _
    // Predicated region
    $region18: #{tpu_custom_call.1} parent=1 // pred_check
      _
    $region19: #{tpu_custom_call.1} parent=1 // pred_check_branch
      %66 = sbr.rel (0) target = $region21
    $region20: #{tpu_custom_call.1} parent=1 // pred_region
      _
    $region21: #{tpu_custom_call.1} parent=1 // pred_fallthru
      _
    // Predicated region
    $region22: #{tpu_custom_call.1} parent=1 // pred_check
      _
    $region23: #{tpu_custom_call.1} parent=1 // pred_check_branch
      %68 = sbr.rel (0) target = $region25
    $region24: #{tpu_custom_call.1} parent=1 // pred_region
      %s70 = ssub.s32 12288, 12288
      %71 = vsyncadd [#allocation9], %s70
      %s72 = sshll.u32 [#allocation10], 4
      %s73 = int_to_ptr.vmem [resolvable:$true] %s72
      %78 = dma.hbm_to_vmem [thread:$0]  %s5, 12288, %s73, [#allocation9], 384, 384, 24
    $region25: #{tpu_custom_call.1} parent=1 // pred_fallthru
      _
    // Predicated region
    $region26: #{tpu_custom_call.1} parent=1 // pred_check
      _
    $region27: #{tpu_custom_call.1} parent=1 // pred_check_branch
      %80 = sbr.rel (0) target = $region29
    $region28: #{tpu_custom_call.1} parent=1 // pred_region
      _
    $region29: #{tpu_custom_call.1} parent=1 // pred_fallthru
      _
    // Predicated region
    $region30: #{tpu_custom_call.1} parent=1 // pred_check
      _
    $region31: #{tpu_custom_call.1} parent=1 // pred_check_branch
      %82 = sbr.rel (0) target = $region33
    $region32: #{tpu_custom_call.1} parent=1 // pred_region
      %s84 = ssub.s32 4096, 4096
      %85 = vsyncadd [#allocation12], %s84
      %s86 = sshll.u32 [#allocation11], 4
      %s87 = int_to_ptr.vmem [resolvable:$true] %s86
      %92 = dma.hbm_to_vmem [thread:$0]  %s7, 4096, %s87, [#allocation12], 128, 128, 8
    $region33: #{tpu_custom_call.1} parent=1 // pred_fallthru
      _
    // Predicated region
    $region34: #{tpu_custom_call.1} parent=1 // pred_check
      _
    $region35: #{tpu_custom_call.1} parent=1 // pred_check_branch
      %94 = sbr.rel (0) target = $region37
    $region36: #{tpu_custom_call.1} parent=1 // pred_region
      _
    $region37: #{tpu_custom_call.1} parent=1 // pred_fallthru
      _
    // Predicated region
    $region38: #{tpu_custom_call.1} parent=1 // pred_check
      _
    $region39: #{tpu_custom_call.1} parent=1 // pred_check_branch
      %96 = sbr.rel (0) target = $region41
    $region40: #{tpu_custom_call.1} parent=1 // pred_region
      %97 = dma.done [#allocation3], 1024
    $region41: #{tpu_custom_call.1} parent=1 // pred_fallthru
      _
    // Predicated region
    $region42: #{tpu_custom_call.1} parent=1 // pred_check
      _
    $region43: #{tpu_custom_call.1} parent=1 // pred_check_branch
      %99 = sbr.rel (0) target = $region45
    $region44: #{tpu_custom_call.1} parent=1 // pred_region
      %100 = dma.done [#allocation6], 2048
    $region45: #{tpu_custom_call.1} parent=1 // pred_fallthru
      _
    // Predicated region
    $region46: #{tpu_custom_call.1} parent=1 // pred_check
      _
    $region47: #{tpu_custom_call.1} parent=1 // pred_check_branch
      %102 = sbr.rel (0) target = $region49
    $region48: #{tpu_custom_call.1} parent=1 // pred_region
      %103 = dma.done [#allocation6], 16
    $region49: #{tpu_custom_call.1} parent=1 // pred_fallthru
      _
    // Predicated region
    $region50: #{tpu_custom_call.1} parent=1 // pred_check
      _
    $region51: #{tpu_custom_call.1} parent=1 // pred_check_branch
      %105 = sbr.rel (0) target = $region53
    $region52: #{tpu_custom_call.1} parent=1 // pred_region
      %106 = dma.done [#allocation9], 2048
    $region53: #{tpu_custom_call.1} parent=1 // pred_fallthru
      _
    // Predicated region
    $region54: #{tpu_custom_call.1} parent=1 // pred_check
      _
    $region55: #{tpu_custom_call.1} parent=1 // pred_check_branch
      %108 = sbr.rel (0) target = $region57
    $region56: #{tpu_custom_call.1} parent=1 // pred_region
      %109 = dma.done [#allocation9], 12288
    $region57: #{tpu_custom_call.1} parent=1 // pred_fallthru
      _
    // Predicated region
    $region58: #{tpu_custom_call.1} parent=1 // pred_check
      _
    $region59: #{tpu_custom_call.1} parent=1 // pred_check_branch
      %111 = sbr.rel (0) target = $region61
    $region60: #{tpu_custom_call.1} parent=1 // pred_region
      %112 = dma.done [#allocation12], 4096
    $region61: #{tpu_custom_call.1} parent=1 // pred_fallthru
      _
    %v114 = vld [vmem:[#allocation2] sm:$0xff]
    %v115 = vld [vmem:[#allocation2 + $0x8] sm:$0xff]
    %v116 = vld [vmem:[#allocation2 + $0x10] sm:$0xff]
    %v117 = vld [vmem:[#allocation2 + $0x18] sm:$0xff]
    %v118 = vld [vmem:[#allocation2 + $0x20] sm:$0xff]
    %v119 = vld [vmem:[#allocation2 + $0x28] sm:$0xff]
    %v120 = vld [vmem:[#allocation2 + $0x30] sm:$0xff]
    %v121 = vld [vmem:[#allocation2 + $0x38] sm:$0xff]
    %v122 = vpack.c.bf16 %v116, %v114
    %v123 = vpack.c.bf16 %v117, %v115
    %v124 = vpack.c.bf16 %v120, %v118
    %v125 = vpack.c.bf16 %v121, %v119
    %v126 = vld [vmem:[#allocation5] sm:$0xf]
    %v127 = vld [vmem:[#allocation5 + $0x4] sm:$0xf]
    %v128 = vld [vmem:[#allocation5 + $0x8] sm:$0xf]
    %v129 = vld [vmem:[#allocation5 + $0xc] sm:$0xf]
    %v130 = vld [vmem:[#allocation5 + $0x10] sm:$0xf]
    %v131 = vld [vmem:[#allocation5 + $0x14] sm:$0xf]
    %v132 = vld [vmem:[#allocation5 + $0x18] sm:$0xf]
    %v133 = vld [vmem:[#allocation5 + $0x1c] sm:$0xf]
    %v134 = vld [vmem:[#allocation5 + $0x20] sm:$0xf]
    %v135 = vld [vmem:[#allocation5 + $0x24] sm:$0xf]
    %v136 = vld [vmem:[#allocation5 + $0x28] sm:$0xf]
    %v137 = vld [vmem:[#allocation5 + $0x2c] sm:$0xf]
    %v138 = vld [vmem:[#allocation5 + $0x30] sm:$0xf]
    %v139 = vld [vmem:[#allocation5 + $0x34] sm:$0xf]
    %v140 = vld [vmem:[#allocation5 + $0x38] sm:$0xf]
    %v141 = vld [vmem:[#allocation5 + $0x3c] sm:$0xf]
    %v142 = vld [vmem:[#allocation5 + $0x40] sm:$0xf]
    %v143 = vld [vmem:[#allocation5 + $0x44] sm:$0xf]
    %v144 = vld [vmem:[#allocation5 + $0x48] sm:$0xf]
    %v145 = vld [vmem:[#allocation5 + $0x4c] sm:$0xf]
    %v146 = vld [vmem:[#allocation5 + $0x50] sm:$0xf]
    %v147 = vld [vmem:[#allocation5 + $0x54] sm:$0xf]
    %v148 = vld [vmem:[#allocation5 + $0x58] sm:$0xf]
    %v149 = vld [vmem:[#allocation5 + $0x5c] sm:$0xf]
    %v150 = vld [vmem:[#allocation5 + $0x60] sm:$0xf]
    %v151 = vld [vmem:[#allocation5 + $0x64] sm:$0xf]
    %v152 = vld [vmem:[#allocation5 + $0x68] sm:$0xf]
    %v153 = vld [vmem:[#allocation5 + $0x6c] sm:$0xf]
    %v154 = vld [vmem:[#allocation5 + $0x70] sm:$0xf]
    %v155 = vld [vmem:[#allocation5 + $0x74] sm:$0xf]
    %v156 = vld [vmem:[#allocation5 + $0x78] sm:$0xf]
    %v157 = vld [vmem:[#allocation5 + $0x7c] sm:$0xf]
    %v158 = vld [vmem:[#allocation7] sm:$0x1]
    %v160 = vlaneseq
    %v161 = vshrl.u32 %v160, 7
    %v162 = vsub.s32 0, %v161
    %v163 = vrot.slane %v158, %v162
    %v197 = vunpack.c.l.b16 %v126
    %v198 = vunpack.c.l.b16 %v127
    %v199 = vunpack.c.l.b16 %v128
    %v200 = vunpack.c.l.b16 %v129
    %v201 = vunpack.c.l.b16 %v130
    %v202 = vunpack.c.l.b16 %v131
    %v203 = vunpack.c.l.b16 %v132
    %v204 = vunpack.c.l.b16 %v133
    %v205 = vunpack.c.l.b16 %v134
    %v206 = vunpack.c.l.b16 %v135
    %v207 = vunpack.c.l.b16 %v136
    %v208 = vunpack.c.l.b16 %v137
    %v209 = vunpack.c.l.b16 %v138
    %v210 = vunpack.c.l.b16 %v139
    %v211 = vunpack.c.l.b16 %v140
    %v212 = vunpack.c.l.b16 %v141
    %v213 = vunpack.c.l.b16 %v142
    %v214 = vunpack.c.l.b16 %v143
    %v215 = vunpack.c.l.b16 %v144
    %v216 = vunpack.c.l.b16 %v145
    %v217 = vunpack.c.l.b16 %v146
    %v218 = vunpack.c.l.b16 %v147
    %v219 = vunpack.c.l.b16 %v148
    %v220 = vunpack.c.l.b16 %v149
    %v221 = vunpack.c.l.b16 %v150
    %v222 = vunpack.c.l.b16 %v151
    %v223 = vunpack.c.l.b16 %v152
    %v224 = vunpack.c.l.b16 %v153
    %v225 = vunpack.c.l.b16 %v154
    %v226 = vunpack.c.l.b16 %v155
    %v227 = vunpack.c.l.b16 %v156
    %v228 = vunpack.c.l.b16 %v157
    %v229 = vpack.c.b16 %v198, %v197
    %v230 = vpack.c.b16 %v200, %v199
    %v231 = vpack.c.b16 %v202, %v201
    %v232 = vpack.c.b16 %v204, %v203
    %v233 = vpack.c.b16 %v206, %v205
    %v234 = vpack.c.b16 %v208, %v207
    %v235 = vpack.c.b16 %v210, %v209
    %v236 = vpack.c.b16 %v212, %v211
    %v237 = vpack.c.b16 %v214, %v213
    %v238 = vpack.c.b16 %v216, %v215
    %v239 = vpack.c.b16 %v218, %v217
    %v240 = vpack.c.b16 %v220, %v219
    %v241 = vpack.c.b16 %v222, %v221
    %v242 = vpack.c.b16 %v224, %v223
    %v243 = vpack.c.b16 %v226, %v225
    %v244 = vpack.c.b16 %v228, %v227
    %261 = vmatprep.subr.bf16.mxu0 0
    %262 = vmatpush1.bf16.msra.mxu0 %v236
    %263 = vmatprep.subr.bf16.mxu0 0
    %264 = vmatpush1.bf16.msra.mxu0 %v235
    %265 = vmatprep.subr.bf16.mxu0 0
    %266 = vmatpush1.bf16.msra.mxu0 %v234
    %267 = vmatprep.subr.bf16.mxu0 0
    %268 = vmatpush1.bf16.msra.mxu0 %v233
    %269 = vmatprep.subr.bf16.mxu0 0
    %270 = vmatpush1.bf16.msra.mxu0 %v232
    %271 = vmatprep.subr.bf16.mxu0 0
    %272 = vmatpush1.bf16.msra.mxu0 %v231
    %273 = vmatprep.subr.bf16.mxu0 0
    %274 = vmatpush1.bf16.msra.mxu0 %v230
    %275 = vmatprep.subr.bf16.mxu0 0
    %276 = vmatpush1.bf16.msra.mxu0 %v229
    %277 = vmatprep.subr.bf16.mxu0 0
    %278 = vmatpush2.bf16.msra.mxu0 %v244
    %279 = vmatprep.subr.bf16.mxu0 0
    %280 = vmatpush2.bf16.msra.mxu0 %v243
    %281 = vmatprep.subr.bf16.mxu0 0
    %282 = vmatpush2.bf16.msra.mxu0 %v242
    %283 = vmatprep.subr.bf16.mxu0 0
    %284 = vmatpush2.bf16.msra.mxu0 %v241
    %285 = vmatprep.subr.bf16.mxu0 0
    %286 = vmatpush2.bf16.msra.mxu0 %v240
    %287 = vmatprep.subr.bf16.mxu0 0
    %288 = vmatpush2.bf16.msra.mxu0 %v239
    %289 = vmatprep.subr.bf16.mxu0 0
    %290 = vmatpush2.bf16.msra.mxu0 %v238
    %291 = vmatprep.subr.bf16.mxu0 0
    %292 = vmatpush2.bf16.msra.mxu0 %v237
    %293 = vmatprep.mubr.bf16.mxu0 %v123
    %294 = vmatmul.mubr.bf16.gmra.mxu0 %v122
    %v295 = vpop.f32.mrf.mxu0
    %v296 = vadd.f32 %v163, %v295
    %v297 = vpop.f32.mrf.mxu0
    %v298 = vpop.f32.mrf.mxu0
    %v299 = vadd.f32 %v163, %v298
    %v300 = vpop.f32.mrf.mxu0
    %301 = vmatprep.mubr.bf16.mxu0 %v125
    %302 = vmatmul.mubr.bf16.gmra.mxu0 %v124
    %v303 = vpop.f32.mrf.mxu0
    %v304 = vadd.f32 %v163, %v303
    %v305 = vpop.f32.mrf.mxu0
    %v306 = vpop.f32.mrf.mxu0
    %v307 = vadd.f32 %v163, %v306
    %v308 = vpop.f32.mrf.mxu0
    %309 = vdwg.mxu0
    %v310 = vmax.f32 %v296, 0.0
    %v311 = vmax.f32 %v299, 0.0
    %v312 = vmax.f32 %v304, 0.0
    %v313 = vmax.f32 %v307, 0.0
    %v314 = vpack.c.bf16 %v311, %v310
    %v315 = vpack.c.bf16 %v313, %v312
    %v316 = vld [vmem:[#allocation8] sm:$0xff]
    %v317 = vld [vmem:[#allocation8 + $0x8] sm:$0xff]
    %v318 = vld [vmem:[#allocation8 + $0x10] sm:$0xff]
    %v319 = vld [vmem:[#allocation8 + $0x18] sm:$0xff]
    %v320 = vld [vmem:[#allocation8 + $0x20] sm:$0xff]
    %v321 = vld [vmem:[#allocation8 + $0x28] sm:$0xff]
    %v322 = vld [vmem:[#allocation8 + $0x30] sm:$0xff]
    %v323 = vld [vmem:[#allocation8 + $0x38] sm:$0xff]
    %v324 = vld [vmem:[#allocation8 + $0x40] sm:$0xff]
    %v325 = vld [vmem:[#allocation8 + $0x48] sm:$0xff]
    %v326 = vld [vmem:[#allocation8 + $0x50] sm:$0xff]
    %v327 = vld [vmem:[#allocation8 + $0x58] sm:$0xff]
    %v328 = vld [vmem:[#allocation8 + $0x60] sm:$0xff]
    %v329 = vld [vmem:[#allocation8 + $0x68] sm:$0xff]
    %v330 = vld [vmem:[#allocation8 + $0x70] sm:$0xff]
    %v331 = vld [vmem:[#allocation8 + $0x78] sm:$0xff]
    %v332 = vld [vmem:[%s4] sm:$0x3]
    %v334 = vlaneseq
    %v335 = vshrl.u32 %v334, 7
    %v336 = vsub.s32 0, %v335
    %v337 = vrot.slane %v332, %v336
    %v338 = vlaneseq
    %v339 = vshrl.u32 %v338, 7
    %v340 = vsub.s32 1, %v339
    %v341 = vrot.slane %v332, %v340
    %v360 = vunpack.c.l.b16 %v316
    %v361 = vunpack.c.h.b16 %v316
    %v362 = vunpack.c.l.b16 %v317
    %v363 = vunpack.c.h.b16 %v317
    %v364 = vunpack.c.l.b16 %v318
    %v365 = vunpack.c.h.b16 %v318
    %v366 = vunpack.c.l.b16 %v319
    %v367 = vunpack.c.h.b16 %v319
    %v368 = vunpack.c.l.b16 %v320
    %v369 = vunpack.c.h.b16 %v320
    %v370 = vunpack.c.l.b16 %v321
    %v371 = vunpack.c.h.b16 %v321
    %v372 = vunpack.c.l.b16 %v322
    %v373 = vunpack.c.h.b16 %v322
    %v374 = vunpack.c.l.b16 %v323
    %v375 = vunpack.c.h.b16 %v323
    %v376 = vunpack.c.l.b16 %v324
    %v377 = vunpack.c.h.b16 %v324
    %v378 = vunpack.c.l.b16 %v325
    %v379 = vunpack.c.h.b16 %v325
    %v380 = vunpack.c.l.b16 %v326
    %v381 = vunpack.c.h.b16 %v326
    %v382 = vunpack.c.l.b16 %v327
    %v383 = vunpack.c.h.b16 %v327
    %v384 = vunpack.c.l.b16 %v328
    %v385 = vunpack.c.h.b16 %v328
    %v386 = vunpack.c.l.b16 %v329
    %v387 = vunpack.c.h.b16 %v329
    %v388 = vunpack.c.l.b16 %v330
    %v389 = vunpack.c.h.b16 %v330
    %v390 = vunpack.c.l.b16 %v331
    %v391 = vunpack.c.h.b16 %v331
    %v392 = vpack.c.b16 %v362, %v360
    %v393 = vpack.c.b16 %v363, %v361
    %v394 = vpack.c.b16 %v366, %v364
    %v395 = vpack.c.b16 %v367, %v365
    %v396 = vpack.c.b16 %v370, %v368
    %v397 = vpack.c.b16 %v371, %v369
    %v398 = vpack.c.b16 %v374, %v372
    %v399 = vpack.c.b16 %v375, %v373
    %v400 = vpack.c.b16 %v378, %v376
    %v401 = vpack.c.b16 %v379, %v377
    %v402 = vpack.c.b16 %v382, %v380
    %v403 = vpack.c.b16 %v383, %v381
    %v404 = vpack.c.b16 %v386, %v384
    %v405 = vpack.c.b16 %v387, %v385
    %v406 = vpack.c.b16 %v390, %v388
    %v407 = vpack.c.b16 %v391, %v389
    %424 = vmatprep.subr.bf16.mxu0 %v407
    %425 = vmatpush1.bf16.msra.mxu0 %v406
    %426 = vmatprep.subr.bf16.mxu0 %v405
    %427 = vmatpush1.bf16.msra.mxu0 %v404
    %428 = vmatprep.subr.bf16.mxu0 %v403
    %429 = vmatpush1.bf16.msra.mxu0 %v402
    %430 = vmatprep.subr.bf16.mxu0 %v401
    %431 = vmatpush1.bf16.msra.mxu0 %v400
    %432 = vmatprep.subr.bf16.mxu0 %v399
    %433 = vmatpush1.bf16.msra.mxu0 %v398
    %434 = vmatprep.subr.bf16.mxu0 %v397
    %435 = vmatpush1.bf16.msra.mxu0 %v396
    %436 = vmatprep.subr.bf16.mxu0 %v395
    %437 = vmatpush1.bf16.msra.mxu0 %v394
    %438 = vmatprep.subr.bf16.mxu0 %v393
    %439 = vmatpush1.bf16.msra.mxu0 %v392
    %440 = vmatprep.subr.bf16.mxu0 0
    %441 = vmatpush2.bf16.msra.mxu0 0
    %442 = vmatprep.subr.bf16.mxu0 0
    %443 = vmatpush2.bf16.msra.mxu0 0
    %444 = vmatprep.subr.bf16.mxu0 0
    %445 = vmatpush2.bf16.msra.mxu0 0
    %446 = vmatprep.subr.bf16.mxu0 0
    %447 = vmatpush2.bf16.msra.mxu0 0
    %448 = vmatprep.subr.bf16.mxu0 0
    %449 = vmatpush2.bf16.msra.mxu0 0
    %450 = vmatprep.subr.bf16.mxu0 0
    %451 = vmatpush2.bf16.msra.mxu0 0
    %452 = vmatprep.subr.bf16.mxu0 0
    %453 = vmatpush2.bf16.msra.mxu0 0
    %454 = vmatprep.subr.bf16.mxu0 0
    %455 = vmatpush2.bf16.msra.mxu0 0
    %456 = vmatprep.mubr.bf16.mxu0 0
    %457 = vmatmul.mubr.bf16.gmra.mxu0 %v314
    %v458 = vpop.f32.mrf.mxu0
    %v459 = vadd.f32 %v337, %v458
    %v460 = vpop.f32.mrf.mxu0
    %v461 = vadd.f32 %v341, %v460
    %v462 = vpop.f32.mrf.mxu0
    %v463 = vadd.f32 %v337, %v462
    %v464 = vpop.f32.mrf.mxu0
    %v465 = vadd.f32 %v341, %v464
    %466 = vmatprep.mubr.bf16.mxu0 0
    %467 = vmatmul.mubr.bf16.gmra.mxu0 %v315
    %v468 = vpop.f32.mrf.mxu0
    %v469 = vadd.f32 %v337, %v468
    %v470 = vpop.f32.mrf.mxu0
    %v471 = vadd.f32 %v341, %v470
    %v472 = vpop.f32.mrf.mxu0
    %v473 = vadd.f32 %v337, %v472
    %v474 = vpop.f32.mrf.mxu0
    %v475 = vadd.f32 %v341, %v474
    %476 = vdwg.mxu0
    %v477 = vsub.f32 0.0, %v459
    %v478 = vsub.f32 0.0, %v461
    %v479 = vsub.f32 0.0, %v463
    %v480 = vsub.f32 0.0, %v465
    %v481 = vsub.f32 0.0, %v469
    %v482 = vsub.f32 0.0, %v471
    %v483 = vsub.f32 0.0, %v473
    %v484 = vsub.f32 0.0, %v475
    %v485 = vmul.f32 %v477, 1.442695
    %v486 = vpow.pop %v485
    %v487 = vmul.f32 %v478, 1.442695
    %v488 = vpow.pop %v487
    %v489 = vmul.f32 %v479, 1.442695
    %v490 = vpow.pop %v489
    %v491 = vmul.f32 %v480, 1.442695
    %v492 = vpow.pop %v491
    %v493 = vmul.f32 %v481, 1.442695
    %v494 = vpow.pop %v493
    %v495 = vmul.f32 %v482, 1.442695
    %v496 = vpow.pop %v495
    %v497 = vmul.f32 %v483, 1.442695
    %v498 = vpow.pop %v497
    %v499 = vmul.f32 %v484, 1.442695
    %v500 = vpow.pop %v499
    %v501 = vadd.f32 %v486, 1.0
    %v502 = vadd.f32 %v488, 1.0
    %v503 = vadd.f32 %v490, 1.0
    %v504 = vadd.f32 %v492, 1.0
    %v505 = vadd.f32 %v494, 1.0
    %v506 = vadd.f32 %v496, 1.0
    %v507 = vadd.f32 %v498, 1.0
    %v508 = vadd.f32 %v500, 1.0
    %v509 = vrcp.pop %v501
    %v510 = vrcp.pop %v502
    %v511 = vrcp.pop %v503
    %v512 = vrcp.pop %v504
    %v513 = vrcp.pop %v505
    %v514 = vrcp.pop %v506
    %v515 = vrcp.pop %v507
    %v516 = vrcp.pop %v508
    %v517 = vmul.f32 %v509, %v114
    %v518 = vmul.f32 %v510, %v115
    %v519 = vmul.f32 %v511, %v116
    %v520 = vmul.f32 %v512, %v117
    %v521 = vmul.f32 %v513, %v118
    %v522 = vmul.f32 %v514, %v119
    %v523 = vmul.f32 %v515, %v120
    %v524 = vmul.f32 %v516, %v121
    %v525 = vpack.c.bf16 %v519, %v517
    %v526 = vpack.c.bf16 %v520, %v518
    %v527 = vpack.c.bf16 %v523, %v521
    %v528 = vpack.c.bf16 %v524, %v522
    %v529 = vld [vmem:[#allocation10] sm:$0xff]
    %v530 = vld [vmem:[#allocation10 + $0x8] sm:$0xff]
    %v531 = vld [vmem:[#allocation10 + $0x10] sm:$0xff]
    %v532 = vld [vmem:[#allocation10 + $0x18] sm:$0xff]
    %v533 = vld [vmem:[#allocation10 + $0x20] sm:$0xff]
    %v534 = vld [vmem:[#allocation10 + $0x28] sm:$0xff]
    %v535 = vld [vmem:[#allocation10 + $0x30] sm:$0xff]
    %v536 = vld [vmem:[#allocation10 + $0x38] sm:$0xff]
    %v537 = vld [vmem:[#allocation10 + $0x40] sm:$0xff]
    %v538 = vld [vmem:[#allocation10 + $0x48] sm:$0xff]
    %v539 = vld [vmem:[#allocation10 + $0x50] sm:$0xff]
    %v540 = vld [vmem:[#allocation10 + $0x58] sm:$0xff]
    %v541 = vld [vmem:[#allocation10 + $0x60] sm:$0xff]
    %v542 = vld [vmem:[#allocation10 + $0x68] sm:$0xff]
    %v543 = vld [vmem:[#allocation10 + $0x70] sm:$0xff]
    %v544 = vld [vmem:[#allocation10 + $0x78] sm:$0xff]
    %v545 = vld [vmem:[#allocation10 + $0x80] sm:$0xff]
    %v546 = vld [vmem:[#allocation10 + $0x88] sm:$0xff]
    %v547 = vld [vmem:[#allocation10 + $0x90] sm:$0xff]
    %v548 = vld [vmem:[#allocation10 + $0x98] sm:$0xff]
    %v549 = vld [vmem:[#allocation10 + $0xa0] sm:$0xff]
    %v550 = vld [vmem:[#allocation10 + $0xa8] sm:$0xff]
    %v551 = vld [vmem:[#allocation10 + $0xb0] sm:$0xff]
    %v552 = vld [vmem:[#allocation10 + $0xb8] sm:$0xff]
    %v553 = vld [vmem:[#allocation10 + $0xc0] sm:$0xff]
    %v554 = vld [vmem:[#allocation10 + $0xc8] sm:$0xff]
    %v555 = vld [vmem:[#allocation10 + $0xd0] sm:$0xff]
    %v556 = vld [vmem:[#allocation10 + $0xd8] sm:$0xff]
    %v557 = vld [vmem:[#allocation10 + $0xe0] sm:$0xff]
    %v558 = vld [vmem:[#allocation10 + $0xe8] sm:$0xff]
    %v559 = vld [vmem:[#allocation10 + $0xf0] sm:$0xff]
    %v560 = vld [vmem:[#allocation10 + $0xf8] sm:$0xff]
    %v561 = vld [vmem:[#allocation10 + $0x100] sm:$0xff]
    %v562 = vld [vmem:[#allocation10 + $0x108] sm:$0xff]
    %v563 = vld [vmem:[#allocation10 + $0x110] sm:$0xff]
    %v564 = vld [vmem:[#allocation10 + $0x118] sm:$0xff]
    %v565 = vld [vmem:[#allocation10 + $0x120] sm:$0xff]
    %v566 = vld [vmem:[#allocation10 + $0x128] sm:$0xff]
    %v567 = vld [vmem:[#allocation10 + $0x130] sm:$0xff]
    %v568 = vld [vmem:[#allocation10 + $0x138] sm:$0xff]
    %v569 = vld [vmem:[#allocation10 + $0x140] sm:$0xff]
    %v570 = vld [vmem:[#allocation10 + $0x148] sm:$0xff]
    %v571 = vld [vmem:[#allocation10 + $0x150] sm:$0xff]
    %v572 = vld [vmem:[#allocation10 + $0x158] sm:$0xff]
    %v573 = vld [vmem:[#allocation10 + $0x160] sm:$0xff]
    %v574 = vld [vmem:[#allocation10 + $0x168] sm:$0xff]
    %v575 = vld [vmem:[#allocation10 + $0x170] sm:$0xff]
    %v576 = vld [vmem:[#allocation10 + $0x178] sm:$0xff]
    %v577 = vld [vmem:[#allocation10 + $0x180] sm:$0xff]
    %v578 = vld [vmem:[#allocation10 + $0x188] sm:$0xff]
    %v579 = vld [vmem:[#allocation10 + $0x190] sm:$0xff]
    %v580 = vld [vmem:[#allocation10 + $0x198] sm:$0xff]
    %v581 = vld [vmem:[#allocation10 + $0x1a0] sm:$0xff]
    %v582 = vld [vmem:[#allocation10 + $0x1a8] sm:$0xff]
    %v583 = vld [vmem:[#allocation10 + $0x1b0] sm:$0xff]
    %v584 = vld [vmem:[#allocation10 + $0x1b8] sm:$0xff]
    %v585 = vld [vmem:[#allocation10 + $0x1c0] sm:$0xff]
    %v586 = vld [vmem:[#allocation10 + $0x1c8] sm:$0xff]
    %v587 = vld [vmem:[#allocation10 + $0x1d0] sm:$0xff]
    %v588 = vld [vmem:[#allocation10 + $0x1d8] sm:$0xff]
    %v589 = vld [vmem:[#allocation10 + $0x1e0] sm:$0xff]
    %v590 = vld [vmem:[#allocation10 + $0x1e8] sm:$0xff]
    %v591 = vld [vmem:[#allocation10 + $0x1f0] sm:$0xff]
    %v592 = vld [vmem:[#allocation10 + $0x1f8] sm:$0xff]
    %v593 = vld [vmem:[#allocation10 + $0x200] sm:$0xff]
    %v594 = vld [vmem:[#allocation10 + $0x208] sm:$0xff]
    %v595 = vld [vmem:[#allocation10 + $0x210] sm:$0xff]
    %v596 = vld [vmem:[#allocation10 + $0x218] sm:$0xff]
    %v597 = vld [vmem:[#allocation10 + $0x220] sm:$0xff]
    %v598 = vld [vmem:[#allocation10 + $0x228] sm:$0xff]
    %v599 = vld [vmem:[#allocation10 + $0x230] sm:$0xff]
    %v600 = vld [vmem:[#allocation10 + $0x238] sm:$0xff]
    %v601 = vld [vmem:[#allocation10 + $0x240] sm:$0xff]
    %v602 = vld [vmem:[#allocation10 + $0x248] sm:$0xff]
    %v603 = vld [vmem:[#allocation10 + $0x250] sm:$0xff]
    %v604 = vld [vmem:[#allocation10 + $0x258] sm:$0xff]
    %v605 = vld [vmem:[#allocation10 + $0x260] sm:$0xff]
    %v606 = vld [vmem:[#allocation10 + $0x268] sm:$0xff]
    %v607 = vld [vmem:[#allocation10 + $0x270] sm:$0xff]
    %v608 = vld [vmem:[#allocation10 + $0x278] sm:$0xff]
    %v609 = vld [vmem:[#allocation10 + $0x280] sm:$0xff]
    %v610 = vld [vmem:[#allocation10 + $0x288] sm:$0xff]
    %v611 = vld [vmem:[#allocation10 + $0x290] sm:$0xff]
    %v612 = vld [vmem:[#allocation10 + $0x298] sm:$0xff]
    %v613 = vld [vmem:[#allocation10 + $0x2a0] sm:$0xff]
    %v614 = vld [vmem:[#allocation10 + $0x2a8] sm:$0xff]
    %v615 = vld [vmem:[#allocation10 + $0x2b0] sm:$0xff]
    %v616 = vld [vmem:[#allocation10 + $0x2b8] sm:$0xff]
    %v617 = vld [vmem:[#allocation10 + $0x2c0] sm:$0xff]
    %v618 = vld [vmem:[#allocation10 + $0x2c8] sm:$0xff]
    %v619 = vld [vmem:[#allocation10 + $0x2d0] sm:$0xff]
    %v620 = vld [vmem:[#allocation10 + $0x2d8] sm:$0xff]
    %v621 = vld [vmem:[#allocation10 + $0x2e0] sm:$0xff]
    %v622 = vld [vmem:[#allocation10 + $0x2e8] sm:$0xff]
    %v623 = vld [vmem:[#allocation10 + $0x2f0] sm:$0xff]
    %v624 = vld [vmem:[#allocation10 + $0x2f8] sm:$0xff]
    %v625 = vld [vmem:[%s6] sm:$0x3f]
    %v627 = vlaneseq
    %v628 = vshrl.u32 %v627, 7
    %v629 = vsub.s32 0, %v628
    %v630 = vrot.slane %v625, %v629
    %v631 = vlaneseq
    %v632 = vshrl.u32 %v631, 7
    %v633 = vsub.s32 1, %v632
    %v634 = vrot.slane %v625, %v633
    %v635 = vlaneseq
    %v636 = vshrl.u32 %v635, 7
    %v637 = vsub.s32 2, %v636
    %v638 = vrot.slane %v625, %v637
    %v639 = vlaneseq
    %v640 = vshrl.u32 %v639, 7
    %v641 = vsub.s32 3, %v640
    %v642 = vrot.slane %v625, %v641
    %v643 = vlaneseq
    %v644 = vshrl.u32 %v643, 7
    %v645 = vsub.s32 4, %v644
    %v646 = vrot.slane %v625, %v645
    %v647 = vlaneseq
    %v648 = vshrl.u32 %v647, 7
    %v649 = vsub.s32 5, %v648
    %v650 = vrot.slane %v625, %v649
    %v753 = vunpack.c.l.b16 %v529
    %v754 = vunpack.c.h.b16 %v529
    %v755 = vunpack.c.l.b16 %v530
    %v756 = vunpack.c.h.b16 %v530
    %v757 = vunpack.c.l.b16 %v531
    %v758 = vunpack.c.h.b16 %v531
    %v759 = vunpack.c.l.b16 %v532
    %v760 = vunpack.c.h.b16 %v532
    %v761 = vunpack.c.l.b16 %v533
    %v762 = vunpack.c.h.b16 %v533
    %v763 = vunpack.c.l.b16 %v534
    %v764 = vunpack.c.h.b16 %v534
    %v765 = vunpack.c.l.b16 %v535
    %v766 = vunpack.c.h.b16 %v535
    %v767 = vunpack.c.l.b16 %v536
    %v768 = vunpack.c.h.b16 %v536
    %v769 = vunpack.c.l.b16 %v537
    %v770 = vunpack.c.h.b16 %v537
    %v771 = vunpack.c.l.b16 %v538
    %v772 = vunpack.c.h.b16 %v538
    %v773 = vunpack.c.l.b16 %v539
    %v774 = vunpack.c.h.b16 %v539
    %v775 = vunpack.c.l.b16 %v540
    %v776 = vunpack.c.h.b16 %v540
    %v777 = vunpack.c.l.b16 %v541
    %v778 = vunpack.c.h.b16 %v541
    %v779 = vunpack.c.l.b16 %v542
    %v780 = vunpack.c.h.b16 %v542
    %v781 = vunpack.c.l.b16 %v543
    %v782 = vunpack.c.h.b16 %v543
    %v783 = vunpack.c.l.b16 %v544
    %v784 = vunpack.c.h.b16 %v544
    %v785 = vunpack.c.l.b16 %v545
    %v786 = vunpack.c.h.b16 %v545
    %v787 = vunpack.c.l.b16 %v546
    %v788 = vunpack.c.h.b16 %v546
    %v789 = vunpack.c.l.b16 %v547
    %v790 = vunpack.c.h.b16 %v547
    %v791 = vunpack.c.l.b16 %v548
    %v792 = vunpack.c.h.b16 %v548
    %v793 = vunpack.c.l.b16 %v549
    %v794 = vunpack.c.h.b16 %v549
    %v795 = vunpack.c.l.b16 %v550
    %v796 = vunpack.c.h.b16 %v550
    %v797 = vunpack.c.l.b16 %v551
    %v798 = vunpack.c.h.b16 %v551
    %v799 = vunpack.c.l.b16 %v552
    %v800 = vunpack.c.h.b16 %v552
    %v801 = vunpack.c.l.b16 %v553
    %v802 = vunpack.c.h.b16 %v553
    %v803 = vunpack.c.l.b16 %v554
    %v804 = vunpack.c.h.b16 %v554
    %v805 = vunpack.c.l.b16 %v555
    %v806 = vunpack.c.h.b16 %v555
    %v807 = vunpack.c.l.b16 %v556
    %v808 = vunpack.c.h.b16 %v556
    %v809 = vunpack.c.l.b16 %v557
    %v810 = vunpack.c.h.b16 %v557
    %v811 = vunpack.c.l.b16 %v558
    %v812 = vunpack.c.h.b16 %v558
    %v813 = vunpack.c.l.b16 %v559
    %v814 = vunpack.c.h.b16 %v559
    %v815 = vunpack.c.l.b16 %v560
    %v816 = vunpack.c.h.b16 %v560
    %v817 = vunpack.c.l.b16 %v561
    %v818 = vunpack.c.h.b16 %v561
    %v819 = vunpack.c.l.b16 %v562
    %v820 = vunpack.c.h.b16 %v562
    %v821 = vunpack.c.l.b16 %v563
    %v822 = vunpack.c.h.b16 %v563
    %v823 = vunpack.c.l.b16 %v564
    %v824 = vunpack.c.h.b16 %v564
    %v825 = vunpack.c.l.b16 %v565
    %v826 = vunpack.c.h.b16 %v565
    %v827 = vunpack.c.l.b16 %v566
    %v828 = vunpack.c.h.b16 %v566
    %v829 = vunpack.c.l.b16 %v567
    %v830 = vunpack.c.h.b16 %v567
    %v831 = vunpack.c.l.b16 %v568
    %v832 = vunpack.c.h.b16 %v568
    %v833 = vunpack.c.l.b16 %v569
    %v834 = vunpack.c.h.b16 %v569
    %v835 = vunpack.c.l.b16 %v570
    %v836 = vunpack.c.h.b16 %v570
    %v837 = vunpack.c.l.b16 %v571
    %v838 = vunpack.c.h.b16 %v571
    %v839 = vunpack.c.l.b16 %v572
    %v840 = vunpack.c.h.b16 %v572
    %v841 = vunpack.c.l.b16 %v573
    %v842 = vunpack.c.h.b16 %v573
    %v843 = vunpack.c.l.b16 %v574
    %v844 = vunpack.c.h.b16 %v574
    %v845 = vunpack.c.l.b16 %v575
    %v846 = vunpack.c.h.b16 %v575
    %v847 = vunpack.c.l.b16 %v576
    %v848 = vunpack.c.h.b16 %v576
    %v849 = vunpack.c.l.b16 %v577
    %v850 = vunpack.c.h.b16 %v577
    %v851 = vunpack.c.l.b16 %v578
    %v852 = vunpack.c.h.b16 %v578
    %v853 = vunpack.c.l.b16 %v579
    %v854 = vunpack.c.h.b16 %v579
    %v855 = vunpack.c.l.b16 %v580
    %v856 = vunpack.c.h.b16 %v580
    %v857 = vunpack.c.l.b16 %v581
    %v858 = vunpack.c.h.b16 %v581
    %v859 = vunpack.c.l.b16 %v582
    %v860 = vunpack.c.h.b16 %v582
    %v861 = vunpack.c.l.b16 %v583
    %v862 = vunpack.c.h.b16 %v583
    %v863 = vunpack.c.l.b16 %v584
    %v864 = vunpack.c.h.b16 %v584
    %v865 = vunpack.c.l.b16 %v585
    %v866 = vunpack.c.h.b16 %v585
    %v867 = vunpack.c.l.b16 %v586
    %v868 = vunpack.c.h.b16 %v586
    %v869 = vunpack.c.l.b16 %v587
    %v870 = vunpack.c.h.b16 %v587
    %v871 = vunpack.c.l.b16 %v588
    %v872 = vunpack.c.h.b16 %v588
    %v873 = vunpack.c.l.b16 %v589
    %v874 = vunpack.c.h.b16 %v589
    %v875 = vunpack.c.l.b16 %v590
    %v876 = vunpack.c.h.b16 %v590
    %v877 = vunpack.c.l.b16 %v591
    %v878 = vunpack.c.h.b16 %v591
    %v879 = vunpack.c.l.b16 %v592
    %v880 = vunpack.c.h.b16 %v592
    %v881 = vunpack.c.l.b16 %v593
    %v882 = vunpack.c.h.b16 %v593
    %v883 = vunpack.c.l.b16 %v594
    %v884 = vunpack.c.h.b16 %v594
    %v885 = vunpack.c.l.b16 %v595
    %v886 = vunpack.c.h.b16 %v595
    %v887 = vunpack.c.l.b16 %v596
    %v888 = vunpack.c.h.b16 %v596
    %v889 = vunpack.c.l.b16 %v597
    %v890 = vunpack.c.h.b16 %v597
    %v891 = vunpack.c.l.b16 %v598
    %v892 = vunpack.c.h.b16 %v598
    %v893 = vunpack.c.l.b16 %v599
    %v894 = vunpack.c.h.b16 %v599
    %v895 = vunpack.c.l.b16 %v600
    %v896 = vunpack.c.h.b16 %v600
    %v897 = vunpack.c.l.b16 %v601
    %v898 = vunpack.c.h.b16 %v601
    %v899 = vunpack.c.l.b16 %v602
    %v900 = vunpack.c.h.b16 %v602
    %v901 = vunpack.c.l.b16 %v603
    %v902 = vunpack.c.h.b16 %v603
    %v903 = vunpack.c.l.b16 %v604
    %v904 = vunpack.c.h.b16 %v604
    %v905 = vunpack.c.l.b16 %v605
    %v906 = vunpack.c.h.b16 %v605
    %v907 = vunpack.c.l.b16 %v606
    %v908 = vunpack.c.h.b16 %v606
    %v909 = vunpack.c.l.b16 %v607
    %v910 = vunpack.c.h.b16 %v607
    %v911 = vunpack.c.l.b16 %v608
    %v912 = vunpack.c.h.b16 %v608
    %v913 = vunpack.c.l.b16 %v609
    %v914 = vunpack.c.h.b16 %v609
    %v915 = vunpack.c.l.b16 %v610
    %v916 = vunpack.c.h.b16 %v610
    %v917 = vunpack.c.l.b16 %v611
    %v918 = vunpack.c.h.b16 %v611
    %v919 = vunpack.c.l.b16 %v612
    %v920 = vunpack.c.h.b16 %v612
    %v921 = vunpack.c.l.b16 %v613
    %v922 = vunpack.c.h.b16 %v613
    %v923 = vunpack.c.l.b16 %v614
    %v924 = vunpack.c.h.b16 %v614
    %v925 = vunpack.c.l.b16 %v615
    %v926 = vunpack.c.h.b16 %v615
    %v927 = vunpack.c.l.b16 %v616
    %v928 = vunpack.c.h.b16 %v616
    %v929 = vunpack.c.l.b16 %v617
    %v930 = vunpack.c.h.b16 %v617
    %v931 = vunpack.c.l.b16 %v618
    %v932 = vunpack.c.h.b16 %v618
    %v933 = vunpack.c.l.b16 %v619
    %v934 = vunpack.c.h.b16 %v619
    %v935 = vunpack.c.l.b16 %v620
    %v936 = vunpack.c.h.b16 %v620
    %v937 = vunpack.c.l.b16 %v621
    %v938 = vunpack.c.h.b16 %v621
    %v939 = vunpack.c.l.b16 %v622
    %v940 = vunpack.c.h.b16 %v622
    %v941 = vunpack.c.l.b16 %v623
    %v942 = vunpack.c.h.b16 %v623
    %v943 = vunpack.c.l.b16 %v624
    %v944 = vunpack.c.h.b16 %v624
    %v945 = vpack.c.b16 %v759, %v753
    %v946 = vpack.c.b16 %v760, %v754
    %v947 = vpack.c.b16 %v761, %v755
    %v948 = vpack.c.b16 %v762, %v756
    %v949 = vpack.c.b16 %v763, %v757
    %v950 = vpack.c.b16 %v764, %v758
    %v951 = vpack.c.b16 %v771, %v765
    %v952 = vpack.c.b16 %v772, %v766
    %v953 = vpack.c.b16 %v773, %v767
    %v954 = vpack.c.b16 %v774, %v768
    %v955 = vpack.c.b16 %v775, %v769
    %v956 = vpack.c.b16 %v776, %v770
    %v957 = vpack.c.b16 %v783, %v777
    %v958 = vpack.c.b16 %v784, %v778
    %v959 = vpack.c.b16 %v785, %v779
    %v960 = vpack.c.b16 %v786, %v780
    %v961 = vpack.c.b16 %v787, %v781
    %v962 = vpack.c.b16 %v788, %v782
    %v963 = vpack.c.b16 %v795, %v789
    %v964 = vpack.c.b16 %v796, %v790
    %v965 = vpack.c.b16 %v797, %v791
    %v966 = vpack.c.b16 %v798, %v792
    %v967 = vpack.c.b16 %v799, %v793
    %v968 = vpack.c.b16 %v800, %v794
    %v969 = vpack.c.b16 %v807, %v801
    %v970 = vpack.c.b16 %v808, %v802
    %v971 = vpack.c.b16 %v809, %v803
    %v972 = vpack.c.b16 %v810, %v804
    %v973 = vpack.c.b16 %v811, %v805
    %v974 = vpack.c.b16 %v812, %v806
    %v975 = vpack.c.b16 %v819, %v813
    %v976 = vpack.c.b16 %v820, %v814
    %v977 = vpack.c.b16 %v821, %v815
    %v978 = vpack.c.b16 %v822, %v816
    %v979 = vpack.c.b16 %v823, %v817
    %v980 = vpack.c.b16 %v824, %v818
    %v981 = vpack.c.b16 %v831, %v825
    %v982 = vpack.c.b16 %v832, %v826
    %v983 = vpack.c.b16 %v833, %v827
    %v984 = vpack.c.b16 %v834, %v828
    %v985 = vpack.c.b16 %v835, %v829
    %v986 = vpack.c.b16 %v836, %v830
    %v987 = vpack.c.b16 %v843, %v837
    %v988 = vpack.c.b16 %v844, %v838
    %v989 = vpack.c.b16 %v845, %v839
    %v990 = vpack.c.b16 %v846, %v840
    %v991 = vpack.c.b16 %v847, %v841
    %v992 = vpack.c.b16 %v848, %v842
    %v993 = vpack.c.b16 %v855, %v849
    %v994 = vpack.c.b16 %v856, %v850
    %v995 = vpack.c.b16 %v857, %v851
    %v996 = vpack.c.b16 %v858, %v852
    %v997 = vpack.c.b16 %v859, %v853
    %v998 = vpack.c.b16 %v860, %v854
    %v999 = vpack.c.b16 %v867, %v861
    %v1000 = vpack.c.b16 %v868, %v862
    %v1001 = vpack.c.b16 %v869, %v863
    %v1002 = vpack.c.b16 %v870, %v864
    %v1003 = vpack.c.b16 %v871, %v865
    %v1004 = vpack.c.b16 %v872, %v866
    %v1005 = vpack.c.b16 %v879, %v873
    %v1006 = vpack.c.b16 %v880, %v874
    %v1007 = vpack.c.b16 %v881, %v875
    %v1008 = vpack.c.b16 %v882, %v876
    %v1009 = vpack.c.b16 %v883, %v877
    %v1010 = vpack.c.b16 %v884, %v878
    %v1011 = vpack.c.b16 %v891, %v885
    %v1012 = vpack.c.b16 %v892, %v886
    %v1013 = vpack.c.b16 %v893, %v887
    %v1014 = vpack.c.b16 %v894, %v888
    %v1015 = vpack.c.b16 %v895, %v889
    %v1016 = vpack.c.b16 %v896, %v890
    %v1017 = vpack.c.b16 %v903, %v897
    %v1018 = vpack.c.b16 %v904, %v898
    %v1019 = vpack.c.b16 %v905, %v899
    %v1020 = vpack.c.b16 %v906, %v900
    %v1021 = vpack.c.b16 %v907, %v901
    %v1022 = vpack.c.b16 %v908, %v902
    %v1023 = vpack.c.b16 %v915, %v909
    %v1024 = vpack.c.b16 %v916, %v910
    %v1025 = vpack.c.b16 %v917, %v911
    %v1026 = vpack.c.b16 %v918, %v912
    %v1027 = vpack.c.b16 %v919, %v913
    %v1028 = vpack.c.b16 %v920, %v914
    %v1029 = vpack.c.b16 %v927, %v921
    %v1030 = vpack.c.b16 %v928, %v922
    %v1031 = vpack.c.b16 %v929, %v923
    %v1032 = vpack.c.b16 %v930, %v924
    %v1033 = vpack.c.b16 %v931, %v925
    %v1034 = vpack.c.b16 %v932, %v926
    %v1035 = vpack.c.b16 %v939, %v933
    %v1036 = vpack.c.b16 %v940, %v934
    %v1037 = vpack.c.b16 %v941, %v935
    %v1038 = vpack.c.b16 %v942, %v936
    %v1039 = vpack.c.b16 %v943, %v937
    %v1040 = vpack.c.b16 %v944, %v938
    %1137 = vmatprep.subr.bf16.mxu0 %v988
    %1138 = vmatpush1.bf16.msra.mxu0 %v987
    %1139 = vmatprep.subr.bf16.mxu0 %v982
    %1140 = vmatpush1.bf16.msra.mxu0 %v981
    %1141 = vmatprep.subr.bf16.mxu0 %v976
    %1142 = vmatpush1.bf16.msra.mxu0 %v975
    %1143 = vmatprep.subr.bf16.mxu0 %v970
    %1144 = vmatpush1.bf16.msra.mxu0 %v969
    %1145 = vmatprep.subr.bf16.mxu0 %v964
    %1146 = vmatpush1.bf16.msra.mxu0 %v963
    %1147 = vmatprep.subr.bf16.mxu0 %v958
    %1148 = vmatpush1.bf16.msra.mxu0 %v957
    %1149 = vmatprep.subr.bf16.mxu0 %v952
    %1150 = vmatpush1.bf16.msra.mxu0 %v951
    %1151 = vmatprep.subr.bf16.mxu0 %v946
    %1152 = vmatpush1.bf16.msra.mxu0 %v945
    %1153 = vmatprep.subr.bf16.mxu0 %v1036
    %1154 = vmatpush2.bf16.msra.mxu0 %v1035
    %1155 = vmatprep.subr.bf16.mxu0 %v1030
    %1156 = vmatpush2.bf16.msra.mxu0 %v1029
    %1157 = vmatprep.subr.bf16.mxu0 %v1024
    %1158 = vmatpush2.bf16.msra.mxu0 %v1023
    %1159 = vmatprep.subr.bf16.mxu0 %v1018
    %1160 = vmatpush2.bf16.msra.mxu0 %v1017
    %1161 = vmatprep.subr.bf16.mxu0 %v1012
    %1162 = vmatpush2.bf16.msra.mxu0 %v1011
    %1163 = vmatprep.subr.bf16.mxu0 %v1006
    %1164 = vmatpush2.bf16.msra.mxu0 %v1005
    %1165 = vmatprep.subr.bf16.mxu0 %v1000
    %1166 = vmatpush2.bf16.msra.mxu0 %v999
    %1167 = vmatprep.subr.bf16.mxu0 %v994
    %1168 = vmatpush2.bf16.msra.mxu0 %v993
    %1169 = vmatprep.mubr.bf16.mxu0 %v526
    %1170 = vmatmul.mubr.bf16.gmra.mxu0 %v525
    %v1171 = vpop.f32.mrf.mxu0
    %v1172 = vadd.f32 %v630, %v1171
    %v1173 = vpop.f32.mrf.mxu0
    %v1174 = vadd.f32 %v634, %v1173
    %v1175 = vpop.f32.mrf.mxu0
    %v1176 = vadd.f32 %v630, %v1175
    %v1177 = vpop.f32.mrf.mxu0
    %v1178 = vadd.f32 %v634, %v1177
    %1179 = vmatprep.mubr.bf16.mxu0 %v528
    %1180 = vmatmul.mubr.bf16.gmra.mxu0 %v527
    %v1181 = vpop.f32.mrf.mxu0
    %v1182 = vadd.f32 %v630, %v1181
    %v1183 = vpop.f32.mrf.mxu0
    %v1184 = vadd.f32 %v634, %v1183
    %v1185 = vpop.f32.mrf.mxu0
    %v1186 = vadd.f32 %v630, %v1185
    %v1187 = vpop.f32.mrf.mxu0
    %v1188 = vadd.f32 %v634, %v1187
    %1189 = vdwg.mxu0
    %1190 = vmatprep.subr.bf16.mxu0 %v990
    %1191 = vmatpush1.bf16.msra.mxu0 %v989
    %1192 = vmatprep.subr.bf16.mxu0 %v984
    %1193 = vmatpush1.bf16.msra.mxu0 %v983
    %1194 = vmatprep.subr.bf16.mxu0 %v978
    %1195 = vmatpush1.bf16.msra.mxu0 %v977
    %1196 = vmatprep.subr.bf16.mxu0 %v972
    %1197 = vmatpush1.bf16.msra.mxu0 %v971
    %1198 = vmatprep.subr.bf16.mxu0 %v966
    %1199 = vmatpush1.bf16.msra.mxu0 %v965
    %1200 = vmatprep.subr.bf16.mxu0 %v960
    %1201 = vmatpush1.bf16.msra.mxu0 %v959
    %1202 = vmatprep.subr.bf16.mxu0 %v954
    %1203 = vmatpush1.bf16.msra.mxu0 %v953
    %1204 = vmatprep.subr.bf16.mxu0 %v948
    %1205 = vmatpush1.bf16.msra.mxu0 %v947
    %1206 = vmatprep.subr.bf16.mxu0 %v1038
    %1207 = vmatpush2.bf16.msra.mxu0 %v1037
    %1208 = vmatprep.subr.bf16.mxu0 %v1032
    %1209 = vmatpush2.bf16.msra.mxu0 %v1031
    %1210 = vmatprep.subr.bf16.mxu0 %v1026
    %1211 = vmatpush2.bf16.msra.mxu0 %v1025
    %1212 = vmatprep.subr.bf16.mxu0 %v1020
    %1213 = vmatpush2.bf16.msra.mxu0 %v1019
    %1214 = vmatprep.subr.bf16.mxu0 %v1014
    %1215 = vmatpush2.bf16.msra.mxu0 %v1013
    %1216 = vmatprep.subr.bf16.mxu0 %v1008
    %1217 = vmatpush2.bf16.msra.mxu0 %v1007
    %1218 = vmatprep.subr.bf16.mxu0 %v1002
    %1219 = vmatpush2.bf16.msra.mxu0 %v1001
    %1220 = vmatprep.subr.bf16.mxu0 %v996
    %1221 = vmatpush2.bf16.msra.mxu0 %v995
    %1222 = vmatprep.mubr.bf16.mxu0 %v526
    %1223 = vmatmul.mubr.bf16.gmra.mxu0 %v525
    %v1224 = vpop.f32.mrf.mxu0
    %v1225 = vadd.f32 %v638, %v1224
    %v1226 = vpop.f32.mrf.mxu0
    %v1227 = vadd.f32 %v642, %v1226
    %v1228 = vpop.f32.mrf.mxu0
    %v1229 = vadd.f32 %v638, %v1228
    %v1230 = vpop.f32.mrf.mxu0
    %v1231 = vadd.f32 %v642, %v1230
    %1232 = vmatprep.mubr.bf16.mxu0 %v528
    %1233 = vmatmul.mubr.bf16.gmra.mxu0 %v527
    %v1234 = vpop.f32.mrf.mxu0
    %v1235 = vadd.f32 %v638, %v1234
    %v1236 = vpop.f32.mrf.mxu0
    %v1237 = vadd.f32 %v642, %v1236
    %v1238 = vpop.f32.mrf.mxu0
    %v1239 = vadd.f32 %v638, %v1238
    %v1240 = vpop.f32.mrf.mxu0
    %v1241 = vadd.f32 %v642, %v1240
    %1242 = vdwg.mxu0
    %1243 = vmatprep.subr.bf16.mxu0 %v992
    %1244 = vmatpush1.bf16.msra.mxu0 %v991
    %1245 = vmatprep.subr.bf16.mxu0 %v986
    %1246 = vmatpush1.bf16.msra.mxu0 %v985
    %1247 = vmatprep.subr.bf16.mxu0 %v980
    %1248 = vmatpush1.bf16.msra.mxu0 %v979
    %1249 = vmatprep.subr.bf16.mxu0 %v974
    %1250 = vmatpush1.bf16.msra.mxu0 %v973
    %1251 = vmatprep.subr.bf16.mxu0 %v968
    %1252 = vmatpush1.bf16.msra.mxu0 %v967
    %1253 = vmatprep.subr.bf16.mxu0 %v962
    %1254 = vmatpush1.bf16.msra.mxu0 %v961
    %1255 = vmatprep.subr.bf16.mxu0 %v956
    %1256 = vmatpush1.bf16.msra.mxu0 %v955
    %1257 = vmatprep.subr.bf16.mxu0 %v950
    %1258 = vmatpush1.bf16.msra.mxu0 %v949
    %1259 = vmatprep.subr.bf16.mxu0 %v1040
    %1260 = vmatpush2.bf16.msra.mxu0 %v1039
    %1261 = vmatprep.subr.bf16.mxu0 %v1034
    %1262 = vmatpush2.bf16.msra.mxu0 %v1033
    %1263 = vmatprep.subr.bf16.mxu0 %v1028
    %1264 = vmatpush2.bf16.msra.mxu0 %v1027
    %1265 = vmatprep.subr.bf16.mxu0 %v1022
    %1266 = vmatpush2.bf16.msra.mxu0 %v1021
    %1267 = vmatprep.subr.bf16.mxu0 %v1016
    %1268 = vmatpush2.bf16.msra.mxu0 %v1015
    %1269 = vmatprep.subr.bf16.mxu0 %v1010
    %1270 = vmatpush2.bf16.msra.mxu0 %v1009
    %1271 = vmatprep.subr.bf16.mxu0 %v1004
    %1272 = vmatpush2.bf16.msra.mxu0 %v1003
    %1273 = vmatprep.subr.bf16.mxu0 %v998
    %1274 = vmatpush2.bf16.msra.mxu0 %v997
    %1275 = vmatprep.mubr.bf16.mxu0 %v526
    %1276 = vmatmul.mubr.bf16.gmra.mxu0 %v525
    %v1277 = vpop.f32.mrf.mxu0
    %v1278 = vadd.f32 %v646, %v1277
    %v1279 = vpop.f32.mrf.mxu0
    %v1280 = vadd.f32 %v650, %v1279
    %v1281 = vpop.f32.mrf.mxu0
    %v1282 = vadd.f32 %v646, %v1281
    %v1283 = vpop.f32.mrf.mxu0
    %v1284 = vadd.f32 %v650, %v1283
    %1285 = vmatprep.mubr.bf16.mxu0 %v528
    %1286 = vmatmul.mubr.bf16.gmra.mxu0 %v527
    %v1287 = vpop.f32.mrf.mxu0
    %v1288 = vadd.f32 %v646, %v1287
    %v1289 = vpop.f32.mrf.mxu0
    %v1290 = vadd.f32 %v650, %v1289
    %v1291 = vpop.f32.mrf.mxu0
    %v1292 = vadd.f32 %v646, %v1291
    %v1293 = vpop.f32.mrf.mxu0
    %v1294 = vadd.f32 %v650, %v1293
    %1295 = vdwg.mxu0
    %1300 = vrot.lane.b32.xlu0 %v1172, 96
    %v1301 = vpop.permute.xlu0 %1300
    %1302 = vrot.lane.b32.xlu0 %v1176, 96
    %v1303 = vpop.permute.xlu0 %1302
    %1304 = vrot.lane.b32.xlu0 %v1182, 96
    %v1305 = vpop.permute.xlu0 %1304
    %1306 = vrot.lane.b32.xlu0 %v1186, 96
    %v1307 = vpop.permute.xlu0 %1306
    %1312 = vrot.lane.b32.xlu0 %v1172, 64
    %v1313 = vpop.permute.xlu0 %1312
    %1314 = vrot.lane.b32.xlu0 %v1176, 64
    %v1315 = vpop.permute.xlu0 %1314
    %1316 = vrot.lane.b32.xlu0 %v1182, 64
    %v1317 = vpop.permute.xlu0 %1316
    %1318 = vrot.lane.b32.xlu0 %v1186, 64
    %v1319 = vpop.permute.xlu0 %1318
    %1324 = vrot.lane.b32.xlu0 %v1172, 32
    %v1325 = vpop.permute.xlu0 %1324
    %1326 = vrot.lane.b32.xlu0 %v1176, 32
    %v1327 = vpop.permute.xlu0 %1326
    %1328 = vrot.lane.b32.xlu0 %v1182, 32
    %v1329 = vpop.permute.xlu0 %1328
    %1330 = vrot.lane.b32.xlu0 %v1186, 32
    %v1331 = vpop.permute.xlu0 %1330
    %1340 = vrot.lane.b32.xlu0 %v1174, 96
    %v1341 = vpop.permute.xlu0 %1340
    %1342 = vrot.lane.b32.xlu0 %v1178, 96
    %v1343 = vpop.permute.xlu0 %1342
    %1344 = vrot.lane.b32.xlu0 %v1184, 96
    %v1345 = vpop.permute.xlu0 %1344
    %1346 = vrot.lane.b32.xlu0 %v1188, 96
    %v1347 = vpop.permute.xlu0 %1346
    %1352 = vrot.lane.b32.xlu0 %v1174, 64
    %v1353 = vpop.permute.xlu0 %1352
    %1354 = vrot.lane.b32.xlu0 %v1178, 64
    %v1355 = vpop.permute.xlu0 %1354
    %1356 = vrot.lane.b32.xlu0 %v1184, 64
    %v1357 = vpop.permute.xlu0 %1356
    %1358 = vrot.lane.b32.xlu0 %v1188, 64
    %v1359 = vpop.permute.xlu0 %1358
    %1364 = vrot.lane.b32.xlu0 %v1174, 32
    %v1365 = vpop.permute.xlu0 %1364
    %1366 = vrot.lane.b32.xlu0 %v1178, 32
    %v1367 = vpop.permute.xlu0 %1366
    %1368 = vrot.lane.b32.xlu0 %v1184, 32
    %v1369 = vpop.permute.xlu0 %1368
    %1370 = vrot.lane.b32.xlu0 %v1188, 32
    %v1371 = vpop.permute.xlu0 %1370
    %v1376 = vcombine.low %v1172, %v1313
    %v1377 = vcombine.high %v1172, %v1313
    %v1379 = vunpack.c.l.s4 1983009808
    %v1380 = vunpack.c.0.s8 %v1379
    %v1381 = vlaneseq
    %v1382 = vshrl.u32 %v1381, 7
    %v1383 = vsub.s32 %v1380, %v1382
    %v1384 = vrot.slane %v1376, %v1383
    %v1386 = vunpack.c.l.s4 1983009808
    %v1387 = vunpack.c.0.s8 %v1386
    %v1388 = vlaneseq
    %v1389 = vshrl.u32 %v1388, 7
    %v1390 = vsub.s32 %v1387, %v1389
    %v1391 = vrot.slane %v1377, %v1390
    %v1392 = vcombine.low %v1301, %v1325
    %v1393 = vcombine.high %v1301, %v1325
    %v1395 = vunpack.c.l.s4 1983009808
    %v1396 = vunpack.c.0.s8 %v1395
    %v1397 = vlaneseq
    %v1398 = vshrl.u32 %v1397, 7
    %v1399 = vsub.s32 %v1396, %v1398
    %v1400 = vrot.slane %v1392, %v1399
    %v1402 = vunpack.c.l.s4 1983009808
    %v1403 = vunpack.c.0.s8 %v1402
    %v1404 = vlaneseq
    %v1405 = vshrl.u32 %v1404, 7
    %v1406 = vsub.s32 %v1403, %v1405
    %v1407 = vrot.slane %v1393, %v1406
    %v1408 = vcombine.low %v1174, %v1353
    %v1409 = vcombine.high %v1174, %v1353
    %v1411 = vunpack.c.l.s4 1983009808
    %v1412 = vunpack.c.0.s8 %v1411
    %v1413 = vlaneseq
    %v1414 = vshrl.u32 %v1413, 7
    %v1415 = vsub.s32 %v1412, %v1414
    %v1416 = vrot.slane %v1408, %v1415
    %v1418 = vunpack.c.l.s4 1983009808
    %v1419 = vunpack.c.0.s8 %v1418
    %v1420 = vlaneseq
    %v1421 = vshrl.u32 %v1420, 7
    %v1422 = vsub.s32 %v1419, %v1421
    %v1423 = vrot.slane %v1409, %v1422
    %v1424 = vcombine.low %v1341, %v1365
    %v1425 = vcombine.high %v1341, %v1365
    %v1427 = vunpack.c.l.s4 1983009808
    %v1428 = vunpack.c.0.s8 %v1427
    %v1429 = vlaneseq
    %v1430 = vshrl.u32 %v1429, 7
    %v1431 = vsub.s32 %v1428, %v1430
    %v1432 = vrot.slane %v1424, %v1431
    %v1434 = vunpack.c.l.s4 1983009808
    %v1435 = vunpack.c.0.s8 %v1434
    %v1436 = vlaneseq
    %v1437 = vshrl.u32 %v1436, 7
    %v1438 = vsub.s32 %v1435, %v1437
    %v1439 = vrot.slane %v1425, %v1438
    %v1440 = vcombine.low %v1384, %v1400
    %v1441 = vcombine.high %v1384, %v1400
    %v1443 = vunpack.c.l.s4 1934713408
    %v1444 = vunpack.c.0.s8 %v1443
    %v1445 = vlaneseq
    %v1446 = vshrl.u32 %v1445, 7
    %v1447 = vsub.s32 %v1444, %v1446
    %v1448 = vrot.slane %v1440, %v1447
    %v1450 = vunpack.c.l.s4 1934713408
    %v1451 = vunpack.c.0.s8 %v1450
    %v1452 = vlaneseq
    %v1453 = vshrl.u32 %v1452, 7
    %v1454 = vsub.s32 %v1451, %v1453
    %v1455 = vrot.slane %v1441, %v1454
    %v1456 = vcombine.low %v1391, %v1407
    %v1457 = vcombine.high %v1391, %v1407
    %v1459 = vunpack.c.l.s4 1934713408
    %v1460 = vunpack.c.0.s8 %v1459
    %v1461 = vlaneseq
    %v1462 = vshrl.u32 %v1461, 7
    %v1463 = vsub.s32 %v1460, %v1462
    %v1464 = vrot.slane %v1456, %v1463
    %v1466 = vunpack.c.l.s4 1934713408
    %v1467 = vunpack.c.0.s8 %v1466
    %v1468 = vlaneseq
    %v1469 = vshrl.u32 %v1468, 7
    %v1470 = vsub.s32 %v1467, %v1469
    %v1471 = vrot.slane %v1457, %v1470
    %v1472 = vcombine.low %v1416, %v1432
    %v1473 = vcombine.high %v1416, %v1432
    %v1475 = vunpack.c.l.s4 1934713408
    %v1476 = vunpack.c.0.s8 %v1475
    %v1477 = vlaneseq
    %v1478 = vshrl.u32 %v1477, 7
    %v1479 = vsub.s32 %v1476, %v1478
    %v1480 = vrot.slane %v1472, %v1479
    %v1482 = vunpack.c.l.s4 1934713408
    %v1483 = vunpack.c.0.s8 %v1482
    %v1484 = vlaneseq
    %v1485 = vshrl.u32 %v1484, 7
    %v1486 = vsub.s32 %v1483, %v1485
    %v1487 = vrot.slane %v1473, %v1486
    %v1488 = vcombine.low %v1423, %v1439
    %v1489 = vcombine.high %v1423, %v1439
    %v1491 = vunpack.c.l.s4 1934713408
    %v1492 = vunpack.c.0.s8 %v1491
    %v1493 = vlaneseq
    %v1494 = vshrl.u32 %v1493, 7
    %v1495 = vsub.s32 %v1492, %v1494
    %v1496 = vrot.slane %v1488, %v1495
    %v1498 = vunpack.c.l.s4 1934713408
    %v1499 = vunpack.c.0.s8 %v1498
    %v1500 = vlaneseq
    %v1501 = vshrl.u32 %v1500, 7
    %v1502 = vsub.s32 %v1499, %v1501
    %v1503 = vrot.slane %v1489, %v1502
    %v1504 = vcombine.low %v1448, %v1480
    %v1505 = vcombine.high %v1448, %v1480
    %v1506 = vcombine.low %v1455, %v1487
    %v1507 = vcombine.high %v1455, %v1487
    %v1508 = vcombine.low %v1464, %v1496
    %v1509 = vcombine.high %v1464, %v1496
    %v1510 = vcombine.low %v1471, %v1503
    %v1511 = vcombine.high %v1471, %v1503
    %v1512 = vcombine.low %v1176, %v1315
    %v1513 = vcombine.high %v1176, %v1315
    %v1515 = vunpack.c.l.s4 1983009808
    %v1516 = vunpack.c.0.s8 %v1515
    %v1517 = vlaneseq
    %v1518 = vshrl.u32 %v1517, 7
    %v1519 = vsub.s32 %v1516, %v1518
    %v1520 = vrot.slane %v1512, %v1519
    %v1522 = vunpack.c.l.s4 1983009808
    %v1523 = vunpack.c.0.s8 %v1522
    %v1524 = vlaneseq
    %v1525 = vshrl.u32 %v1524, 7
    %v1526 = vsub.s32 %v1523, %v1525
    %v1527 = vrot.slane %v1513, %v1526
    %v1528 = vcombine.low %v1303, %v1327
    %v1529 = vcombine.high %v1303, %v1327
    %v1531 = vunpack.c.l.s4 1983009808
    %v1532 = vunpack.c.0.s8 %v1531
    %v1533 = vlaneseq
    %v1534 = vshrl.u32 %v1533, 7
    %v1535 = vsub.s32 %v1532, %v1534
    %v1536 = vrot.slane %v1528, %v1535
    %v1538 = vunpack.c.l.s4 1983009808
    %v1539 = vunpack.c.0.s8 %v1538
    %v1540 = vlaneseq
    %v1541 = vshrl.u32 %v1540, 7
    %v1542 = vsub.s32 %v1539, %v1541
    %v1543 = vrot.slane %v1529, %v1542
    %v1544 = vcombine.low %v1178, %v1355
    %v1545 = vcombine.high %v1178, %v1355
    %v1547 = vunpack.c.l.s4 1983009808
    %v1548 = vunpack.c.0.s8 %v1547
    %v1549 = vlaneseq
    %v1550 = vshrl.u32 %v1549, 7
    %v1551 = vsub.s32 %v1548, %v1550
    %v1552 = vrot.slane %v1544, %v1551
    %v1554 = vunpack.c.l.s4 1983009808
    %v1555 = vunpack.c.0.s8 %v1554
    %v1556 = vlaneseq
    %v1557 = vshrl.u32 %v1556, 7
    %v1558 = vsub.s32 %v1555, %v1557
    %v1559 = vrot.slane %v1545, %v1558
    %v1560 = vcombine.low %v1343, %v1367
    %v1561 = vcombine.high %v1343, %v1367
    %v1563 = vunpack.c.l.s4 1983009808
    %v1564 = vunpack.c.0.s8 %v1563
    %v1565 = vlaneseq
    %v1566 = vshrl.u32 %v1565, 7
    %v1567 = vsub.s32 %v1564, %v1566
    %v1568 = vrot.slane %v1560, %v1567
    %v1570 = vunpack.c.l.s4 1983009808
    %v1571 = vunpack.c.0.s8 %v1570
    %v1572 = vlaneseq
    %v1573 = vshrl.u32 %v1572, 7
    %v1574 = vsub.s32 %v1571, %v1573
    %v1575 = vrot.slane %v1561, %v1574
    %v1576 = vcombine.low %v1520, %v1536
    %v1577 = vcombine.high %v1520, %v1536
    %v1579 = vunpack.c.l.s4 1934713408
    %v1580 = vunpack.c.0.s8 %v1579
    %v1581 = vlaneseq
    %v1582 = vshrl.u32 %v1581, 7
    %v1583 = vsub.s32 %v1580, %v1582
    %v1584 = vrot.slane %v1576, %v1583
    %v1586 = vunpack.c.l.s4 1934713408
    %v1587 = vunpack.c.0.s8 %v1586
    %v1588 = vlaneseq
    %v1589 = vshrl.u32 %v1588, 7
    %v1590 = vsub.s32 %v1587, %v1589
    %v1591 = vrot.slane %v1577, %v1590
    %v1592 = vcombine.low %v1527, %v1543
    %v1593 = vcombine.high %v1527, %v1543
    %v1595 = vunpack.c.l.s4 1934713408
    %v1596 = vunpack.c.0.s8 %v1595
    %v1597 = vlaneseq
    %v1598 = vshrl.u32 %v1597, 7
    %v1599 = vsub.s32 %v1596, %v1598
    %v1600 = vrot.slane %v1592, %v1599
    %v1602 = vunpack.c.l.s4 1934713408
    %v1603 = vunpack.c.0.s8 %v1602
    %v1604 = vlaneseq
    %v1605 = vshrl.u32 %v1604, 7
    %v1606 = vsub.s32 %v1603, %v1605
    %v1607 = vrot.slane %v1593, %v1606
    %v1608 = vcombine.low %v1552, %v1568
    %v1609 = vcombine.high %v1552, %v1568
    %v1611 = vunpack.c.l.s4 1934713408
    %v1612 = vunpack.c.0.s8 %v1611
    %v1613 = vlaneseq
    %v1614 = vshrl.u32 %v1613, 7
    %v1615 = vsub.s32 %v1612, %v1614
    %v1616 = vrot.slane %v1608, %v1615
    %v1618 = vunpack.c.l.s4 1934713408
    %v1619 = vunpack.c.0.s8 %v1618
    %v1620 = vlaneseq
    %v1621 = vshrl.u32 %v1620, 7
    %v1622 = vsub.s32 %v1619, %v1621
    %v1623 = vrot.slane %v1609, %v1622
    %v1624 = vcombine.low %v1559, %v1575
    %v1625 = vcombine.high %v1559, %v1575
    %v1627 = vunpack.c.l.s4 1934713408
    %v1628 = vunpack.c.0.s8 %v1627
    %v1629 = vlaneseq
    %v1630 = vshrl.u32 %v1629, 7
    %v1631 = vsub.s32 %v1628, %v1630
    %v1632 = vrot.slane %v1624, %v1631
    %v1634 = vunpack.c.l.s4 1934713408
    %v1635 = vunpack.c.0.s8 %v1634
    %v1636 = vlaneseq
    %v1637 = vshrl.u32 %v1636, 7
    %v1638 = vsub.s32 %v1635, %v1637
    %v1639 = vrot.slane %v1625, %v1638
    %v1640 = vcombine.low %v1584, %v1616
    %v1641 = vcombine.high %v1584, %v1616
    %v1642 = vcombine.low %v1591, %v1623
    %v1643 = vcombine.high %v1591, %v1623
    %v1644 = vcombine.low %v1600, %v1632
    %v1645 = vcombine.high %v1600, %v1632
    %v1646 = vcombine.low %v1607, %v1639
    %v1647 = vcombine.high %v1607, %v1639
    %v1648 = vcombine.low %v1182, %v1317
    %v1649 = vcombine.high %v1182, %v1317
    %v1651 = vunpack.c.l.s4 1983009808
    %v1652 = vunpack.c.0.s8 %v1651
    %v1653 = vlaneseq
    %v1654 = vshrl.u32 %v1653, 7
    %v1655 = vsub.s32 %v1652, %v1654
    %v1656 = vrot.slane %v1648, %v1655
    %v1658 = vunpack.c.l.s4 1983009808
    %v1659 = vunpack.c.0.s8 %v1658
    %v1660 = vlaneseq
    %v1661 = vshrl.u32 %v1660, 7
    %v1662 = vsub.s32 %v1659, %v1661
    %v1663 = vrot.slane %v1649, %v1662
    %v1664 = vcombine.low %v1305, %v1329
    %v1665 = vcombine.high %v1305, %v1329
    %v1667 = vunpack.c.l.s4 1983009808
    %v1668 = vunpack.c.0.s8 %v1667
    %v1669 = vlaneseq
    %v1670 = vshrl.u32 %v1669, 7
    %v1671 = vsub.s32 %v1668, %v1670
    %v1672 = vrot.slane %v1664, %v1671
    %v1674 = vunpack.c.l.s4 1983009808
    %v1675 = vunpack.c.0.s8 %v1674
    %v1676 = vlaneseq
    %v1677 = vshrl.u32 %v1676, 7
    %v1678 = vsub.s32 %v1675, %v1677
    %v1679 = vrot.slane %v1665, %v1678
    %v1680 = vcombine.low %v1184, %v1357
    %v1681 = vcombine.high %v1184, %v1357
    %v1683 = vunpack.c.l.s4 1983009808
    %v1684 = vunpack.c.0.s8 %v1683
    %v1685 = vlaneseq
    %v1686 = vshrl.u32 %v1685, 7
    %v1687 = vsub.s32 %v1684, %v1686
    %v1688 = vrot.slane %v1680, %v1687
    %v1690 = vunpack.c.l.s4 1983009808
    %v1691 = vunpack.c.0.s8 %v1690
    %v1692 = vlaneseq
    %v1693 = vshrl.u32 %v1692, 7
    %v1694 = vsub.s32 %v1691, %v1693
    %v1695 = vrot.slane %v1681, %v1694
    %v1696 = vcombine.low %v1345, %v1369
    %v1697 = vcombine.high %v1345, %v1369
    %v1699 = vunpack.c.l.s4 1983009808
    %v1700 = vunpack.c.0.s8 %v1699
    %v1701 = vlaneseq
    %v1702 = vshrl.u32 %v1701, 7
    %v1703 = vsub.s32 %v1700, %v1702
    %v1704 = vrot.slane %v1696, %v1703
    %v1706 = vunpack.c.l.s4 1983009808
    %v1707 = vunpack.c.0.s8 %v1706
    %v1708 = vlaneseq
    %v1709 = vshrl.u32 %v1708, 7
    %v1710 = vsub.s32 %v1707, %v1709
    %v1711 = vrot.slane %v1697, %v1710
    %v1712 = vcombine.low %v1656, %v1672
    %v1713 = vcombine.high %v1656, %v1672
    %v1715 = vunpack.c.l.s4 1934713408
    %v1716 = vunpack.c.0.s8 %v1715
    %v1717 = vlaneseq
    %v1718 = vshrl.u32 %v1717, 7
    %v1719 = vsub.s32 %v1716, %v1718
    %v1720 = vrot.slane %v1712, %v1719
    %v1722 = vunpack.c.l.s4 1934713408
    %v1723 = vunpack.c.0.s8 %v1722
    %v1724 = vlaneseq
    %v1725 = vshrl.u32 %v1724, 7
    %v1726 = vsub.s32 %v1723, %v1725
    %v1727 = vrot.slane %v1713, %v1726
    %v1728 = vcombine.low %v1663, %v1679
    %v1729 = vcombine.high %v1663, %v1679
    %v1731 = vunpack.c.l.s4 1934713408
    %v1732 = vunpack.c.0.s8 %v1731
    %v1733 = vlaneseq
    %v1734 = vshrl.u32 %v1733, 7
    %v1735 = vsub.s32 %v1732, %v1734
    %v1736 = vrot.slane %v1728, %v1735
    %v1738 = vunpack.c.l.s4 1934713408
    %v1739 = vunpack.c.0.s8 %v1738
    %v1740 = vlaneseq
    %v1741 = vshrl.u32 %v1740, 7
    %v1742 = vsub.s32 %v1739, %v1741
    %v1743 = vrot.slane %v1729, %v1742
    %v1744 = vcombine.low %v1688, %v1704
    %v1745 = vcombine.high %v1688, %v1704
    %v1747 = vunpack.c.l.s4 1934713408
    %v1748 = vunpack.c.0.s8 %v1747
    %v1749 = vlaneseq
    %v1750 = vshrl.u32 %v1749, 7
    %v1751 = vsub.s32 %v1748, %v1750
    %v1752 = vrot.slane %v1744, %v1751
    %v1754 = vunpack.c.l.s4 1934713408
    %v1755 = vunpack.c.0.s8 %v1754
    %v1756 = vlaneseq
    %v1757 = vshrl.u32 %v1756, 7
    %v1758 = vsub.s32 %v1755, %v1757
    %v1759 = vrot.slane %v1745, %v1758
    %v1760 = vcombine.low %v1695, %v1711
    %v1761 = vcombine.high %v1695, %v1711
    %v1763 = vunpack.c.l.s4 1934713408
    %v1764 = vunpack.c.0.s8 %v1763
    %v1765 = vlaneseq
    %v1766 = vshrl.u32 %v1765, 7
    %v1767 = vsub.s32 %v1764, %v1766
    %v1768 = vrot.slane %v1760, %v1767
    %v1770 = vunpack.c.l.s4 1934713408
    %v1771 = vunpack.c.0.s8 %v1770
    %v1772 = vlaneseq
    %v1773 = vshrl.u32 %v1772, 7
    %v1774 = vsub.s32 %v1771, %v1773
    %v1775 = vrot.slane %v1761, %v1774
    %v1776 = vcombine.low %v1720, %v1752
    %v1777 = vcombine.high %v1720, %v1752
    %v1778 = vcombine.low %v1727, %v1759
    %v1779 = vcombine.high %v1727, %v1759
    %v1780 = vcombine.low %v1736, %v1768
    %v1781 = vcombine.high %v1736, %v1768
    %v1782 = vcombine.low %v1743, %v1775
    %v1783 = vcombine.high %v1743, %v1775
    %v1784 = vcombine.low %v1186, %v1319
    %v1785 = vcombine.high %v1186, %v1319
    %v1787 = vunpack.c.l.s4 1983009808
    %v1788 = vunpack.c.0.s8 %v1787
    %v1789 = vlaneseq
    %v1790 = vshrl.u32 %v1789, 7
    %v1791 = vsub.s32 %v1788, %v1790
    %v1792 = vrot.slane %v1784, %v1791
    %v1794 = vunpack.c.l.s4 1983009808
    %v1795 = vunpack.c.0.s8 %v1794
    %v1796 = vlaneseq
    %v1797 = vshrl.u32 %v1796, 7
    %v1798 = vsub.s32 %v1795, %v1797
    %v1799 = vrot.slane %v1785, %v1798
    %v1800 = vcombine.low %v1307, %v1331
    %v1801 = vcombine.high %v1307, %v1331
    %v1803 = vunpack.c.l.s4 1983009808
    %v1804 = vunpack.c.0.s8 %v1803
    %v1805 = vlaneseq
    %v1806 = vshrl.u32 %v1805, 7
    %v1807 = vsub.s32 %v1804, %v1806
    %v1808 = vrot.slane %v1800, %v1807
    %v1810 = vunpack.c.l.s4 1983009808
    %v1811 = vunpack.c.0.s8 %v1810
    %v1812 = vlaneseq
    %v1813 = vshrl.u32 %v1812, 7
    %v1814 = vsub.s32 %v1811, %v1813
    %v1815 = vrot.slane %v1801, %v1814
    %v1816 = vcombine.low %v1188, %v1359
    %v1817 = vcombine.high %v1188, %v1359
    %v1819 = vunpack.c.l.s4 1983009808
    %v1820 = vunpack.c.0.s8 %v1819
    %v1821 = vlaneseq
    %v1822 = vshrl.u32 %v1821, 7
    %v1823 = vsub.s32 %v1820, %v1822
    %v1824 = vrot.slane %v1816, %v1823
    %v1826 = vunpack.c.l.s4 1983009808
    %v1827 = vunpack.c.0.s8 %v1826
    %v1828 = vlaneseq
    %v1829 = vshrl.u32 %v1828, 7
    %v1830 = vsub.s32 %v1827, %v1829
    %v1831 = vrot.slane %v1817, %v1830
    %v1832 = vcombine.low %v1347, %v1371
    %v1833 = vcombine.high %v1347, %v1371
    %v1835 = vunpack.c.l.s4 1983009808
    %v1836 = vunpack.c.0.s8 %v1835
    %v1837 = vlaneseq
    %v1838 = vshrl.u32 %v1837, 7
    %v1839 = vsub.s32 %v1836, %v1838
    %v1840 = vrot.slane %v1832, %v1839
    %v1842 = vunpack.c.l.s4 1983009808
    %v1843 = vunpack.c.0.s8 %v1842
    %v1844 = vlaneseq
    %v1845 = vshrl.u32 %v1844, 7
    %v1846 = vsub.s32 %v1843, %v1845
    %v1847 = vrot.slane %v1833, %v1846
    %v1848 = vcombine.low %v1792, %v1808
    %v1849 = vcombine.high %v1792, %v1808
    %v1851 = vunpack.c.l.s4 1934713408
    %v1852 = vunpack.c.0.s8 %v1851
    %v1853 = vlaneseq
    %v1854 = vshrl.u32 %v1853, 7
    %v1855 = vsub.s32 %v1852, %v1854
    %v1856 = vrot.slane %v1848, %v1855
    %v1858 = vunpack.c.l.s4 1934713408
    %v1859 = vunpack.c.0.s8 %v1858
    %v1860 = vlaneseq
    %v1861 = vshrl.u32 %v1860, 7
    %v1862 = vsub.s32 %v1859, %v1861
    %v1863 = vrot.slane %v1849, %v1862
    %v1864 = vcombine.low %v1799, %v1815
    %v1865 = vcombine.high %v1799, %v1815
    %v1867 = vunpack.c.l.s4 1934713408
    %v1868 = vunpack.c.0.s8 %v1867
    %v1869 = vlaneseq
    %v1870 = vshrl.u32 %v1869, 7
    %v1871 = vsub.s32 %v1868, %v1870
    %v1872 = vrot.slane %v1864, %v1871
    %v1874 = vunpack.c.l.s4 1934713408
    %v1875 = vunpack.c.0.s8 %v1874
    %v1876 = vlaneseq
    %v1877 = vshrl.u32 %v1876, 7
    %v1878 = vsub.s32 %v1875, %v1877
    %v1879 = vrot.slane %v1865, %v1878
    %v1880 = vcombine.low %v1824, %v1840
    %v1881 = vcombine.high %v1824, %v1840
    %v1883 = vunpack.c.l.s4 1934713408
    %v1884 = vunpack.c.0.s8 %v1883
    %v1885 = vlaneseq
    %v1886 = vshrl.u32 %v1885, 7
    %v1887 = vsub.s32 %v1884, %v1886
    %v1888 = vrot.slane %v1880, %v1887
    %v1890 = vunpack.c.l.s4 1934713408
    %v1891 = vunpack.c.0.s8 %v1890
    %v1892 = vlaneseq
    %v1893 = vshrl.u32 %v1892, 7
    %v1894 = vsub.s32 %v1891, %v1893
    %v1895 = vrot.slane %v1881, %v1894
    %v1896 = vcombine.low %v1831, %v1847
    %v1897 = vcombine.high %v1831, %v1847
    %v1899 = vunpack.c.l.s4 1934713408
    %v1900 = vunpack.c.0.s8 %v1899
    %v1901 = vlaneseq
    %v1902 = vshrl.u32 %v1901, 7
    %v1903 = vsub.s32 %v1900, %v1902
    %v1904 = vrot.slane %v1896, %v1903
    %v1906 = vunpack.c.l.s4 1934713408
    %v1907 = vunpack.c.0.s8 %v1906
    %v1908 = vlaneseq
    %v1909 = vshrl.u32 %v1908, 7
    %v1910 = vsub.s32 %v1907, %v1909
    %v1911 = vrot.slane %v1897, %v1910
    %v1912 = vcombine.low %v1856, %v1888
    %v1913 = vcombine.high %v1856, %v1888
    %v1914 = vcombine.low %v1863, %v1895
    %v1915 = vcombine.high %v1863, %v1895
    %v1916 = vcombine.low %v1872, %v1904
    %v1917 = vcombine.high %v1872, %v1904
    %v1918 = vcombine.low %v1879, %v1911
    %v1919 = vcombine.high %v1879, %v1911
    %1924 = vrot.lane.b32.xlu0 %v1225, 96
    %v1925 = vpop.permute.xlu0 %1924
    %1926 = vrot.lane.b32.xlu0 %v1229, 96
    %v1927 = vpop.permute.xlu0 %1926
    %1928 = vrot.lane.b32.xlu0 %v1235, 96
    %v1929 = vpop.permute.xlu0 %1928
    %1930 = vrot.lane.b32.xlu0 %v1239, 96
    %v1931 = vpop.permute.xlu0 %1930
    %1936 = vrot.lane.b32.xlu0 %v1225, 64
    %v1937 = vpop.permute.xlu0 %1936
    %1938 = vrot.lane.b32.xlu0 %v1229, 64
    %v1939 = vpop.permute.xlu0 %1938
    %1940 = vrot.lane.b32.xlu0 %v1235, 64
    %v1941 = vpop.permute.xlu0 %1940
    %1942 = vrot.lane.b32.xlu0 %v1239, 64
    %v1943 = vpop.permute.xlu0 %1942
    %1948 = vrot.lane.b32.xlu0 %v1225, 32
    %v1949 = vpop.permute.xlu0 %1948
    %1950 = vrot.lane.b32.xlu0 %v1229, 32
    %v1951 = vpop.permute.xlu0 %1950
    %1952 = vrot.lane.b32.xlu0 %v1235, 32
    %v1953 = vpop.permute.xlu0 %1952
    %1954 = vrot.lane.b32.xlu0 %v1239, 32
    %v1955 = vpop.permute.xlu0 %1954
    %1964 = vrot.lane.b32.xlu0 %v1227, 96
    %v1965 = vpop.permute.xlu0 %1964
    %1966 = vrot.lane.b32.xlu0 %v1231, 96
    %v1967 = vpop.permute.xlu0 %1966
    %1968 = vrot.lane.b32.xlu0 %v1237, 96
    %v1969 = vpop.permute.xlu0 %1968
    %1970 = vrot.lane.b32.xlu0 %v1241, 96
    %v1971 = vpop.permute.xlu0 %1970
    %1976 = vrot.lane.b32.xlu0 %v1227, 64
    %v1977 = vpop.permute.xlu0 %1976
    %1978 = vrot.lane.b32.xlu0 %v1231, 64
    %v1979 = vpop.permute.xlu0 %1978
    %1980 = vrot.lane.b32.xlu0 %v1237, 64
    %v1981 = vpop.permute.xlu0 %1980
    %1982 = vrot.lane.b32.xlu0 %v1241, 64
    %v1983 = vpop.permute.xlu0 %1982
    %1988 = vrot.lane.b32.xlu0 %v1227, 32
    %v1989 = vpop.permute.xlu0 %1988
    %1990 = vrot.lane.b32.xlu0 %v1231, 32
    %v1991 = vpop.permute.xlu0 %1990
    %1992 = vrot.lane.b32.xlu0 %v1237, 32
    %v1993 = vpop.permute.xlu0 %1992
    %1994 = vrot.lane.b32.xlu0 %v1241, 32
    %v1995 = vpop.permute.xlu0 %1994
    %v2000 = vcombine.low %v1225, %v1937
    %v2001 = vcombine.high %v1225, %v1937
    %v2003 = vunpack.c.l.s4 1983009808
    %v2004 = vunpack.c.0.s8 %v2003
    %v2005 = vlaneseq
    %v2006 = vshrl.u32 %v2005, 7
    %v2007 = vsub.s32 %v2004, %v2006
    %v2008 = vrot.slane %v2000, %v2007
    %v2010 = vunpack.c.l.s4 1983009808
    %v2011 = vunpack.c.0.s8 %v2010
    %v2012 = vlaneseq
    %v2013 = vshrl.u32 %v2012, 7
    %v2014 = vsub.s32 %v2011, %v2013
    %v2015 = vrot.slane %v2001, %v2014
    %v2016 = vcombine.low %v1925, %v1949
    %v2017 = vcombine.high %v1925, %v1949
    %v2019 = vunpack.c.l.s4 1983009808
    %v2020 = vunpack.c.0.s8 %v2019
    %v2021 = vlaneseq
    %v2022 = vshrl.u32 %v2021, 7
    %v2023 = vsub.s32 %v2020, %v2022
    %v2024 = vrot.slane %v2016, %v2023
    %v2026 = vunpack.c.l.s4 1983009808
    %v2027 = vunpack.c.0.s8 %v2026
    %v2028 = vlaneseq
    %v2029 = vshrl.u32 %v2028, 7
    %v2030 = vsub.s32 %v2027, %v2029
    %v2031 = vrot.slane %v2017, %v2030
    %v2032 = vcombine.low %v1227, %v1977
    %v2033 = vcombine.high %v1227, %v1977
    %v2035 = vunpack.c.l.s4 1983009808
    %v2036 = vunpack.c.0.s8 %v2035
    %v2037 = vlaneseq
    %v2038 = vshrl.u32 %v2037, 7
    %v2039 = vsub.s32 %v2036, %v2038
    %v2040 = vrot.slane %v2032, %v2039
    %v2042 = vunpack.c.l.s4 1983009808
    %v2043 = vunpack.c.0.s8 %v2042
    %v2044 = vlaneseq
    %v2045 = vshrl.u32 %v2044, 7
    %v2046 = vsub.s32 %v2043, %v2045
    %v2047 = vrot.slane %v2033, %v2046
    %v2048 = vcombine.low %v1965, %v1989
    %v2049 = vcombine.high %v1965, %v1989
    %v2051 = vunpack.c.l.s4 1983009808
    %v2052 = vunpack.c.0.s8 %v2051
    %v2053 = vlaneseq
    %v2054 = vshrl.u32 %v2053, 7
    %v2055 = vsub.s32 %v2052, %v2054
    %v2056 = vrot.slane %v2048, %v2055
    %v2058 = vunpack.c.l.s4 1983009808
    %v2059 = vunpack.c.0.s8 %v2058
    %v2060 = vlaneseq
    %v2061 = vshrl.u32 %v2060, 7
    %v2062 = vsub.s32 %v2059, %v2061
    %v2063 = vrot.slane %v2049, %v2062
    %v2064 = vcombine.low %v2008, %v2024
    %v2065 = vcombine.high %v2008, %v2024
    %v2067 = vunpack.c.l.s4 1934713408
    %v2068 = vunpack.c.0.s8 %v2067
    %v2069 = vlaneseq
    %v2070 = vshrl.u32 %v2069, 7
    %v2071 = vsub.s32 %v2068, %v2070
    %v2072 = vrot.slane %v2064, %v2071
    %v2074 = vunpack.c.l.s4 1934713408
    %v2075 = vunpack.c.0.s8 %v2074
    %v2076 = vlaneseq
    %v2077 = vshrl.u32 %v2076, 7
    %v2078 = vsub.s32 %v2075, %v2077
    %v2079 = vrot.slane %v2065, %v2078
    %v2080 = vcombine.low %v2015, %v2031
    %v2081 = vcombine.high %v2015, %v2031
    %v2083 = vunpack.c.l.s4 1934713408
    %v2084 = vunpack.c.0.s8 %v2083
    %v2085 = vlaneseq
    %v2086 = vshrl.u32 %v2085, 7
    %v2087 = vsub.s32 %v2084, %v2086
    %v2088 = vrot.slane %v2080, %v2087
    %v2090 = vunpack.c.l.s4 1934713408
    %v2091 = vunpack.c.0.s8 %v2090
    %v2092 = vlaneseq
    %v2093 = vshrl.u32 %v2092, 7
    %v2094 = vsub.s32 %v2091, %v2093
    %v2095 = vrot.slane %v2081, %v2094
    %v2096 = vcombine.low %v2040, %v2056
    %v2097 = vcombine.high %v2040, %v2056
    %v2099 = vunpack.c.l.s4 1934713408
    %v2100 = vunpack.c.0.s8 %v2099
    %v2101 = vlaneseq
    %v2102 = vshrl.u32 %v2101, 7
    %v2103 = vsub.s32 %v2100, %v2102
    %v2104 = vrot.slane %v2096, %v2103
    %v2106 = vunpack.c.l.s4 1934713408
    %v2107 = vunpack.c.0.s8 %v2106
    %v2108 = vlaneseq
    %v2109 = vshrl.u32 %v2108, 7
    %v2110 = vsub.s32 %v2107, %v2109
    %v2111 = vrot.slane %v2097, %v2110
    %v2112 = vcombine.low %v2047, %v2063
    %v2113 = vcombine.high %v2047, %v2063
    %v2115 = vunpack.c.l.s4 1934713408
    %v2116 = vunpack.c.0.s8 %v2115
    %v2117 = vlaneseq
    %v2118 = vshrl.u32 %v2117, 7
    %v2119 = vsub.s32 %v2116, %v2118
    %v2120 = vrot.slane %v2112, %v2119
    %v2122 = vunpack.c.l.s4 1934713408
    %v2123 = vunpack.c.0.s8 %v2122
    %v2124 = vlaneseq
    %v2125 = vshrl.u32 %v2124, 7
    %v2126 = vsub.s32 %v2123, %v2125
    %v2127 = vrot.slane %v2113, %v2126
    %v2128 = vcombine.low %v2072, %v2104
    %v2129 = vcombine.high %v2072, %v2104
    %v2130 = vcombine.low %v2079, %v2111
    %v2131 = vcombine.high %v2079, %v2111
    %v2132 = vcombine.low %v2088, %v2120
    %v2133 = vcombine.high %v2088, %v2120
    %v2134 = vcombine.low %v2095, %v2127
    %v2135 = vcombine.high %v2095, %v2127
    %v2136 = vcombine.low %v1229, %v1939
    %v2137 = vcombine.high %v1229, %v1939
    %v2139 = vunpack.c.l.s4 1983009808
    %v2140 = vunpack.c.0.s8 %v2139
    %v2141 = vlaneseq
    %v2142 = vshrl.u32 %v2141, 7
    %v2143 = vsub.s32 %v2140, %v2142
    %v2144 = vrot.slane %v2136, %v2143
    %v2146 = vunpack.c.l.s4 1983009808
    %v2147 = vunpack.c.0.s8 %v2146
    %v2148 = vlaneseq
    %v2149 = vshrl.u32 %v2148, 7
    %v2150 = vsub.s32 %v2147, %v2149
    %v2151 = vrot.slane %v2137, %v2150
    %v2152 = vcombine.low %v1927, %v1951
    %v2153 = vcombine.high %v1927, %v1951
    %v2155 = vunpack.c.l.s4 1983009808
    %v2156 = vunpack.c.0.s8 %v2155
    %v2157 = vlaneseq
    %v2158 = vshrl.u32 %v2157, 7
    %v2159 = vsub.s32 %v2156, %v2158
    %v2160 = vrot.slane %v2152, %v2159
    %v2162 = vunpack.c.l.s4 1983009808
    %v2163 = vunpack.c.0.s8 %v2162
    %v2164 = vlaneseq
    %v2165 = vshrl.u32 %v2164, 7
    %v2166 = vsub.s32 %v2163, %v2165
    %v2167 = vrot.slane %v2153, %v2166
    %v2168 = vcombine.low %v1231, %v1979
    %v2169 = vcombine.high %v1231, %v1979
    %v2171 = vunpack.c.l.s4 1983009808
    %v2172 = vunpack.c.0.s8 %v2171
    %v2173 = vlaneseq
    %v2174 = vshrl.u32 %v2173, 7
    %v2175 = vsub.s32 %v2172, %v2174
    %v2176 = vrot.slane %v2168, %v2175
    %v2178 = vunpack.c.l.s4 1983009808
    %v2179 = vunpack.c.0.s8 %v2178
    %v2180 = vlaneseq
    %v2181 = vshrl.u32 %v2180, 7
    %v2182 = vsub.s32 %v2179, %v2181
    %v2183 = vrot.slane %v2169, %v2182
    %v2184 = vcombine.low %v1967, %v1991
    %v2185 = vcombine.high %v1967, %v1991
    %v2187 = vunpack.c.l.s4 1983009808
    %v2188 = vunpack.c.0.s8 %v2187
    %v2189 = vlaneseq
    %v2190 = vshrl.u32 %v2189, 7
    %v2191 = vsub.s32 %v2188, %v2190
    %v2192 = vrot.slane %v2184, %v2191
    %v2194 = vunpack.c.l.s4 1983009808
    %v2195 = vunpack.c.0.s8 %v2194
    %v2196 = vlaneseq
    %v2197 = vshrl.u32 %v2196, 7
    %v2198 = vsub.s32 %v2195, %v2197
    %v2199 = vrot.slane %v2185, %v2198
    %v2200 = vcombine.low %v2144, %v2160
    %v2201 = vcombine.high %v2144, %v2160
    %v2203 = vunpack.c.l.s4 1934713408
    %v2204 = vunpack.c.0.s8 %v2203
    %v2205 = vlaneseq
    %v2206 = vshrl.u32 %v2205, 7
    %v2207 = vsub.s32 %v2204, %v2206
    %v2208 = vrot.slane %v2200, %v2207
    %v2210 = vunpack.c.l.s4 1934713408
    %v2211 = vunpack.c.0.s8 %v2210
    %v2212 = vlaneseq
    %v2213 = vshrl.u32 %v2212, 7
    %v2214 = vsub.s32 %v2211, %v2213
    %v2215 = vrot.slane %v2201, %v2214
    %v2216 = vcombine.low %v2151, %v2167
    %v2217 = vcombine.high %v2151, %v2167
    %v2219 = vunpack.c.l.s4 1934713408
    %v2220 = vunpack.c.0.s8 %v2219
    %v2221 = vlaneseq
    %v2222 = vshrl.u32 %v2221, 7
    %v2223 = vsub.s32 %v2220, %v2222
    %v2224 = vrot.slane %v2216, %v2223
    %v2226 = vunpack.c.l.s4 1934713408
    %v2227 = vunpack.c.0.s8 %v2226
    %v2228 = vlaneseq
    %v2229 = vshrl.u32 %v2228, 7
    %v2230 = vsub.s32 %v2227, %v2229
    %v2231 = vrot.slane %v2217, %v2230
    %v2232 = vcombine.low %v2176, %v2192
    %v2233 = vcombine.high %v2176, %v2192
    %v2235 = vunpack.c.l.s4 1934713408
    %v2236 = vunpack.c.0.s8 %v2235
    %v2237 = vlaneseq
    %v2238 = vshrl.u32 %v2237, 7
    %v2239 = vsub.s32 %v2236, %v2238
    %v2240 = vrot.slane %v2232, %v2239
    %v2242 = vunpack.c.l.s4 1934713408
    %v2243 = vunpack.c.0.s8 %v2242
    %v2244 = vlaneseq
    %v2245 = vshrl.u32 %v2244, 7
    %v2246 = vsub.s32 %v2243, %v2245
    %v2247 = vrot.slane %v2233, %v2246
    %v2248 = vcombine.low %v2183, %v2199
    %v2249 = vcombine.high %v2183, %v2199
    %v2251 = vunpack.c.l.s4 1934713408
    %v2252 = vunpack.c.0.s8 %v2251
    %v2253 = vlaneseq
    %v2254 = vshrl.u32 %v2253, 7
    %v2255 = vsub.s32 %v2252, %v2254
    %v2256 = vrot.slane %v2248, %v2255
    %v2258 = vunpack.c.l.s4 1934713408
    %v2259 = vunpack.c.0.s8 %v2258
    %v2260 = vlaneseq
    %v2261 = vshrl.u32 %v2260, 7
    %v2262 = vsub.s32 %v2259, %v2261
    %v2263 = vrot.slane %v2249, %v2262
    %v2264 = vcombine.low %v2208, %v2240
    %v2265 = vcombine.high %v2208, %v2240
    %v2266 = vcombine.low %v2215, %v2247
    %v2267 = vcombine.high %v2215, %v2247
    %v2268 = vcombine.low %v2224, %v2256
    %v2269 = vcombine.high %v2224, %v2256
    %v2270 = vcombine.low %v2231, %v2263
    %v2271 = vcombine.high %v2231, %v2263
    %v2272 = vcombine.low %v1235, %v1941
    %v2273 = vcombine.high %v1235, %v1941
    %v2275 = vunpack.c.l.s4 1983009808
    %v2276 = vunpack.c.0.s8 %v2275
    %v2277 = vlaneseq
    %v2278 = vshrl.u32 %v2277, 7
    %v2279 = vsub.s32 %v2276, %v2278
    %v2280 = vrot.slane %v2272, %v2279
    %v2282 = vunpack.c.l.s4 1983009808
    %v2283 = vunpack.c.0.s8 %v2282
    %v2284 = vlaneseq
    %v2285 = vshrl.u32 %v2284, 7
    %v2286 = vsub.s32 %v2283, %v2285
    %v2287 = vrot.slane %v2273, %v2286
    %v2288 = vcombine.low %v1929, %v1953
    %v2289 = vcombine.high %v1929, %v1953
    %v2291 = vunpack.c.l.s4 1983009808
    %v2292 = vunpack.c.0.s8 %v2291
    %v2293 = vlaneseq
    %v2294 = vshrl.u32 %v2293, 7
    %v2295 = vsub.s32 %v2292, %v2294
    %v2296 = vrot.slane %v2288, %v2295
    %v2298 = vunpack.c.l.s4 1983009808
    %v2299 = vunpack.c.0.s8 %v2298
    %v2300 = vlaneseq
    %v2301 = vshrl.u32 %v2300, 7
    %v2302 = vsub.s32 %v2299, %v2301
    %v2303 = vrot.slane %v2289, %v2302
    %v2304 = vcombine.low %v1237, %v1981
    %v2305 = vcombine.high %v1237, %v1981
    %v2307 = vunpack.c.l.s4 1983009808
    %v2308 = vunpack.c.0.s8 %v2307
    %v2309 = vlaneseq
    %v2310 = vshrl.u32 %v2309, 7
    %v2311 = vsub.s32 %v2308, %v2310
    %v2312 = vrot.slane %v2304, %v2311
    %v2314 = vunpack.c.l.s4 1983009808
    %v2315 = vunpack.c.0.s8 %v2314
    %v2316 = vlaneseq
    %v2317 = vshrl.u32 %v2316, 7
    %v2318 = vsub.s32 %v2315, %v2317
    %v2319 = vrot.slane %v2305, %v2318
    %v2320 = vcombine.low %v1969, %v1993
    %v2321 = vcombine.high %v1969, %v1993
    %v2323 = vunpack.c.l.s4 1983009808
    %v2324 = vunpack.c.0.s8 %v2323
    %v2325 = vlaneseq
    %v2326 = vshrl.u32 %v2325, 7
    %v2327 = vsub.s32 %v2324, %v2326
    %v2328 = vrot.slane %v2320, %v2327
    %v2330 = vunpack.c.l.s4 1983009808
    %v2331 = vunpack.c.0.s8 %v2330
    %v2332 = vlaneseq
    %v2333 = vshrl.u32 %v2332, 7
    %v2334 = vsub.s32 %v2331, %v2333
    %v2335 = vrot.slane %v2321, %v2334
    %v2336 = vcombine.low %v2280, %v2296
    %v2337 = vcombine.high %v2280, %v2296
    %v2339 = vunpack.c.l.s4 1934713408
    %v2340 = vunpack.c.0.s8 %v2339
    %v2341 = vlaneseq
    %v2342 = vshrl.u32 %v2341, 7
    %v2343 = vsub.s32 %v2340, %v2342
    %v2344 = vrot.slane %v2336, %v2343
    %v2346 = vunpack.c.l.s4 1934713408
    %v2347 = vunpack.c.0.s8 %v2346
    %v2348 = vlaneseq
    %v2349 = vshrl.u32 %v2348, 7
    %v2350 = vsub.s32 %v2347, %v2349
    %v2351 = vrot.slane %v2337, %v2350
    %v2352 = vcombine.low %v2287, %v2303
    %v2353 = vcombine.high %v2287, %v2303
    %v2355 = vunpack.c.l.s4 1934713408
    %v2356 = vunpack.c.0.s8 %v2355
    %v2357 = vlaneseq
    %v2358 = vshrl.u32 %v2357, 7
    %v2359 = vsub.s32 %v2356, %v2358
    %v2360 = vrot.slane %v2352, %v2359
    %v2362 = vunpack.c.l.s4 1934713408
    %v2363 = vunpack.c.0.s8 %v2362
    %v2364 = vlaneseq
    %v2365 = vshrl.u32 %v2364, 7
    %v2366 = vsub.s32 %v2363, %v2365
    %v2367 = vrot.slane %v2353, %v2366
    %v2368 = vcombine.low %v2312, %v2328
    %v2369 = vcombine.high %v2312, %v2328
    %v2371 = vunpack.c.l.s4 1934713408
    %v2372 = vunpack.c.0.s8 %v2371
    %v2373 = vlaneseq
    %v2374 = vshrl.u32 %v2373, 7
    %v2375 = vsub.s32 %v2372, %v2374
    %v2376 = vrot.slane %v2368, %v2375
    %v2378 = vunpack.c.l.s4 1934713408
    %v2379 = vunpack.c.0.s8 %v2378
    %v2380 = vlaneseq
    %v2381 = vshrl.u32 %v2380, 7
    %v2382 = vsub.s32 %v2379, %v2381
    %v2383 = vrot.slane %v2369, %v2382
    %v2384 = vcombine.low %v2319, %v2335
    %v2385 = vcombine.high %v2319, %v2335
    %v2387 = vunpack.c.l.s4 1934713408
    %v2388 = vunpack.c.0.s8 %v2387
    %v2389 = vlaneseq
    %v2390 = vshrl.u32 %v2389, 7
    %v2391 = vsub.s32 %v2388, %v2390
    %v2392 = vrot.slane %v2384, %v2391
    %v2394 = vunpack.c.l.s4 1934713408
    %v2395 = vunpack.c.0.s8 %v2394
    %v2396 = vlaneseq
    %v2397 = vshrl.u32 %v2396, 7
    %v2398 = vsub.s32 %v2395, %v2397
    %v2399 = vrot.slane %v2385, %v2398
    %v2400 = vcombine.low %v2344, %v2376
    %v2401 = vcombine.high %v2344, %v2376
    %v2402 = vcombine.low %v2351, %v2383
    %v2403 = vcombine.high %v2351, %v2383
    %v2404 = vcombine.low %v2360, %v2392
    %v2405 = vcombine.high %v2360, %v2392
    %v2406 = vcombine.low %v2367, %v2399
    %v2407 = vcombine.high %v2367, %v2399
    %v2408 = vcombine.low %v1239, %v1943
    %v2409 = vcombine.high %v1239, %v1943
    %v2411 = vunpack.c.l.s4 1983009808
    %v2412 = vunpack.c.0.s8 %v2411
    %v2413 = vlaneseq
    %v2414 = vshrl.u32 %v2413, 7
    %v2415 = vsub.s32 %v2412, %v2414
    %v2416 = vrot.slane %v2408, %v2415
    %v2418 = vunpack.c.l.s4 1983009808
    %v2419 = vunpack.c.0.s8 %v2418
    %v2420 = vlaneseq
    %v2421 = vshrl.u32 %v2420, 7
    %v2422 = vsub.s32 %v2419, %v2421
    %v2423 = vrot.slane %v2409, %v2422
    %v2424 = vcombine.low %v1931, %v1955
    %v2425 = vcombine.high %v1931, %v1955
    %v2427 = vunpack.c.l.s4 1983009808
    %v2428 = vunpack.c.0.s8 %v2427
    %v2429 = vlaneseq
    %v2430 = vshrl.u32 %v2429, 7
    %v2431 = vsub.s32 %v2428, %v2430
    %v2432 = vrot.slane %v2424, %v2431
    %v2434 = vunpack.c.l.s4 1983009808
    %v2435 = vunpack.c.0.s8 %v2434
    %v2436 = vlaneseq
    %v2437 = vshrl.u32 %v2436, 7
    %v2438 = vsub.s32 %v2435, %v2437
    %v2439 = vrot.slane %v2425, %v2438
    %v2440 = vcombine.low %v1241, %v1983
    %v2441 = vcombine.high %v1241, %v1983
    %v2443 = vunpack.c.l.s4 1983009808
    %v2444 = vunpack.c.0.s8 %v2443
    %v2445 = vlaneseq
    %v2446 = vshrl.u32 %v2445, 7
    %v2447 = vsub.s32 %v2444, %v2446
    %v2448 = vrot.slane %v2440, %v2447
    %v2450 = vunpack.c.l.s4 1983009808
    %v2451 = vunpack.c.0.s8 %v2450
    %v2452 = vlaneseq
    %v2453 = vshrl.u32 %v2452, 7
    %v2454 = vsub.s32 %v2451, %v2453
    %v2455 = vrot.slane %v2441, %v2454
    %v2456 = vcombine.low %v1971, %v1995
    %v2457 = vcombine.high %v1971, %v1995
    %v2459 = vunpack.c.l.s4 1983009808
    %v2460 = vunpack.c.0.s8 %v2459
    %v2461 = vlaneseq
    %v2462 = vshrl.u32 %v2461, 7
    %v2463 = vsub.s32 %v2460, %v2462
    %v2464 = vrot.slane %v2456, %v2463
    %v2466 = vunpack.c.l.s4 1983009808
    %v2467 = vunpack.c.0.s8 %v2466
    %v2468 = vlaneseq
    %v2469 = vshrl.u32 %v2468, 7
    %v2470 = vsub.s32 %v2467, %v2469
    %v2471 = vrot.slane %v2457, %v2470
    %v2472 = vcombine.low %v2416, %v2432
    %v2473 = vcombine.high %v2416, %v2432
    %v2475 = vunpack.c.l.s4 1934713408
    %v2476 = vunpack.c.0.s8 %v2475
    %v2477 = vlaneseq
    %v2478 = vshrl.u32 %v2477, 7
    %v2479 = vsub.s32 %v2476, %v2478
    %v2480 = vrot.slane %v2472, %v2479
    %v2482 = vunpack.c.l.s4 1934713408
    %v2483 = vunpack.c.0.s8 %v2482
    %v2484 = vlaneseq
    %v2485 = vshrl.u32 %v2484, 7
    %v2486 = vsub.s32 %v2483, %v2485
    %v2487 = vrot.slane %v2473, %v2486
    %v2488 = vcombine.low %v2423, %v2439
    %v2489 = vcombine.high %v2423, %v2439
    %v2491 = vunpack.c.l.s4 1934713408
    %v2492 = vunpack.c.0.s8 %v2491
    %v2493 = vlaneseq
    %v2494 = vshrl.u32 %v2493, 7
    %v2495 = vsub.s32 %v2492, %v2494
    %v2496 = vrot.slane %v2488, %v2495
    %v2498 = vunpack.c.l.s4 1934713408
    %v2499 = vunpack.c.0.s8 %v2498
    %v2500 = vlaneseq
    %v2501 = vshrl.u32 %v2500, 7
    %v2502 = vsub.s32 %v2499, %v2501
    %v2503 = vrot.slane %v2489, %v2502
    %v2504 = vcombine.low %v2448, %v2464
    %v2505 = vcombine.high %v2448, %v2464
    %v2507 = vunpack.c.l.s4 1934713408
    %v2508 = vunpack.c.0.s8 %v2507
    %v2509 = vlaneseq
    %v2510 = vshrl.u32 %v2509, 7
    %v2511 = vsub.s32 %v2508, %v2510
    %v2512 = vrot.slane %v2504, %v2511
    %v2514 = vunpack.c.l.s4 1934713408
    %v2515 = vunpack.c.0.s8 %v2514
    %v2516 = vlaneseq
    %v2517 = vshrl.u32 %v2516, 7
    %v2518 = vsub.s32 %v2515, %v2517
    %v2519 = vrot.slane %v2505, %v2518
    %v2520 = vcombine.low %v2455, %v2471
    %v2521 = vcombine.high %v2455, %v2471
    %v2523 = vunpack.c.l.s4 1934713408
    %v2524 = vunpack.c.0.s8 %v2523
    %v2525 = vlaneseq
    %v2526 = vshrl.u32 %v2525, 7
    %v2527 = vsub.s32 %v2524, %v2526
    %v2528 = vrot.slane %v2520, %v2527
    %v2530 = vunpack.c.l.s4 1934713408
    %v2531 = vunpack.c.0.s8 %v2530
    %v2532 = vlaneseq
    %v2533 = vshrl.u32 %v2532, 7
    %v2534 = vsub.s32 %v2531, %v2533
    %v2535 = vrot.slane %v2521, %v2534
    %v2536 = vcombine.low %v2480, %v2512
    %v2537 = vcombine.high %v2480, %v2512
    %v2538 = vcombine.low %v2487, %v2519
    %v2539 = vcombine.high %v2487, %v2519
    %v2540 = vcombine.low %v2496, %v2528
    %v2541 = vcombine.high %v2496, %v2528
    %v2542 = vcombine.low %v2503, %v2535
    %v2543 = vcombine.high %v2503, %v2535
    %2548 = vrot.lane.b32.xlu0 %v1278, 96
    %v2549 = vpop.permute.xlu0 %2548
    %2550 = vrot.lane.b32.xlu0 %v1282, 96
    %v2551 = vpop.permute.xlu0 %2550
    %2552 = vrot.lane.b32.xlu0 %v1288, 96
    %v2553 = vpop.permute.xlu0 %2552
    %2554 = vrot.lane.b32.xlu0 %v1292, 96
    %v2555 = vpop.permute.xlu0 %2554
    %2560 = vrot.lane.b32.xlu0 %v1278, 64
    %v2561 = vpop.permute.xlu0 %2560
    %2562 = vrot.lane.b32.xlu0 %v1282, 64
    %v2563 = vpop.permute.xlu0 %2562
    %2564 = vrot.lane.b32.xlu0 %v1288, 64
    %v2565 = vpop.permute.xlu0 %2564
    %2566 = vrot.lane.b32.xlu0 %v1292, 64
    %v2567 = vpop.permute.xlu0 %2566
    %2572 = vrot.lane.b32.xlu0 %v1278, 32
    %v2573 = vpop.permute.xlu0 %2572
    %2574 = vrot.lane.b32.xlu0 %v1282, 32
    %v2575 = vpop.permute.xlu0 %2574
    %2576 = vrot.lane.b32.xlu0 %v1288, 32
    %v2577 = vpop.permute.xlu0 %2576
    %2578 = vrot.lane.b32.xlu0 %v1292, 32
    %v2579 = vpop.permute.xlu0 %2578
    %2588 = vrot.lane.b32.xlu0 %v1280, 96
    %v2589 = vpop.permute.xlu0 %2588
    %2590 = vrot.lane.b32.xlu0 %v1284, 96
    %v2591 = vpop.permute.xlu0 %2590
    %2592 = vrot.lane.b32.xlu0 %v1290, 96
    %v2593 = vpop.permute.xlu0 %2592
    %2594 = vrot.lane.b32.xlu0 %v1294, 96
    %v2595 = vpop.permute.xlu0 %2594
    %2600 = vrot.lane.b32.xlu0 %v1280, 64
    %v2601 = vpop.permute.xlu0 %2600
    %2602 = vrot.lane.b32.xlu0 %v1284, 64
    %v2603 = vpop.permute.xlu0 %2602
    %2604 = vrot.lane.b32.xlu0 %v1290, 64
    %v2605 = vpop.permute.xlu0 %2604
    %2606 = vrot.lane.b32.xlu0 %v1294, 64
    %v2607 = vpop.permute.xlu0 %2606
    %2612 = vrot.lane.b32.xlu0 %v1280, 32
    %v2613 = vpop.permute.xlu0 %2612
    %2614 = vrot.lane.b32.xlu0 %v1284, 32
    %v2615 = vpop.permute.xlu0 %2614
    %2616 = vrot.lane.b32.xlu0 %v1290, 32
    %v2617 = vpop.permute.xlu0 %2616
    %2618 = vrot.lane.b32.xlu0 %v1294, 32
    %v2619 = vpop.permute.xlu0 %2618
    %v2624 = vcombine.low %v1278, %v2561
    %v2625 = vcombine.high %v1278, %v2561
    %v2627 = vunpack.c.l.s4 1983009808
    %v2628 = vunpack.c.0.s8 %v2627
    %v2629 = vlaneseq
    %v2630 = vshrl.u32 %v2629, 7
    %v2631 = vsub.s32 %v2628, %v2630
    %v2632 = vrot.slane %v2624, %v2631
    %v2634 = vunpack.c.l.s4 1983009808
    %v2635 = vunpack.c.0.s8 %v2634
    %v2636 = vlaneseq
    %v2637 = vshrl.u32 %v2636, 7
    %v2638 = vsub.s32 %v2635, %v2637
    %v2639 = vrot.slane %v2625, %v2638
    %v2640 = vcombine.low %v2549, %v2573
    %v2641 = vcombine.high %v2549, %v2573
    %v2643 = vunpack.c.l.s4 1983009808
    %v2644 = vunpack.c.0.s8 %v2643
    %v2645 = vlaneseq
    %v2646 = vshrl.u32 %v2645, 7
    %v2647 = vsub.s32 %v2644, %v2646
    %v2648 = vrot.slane %v2640, %v2647
    %v2650 = vunpack.c.l.s4 1983009808
    %v2651 = vunpack.c.0.s8 %v2650
    %v2652 = vlaneseq
    %v2653 = vshrl.u32 %v2652, 7
    %v2654 = vsub.s32 %v2651, %v2653
    %v2655 = vrot.slane %v2641, %v2654
    %v2656 = vcombine.low %v1280, %v2601
    %v2657 = vcombine.high %v1280, %v2601
    %v2659 = vunpack.c.l.s4 1983009808
    %v2660 = vunpack.c.0.s8 %v2659
    %v2661 = vlaneseq
    %v2662 = vshrl.u32 %v2661, 7
    %v2663 = vsub.s32 %v2660, %v2662
    %v2664 = vrot.slane %v2656, %v2663
    %v2666 = vunpack.c.l.s4 1983009808
    %v2667 = vunpack.c.0.s8 %v2666
    %v2668 = vlaneseq
    %v2669 = vshrl.u32 %v2668, 7
    %v2670 = vsub.s32 %v2667, %v2669
    %v2671 = vrot.slane %v2657, %v2670
    %v2672 = vcombine.low %v2589, %v2613
    %v2673 = vcombine.high %v2589, %v2613
    %v2675 = vunpack.c.l.s4 1983009808
    %v2676 = vunpack.c.0.s8 %v2675
    %v2677 = vlaneseq
    %v2678 = vshrl.u32 %v2677, 7
    %v2679 = vsub.s32 %v2676, %v2678
    %v2680 = vrot.slane %v2672, %v2679
    %v2682 = vunpack.c.l.s4 1983009808
    %v2683 = vunpack.c.0.s8 %v2682
    %v2684 = vlaneseq
    %v2685 = vshrl.u32 %v2684, 7
    %v2686 = vsub.s32 %v2683, %v2685
    %v2687 = vrot.slane %v2673, %v2686
    %v2688 = vcombine.low %v2632, %v2648
    %v2689 = vcombine.high %v2632, %v2648
    %v2691 = vunpack.c.l.s4 1934713408
    %v2692 = vunpack.c.0.s8 %v2691
    %v2693 = vlaneseq
    %v2694 = vshrl.u32 %v2693, 7
    %v2695 = vsub.s32 %v2692, %v2694
    %v2696 = vrot.slane %v2688, %v2695
    %v2698 = vunpack.c.l.s4 1934713408
    %v2699 = vunpack.c.0.s8 %v2698
    %v2700 = vlaneseq
    %v2701 = vshrl.u32 %v2700, 7
    %v2702 = vsub.s32 %v2699, %v2701
    %v2703 = vrot.slane %v2689, %v2702
    %v2704 = vcombine.low %v2639, %v2655
    %v2705 = vcombine.high %v2639, %v2655
    %v2707 = vunpack.c.l.s4 1934713408
    %v2708 = vunpack.c.0.s8 %v2707
    %v2709 = vlaneseq
    %v2710 = vshrl.u32 %v2709, 7
    %v2711 = vsub.s32 %v2708, %v2710
    %v2712 = vrot.slane %v2704, %v2711
    %v2714 = vunpack.c.l.s4 1934713408
    %v2715 = vunpack.c.0.s8 %v2714
    %v2716 = vlaneseq
    %v2717 = vshrl.u32 %v2716, 7
    %v2718 = vsub.s32 %v2715, %v2717
    %v2719 = vrot.slane %v2705, %v2718
    %v2720 = vcombine.low %v2664, %v2680
    %v2721 = vcombine.high %v2664, %v2680
    %v2723 = vunpack.c.l.s4 1934713408
    %v2724 = vunpack.c.0.s8 %v2723
    %v2725 = vlaneseq
    %v2726 = vshrl.u32 %v2725, 7
    %v2727 = vsub.s32 %v2724, %v2726
    %v2728 = vrot.slane %v2720, %v2727
    %v2730 = vunpack.c.l.s4 1934713408
    %v2731 = vunpack.c.0.s8 %v2730
    %v2732 = vlaneseq
    %v2733 = vshrl.u32 %v2732, 7
    %v2734 = vsub.s32 %v2731, %v2733
    %v2735 = vrot.slane %v2721, %v2734
    %v2736 = vcombine.low %v2671, %v2687
    %v2737 = vcombine.high %v2671, %v2687
    %v2739 = vunpack.c.l.s4 1934713408
    %v2740 = vunpack.c.0.s8 %v2739
    %v2741 = vlaneseq
    %v2742 = vshrl.u32 %v2741, 7
    %v2743 = vsub.s32 %v2740, %v2742
    %v2744 = vrot.slane %v2736, %v2743
    %v2746 = vunpack.c.l.s4 1934713408
    %v2747 = vunpack.c.0.s8 %v2746
    %v2748 = vlaneseq
    %v2749 = vshrl.u32 %v2748, 7
    %v2750 = vsub.s32 %v2747, %v2749
    %v2751 = vrot.slane %v2737, %v2750
    %v2752 = vcombine.low %v2696, %v2728
    %v2753 = vcombine.high %v2696, %v2728
    %v2754 = vcombine.low %v2703, %v2735
    %v2755 = vcombine.high %v2703, %v2735
    %v2756 = vcombine.low %v2712, %v2744
    %v2757 = vcombine.high %v2712, %v2744
    %v2758 = vcombine.low %v2719, %v2751
    %v2759 = vcombine.high %v2719, %v2751
    %v2760 = vcombine.low %v1282, %v2563
    %v2761 = vcombine.high %v1282, %v2563
    %v2763 = vunpack.c.l.s4 1983009808
    %v2764 = vunpack.c.0.s8 %v2763
    %v2765 = vlaneseq
    %v2766 = vshrl.u32 %v2765, 7
    %v2767 = vsub.s32 %v2764, %v2766
    %v2768 = vrot.slane %v2760, %v2767
    %v2770 = vunpack.c.l.s4 1983009808
    %v2771 = vunpack.c.0.s8 %v2770
    %v2772 = vlaneseq
    %v2773 = vshrl.u32 %v2772, 7
    %v2774 = vsub.s32 %v2771, %v2773
    %v2775 = vrot.slane %v2761, %v2774
    %v2776 = vcombine.low %v2551, %v2575
    %v2777 = vcombine.high %v2551, %v2575
    %v2779 = vunpack.c.l.s4 1983009808
    %v2780 = vunpack.c.0.s8 %v2779
    %v2781 = vlaneseq
    %v2782 = vshrl.u32 %v2781, 7
    %v2783 = vsub.s32 %v2780, %v2782
    %v2784 = vrot.slane %v2776, %v2783
    %v2786 = vunpack.c.l.s4 1983009808
    %v2787 = vunpack.c.0.s8 %v2786
    %v2788 = vlaneseq
    %v2789 = vshrl.u32 %v2788, 7
    %v2790 = vsub.s32 %v2787, %v2789
    %v2791 = vrot.slane %v2777, %v2790
    %v2792 = vcombine.low %v1284, %v2603
    %v2793 = vcombine.high %v1284, %v2603
    %v2795 = vunpack.c.l.s4 1983009808
    %v2796 = vunpack.c.0.s8 %v2795
    %v2797 = vlaneseq
    %v2798 = vshrl.u32 %v2797, 7
    %v2799 = vsub.s32 %v2796, %v2798
    %v2800 = vrot.slane %v2792, %v2799
    %v2802 = vunpack.c.l.s4 1983009808
    %v2803 = vunpack.c.0.s8 %v2802
    %v2804 = vlaneseq
    %v2805 = vshrl.u32 %v2804, 7
    %v2806 = vsub.s32 %v2803, %v2805
    %v2807 = vrot.slane %v2793, %v2806
    %v2808 = vcombine.low %v2591, %v2615
    %v2809 = vcombine.high %v2591, %v2615
    %v2811 = vunpack.c.l.s4 1983009808
    %v2812 = vunpack.c.0.s8 %v2811
    %v2813 = vlaneseq
    %v2814 = vshrl.u32 %v2813, 7
    %v2815 = vsub.s32 %v2812, %v2814
    %v2816 = vrot.slane %v2808, %v2815
    %v2818 = vunpack.c.l.s4 1983009808
    %v2819 = vunpack.c.0.s8 %v2818
    %v2820 = vlaneseq
    %v2821 = vshrl.u32 %v2820, 7
    %v2822 = vsub.s32 %v2819, %v2821
    %v2823 = vrot.slane %v2809, %v2822
    %v2824 = vcombine.low %v2768, %v2784
    %v2825 = vcombine.high %v2768, %v2784
    %v2827 = vunpack.c.l.s4 1934713408
    %v2828 = vunpack.c.0.s8 %v2827
    %v2829 = vlaneseq
    %v2830 = vshrl.u32 %v2829, 7
    %v2831 = vsub.s32 %v2828, %v2830
    %v2832 = vrot.slane %v2824, %v2831
    %v2834 = vunpack.c.l.s4 1934713408
    %v2835 = vunpack.c.0.s8 %v2834
    %v2836 = vlaneseq
    %v2837 = vshrl.u32 %v2836, 7
    %v2838 = vsub.s32 %v2835, %v2837
    %v2839 = vrot.slane %v2825, %v2838
    %v2840 = vcombine.low %v2775, %v2791
    %v2841 = vcombine.high %v2775, %v2791
    %v2843 = vunpack.c.l.s4 1934713408
    %v2844 = vunpack.c.0.s8 %v2843
    %v2845 = vlaneseq
    %v2846 = vshrl.u32 %v2845, 7
    %v2847 = vsub.s32 %v2844, %v2846
    %v2848 = vrot.slane %v2840, %v2847
    %v2850 = vunpack.c.l.s4 1934713408
    %v2851 = vunpack.c.0.s8 %v2850
    %v2852 = vlaneseq
    %v2853 = vshrl.u32 %v2852, 7
    %v2854 = vsub.s32 %v2851, %v2853
    %v2855 = vrot.slane %v2841, %v2854
    %v2856 = vcombine.low %v2800, %v2816
    %v2857 = vcombine.high %v2800, %v2816
    %v2859 = vunpack.c.l.s4 1934713408
    %v2860 = vunpack.c.0.s8 %v2859
    %v2861 = vlaneseq
    %v2862 = vshrl.u32 %v2861, 7
    %v2863 = vsub.s32 %v2860, %v2862
    %v2864 = vrot.slane %v2856, %v2863
    %v2866 = vunpack.c.l.s4 1934713408
    %v2867 = vunpack.c.0.s8 %v2866
    %v2868 = vlaneseq
    %v2869 = vshrl.u32 %v2868, 7
    %v2870 = vsub.s32 %v2867, %v2869
    %v2871 = vrot.slane %v2857, %v2870
    %v2872 = vcombine.low %v2807, %v2823
    %v2873 = vcombine.high %v2807, %v2823
    %v2875 = vunpack.c.l.s4 1934713408
    %v2876 = vunpack.c.0.s8 %v2875
    %v2877 = vlaneseq
    %v2878 = vshrl.u32 %v2877, 7
    %v2879 = vsub.s32 %v2876, %v2878
    %v2880 = vrot.slane %v2872, %v2879
    %v2882 = vunpack.c.l.s4 1934713408
    %v2883 = vunpack.c.0.s8 %v2882
    %v2884 = vlaneseq
    %v2885 = vshrl.u32 %v2884, 7
    %v2886 = vsub.s32 %v2883, %v2885
    %v2887 = vrot.slane %v2873, %v2886
    %v2888 = vcombine.low %v2832, %v2864
    %v2889 = vcombine.high %v2832, %v2864
    %v2890 = vcombine.low %v2839, %v2871
    %v2891 = vcombine.high %v2839, %v2871
    %v2892 = vcombine.low %v2848, %v2880
    %v2893 = vcombine.high %v2848, %v2880
    %v2894 = vcombine.low %v2855, %v2887
    %v2895 = vcombine.high %v2855, %v2887
    %v2896 = vcombine.low %v1288, %v2565
    %v2897 = vcombine.high %v1288, %v2565
    %v2899 = vunpack.c.l.s4 1983009808
    %v2900 = vunpack.c.0.s8 %v2899
    %v2901 = vlaneseq
    %v2902 = vshrl.u32 %v2901, 7
    %v2903 = vsub.s32 %v2900, %v2902
    %v2904 = vrot.slane %v2896, %v2903
    %v2906 = vunpack.c.l.s4 1983009808
    %v2907 = vunpack.c.0.s8 %v2906
    %v2908 = vlaneseq
    %v2909 = vshrl.u32 %v2908, 7
    %v2910 = vsub.s32 %v2907, %v2909
    %v2911 = vrot.slane %v2897, %v2910
    %v2912 = vcombine.low %v2553, %v2577
    %v2913 = vcombine.high %v2553, %v2577
    %v2915 = vunpack.c.l.s4 1983009808
    %v2916 = vunpack.c.0.s8 %v2915
    %v2917 = vlaneseq
    %v2918 = vshrl.u32 %v2917, 7
    %v2919 = vsub.s32 %v2916, %v2918
    %v2920 = vrot.slane %v2912, %v2919
    %v2922 = vunpack.c.l.s4 1983009808
    %v2923 = vunpack.c.0.s8 %v2922
    %v2924 = vlaneseq
    %v2925 = vshrl.u32 %v2924, 7
    %v2926 = vsub.s32 %v2923, %v2925
    %v2927 = vrot.slane %v2913, %v2926
    %v2928 = vcombine.low %v1290, %v2605
    %v2929 = vcombine.high %v1290, %v2605
    %v2931 = vunpack.c.l.s4 1983009808
    %v2932 = vunpack.c.0.s8 %v2931
    %v2933 = vlaneseq
    %v2934 = vshrl.u32 %v2933, 7
    %v2935 = vsub.s32 %v2932, %v2934
    %v2936 = vrot.slane %v2928, %v2935
    %v2938 = vunpack.c.l.s4 1983009808
    %v2939 = vunpack.c.0.s8 %v2938
    %v2940 = vlaneseq
    %v2941 = vshrl.u32 %v2940, 7
    %v2942 = vsub.s32 %v2939, %v2941
    %v2943 = vrot.slane %v2929, %v2942
    %v2944 = vcombine.low %v2593, %v2617
    %v2945 = vcombine.high %v2593, %v2617
    %v2947 = vunpack.c.l.s4 1983009808
    %v2948 = vunpack.c.0.s8 %v2947
    %v2949 = vlaneseq
    %v2950 = vshrl.u32 %v2949, 7
    %v2951 = vsub.s32 %v2948, %v2950
    %v2952 = vrot.slane %v2944, %v2951
    %v2954 = vunpack.c.l.s4 1983009808
    %v2955 = vunpack.c.0.s8 %v2954
    %v2956 = vlaneseq
    %v2957 = vshrl.u32 %v2956, 7
    %v2958 = vsub.s32 %v2955, %v2957
    %v2959 = vrot.slane %v2945, %v2958
    %v2960 = vcombine.low %v2904, %v2920
    %v2961 = vcombine.high %v2904, %v2920
    %v2963 = vunpack.c.l.s4 1934713408
    %v2964 = vunpack.c.0.s8 %v2963
    %v2965 = vlaneseq
    %v2966 = vshrl.u32 %v2965, 7
    %v2967 = vsub.s32 %v2964, %v2966
    %v2968 = vrot.slane %v2960, %v2967
    %v2970 = vunpack.c.l.s4 1934713408
    %v2971 = vunpack.c.0.s8 %v2970
    %v2972 = vlaneseq
    %v2973 = vshrl.u32 %v2972, 7
    %v2974 = vsub.s32 %v2971, %v2973
    %v2975 = vrot.slane %v2961, %v2974
    %v2976 = vcombine.low %v2911, %v2927
    %v2977 = vcombine.high %v2911, %v2927
    %v2979 = vunpack.c.l.s4 1934713408
    %v2980 = vunpack.c.0.s8 %v2979
    %v2981 = vlaneseq
    %v2982 = vshrl.u32 %v2981, 7
    %v2983 = vsub.s32 %v2980, %v2982
    %v2984 = vrot.slane %v2976, %v2983
    %v2986 = vunpack.c.l.s4 1934713408
    %v2987 = vunpack.c.0.s8 %v2986
    %v2988 = vlaneseq
    %v2989 = vshrl.u32 %v2988, 7
    %v2990 = vsub.s32 %v2987, %v2989
    %v2991 = vrot.slane %v2977, %v2990
    %v2992 = vcombine.low %v2936, %v2952
    %v2993 = vcombine.high %v2936, %v2952
    %v2995 = vunpack.c.l.s4 1934713408
    %v2996 = vunpack.c.0.s8 %v2995
    %v2997 = vlaneseq
    %v2998 = vshrl.u32 %v2997, 7
    %v2999 = vsub.s32 %v2996, %v2998
    %v3000 = vrot.slane %v2992, %v2999
    %v3002 = vunpack.c.l.s4 1934713408
    %v3003 = vunpack.c.0.s8 %v3002
    %v3004 = vlaneseq
    %v3005 = vshrl.u32 %v3004, 7
    %v3006 = vsub.s32 %v3003, %v3005
    %v3007 = vrot.slane %v2993, %v3006
    %v3008 = vcombine.low %v2943, %v2959
    %v3009 = vcombine.high %v2943, %v2959
    %v3011 = vunpack.c.l.s4 1934713408
    %v3012 = vunpack.c.0.s8 %v3011
    %v3013 = vlaneseq
    %v3014 = vshrl.u32 %v3013, 7
    %v3015 = vsub.s32 %v3012, %v3014
    %v3016 = vrot.slane %v3008, %v3015
    %v3018 = vunpack.c.l.s4 1934713408
    %v3019 = vunpack.c.0.s8 %v3018
    %v3020 = vlaneseq
    %v3021 = vshrl.u32 %v3020, 7
    %v3022 = vsub.s32 %v3019, %v3021
    %v3023 = vrot.slane %v3009, %v3022
    %v3024 = vcombine.low %v2968, %v3000
    %v3025 = vcombine.high %v2968, %v3000
    %v3026 = vcombine.low %v2975, %v3007
    %v3027 = vcombine.high %v2975, %v3007
    %v3028 = vcombine.low %v2984, %v3016
    %v3029 = vcombine.high %v2984, %v3016
    %v3030 = vcombine.low %v2991, %v3023
    %v3031 = vcombine.high %v2991, %v3023
    %v3032 = vcombine.low %v1292, %v2567
    %v3033 = vcombine.high %v1292, %v2567
    %v3035 = vunpack.c.l.s4 1983009808
    %v3036 = vunpack.c.0.s8 %v3035
    %v3037 = vlaneseq
    %v3038 = vshrl.u32 %v3037, 7
    %v3039 = vsub.s32 %v3036, %v3038
    %v3040 = vrot.slane %v3032, %v3039
    %v3042 = vunpack.c.l.s4 1983009808
    %v3043 = vunpack.c.0.s8 %v3042
    %v3044 = vlaneseq
    %v3045 = vshrl.u32 %v3044, 7
    %v3046 = vsub.s32 %v3043, %v3045
    %v3047 = vrot.slane %v3033, %v3046
    %v3048 = vcombine.low %v2555, %v2579
    %v3049 = vcombine.high %v2555, %v2579
    %v3051 = vunpack.c.l.s4 1983009808
    %v3052 = vunpack.c.0.s8 %v3051
    %v3053 = vlaneseq
    %v3054 = vshrl.u32 %v3053, 7
    %v3055 = vsub.s32 %v3052, %v3054
    %v3056 = vrot.slane %v3048, %v3055
    %v3058 = vunpack.c.l.s4 1983009808
    %v3059 = vunpack.c.0.s8 %v3058
    %v3060 = vlaneseq
    %v3061 = vshrl.u32 %v3060, 7
    %v3062 = vsub.s32 %v3059, %v3061
    %v3063 = vrot.slane %v3049, %v3062
    %v3064 = vcombine.low %v1294, %v2607
    %v3065 = vcombine.high %v1294, %v2607
    %v3067 = vunpack.c.l.s4 1983009808
    %v3068 = vunpack.c.0.s8 %v3067
    %v3069 = vlaneseq
    %v3070 = vshrl.u32 %v3069, 7
    %v3071 = vsub.s32 %v3068, %v3070
    %v3072 = vrot.slane %v3064, %v3071
    %v3074 = vunpack.c.l.s4 1983009808
    %v3075 = vunpack.c.0.s8 %v3074
    %v3076 = vlaneseq
    %v3077 = vshrl.u32 %v3076, 7
    %v3078 = vsub.s32 %v3075, %v3077
    %v3079 = vrot.slane %v3065, %v3078
    %v3080 = vcombine.low %v2595, %v2619
    %v3081 = vcombine.high %v2595, %v2619
    %v3083 = vunpack.c.l.s4 1983009808
    %v3084 = vunpack.c.0.s8 %v3083
    %v3085 = vlaneseq
    %v3086 = vshrl.u32 %v3085, 7
    %v3087 = vsub.s32 %v3084, %v3086
    %v3088 = vrot.slane %v3080, %v3087
    %v3090 = vunpack.c.l.s4 1983009808
    %v3091 = vunpack.c.0.s8 %v3090
    %v3092 = vlaneseq
    %v3093 = vshrl.u32 %v3092, 7
    %v3094 = vsub.s32 %v3091, %v3093
    %v3095 = vrot.slane %v3081, %v3094
    %v3096 = vcombine.low %v3040, %v3056
    %v3097 = vcombine.high %v3040, %v3056
    %v3099 = vunpack.c.l.s4 1934713408
    %v3100 = vunpack.c.0.s8 %v3099
    %v3101 = vlaneseq
    %v3102 = vshrl.u32 %v3101, 7
    %v3103 = vsub.s32 %v3100, %v3102
    %v3104 = vrot.slane %v3096, %v3103
    %v3106 = vunpack.c.l.s4 1934713408
    %v3107 = vunpack.c.0.s8 %v3106
    %v3108 = vlaneseq
    %v3109 = vshrl.u32 %v3108, 7
    %v3110 = vsub.s32 %v3107, %v3109
    %v3111 = vrot.slane %v3097, %v3110
    %v3112 = vcombine.low %v3047, %v3063
    %v3113 = vcombine.high %v3047, %v3063
    %v3115 = vunpack.c.l.s4 1934713408
    %v3116 = vunpack.c.0.s8 %v3115
    %v3117 = vlaneseq
    %v3118 = vshrl.u32 %v3117, 7
    %v3119 = vsub.s32 %v3116, %v3118
    %v3120 = vrot.slane %v3112, %v3119
    %v3122 = vunpack.c.l.s4 1934713408
    %v3123 = vunpack.c.0.s8 %v3122
    %v3124 = vlaneseq
    %v3125 = vshrl.u32 %v3124, 7
    %v3126 = vsub.s32 %v3123, %v3125
    %v3127 = vrot.slane %v3113, %v3126
    %v3128 = vcombine.low %v3072, %v3088
    %v3129 = vcombine.high %v3072, %v3088
    %v3131 = vunpack.c.l.s4 1934713408
    %v3132 = vunpack.c.0.s8 %v3131
    %v3133 = vlaneseq
    %v3134 = vshrl.u32 %v3133, 7
    %v3135 = vsub.s32 %v3132, %v3134
    %v3136 = vrot.slane %v3128, %v3135
    %v3138 = vunpack.c.l.s4 1934713408
    %v3139 = vunpack.c.0.s8 %v3138
    %v3140 = vlaneseq
    %v3141 = vshrl.u32 %v3140, 7
    %v3142 = vsub.s32 %v3139, %v3141
    %v3143 = vrot.slane %v3129, %v3142
    %v3144 = vcombine.low %v3079, %v3095
    %v3145 = vcombine.high %v3079, %v3095
    %v3147 = vunpack.c.l.s4 1934713408
    %v3148 = vunpack.c.0.s8 %v3147
    %v3149 = vlaneseq
    %v3150 = vshrl.u32 %v3149, 7
    %v3151 = vsub.s32 %v3148, %v3150
    %v3152 = vrot.slane %v3144, %v3151
    %v3154 = vunpack.c.l.s4 1934713408
    %v3155 = vunpack.c.0.s8 %v3154
    %v3156 = vlaneseq
    %v3157 = vshrl.u32 %v3156, 7
    %v3158 = vsub.s32 %v3155, %v3157
    %v3159 = vrot.slane %v3145, %v3158
    %v3160 = vcombine.low %v3104, %v3136
    %v3161 = vcombine.high %v3104, %v3136
    %v3162 = vcombine.low %v3111, %v3143
    %v3163 = vcombine.high %v3111, %v3143
    %v3164 = vcombine.low %v3120, %v3152
    %v3165 = vcombine.high %v3120, %v3152
    %v3166 = vcombine.low %v3127, %v3159
    %v3167 = vcombine.high %v3127, %v3159
    %vm3168 = vcmask 261120
    %v3170 = vsel %vm3168, %v1504, 0
    %v3173 = vsel %vm3168, %v2128, 0
    %3175 = vmatprep.subr.mxu0 0.0
    %3176 = vmatpush1.xpose.msra.mxu0 0.0
    %3177 = vmatprep.subr.mxu0 0.0
    %3178 = vmatpush1.xpose.msra.mxu0 0.0
    %3179 = vmatprep.subr.mxu0 0.0
    %3180 = vmatpush1.xpose.msra.mxu0 0.0
    %3181 = vmatprep.subr.mxu0 0.0
    %3182 = vmatpush1.xpose.msra.mxu0 0.0
    %3183 = vmatprep.subr.mxu0 0.0
    %3184 = vmatpush1.xpose.msra.mxu0 0.0
    %3185 = vmatprep.subr.mxu0 0.0
    %3186 = vmatpush1.xpose.msra.mxu0 0.0
    %3187 = vmatprep.subr.mxu0 0.0
    %3188 = vmatpush1.xpose.msra.mxu0 0.0
    %3189 = vmatprep.subr.mxu0 0.0
    %3190 = vmatpush1.xpose.msra.mxu0 0.0
    %3191 = vmatprep.subr.mxu0 0.0
    %3192 = vmatpush1.xpose.msra.mxu0 0.0
    %3193 = vmatprep.subr.mxu0 0.0
    %3194 = vmatpush1.xpose.msra.mxu0 0.0
    %3195 = vmatprep.subr.mxu0 0.0
    %3196 = vmatpush1.xpose.msra.mxu0 0.0
    %3197 = vmatprep.subr.mxu0 0.0
    %3198 = vmatpush1.xpose.msra.mxu0 0.0
    %3199 = vmatprep.subr.mxu0 0.0
    %3200 = vmatpush1.xpose.msra.mxu0 0.0
    %3201 = vmatprep.subr.mxu0 0.0
    %3202 = vmatpush1.xpose.msra.mxu0 0.0
    %3203 = vmatprep.subr.mxu0 0.0
    %3204 = vmatpush1.xpose.msra.mxu0 0.0
    %3205 = vmatprep.subr.mxu0 0.0
    %3206 = vmatpush1.xpose.msra.mxu0 %v3173
    %3207 = vmatprep.subr.mxu0 0.0
    %3208 = vmatpush2.xpose.msra.mxu0 0.0
    %3209 = vmatprep.subr.mxu0 0.0
    %3210 = vmatpush2.xpose.msra.mxu0 0.0
    %3211 = vmatprep.subr.mxu0 0.0
    %3212 = vmatpush2.xpose.msra.mxu0 0.0
    %3213 = vmatprep.subr.mxu0 0.0
    %3214 = vmatpush2.xpose.msra.mxu0 0.0
    %3215 = vmatprep.subr.mxu0 0.0
    %3216 = vmatpush2.xpose.msra.mxu0 0.0
    %3217 = vmatprep.subr.mxu0 0.0
    %3218 = vmatpush2.xpose.msra.mxu0 0.0
    %3219 = vmatprep.subr.mxu0 0.0
    %3220 = vmatpush2.xpose.msra.mxu0 0.0
    %3221 = vmatprep.subr.mxu0 0.0
    %3222 = vmatpush2.xpose.msra.mxu0 0.0
    %3223 = vmatprep.subr.mxu0 0.0
    %3224 = vmatpush2.xpose.msra.mxu0 0.0
    %3225 = vmatprep.subr.mxu0 0.0
    %3226 = vmatpush2.xpose.msra.mxu0 0.0
    %3227 = vmatprep.subr.mxu0 0.0
    %3228 = vmatpush2.xpose.msra.mxu0 0.0
    %3229 = vmatprep.subr.mxu0 0.0
    %3230 = vmatpush2.xpose.msra.mxu0 0.0
    %3231 = vmatprep.subr.mxu0 0.0
    %3232 = vmatpush2.xpose.msra.mxu0 0.0
    %3233 = vmatprep.subr.mxu0 0.0
    %3234 = vmatpush2.xpose.msra.mxu0 0.0
    %3235 = vmatprep.subr.mxu0 0.0
    %3236 = vmatpush2.xpose.msra.mxu0 0.0
    %3237 = vmatprep.subr.mxu0 0.0
    %3238 = vmatpush2.xpose.msra.mxu0 0.0
    %3239 = vmatprep.mubr.f32.mxu0 0.0
    %3240 = vmatmul.mubr.f32.gmra.mxu0 %v3170
    %v3241 = vpop.f32.mrf.mxu0
    %v3242 = vadd.f32 0.0, %v3241
    %v3243 = vpop.f32.mrf.mxu0
    %3244 = vdwg.mxu0
    %v3246 = vsel %vm3168, %v1505, 0
    %v3249 = vsel %vm3168, %v2129, 0
    %3251 = vmatprep.subr.mxu0 0.0
    %3252 = vmatpush1.xpose.msra.mxu0 0.0
    %3253 = vmatprep.subr.mxu0 0.0
    %3254 = vmatpush1.xpose.msra.mxu0 0.0
    %3255 = vmatprep.subr.mxu0 0.0
    %3256 = vmatpush1.xpose.msra.mxu0 0.0
    %3257 = vmatprep.subr.mxu0 0.0
    %3258 = vmatpush1.xpose.msra.mxu0 0.0
    %3259 = vmatprep.subr.mxu0 0.0
    %3260 = vmatpush1.xpose.msra.mxu0 0.0
    %3261 = vmatprep.subr.mxu0 0.0
    %3262 = vmatpush1.xpose.msra.mxu0 0.0
    %3263 = vmatprep.subr.mxu0 0.0
    %3264 = vmatpush1.xpose.msra.mxu0 0.0
    %3265 = vmatprep.subr.mxu0 0.0
    %3266 = vmatpush1.xpose.msra.mxu0 0.0
    %3267 = vmatprep.subr.mxu0 0.0
    %3268 = vmatpush1.xpose.msra.mxu0 0.0
    %3269 = vmatprep.subr.mxu0 0.0
    %3270 = vmatpush1.xpose.msra.mxu0 0.0
    %3271 = vmatprep.subr.mxu0 0.0
    %3272 = vmatpush1.xpose.msra.mxu0 0.0
    %3273 = vmatprep.subr.mxu0 0.0
    %3274 = vmatpush1.xpose.msra.mxu0 0.0
    %3275 = vmatprep.subr.mxu0 0.0
    %3276 = vmatpush1.xpose.msra.mxu0 0.0
    %3277 = vmatprep.subr.mxu0 0.0
    %3278 = vmatpush1.xpose.msra.mxu0 0.0
    %3279 = vmatprep.subr.mxu0 0.0
    %3280 = vmatpush1.xpose.msra.mxu0 0.0
    %3281 = vmatprep.subr.mxu0 0.0
    %3282 = vmatpush1.xpose.msra.mxu0 %v3249
    %3283 = vmatprep.subr.mxu0 0.0
    %3284 = vmatpush2.xpose.msra.mxu0 0.0
    %3285 = vmatprep.subr.mxu0 0.0
    %3286 = vmatpush2.xpose.msra.mxu0 0.0
    %3287 = vmatprep.subr.mxu0 0.0
    %3288 = vmatpush2.xpose.msra.mxu0 0.0
    %3289 = vmatprep.subr.mxu0 0.0
    %3290 = vmatpush2.xpose.msra.mxu0 0.0
    %3291 = vmatprep.subr.mxu0 0.0
    %3292 = vmatpush2.xpose.msra.mxu0 0.0
    %3293 = vmatprep.subr.mxu0 0.0
    %3294 = vmatpush2.xpose.msra.mxu0 0.0
    %3295 = vmatprep.subr.mxu0 0.0
    %3296 = vmatpush2.xpose.msra.mxu0 0.0
    %3297 = vmatprep.subr.mxu0 0.0
    %3298 = vmatpush2.xpose.msra.mxu0 0.0
    %3299 = vmatprep.subr.mxu0 0.0
    %3300 = vmatpush2.xpose.msra.mxu0 0.0
    %3301 = vmatprep.subr.mxu0 0.0
    %3302 = vmatpush2.xpose.msra.mxu0 0.0
    %3303 = vmatprep.subr.mxu0 0.0
    %3304 = vmatpush2.xpose.msra.mxu0 0.0
    %3305 = vmatprep.subr.mxu0 0.0
    %3306 = vmatpush2.xpose.msra.mxu0 0.0
    %3307 = vmatprep.subr.mxu0 0.0
    %3308 = vmatpush2.xpose.msra.mxu0 0.0
    %3309 = vmatprep.subr.mxu0 0.0
    %3310 = vmatpush2.xpose.msra.mxu0 0.0
    %3311 = vmatprep.subr.mxu0 0.0
    %3312 = vmatpush2.xpose.msra.mxu0 0.0
    %3313 = vmatprep.subr.mxu0 0.0
    %3314 = vmatpush2.xpose.msra.mxu0 0.0
    %3315 = vmatprep.mubr.f32.mxu0 0.0
    %3316 = vmatmul.mubr.f32.gmra.mxu0 %v3246
    %v3317 = vpop.f32.mrf.mxu0
    %v3318 = vadd.f32 0.0, %v3317
    %v3319 = vpop.f32.mrf.mxu0
    %3320 = vdwg.mxu0
    %v3322 = vsel %vm3168, %v1506, 0
    %v3325 = vsel %vm3168, %v2130, 0
    %3327 = vmatprep.subr.mxu0 0.0
    %3328 = vmatpush1.xpose.msra.mxu0 0.0
    %3329 = vmatprep.subr.mxu0 0.0
    %3330 = vmatpush1.xpose.msra.mxu0 0.0
    %3331 = vmatprep.subr.mxu0 0.0
    %3332 = vmatpush1.xpose.msra.mxu0 0.0
    %3333 = vmatprep.subr.mxu0 0.0
    %3334 = vmatpush1.xpose.msra.mxu0 0.0
    %3335 = vmatprep.subr.mxu0 0.0
    %3336 = vmatpush1.xpose.msra.mxu0 0.0
    %3337 = vmatprep.subr.mxu0 0.0
    %3338 = vmatpush1.xpose.msra.mxu0 0.0
    %3339 = vmatprep.subr.mxu0 0.0
    %3340 = vmatpush1.xpose.msra.mxu0 0.0
    %3341 = vmatprep.subr.mxu0 0.0
    %3342 = vmatpush1.xpose.msra.mxu0 0.0
    %3343 = vmatprep.subr.mxu0 0.0
    %3344 = vmatpush1.xpose.msra.mxu0 0.0
    %3345 = vmatprep.subr.mxu0 0.0
    %3346 = vmatpush1.xpose.msra.mxu0 0.0
    %3347 = vmatprep.subr.mxu0 0.0
    %3348 = vmatpush1.xpose.msra.mxu0 0.0
    %3349 = vmatprep.subr.mxu0 0.0
    %3350 = vmatpush1.xpose.msra.mxu0 0.0
    %3351 = vmatprep.subr.mxu0 0.0
    %3352 = vmatpush1.xpose.msra.mxu0 0.0
    %3353 = vmatprep.subr.mxu0 0.0
    %3354 = vmatpush1.xpose.msra.mxu0 0.0
    %3355 = vmatprep.subr.mxu0 0.0
    %3356 = vmatpush1.xpose.msra.mxu0 0.0
    %3357 = vmatprep.subr.mxu0 0.0
    %3358 = vmatpush1.xpose.msra.mxu0 %v3325
    %3359 = vmatprep.subr.mxu0 0.0
    %3360 = vmatpush2.xpose.msra.mxu0 0.0
    %3361 = vmatprep.subr.mxu0 0.0
    %3362 = vmatpush2.xpose.msra.mxu0 0.0
    %3363 = vmatprep.subr.mxu0 0.0
    %3364 = vmatpush2.xpose.msra.mxu0 0.0
    %3365 = vmatprep.subr.mxu0 0.0
    %3366 = vmatpush2.xpose.msra.mxu0 0.0
    %3367 = vmatprep.subr.mxu0 0.0
    %3368 = vmatpush2.xpose.msra.mxu0 0.0
    %3369 = vmatprep.subr.mxu0 0.0
    %3370 = vmatpush2.xpose.msra.mxu0 0.0
    %3371 = vmatprep.subr.mxu0 0.0
    %3372 = vmatpush2.xpose.msra.mxu0 0.0
    %3373 = vmatprep.subr.mxu0 0.0
    %3374 = vmatpush2.xpose.msra.mxu0 0.0
    %3375 = vmatprep.subr.mxu0 0.0
    %3376 = vmatpush2.xpose.msra.mxu0 0.0
    %3377 = vmatprep.subr.mxu0 0.0
    %3378 = vmatpush2.xpose.msra.mxu0 0.0
    %3379 = vmatprep.subr.mxu0 0.0
    %3380 = vmatpush2.xpose.msra.mxu0 0.0
    %3381 = vmatprep.subr.mxu0 0.0
    %3382 = vmatpush2.xpose.msra.mxu0 0.0
    %3383 = vmatprep.subr.mxu0 0.0
    %3384 = vmatpush2.xpose.msra.mxu0 0.0
    %3385 = vmatprep.subr.mxu0 0.0
    %3386 = vmatpush2.xpose.msra.mxu0 0.0
    %3387 = vmatprep.subr.mxu0 0.0
    %3388 = vmatpush2.xpose.msra.mxu0 0.0
    %3389 = vmatprep.subr.mxu0 0.0
    %3390 = vmatpush2.xpose.msra.mxu0 0.0
    %3391 = vmatprep.mubr.f32.mxu0 0.0
    %3392 = vmatmul.mubr.f32.gmra.mxu0 %v3322
    %v3393 = vpop.f32.mrf.mxu0
    %v3394 = vadd.f32 0.0, %v3393
    %v3395 = vpop.f32.mrf.mxu0
    %3396 = vdwg.mxu0
    %v3398 = vsel %vm3168, %v1507, 0
    %v3401 = vsel %vm3168, %v2131, 0
    %3403 = vmatprep.subr.mxu0 0.0
    %3404 = vmatpush1.xpose.msra.mxu0 0.0
    %3405 = vmatprep.subr.mxu0 0.0
    %3406 = vmatpush1.xpose.msra.mxu0 0.0
    %3407 = vmatprep.subr.mxu0 0.0
    %3408 = vmatpush1.xpose.msra.mxu0 0.0
    %3409 = vmatprep.subr.mxu0 0.0
    %3410 = vmatpush1.xpose.msra.mxu0 0.0
    %3411 = vmatprep.subr.mxu0 0.0
    %3412 = vmatpush1.xpose.msra.mxu0 0.0
    %3413 = vmatprep.subr.mxu0 0.0
    %3414 = vmatpush1.xpose.msra.mxu0 0.0
    %3415 = vmatprep.subr.mxu0 0.0
    %3416 = vmatpush1.xpose.msra.mxu0 0.0
    %3417 = vmatprep.subr.mxu0 0.0
    %3418 = vmatpush1.xpose.msra.mxu0 0.0
    %3419 = vmatprep.subr.mxu0 0.0
    %3420 = vmatpush1.xpose.msra.mxu0 0.0
    %3421 = vmatprep.subr.mxu0 0.0
    %3422 = vmatpush1.xpose.msra.mxu0 0.0
    %3423 = vmatprep.subr.mxu0 0.0
    %3424 = vmatpush1.xpose.msra.mxu0 0.0
    %3425 = vmatprep.subr.mxu0 0.0
    %3426 = vmatpush1.xpose.msra.mxu0 0.0
    %3427 = vmatprep.subr.mxu0 0.0
    %3428 = vmatpush1.xpose.msra.mxu0 0.0
    %3429 = vmatprep.subr.mxu0 0.0
    %3430 = vmatpush1.xpose.msra.mxu0 0.0
    %3431 = vmatprep.subr.mxu0 0.0
    %3432 = vmatpush1.xpose.msra.mxu0 0.0
    %3433 = vmatprep.subr.mxu0 0.0
    %3434 = vmatpush1.xpose.msra.mxu0 %v3401
    %3435 = vmatprep.subr.mxu0 0.0
    %3436 = vmatpush2.xpose.msra.mxu0 0.0
    %3437 = vmatprep.subr.mxu0 0.0
    %3438 = vmatpush2.xpose.msra.mxu0 0.0
    %3439 = vmatprep.subr.mxu0 0.0
    %3440 = vmatpush2.xpose.msra.mxu0 0.0
    %3441 = vmatprep.subr.mxu0 0.0
    %3442 = vmatpush2.xpose.msra.mxu0 0.0
    %3443 = vmatprep.subr.mxu0 0.0
    %3444 = vmatpush2.xpose.msra.mxu0 0.0
    %3445 = vmatprep.subr.mxu0 0.0
    %3446 = vmatpush2.xpose.msra.mxu0 0.0
    %3447 = vmatprep.subr.mxu0 0.0
    %3448 = vmatpush2.xpose.msra.mxu0 0.0
    %3449 = vmatprep.subr.mxu0 0.0
    %3450 = vmatpush2.xpose.msra.mxu0 0.0
    %3451 = vmatprep.subr.mxu0 0.0
    %3452 = vmatpush2.xpose.msra.mxu0 0.0
    %3453 = vmatprep.subr.mxu0 0.0
    %3454 = vmatpush2.xpose.msra.mxu0 0.0
    %3455 = vmatprep.subr.mxu0 0.0
    %3456 = vmatpush2.xpose.msra.mxu0 0.0
    %3457 = vmatprep.subr.mxu0 0.0
    %3458 = vmatpush2.xpose.msra.mxu0 0.0
    %3459 = vmatprep.subr.mxu0 0.0
    %3460 = vmatpush2.xpose.msra.mxu0 0.0
    %3461 = vmatprep.subr.mxu0 0.0
    %3462 = vmatpush2.xpose.msra.mxu0 0.0
    %3463 = vmatprep.subr.mxu0 0.0
    %3464 = vmatpush2.xpose.msra.mxu0 0.0
    %3465 = vmatprep.subr.mxu0 0.0
    %3466 = vmatpush2.xpose.msra.mxu0 0.0
    %3467 = vmatprep.mubr.f32.mxu0 0.0
    %3468 = vmatmul.mubr.f32.gmra.mxu0 %v3398
    %v3469 = vpop.f32.mrf.mxu0
    %v3470 = vadd.f32 0.0, %v3469
    %v3471 = vpop.f32.mrf.mxu0
    %3472 = vdwg.mxu0
    %v3474 = vsel %vm3168, %v1508, 0
    %v3477 = vsel %vm3168, %v2132, 0
    %3479 = vmatprep.subr.mxu0 0.0
    %3480 = vmatpush1.xpose.msra.mxu0 0.0
    %3481 = vmatprep.subr.mxu0 0.0
    %3482 = vmatpush1.xpose.msra.mxu0 0.0
    %3483 = vmatprep.subr.mxu0 0.0
    %3484 = vmatpush1.xpose.msra.mxu0 0.0
    %3485 = vmatprep.subr.mxu0 0.0
    %3486 = vmatpush1.xpose.msra.mxu0 0.0
    %3487 = vmatprep.subr.mxu0 0.0
    %3488 = vmatpush1.xpose.msra.mxu0 0.0
    %3489 = vmatprep.subr.mxu0 0.0
    %3490 = vmatpush1.xpose.msra.mxu0 0.0
    %3491 = vmatprep.subr.mxu0 0.0
    %3492 = vmatpush1.xpose.msra.mxu0 0.0
    %3493 = vmatprep.subr.mxu0 0.0
    %3494 = vmatpush1.xpose.msra.mxu0 0.0
    %3495 = vmatprep.subr.mxu0 0.0
    %3496 = vmatpush1.xpose.msra.mxu0 0.0
    %3497 = vmatprep.subr.mxu0 0.0
    %3498 = vmatpush1.xpose.msra.mxu0 0.0
    %3499 = vmatprep.subr.mxu0 0.0
    %3500 = vmatpush1.xpose.msra.mxu0 0.0
    %3501 = vmatprep.subr.mxu0 0.0
    %3502 = vmatpush1.xpose.msra.mxu0 0.0
    %3503 = vmatprep.subr.mxu0 0.0
    %3504 = vmatpush1.xpose.msra.mxu0 0.0
    %3505 = vmatprep.subr.mxu0 0.0
    %3506 = vmatpush1.xpose.msra.mxu0 0.0
    %3507 = vmatprep.subr.mxu0 0.0
    %3508 = vmatpush1.xpose.msra.mxu0 0.0
    %3509 = vmatprep.subr.mxu0 0.0
    %3510 = vmatpush1.xpose.msra.mxu0 %v3477
    %3511 = vmatprep.subr.mxu0 0.0
    %3512 = vmatpush2.xpose.msra.mxu0 0.0
    %3513 = vmatprep.subr.mxu0 0.0
    %3514 = vmatpush2.xpose.msra.mxu0 0.0
    %3515 = vmatprep.subr.mxu0 0.0
    %3516 = vmatpush2.xpose.msra.mxu0 0.0
    %3517 = vmatprep.subr.mxu0 0.0
    %3518 = vmatpush2.xpose.msra.mxu0 0.0
    %3519 = vmatprep.subr.mxu0 0.0
    %3520 = vmatpush2.xpose.msra.mxu0 0.0
    %3521 = vmatprep.subr.mxu0 0.0
    %3522 = vmatpush2.xpose.msra.mxu0 0.0
    %3523 = vmatprep.subr.mxu0 0.0
    %3524 = vmatpush2.xpose.msra.mxu0 0.0
    %3525 = vmatprep.subr.mxu0 0.0
    %3526 = vmatpush2.xpose.msra.mxu0 0.0
    %3527 = vmatprep.subr.mxu0 0.0
    %3528 = vmatpush2.xpose.msra.mxu0 0.0
    %3529 = vmatprep.subr.mxu0 0.0
    %3530 = vmatpush2.xpose.msra.mxu0 0.0
    %3531 = vmatprep.subr.mxu0 0.0
    %3532 = vmatpush2.xpose.msra.mxu0 0.0
    %3533 = vmatprep.subr.mxu0 0.0
    %3534 = vmatpush2.xpose.msra.mxu0 0.0
    %3535 = vmatprep.subr.mxu0 0.0
    %3536 = vmatpush2.xpose.msra.mxu0 0.0
    %3537 = vmatprep.subr.mxu0 0.0
    %3538 = vmatpush2.xpose.msra.mxu0 0.0
    %3539 = vmatprep.subr.mxu0 0.0
    %3540 = vmatpush2.xpose.msra.mxu0 0.0
    %3541 = vmatprep.subr.mxu0 0.0
    %3542 = vmatpush2.xpose.msra.mxu0 0.0
    %3543 = vmatprep.mubr.f32.mxu0 0.0
    %3544 = vmatmul.mubr.f32.gmra.mxu0 %v3474
    %v3545 = vpop.f32.mrf.mxu0
    %v3546 = vadd.f32 0.0, %v3545
    %v3547 = vpop.f32.mrf.mxu0
    %3548 = vdwg.mxu0
    %v3550 = vsel %vm3168, %v1509, 0
    %v3553 = vsel %vm3168, %v2133, 0
    %3555 = vmatprep.subr.mxu0 0.0
    %3556 = vmatpush1.xpose.msra.mxu0 0.0
    %3557 = vmatprep.subr.mxu0 0.0
    %3558 = vmatpush1.xpose.msra.mxu0 0.0
    %3559 = vmatprep.subr.mxu0 0.0
    %3560 = vmatpush1.xpose.msra.mxu0 0.0
    %3561 = vmatprep.subr.mxu0 0.0
    %3562 = vmatpush1.xpose.msra.mxu0 0.0
    %3563 = vmatprep.subr.mxu0 0.0
    %3564 = vmatpush1.xpose.msra.mxu0 0.0
    %3565 = vmatprep.subr.mxu0 0.0
    %3566 = vmatpush1.xpose.msra.mxu0 0.0
    %3567 = vmatprep.subr.mxu0 0.0
    %3568 = vmatpush1.xpose.msra.mxu0 0.0
    %3569 = vmatprep.subr.mxu0 0.0
    %3570 = vmatpush1.xpose.msra.mxu0 0.0
    %3571 = vmatprep.subr.mxu0 0.0
    %3572 = vmatpush1.xpose.msra.mxu0 0.0
    %3573 = vmatprep.subr.mxu0 0.0
    %3574 = vmatpush1.xpose.msra.mxu0 0.0
    %3575 = vmatprep.subr.mxu0 0.0
    %3576 = vmatpush1.xpose.msra.mxu0 0.0
    %3577 = vmatprep.subr.mxu0 0.0
    %3578 = vmatpush1.xpose.msra.mxu0 0.0
    %3579 = vmatprep.subr.mxu0 0.0
    %3580 = vmatpush1.xpose.msra.mxu0 0.0
    %3581 = vmatprep.subr.mxu0 0.0
    %3582 = vmatpush1.xpose.msra.mxu0 0.0
    %3583 = vmatprep.subr.mxu0 0.0
    %3584 = vmatpush1.xpose.msra.mxu0 0.0
    %3585 = vmatprep.subr.mxu0 0.0
    %3586 = vmatpush1.xpose.msra.mxu0 %v3553
    %3587 = vmatprep.subr.mxu0 0.0
    %3588 = vmatpush2.xpose.msra.mxu0 0.0
    %3589 = vmatprep.subr.mxu0 0.0
    %3590 = vmatpush2.xpose.msra.mxu0 0.0
    %3591 = vmatprep.subr.mxu0 0.0
    %3592 = vmatpush2.xpose.msra.mxu0 0.0
    %3593 = vmatprep.subr.mxu0 0.0
    %3594 = vmatpush2.xpose.msra.mxu0 0.0
    %3595 = vmatprep.subr.mxu0 0.0
    %3596 = vmatpush2.xpose.msra.mxu0 0.0
    %3597 = vmatprep.subr.mxu0 0.0
    %3598 = vmatpush2.xpose.msra.mxu0 0.0
    %3599 = vmatprep.subr.mxu0 0.0
    %3600 = vmatpush2.xpose.msra.mxu0 0.0
    %3601 = vmatprep.subr.mxu0 0.0
    %3602 = vmatpush2.xpose.msra.mxu0 0.0
    %3603 = vmatprep.subr.mxu0 0.0
    %3604 = vmatpush2.xpose.msra.mxu0 0.0
    %3605 = vmatprep.subr.mxu0 0.0
    %3606 = vmatpush2.xpose.msra.mxu0 0.0
    %3607 = vmatprep.subr.mxu0 0.0
    %3608 = vmatpush2.xpose.msra.mxu0 0.0
    %3609 = vmatprep.subr.mxu0 0.0
    %3610 = vmatpush2.xpose.msra.mxu0 0.0
    %3611 = vmatprep.subr.mxu0 0.0
    %3612 = vmatpush2.xpose.msra.mxu0 0.0
    %3613 = vmatprep.subr.mxu0 0.0
    %3614 = vmatpush2.xpose.msra.mxu0 0.0
    %3615 = vmatprep.subr.mxu0 0.0
    %3616 = vmatpush2.xpose.msra.mxu0 0.0
    %3617 = vmatprep.subr.mxu0 0.0
    %3618 = vmatpush2.xpose.msra.mxu0 0.0
    %3619 = vmatprep.mubr.f32.mxu0 0.0
    %3620 = vmatmul.mubr.f32.gmra.mxu0 %v3550
    %v3621 = vpop.f32.mrf.mxu0
    %v3622 = vadd.f32 0.0, %v3621
    %v3623 = vpop.f32.mrf.mxu0
    %3624 = vdwg.mxu0
    %v3626 = vsel %vm3168, %v1510, 0
    %v3629 = vsel %vm3168, %v2134, 0
    %3631 = vmatprep.subr.mxu0 0.0
    %3632 = vmatpush1.xpose.msra.mxu0 0.0
    %3633 = vmatprep.subr.mxu0 0.0
    %3634 = vmatpush1.xpose.msra.mxu0 0.0
    %3635 = vmatprep.subr.mxu0 0.0
    %3636 = vmatpush1.xpose.msra.mxu0 0.0
    %3637 = vmatprep.subr.mxu0 0.0
    %3638 = vmatpush1.xpose.msra.mxu0 0.0
    %3639 = vmatprep.subr.mxu0 0.0
    %3640 = vmatpush1.xpose.msra.mxu0 0.0
    %3641 = vmatprep.subr.mxu0 0.0
    %3642 = vmatpush1.xpose.msra.mxu0 0.0
    %3643 = vmatprep.subr.mxu0 0.0
    %3644 = vmatpush1.xpose.msra.mxu0 0.0
    %3645 = vmatprep.subr.mxu0 0.0
    %3646 = vmatpush1.xpose.msra.mxu0 0.0
    %3647 = vmatprep.subr.mxu0 0.0
    %3648 = vmatpush1.xpose.msra.mxu0 0.0
    %3649 = vmatprep.subr.mxu0 0.0
    %3650 = vmatpush1.xpose.msra.mxu0 0.0
    %3651 = vmatprep.subr.mxu0 0.0
    %3652 = vmatpush1.xpose.msra.mxu0 0.0
    %3653 = vmatprep.subr.mxu0 0.0
    %3654 = vmatpush1.xpose.msra.mxu0 0.0
    %3655 = vmatprep.subr.mxu0 0.0
    %3656 = vmatpush1.xpose.msra.mxu0 0.0
    %3657 = vmatprep.subr.mxu0 0.0
    %3658 = vmatpush1.xpose.msra.mxu0 0.0
    %3659 = vmatprep.subr.mxu0 0.0
    %3660 = vmatpush1.xpose.msra.mxu0 0.0
    %3661 = vmatprep.subr.mxu0 0.0
    %3662 = vmatpush1.xpose.msra.mxu0 %v3629
    %3663 = vmatprep.subr.mxu0 0.0
    %3664 = vmatpush2.xpose.msra.mxu0 0.0
    %3665 = vmatprep.subr.mxu0 0.0
    %3666 = vmatpush2.xpose.msra.mxu0 0.0
    %3667 = vmatprep.subr.mxu0 0.0
    %3668 = vmatpush2.xpose.msra.mxu0 0.0
    %3669 = vmatprep.subr.mxu0 0.0
    %3670 = vmatpush2.xpose.msra.mxu0 0.0
    %3671 = vmatprep.subr.mxu0 0.0
    %3672 = vmatpush2.xpose.msra.mxu0 0.0
    %3673 = vmatprep.subr.mxu0 0.0
    %3674 = vmatpush2.xpose.msra.mxu0 0.0
    %3675 = vmatprep.subr.mxu0 0.0
    %3676 = vmatpush2.xpose.msra.mxu0 0.0
    %3677 = vmatprep.subr.mxu0 0.0
    %3678 = vmatpush2.xpose.msra.mxu0 0.0
    %3679 = vmatprep.subr.mxu0 0.0
    %3680 = vmatpush2.xpose.msra.mxu0 0.0
    %3681 = vmatprep.subr.mxu0 0.0
    %3682 = vmatpush2.xpose.msra.mxu0 0.0
    %3683 = vmatprep.subr.mxu0 0.0
    %3684 = vmatpush2.xpose.msra.mxu0 0.0
    %3685 = vmatprep.subr.mxu0 0.0
    %3686 = vmatpush2.xpose.msra.mxu0 0.0
    %3687 = vmatprep.subr.mxu0 0.0
    %3688 = vmatpush2.xpose.msra.mxu0 0.0
    %3689 = vmatprep.subr.mxu0 0.0
    %3690 = vmatpush2.xpose.msra.mxu0 0.0
    %3691 = vmatprep.subr.mxu0 0.0
    %3692 = vmatpush2.xpose.msra.mxu0 0.0
    %3693 = vmatprep.subr.mxu0 0.0
    %3694 = vmatpush2.xpose.msra.mxu0 0.0
    %3695 = vmatprep.mubr.f32.mxu0 0.0
    %3696 = vmatmul.mubr.f32.gmra.mxu0 %v3626
    %v3697 = vpop.f32.mrf.mxu0
    %v3698 = vadd.f32 0.0, %v3697
    %v3699 = vpop.f32.mrf.mxu0
    %3700 = vdwg.mxu0
    %v3702 = vsel %vm3168, %v1511, 0
    %v3705 = vsel %vm3168, %v2135, 0
    %3707 = vmatprep.subr.mxu0 0.0
    %3708 = vmatpush1.xpose.msra.mxu0 0.0
    %3709 = vmatprep.subr.mxu0 0.0
    %3710 = vmatpush1.xpose.msra.mxu0 0.0
    %3711 = vmatprep.subr.mxu0 0.0
    %3712 = vmatpush1.xpose.msra.mxu0 0.0
    %3713 = vmatprep.subr.mxu0 0.0
    %3714 = vmatpush1.xpose.msra.mxu0 0.0
    %3715 = vmatprep.subr.mxu0 0.0
    %3716 = vmatpush1.xpose.msra.mxu0 0.0
    %3717 = vmatprep.subr.mxu0 0.0
    %3718 = vmatpush1.xpose.msra.mxu0 0.0
    %3719 = vmatprep.subr.mxu0 0.0
    %3720 = vmatpush1.xpose.msra.mxu0 0.0
    %3721 = vmatprep.subr.mxu0 0.0
    %3722 = vmatpush1.xpose.msra.mxu0 0.0
    %3723 = vmatprep.subr.mxu0 0.0
    %3724 = vmatpush1.xpose.msra.mxu0 0.0
    %3725 = vmatprep.subr.mxu0 0.0
    %3726 = vmatpush1.xpose.msra.mxu0 0.0
    %3727 = vmatprep.subr.mxu0 0.0
    %3728 = vmatpush1.xpose.msra.mxu0 0.0
    %3729 = vmatprep.subr.mxu0 0.0
    %3730 = vmatpush1.xpose.msra.mxu0 0.0
    %3731 = vmatprep.subr.mxu0 0.0
    %3732 = vmatpush1.xpose.msra.mxu0 0.0
    %3733 = vmatprep.subr.mxu0 0.0
    %3734 = vmatpush1.xpose.msra.mxu0 0.0
    %3735 = vmatprep.subr.mxu0 0.0
    %3736 = vmatpush1.xpose.msra.mxu0 0.0
    %3737 = vmatprep.subr.mxu0 0.0
    %3738 = vmatpush1.xpose.msra.mxu0 %v3705
    %3739 = vmatprep.subr.mxu0 0.0
    %3740 = vmatpush2.xpose.msra.mxu0 0.0
    %3741 = vmatprep.subr.mxu0 0.0
    %3742 = vmatpush2.xpose.msra.mxu0 0.0
    %3743 = vmatprep.subr.mxu0 0.0
    %3744 = vmatpush2.xpose.msra.mxu0 0.0
    %3745 = vmatprep.subr.mxu0 0.0
    %3746 = vmatpush2.xpose.msra.mxu0 0.0
    %3747 = vmatprep.subr.mxu0 0.0
    %3748 = vmatpush2.xpose.msra.mxu0 0.0
    %3749 = vmatprep.subr.mxu0 0.0
    %3750 = vmatpush2.xpose.msra.mxu0 0.0
    %3751 = vmatprep.subr.mxu0 0.0
    %3752 = vmatpush2.xpose.msra.mxu0 0.0
    %3753 = vmatprep.subr.mxu0 0.0
    %3754 = vmatpush2.xpose.msra.mxu0 0.0
    %3755 = vmatprep.subr.mxu0 0.0
    %3756 = vmatpush2.xpose.msra.mxu0 0.0
    %3757 = vmatprep.subr.mxu0 0.0
    %3758 = vmatpush2.xpose.msra.mxu0 0.0
    %3759 = vmatprep.subr.mxu0 0.0
    %3760 = vmatpush2.xpose.msra.mxu0 0.0
    %3761 = vmatprep.subr.mxu0 0.0
    %3762 = vmatpush2.xpose.msra.mxu0 0.0
    %3763 = vmatprep.subr.mxu0 0.0
    %3764 = vmatpush2.xpose.msra.mxu0 0.0
    %3765 = vmatprep.subr.mxu0 0.0
    %3766 = vmatpush2.xpose.msra.mxu0 0.0
    %3767 = vmatprep.subr.mxu0 0.0
    %3768 = vmatpush2.xpose.msra.mxu0 0.0
    %3769 = vmatprep.subr.mxu0 0.0
    %3770 = vmatpush2.xpose.msra.mxu0 0.0
    %3771 = vmatprep.mubr.f32.mxu0 0.0
    %3772 = vmatmul.mubr.f32.gmra.mxu0 %v3702
    %v3773 = vpop.f32.mrf.mxu0
    %v3774 = vadd.f32 0.0, %v3773
    %v3775 = vpop.f32.mrf.mxu0
    %3776 = vdwg.mxu0
    %v3778 = vsel %vm3168, %v1640, 0
    %v3781 = vsel %vm3168, %v2264, 0
    %3783 = vmatprep.subr.mxu0 0.0
    %3784 = vmatpush1.xpose.msra.mxu0 0.0
    %3785 = vmatprep.subr.mxu0 0.0
    %3786 = vmatpush1.xpose.msra.mxu0 0.0
    %3787 = vmatprep.subr.mxu0 0.0
    %3788 = vmatpush1.xpose.msra.mxu0 0.0
    %3789 = vmatprep.subr.mxu0 0.0
    %3790 = vmatpush1.xpose.msra.mxu0 0.0
    %3791 = vmatprep.subr.mxu0 0.0
    %3792 = vmatpush1.xpose.msra.mxu0 0.0
    %3793 = vmatprep.subr.mxu0 0.0
    %3794 = vmatpush1.xpose.msra.mxu0 0.0
    %3795 = vmatprep.subr.mxu0 0.0
    %3796 = vmatpush1.xpose.msra.mxu0 0.0
    %3797 = vmatprep.subr.mxu0 0.0
    %3798 = vmatpush1.xpose.msra.mxu0 0.0
    %3799 = vmatprep.subr.mxu0 0.0
    %3800 = vmatpush1.xpose.msra.mxu0 0.0
    %3801 = vmatprep.subr.mxu0 0.0
    %3802 = vmatpush1.xpose.msra.mxu0 0.0
    %3803 = vmatprep.subr.mxu0 0.0
    %3804 = vmatpush1.xpose.msra.mxu0 0.0
    %3805 = vmatprep.subr.mxu0 0.0
    %3806 = vmatpush1.xpose.msra.mxu0 0.0
    %3807 = vmatprep.subr.mxu0 0.0
    %3808 = vmatpush1.xpose.msra.mxu0 0.0
    %3809 = vmatprep.subr.mxu0 0.0
    %3810 = vmatpush1.xpose.msra.mxu0 0.0
    %3811 = vmatprep.subr.mxu0 0.0
    %3812 = vmatpush1.xpose.msra.mxu0 0.0
    %3813 = vmatprep.subr.mxu0 0.0
    %3814 = vmatpush1.xpose.msra.mxu0 %v3781
    %3815 = vmatprep.subr.mxu0 0.0
    %3816 = vmatpush2.xpose.msra.mxu0 0.0
    %3817 = vmatprep.subr.mxu0 0.0
    %3818 = vmatpush2.xpose.msra.mxu0 0.0
    %3819 = vmatprep.subr.mxu0 0.0
    %3820 = vmatpush2.xpose.msra.mxu0 0.0
    %3821 = vmatprep.subr.mxu0 0.0
    %3822 = vmatpush2.xpose.msra.mxu0 0.0
    %3823 = vmatprep.subr.mxu0 0.0
    %3824 = vmatpush2.xpose.msra.mxu0 0.0
    %3825 = vmatprep.subr.mxu0 0.0
    %3826 = vmatpush2.xpose.msra.mxu0 0.0
    %3827 = vmatprep.subr.mxu0 0.0
    %3828 = vmatpush2.xpose.msra.mxu0 0.0
    %3829 = vmatprep.subr.mxu0 0.0
    %3830 = vmatpush2.xpose.msra.mxu0 0.0
    %3831 = vmatprep.subr.mxu0 0.0
    %3832 = vmatpush2.xpose.msra.mxu0 0.0
    %3833 = vmatprep.subr.mxu0 0.0
    %3834 = vmatpush2.xpose.msra.mxu0 0.0
    %3835 = vmatprep.subr.mxu0 0.0
    %3836 = vmatpush2.xpose.msra.mxu0 0.0
    %3837 = vmatprep.subr.mxu0 0.0
    %3838 = vmatpush2.xpose.msra.mxu0 0.0
    %3839 = vmatprep.subr.mxu0 0.0
    %3840 = vmatpush2.xpose.msra.mxu0 0.0
    %3841 = vmatprep.subr.mxu0 0.0
    %3842 = vmatpush2.xpose.msra.mxu0 0.0
    %3843 = vmatprep.subr.mxu0 0.0
    %3844 = vmatpush2.xpose.msra.mxu0 0.0
    %3845 = vmatprep.subr.mxu0 0.0
    %3846 = vmatpush2.xpose.msra.mxu0 0.0
    %3847 = vmatprep.mubr.f32.mxu0 0.0
    %3848 = vmatmul.mubr.f32.gmra.mxu0 %v3778
    %v3849 = vpop.f32.mrf.mxu0
    %v3850 = vadd.f32 0.0, %v3849
    %v3851 = vpop.f32.mrf.mxu0
    %3852 = vdwg.mxu0
    %v3854 = vsel %vm3168, %v1641, 0
    %v3857 = vsel %vm3168, %v2265, 0
    %3859 = vmatprep.subr.mxu0 0.0
    %3860 = vmatpush1.xpose.msra.mxu0 0.0
    %3861 = vmatprep.subr.mxu0 0.0
    %3862 = vmatpush1.xpose.msra.mxu0 0.0
    %3863 = vmatprep.subr.mxu0 0.0
    %3864 = vmatpush1.xpose.msra.mxu0 0.0
    %3865 = vmatprep.subr.mxu0 0.0
    %3866 = vmatpush1.xpose.msra.mxu0 0.0
    %3867 = vmatprep.subr.mxu0 0.0
    %3868 = vmatpush1.xpose.msra.mxu0 0.0
    %3869 = vmatprep.subr.mxu0 0.0
    %3870 = vmatpush1.xpose.msra.mxu0 0.0
    %3871 = vmatprep.subr.mxu0 0.0
    %3872 = vmatpush1.xpose.msra.mxu0 0.0
    %3873 = vmatprep.subr.mxu0 0.0
    %3874 = vmatpush1.xpose.msra.mxu0 0.0
    %3875 = vmatprep.subr.mxu0 0.0
    %3876 = vmatpush1.xpose.msra.mxu0 0.0
    %3877 = vmatprep.subr.mxu0 0.0
    %3878 = vmatpush1.xpose.msra.mxu0 0.0
    %3879 = vmatprep.subr.mxu0 0.0
    %3880 = vmatpush1.xpose.msra.mxu0 0.0
    %3881 = vmatprep.subr.mxu0 0.0
    %3882 = vmatpush1.xpose.msra.mxu0 0.0
    %3883 = vmatprep.subr.mxu0 0.0
    %3884 = vmatpush1.xpose.msra.mxu0 0.0
    %3885 = vmatprep.subr.mxu0 0.0
    %3886 = vmatpush1.xpose.msra.mxu0 0.0
    %3887 = vmatprep.subr.mxu0 0.0
    %3888 = vmatpush1.xpose.msra.mxu0 0.0
    %3889 = vmatprep.subr.mxu0 0.0
    %3890 = vmatpush1.xpose.msra.mxu0 %v3857
    %3891 = vmatprep.subr.mxu0 0.0
    %3892 = vmatpush2.xpose.msra.mxu0 0.0
    %3893 = vmatprep.subr.mxu0 0.0
    %3894 = vmatpush2.xpose.msra.mxu0 0.0
    %3895 = vmatprep.subr.mxu0 0.0
    %3896 = vmatpush2.xpose.msra.mxu0 0.0
    %3897 = vmatprep.subr.mxu0 0.0
    %3898 = vmatpush2.xpose.msra.mxu0 0.0
    %3899 = vmatprep.subr.mxu0 0.0
    %3900 = vmatpush2.xpose.msra.mxu0 0.0
    %3901 = vmatprep.subr.mxu0 0.0
    %3902 = vmatpush2.xpose.msra.mxu0 0.0
    %3903 = vmatprep.subr.mxu0 0.0
    %3904 = vmatpush2.xpose.msra.mxu0 0.0
    %3905 = vmatprep.subr.mxu0 0.0
    %3906 = vmatpush2.xpose.msra.mxu0 0.0
    %3907 = vmatprep.subr.mxu0 0.0
    %3908 = vmatpush2.xpose.msra.mxu0 0.0
    %3909 = vmatprep.subr.mxu0 0.0
    %3910 = vmatpush2.xpose.msra.mxu0 0.0
    %3911 = vmatprep.subr.mxu0 0.0
    %3912 = vmatpush2.xpose.msra.mxu0 0.0
    %3913 = vmatprep.subr.mxu0 0.0
    %3914 = vmatpush2.xpose.msra.mxu0 0.0
    %3915 = vmatprep.subr.mxu0 0.0
    %3916 = vmatpush2.xpose.msra.mxu0 0.0
    %3917 = vmatprep.subr.mxu0 0.0
    %3918 = vmatpush2.xpose.msra.mxu0 0.0
    %3919 = vmatprep.subr.mxu0 0.0
    %3920 = vmatpush2.xpose.msra.mxu0 0.0
    %3921 = vmatprep.subr.mxu0 0.0
    %3922 = vmatpush2.xpose.msra.mxu0 0.0
    %3923 = vmatprep.mubr.f32.mxu0 0.0
    %3924 = vmatmul.mubr.f32.gmra.mxu0 %v3854
    %v3925 = vpop.f32.mrf.mxu0
    %v3926 = vadd.f32 0.0, %v3925
    %v3927 = vpop.f32.mrf.mxu0
    %3928 = vdwg.mxu0
    %v3930 = vsel %vm3168, %v1642, 0
    %v3933 = vsel %vm3168, %v2266, 0
    %3935 = vmatprep.subr.mxu0 0.0
    %3936 = vmatpush1.xpose.msra.mxu0 0.0
    %3937 = vmatprep.subr.mxu0 0.0
    %3938 = vmatpush1.xpose.msra.mxu0 0.0
    %3939 = vmatprep.subr.mxu0 0.0
    %3940 = vmatpush1.xpose.msra.mxu0 0.0
    %3941 = vmatprep.subr.mxu0 0.0
    %3942 = vmatpush1.xpose.msra.mxu0 0.0
    %3943 = vmatprep.subr.mxu0 0.0
    %3944 = vmatpush1.xpose.msra.mxu0 0.0
    %3945 = vmatprep.subr.mxu0 0.0
    %3946 = vmatpush1.xpose.msra.mxu0 0.0
    %3947 = vmatprep.subr.mxu0 0.0
    %3948 = vmatpush1.xpose.msra.mxu0 0.0
    %3949 = vmatprep.subr.mxu0 0.0
    %3950 = vmatpush1.xpose.msra.mxu0 0.0
    %3951 = vmatprep.subr.mxu0 0.0
    %3952 = vmatpush1.xpose.msra.mxu0 0.0
    %3953 = vmatprep.subr.mxu0 0.0
    %3954 = vmatpush1.xpose.msra.mxu0 0.0
    %3955 = vmatprep.subr.mxu0 0.0
    %3956 = vmatpush1.xpose.msra.mxu0 0.0
    %3957 = vmatprep.subr.mxu0 0.0
    %3958 = vmatpush1.xpose.msra.mxu0 0.0
    %3959 = vmatprep.subr.mxu0 0.0
    %3960 = vmatpush1.xpose.msra.mxu0 0.0
    %3961 = vmatprep.subr.mxu0 0.0
    %3962 = vmatpush1.xpose.msra.mxu0 0.0
    %3963 = vmatprep.subr.mxu0 0.0
    %3964 = vmatpush1.xpose.msra.mxu0 0.0
    %3965 = vmatprep.subr.mxu0 0.0
    %3966 = vmatpush1.xpose.msra.mxu0 %v3933
    %3967 = vmatprep.subr.mxu0 0.0
    %3968 = vmatpush2.xpose.msra.mxu0 0.0
    %3969 = vmatprep.subr.mxu0 0.0
    %3970 = vmatpush2.xpose.msra.mxu0 0.0
    %3971 = vmatprep.subr.mxu0 0.0
    %3972 = vmatpush2.xpose.msra.mxu0 0.0
    %3973 = vmatprep.subr.mxu0 0.0
    %3974 = vmatpush2.xpose.msra.mxu0 0.0
    %3975 = vmatprep.subr.mxu0 0.0
    %3976 = vmatpush2.xpose.msra.mxu0 0.0
    %3977 = vmatprep.subr.mxu0 0.0
    %3978 = vmatpush2.xpose.msra.mxu0 0.0
    %3979 = vmatprep.subr.mxu0 0.0
    %3980 = vmatpush2.xpose.msra.mxu0 0.0
    %3981 = vmatprep.subr.mxu0 0.0
    %3982 = vmatpush2.xpose.msra.mxu0 0.0
    %3983 = vmatprep.subr.mxu0 0.0
    %3984 = vmatpush2.xpose.msra.mxu0 0.0
    %3985 = vmatprep.subr.mxu0 0.0
    %3986 = vmatpush2.xpose.msra.mxu0 0.0
    %3987 = vmatprep.subr.mxu0 0.0
    %3988 = vmatpush2.xpose.msra.mxu0 0.0
    %3989 = vmatprep.subr.mxu0 0.0
    %3990 = vmatpush2.xpose.msra.mxu0 0.0
    %3991 = vmatprep.subr.mxu0 0.0
    %3992 = vmatpush2.xpose.msra.mxu0 0.0
    %3993 = vmatprep.subr.mxu0 0.0
    %3994 = vmatpush2.xpose.msra.mxu0 0.0
    %3995 = vmatprep.subr.mxu0 0.0
    %3996 = vmatpush2.xpose.msra.mxu0 0.0
    %3997 = vmatprep.subr.mxu0 0.0
    %3998 = vmatpush2.xpose.msra.mxu0 0.0
    %3999 = vmatprep.mubr.f32.mxu0 0.0
    %4000 = vmatmul.mubr.f32.gmra.mxu0 %v3930
    %v4001 = vpop.f32.mrf.mxu0
    %v4002 = vadd.f32 0.0, %v4001
    %v4003 = vpop.f32.mrf.mxu0
    %4004 = vdwg.mxu0
    %v4006 = vsel %vm3168, %v1643, 0
    %v4009 = vsel %vm3168, %v2267, 0
    %4011 = vmatprep.subr.mxu0 0.0
    %4012 = vmatpush1.xpose.msra.mxu0 0.0
    %4013 = vmatprep.subr.mxu0 0.0
    %4014 = vmatpush1.xpose.msra.mxu0 0.0
    %4015 = vmatprep.subr.mxu0 0.0
    %4016 = vmatpush1.xpose.msra.mxu0 0.0
    %4017 = vmatprep.subr.mxu0 0.0
    %4018 = vmatpush1.xpose.msra.mxu0 0.0
    %4019 = vmatprep.subr.mxu0 0.0
    %4020 = vmatpush1.xpose.msra.mxu0 0.0
    %4021 = vmatprep.subr.mxu0 0.0
    %4022 = vmatpush1.xpose.msra.mxu0 0.0
    %4023 = vmatprep.subr.mxu0 0.0
    %4024 = vmatpush1.xpose.msra.mxu0 0.0
    %4025 = vmatprep.subr.mxu0 0.0
    %4026 = vmatpush1.xpose.msra.mxu0 0.0
    %4027 = vmatprep.subr.mxu0 0.0
    %4028 = vmatpush1.xpose.msra.mxu0 0.0
    %4029 = vmatprep.subr.mxu0 0.0
    %4030 = vmatpush1.xpose.msra.mxu0 0.0
    %4031 = vmatprep.subr.mxu0 0.0
    %4032 = vmatpush1.xpose.msra.mxu0 0.0
    %4033 = vmatprep.subr.mxu0 0.0
    %4034 = vmatpush1.xpose.msra.mxu0 0.0
    %4035 = vmatprep.subr.mxu0 0.0
    %4036 = vmatpush1.xpose.msra.mxu0 0.0
    %4037 = vmatprep.subr.mxu0 0.0
    %4038 = vmatpush1.xpose.msra.mxu0 0.0
    %4039 = vmatprep.subr.mxu0 0.0
    %4040 = vmatpush1.xpose.msra.mxu0 0.0
    %4041 = vmatprep.subr.mxu0 0.0
    %4042 = vmatpush1.xpose.msra.mxu0 %v4009
    %4043 = vmatprep.subr.mxu0 0.0
    %4044 = vmatpush2.xpose.msra.mxu0 0.0
    %4045 = vmatprep.subr.mxu0 0.0
    %4046 = vmatpush2.xpose.msra.mxu0 0.0
    %4047 = vmatprep.subr.mxu0 0.0
    %4048 = vmatpush2.xpose.msra.mxu0 0.0
    %4049 = vmatprep.subr.mxu0 0.0
    %4050 = vmatpush2.xpose.msra.mxu0 0.0
    %4051 = vmatprep.subr.mxu0 0.0
    %4052 = vmatpush2.xpose.msra.mxu0 0.0
    %4053 = vmatprep.subr.mxu0 0.0
    %4054 = vmatpush2.xpose.msra.mxu0 0.0
    %4055 = vmatprep.subr.mxu0 0.0
    %4056 = vmatpush2.xpose.msra.mxu0 0.0
    %4057 = vmatprep.subr.mxu0 0.0
    %4058 = vmatpush2.xpose.msra.mxu0 0.0
    %4059 = vmatprep.subr.mxu0 0.0
    %4060 = vmatpush2.xpose.msra.mxu0 0.0
    %4061 = vmatprep.subr.mxu0 0.0
    %4062 = vmatpush2.xpose.msra.mxu0 0.0
    %4063 = vmatprep.subr.mxu0 0.0
    %4064 = vmatpush2.xpose.msra.mxu0 0.0
    %4065 = vmatprep.subr.mxu0 0.0
    %4066 = vmatpush2.xpose.msra.mxu0 0.0
    %4067 = vmatprep.subr.mxu0 0.0
    %4068 = vmatpush2.xpose.msra.mxu0 0.0
    %4069 = vmatprep.subr.mxu0 0.0
    %4070 = vmatpush2.xpose.msra.mxu0 0.0
    %4071 = vmatprep.subr.mxu0 0.0
    %4072 = vmatpush2.xpose.msra.mxu0 0.0
    %4073 = vmatprep.subr.mxu0 0.0
    %4074 = vmatpush2.xpose.msra.mxu0 0.0
    %4075 = vmatprep.mubr.f32.mxu0 0.0
    %4076 = vmatmul.mubr.f32.gmra.mxu0 %v4006
    %v4077 = vpop.f32.mrf.mxu0
    %v4078 = vadd.f32 0.0, %v4077
    %v4079 = vpop.f32.mrf.mxu0
    %4080 = vdwg.mxu0
    %v4082 = vsel %vm3168, %v1644, 0
    %v4085 = vsel %vm3168, %v2268, 0
    %4087 = vmatprep.subr.mxu0 0.0
    %4088 = vmatpush1.xpose.msra.mxu0 0.0
    %4089 = vmatprep.subr.mxu0 0.0
    %4090 = vmatpush1.xpose.msra.mxu0 0.0
    %4091 = vmatprep.subr.mxu0 0.0
    %4092 = vmatpush1.xpose.msra.mxu0 0.0
    %4093 = vmatprep.subr.mxu0 0.0
    %4094 = vmatpush1.xpose.msra.mxu0 0.0
    %4095 = vmatprep.subr.mxu0 0.0
    %4096 = vmatpush1.xpose.msra.mxu0 0.0
    %4097 = vmatprep.subr.mxu0 0.0
    %4098 = vmatpush1.xpose.msra.mxu0 0.0
    %4099 = vmatprep.subr.mxu0 0.0
    %4100 = vmatpush1.xpose.msra.mxu0 0.0
    %4101 = vmatprep.subr.mxu0 0.0
    %4102 = vmatpush1.xpose.msra.mxu0 0.0
    %4103 = vmatprep.subr.mxu0 0.0
    %4104 = vmatpush1.xpose.msra.mxu0 0.0
    %4105 = vmatprep.subr.mxu0 0.0
    %4106 = vmatpush1.xpose.msra.mxu0 0.0
    %4107 = vmatprep.subr.mxu0 0.0
    %4108 = vmatpush1.xpose.msra.mxu0 0.0
    %4109 = vmatprep.subr.mxu0 0.0
    %4110 = vmatpush1.xpose.msra.mxu0 0.0
    %4111 = vmatprep.subr.mxu0 0.0
    %4112 = vmatpush1.xpose.msra.mxu0 0.0
    %4113 = vmatprep.subr.mxu0 0.0
    %4114 = vmatpush1.xpose.msra.mxu0 0.0
    %4115 = vmatprep.subr.mxu0 0.0
    %4116 = vmatpush1.xpose.msra.mxu0 0.0
    %4117 = vmatprep.subr.mxu0 0.0
    %4118 = vmatpush1.xpose.msra.mxu0 %v4085
    %4119 = vmatprep.subr.mxu0 0.0
    %4120 = vmatpush2.xpose.msra.mxu0 0.0
    %4121 = vmatprep.subr.mxu0 0.0
    %4122 = vmatpush2.xpose.msra.mxu0 0.0
    %4123 = vmatprep.subr.mxu0 0.0
    %4124 = vmatpush2.xpose.msra.mxu0 0.0
    %4125 = vmatprep.subr.mxu0 0.0
    %4126 = vmatpush2.xpose.msra.mxu0 0.0
    %4127 = vmatprep.subr.mxu0 0.0
    %4128 = vmatpush2.xpose.msra.mxu0 0.0
    %4129 = vmatprep.subr.mxu0 0.0
    %4130 = vmatpush2.xpose.msra.mxu0 0.0
    %4131 = vmatprep.subr.mxu0 0.0
    %4132 = vmatpush2.xpose.msra.mxu0 0.0
    %4133 = vmatprep.subr.mxu0 0.0
    %4134 = vmatpush2.xpose.msra.mxu0 0.0
    %4135 = vmatprep.subr.mxu0 0.0
    %4136 = vmatpush2.xpose.msra.mxu0 0.0
    %4137 = vmatprep.subr.mxu0 0.0
    %4138 = vmatpush2.xpose.msra.mxu0 0.0
    %4139 = vmatprep.subr.mxu0 0.0
    %4140 = vmatpush2.xpose.msra.mxu0 0.0
    %4141 = vmatprep.subr.mxu0 0.0
    %4142 = vmatpush2.xpose.msra.mxu0 0.0
    %4143 = vmatprep.subr.mxu0 0.0
    %4144 = vmatpush2.xpose.msra.mxu0 0.0
    %4145 = vmatprep.subr.mxu0 0.0
    %4146 = vmatpush2.xpose.msra.mxu0 0.0
    %4147 = vmatprep.subr.mxu0 0.0
    %4148 = vmatpush2.xpose.msra.mxu0 0.0
    %4149 = vmatprep.subr.mxu0 0.0
    %4150 = vmatpush2.xpose.msra.mxu0 0.0
    %4151 = vmatprep.mubr.f32.mxu0 0.0
    %4152 = vmatmul.mubr.f32.gmra.mxu0 %v4082
    %v4153 = vpop.f32.mrf.mxu0
    %v4154 = vadd.f32 0.0, %v4153
    %v4155 = vpop.f32.mrf.mxu0
    %4156 = vdwg.mxu0
    %v4158 = vsel %vm3168, %v1645, 0
    %v4161 = vsel %vm3168, %v2269, 0
    %4163 = vmatprep.subr.mxu0 0.0
    %4164 = vmatpush1.xpose.msra.mxu0 0.0
    %4165 = vmatprep.subr.mxu0 0.0
    %4166 = vmatpush1.xpose.msra.mxu0 0.0
    %4167 = vmatprep.subr.mxu0 0.0
    %4168 = vmatpush1.xpose.msra.mxu0 0.0
    %4169 = vmatprep.subr.mxu0 0.0
    %4170 = vmatpush1.xpose.msra.mxu0 0.0
    %4171 = vmatprep.subr.mxu0 0.0
    %4172 = vmatpush1.xpose.msra.mxu0 0.0
    %4173 = vmatprep.subr.mxu0 0.0
    %4174 = vmatpush1.xpose.msra.mxu0 0.0
    %4175 = vmatprep.subr.mxu0 0.0
    %4176 = vmatpush1.xpose.msra.mxu0 0.0
    %4177 = vmatprep.subr.mxu0 0.0
    %4178 = vmatpush1.xpose.msra.mxu0 0.0
    %4179 = vmatprep.subr.mxu0 0.0
    %4180 = vmatpush1.xpose.msra.mxu0 0.0
    %4181 = vmatprep.subr.mxu0 0.0
    %4182 = vmatpush1.xpose.msra.mxu0 0.0
    %4183 = vmatprep.subr.mxu0 0.0
    %4184 = vmatpush1.xpose.msra.mxu0 0.0
    %4185 = vmatprep.subr.mxu0 0.0
    %4186 = vmatpush1.xpose.msra.mxu0 0.0
    %4187 = vmatprep.subr.mxu0 0.0
    %4188 = vmatpush1.xpose.msra.mxu0 0.0
    %4189 = vmatprep.subr.mxu0 0.0
    %4190 = vmatpush1.xpose.msra.mxu0 0.0
    %4191 = vmatprep.subr.mxu0 0.0
    %4192 = vmatpush1.xpose.msra.mxu0 0.0
    %4193 = vmatprep.subr.mxu0 0.0
    %4194 = vmatpush1.xpose.msra.mxu0 %v4161
    %4195 = vmatprep.subr.mxu0 0.0
    %4196 = vmatpush2.xpose.msra.mxu0 0.0
    %4197 = vmatprep.subr.mxu0 0.0
    %4198 = vmatpush2.xpose.msra.mxu0 0.0
    %4199 = vmatprep.subr.mxu0 0.0
    %4200 = vmatpush2.xpose.msra.mxu0 0.0
    %4201 = vmatprep.subr.mxu0 0.0
    %4202 = vmatpush2.xpose.msra.mxu0 0.0
    %4203 = vmatprep.subr.mxu0 0.0
    %4204 = vmatpush2.xpose.msra.mxu0 0.0
    %4205 = vmatprep.subr.mxu0 0.0
    %4206 = vmatpush2.xpose.msra.mxu0 0.0
    %4207 = vmatprep.subr.mxu0 0.0
    %4208 = vmatpush2.xpose.msra.mxu0 0.0
    %4209 = vmatprep.subr.mxu0 0.0
    %4210 = vmatpush2.xpose.msra.mxu0 0.0
    %4211 = vmatprep.subr.mxu0 0.0
    %4212 = vmatpush2.xpose.msra.mxu0 0.0
    %4213 = vmatprep.subr.mxu0 0.0
    %4214 = vmatpush2.xpose.msra.mxu0 0.0
    %4215 = vmatprep.subr.mxu0 0.0
    %4216 = vmatpush2.xpose.msra.mxu0 0.0
    %4217 = vmatprep.subr.mxu0 0.0
    %4218 = vmatpush2.xpose.msra.mxu0 0.0
    %4219 = vmatprep.subr.mxu0 0.0
    %4220 = vmatpush2.xpose.msra.mxu0 0.0
    %4221 = vmatprep.subr.mxu0 0.0
    %4222 = vmatpush2.xpose.msra.mxu0 0.0
    %4223 = vmatprep.subr.mxu0 0.0
    %4224 = vmatpush2.xpose.msra.mxu0 0.0
    %4225 = vmatprep.subr.mxu0 0.0
    %4226 = vmatpush2.xpose.msra.mxu0 0.0
    %4227 = vmatprep.mubr.f32.mxu0 0.0
    %4228 = vmatmul.mubr.f32.gmra.mxu0 %v4158
    %v4229 = vpop.f32.mrf.mxu0
    %v4230 = vadd.f32 0.0, %v4229
    %v4231 = vpop.f32.mrf.mxu0
    %4232 = vdwg.mxu0
    %v4234 = vsel %vm3168, %v1646, 0
    %v4237 = vsel %vm3168, %v2270, 0
    %4239 = vmatprep.subr.mxu0 0.0
    %4240 = vmatpush1.xpose.msra.mxu0 0.0
    %4241 = vmatprep.subr.mxu0 0.0
    %4242 = vmatpush1.xpose.msra.mxu0 0.0
    %4243 = vmatprep.subr.mxu0 0.0
    %4244 = vmatpush1.xpose.msra.mxu0 0.0
    %4245 = vmatprep.subr.mxu0 0.0
    %4246 = vmatpush1.xpose.msra.mxu0 0.0
    %4247 = vmatprep.subr.mxu0 0.0
    %4248 = vmatpush1.xpose.msra.mxu0 0.0
    %4249 = vmatprep.subr.mxu0 0.0
    %4250 = vmatpush1.xpose.msra.mxu0 0.0
    %4251 = vmatprep.subr.mxu0 0.0
    %4252 = vmatpush1.xpose.msra.mxu0 0.0
    %4253 = vmatprep.subr.mxu0 0.0
    %4254 = vmatpush1.xpose.msra.mxu0 0.0
    %4255 = vmatprep.subr.mxu0 0.0
    %4256 = vmatpush1.xpose.msra.mxu0 0.0
    %4257 = vmatprep.subr.mxu0 0.0
    %4258 = vmatpush1.xpose.msra.mxu0 0.0
    %4259 = vmatprep.subr.mxu0 0.0
    %4260 = vmatpush1.xpose.msra.mxu0 0.0
    %4261 = vmatprep.subr.mxu0 0.0
    %4262 = vmatpush1.xpose.msra.mxu0 0.0
    %4263 = vmatprep.subr.mxu0 0.0
    %4264 = vmatpush1.xpose.msra.mxu0 0.0
    %4265 = vmatprep.subr.mxu0 0.0
    %4266 = vmatpush1.xpose.msra.mxu0 0.0
    %4267 = vmatprep.subr.mxu0 0.0
    %4268 = vmatpush1.xpose.msra.mxu0 0.0
    %4269 = vmatprep.subr.mxu0 0.0
    %4270 = vmatpush1.xpose.msra.mxu0 %v4237
    %4271 = vmatprep.subr.mxu0 0.0
    %4272 = vmatpush2.xpose.msra.mxu0 0.0
    %4273 = vmatprep.subr.mxu0 0.0
    %4274 = vmatpush2.xpose.msra.mxu0 0.0
    %4275 = vmatprep.subr.mxu0 0.0
    %4276 = vmatpush2.xpose.msra.mxu0 0.0
    %4277 = vmatprep.subr.mxu0 0.0
    %4278 = vmatpush2.xpose.msra.mxu0 0.0
    %4279 = vmatprep.subr.mxu0 0.0
    %4280 = vmatpush2.xpose.msra.mxu0 0.0
    %4281 = vmatprep.subr.mxu0 0.0
    %4282 = vmatpush2.xpose.msra.mxu0 0.0
    %4283 = vmatprep.subr.mxu0 0.0
    %4284 = vmatpush2.xpose.msra.mxu0 0.0
    %4285 = vmatprep.subr.mxu0 0.0
    %4286 = vmatpush2.xpose.msra.mxu0 0.0
    %4287 = vmatprep.subr.mxu0 0.0
    %4288 = vmatpush2.xpose.msra.mxu0 0.0
    %4289 = vmatprep.subr.mxu0 0.0
    %4290 = vmatpush2.xpose.msra.mxu0 0.0
    %4291 = vmatprep.subr.mxu0 0.0
    %4292 = vmatpush2.xpose.msra.mxu0 0.0
    %4293 = vmatprep.subr.mxu0 0.0
    %4294 = vmatpush2.xpose.msra.mxu0 0.0
    %4295 = vmatprep.subr.mxu0 0.0
    %4296 = vmatpush2.xpose.msra.mxu0 0.0
    %4297 = vmatprep.subr.mxu0 0.0
    %4298 = vmatpush2.xpose.msra.mxu0 0.0
    %4299 = vmatprep.subr.mxu0 0.0
    %4300 = vmatpush2.xpose.msra.mxu0 0.0
    %4301 = vmatprep.subr.mxu0 0.0
    %4302 = vmatpush2.xpose.msra.mxu0 0.0
    %4303 = vmatprep.mubr.f32.mxu0 0.0
    %4304 = vmatmul.mubr.f32.gmra.mxu0 %v4234
    %v4305 = vpop.f32.mrf.mxu0
    %v4306 = vadd.f32 0.0, %v4305
    %v4307 = vpop.f32.mrf.mxu0
    %4308 = vdwg.mxu0
    %v4310 = vsel %vm3168, %v1647, 0
    %v4313 = vsel %vm3168, %v2271, 0
    %4315 = vmatprep.subr.mxu0 0.0
    %4316 = vmatpush1.xpose.msra.mxu0 0.0
    %4317 = vmatprep.subr.mxu0 0.0
    %4318 = vmatpush1.xpose.msra.mxu0 0.0
    %4319 = vmatprep.subr.mxu0 0.0
    %4320 = vmatpush1.xpose.msra.mxu0 0.0
    %4321 = vmatprep.subr.mxu0 0.0
    %4322 = vmatpush1.xpose.msra.mxu0 0.0
    %4323 = vmatprep.subr.mxu0 0.0
    %4324 = vmatpush1.xpose.msra.mxu0 0.0
    %4325 = vmatprep.subr.mxu0 0.0
    %4326 = vmatpush1.xpose.msra.mxu0 0.0
    %4327 = vmatprep.subr.mxu0 0.0
    %4328 = vmatpush1.xpose.msra.mxu0 0.0
    %4329 = vmatprep.subr.mxu0 0.0
    %4330 = vmatpush1.xpose.msra.mxu0 0.0
    %4331 = vmatprep.subr.mxu0 0.0
    %4332 = vmatpush1.xpose.msra.mxu0 0.0
    %4333 = vmatprep.subr.mxu0 0.0
    %4334 = vmatpush1.xpose.msra.mxu0 0.0
    %4335 = vmatprep.subr.mxu0 0.0
    %4336 = vmatpush1.xpose.msra.mxu0 0.0
    %4337 = vmatprep.subr.mxu0 0.0
    %4338 = vmatpush1.xpose.msra.mxu0 0.0
    %4339 = vmatprep.subr.mxu0 0.0
    %4340 = vmatpush1.xpose.msra.mxu0 0.0
    %4341 = vmatprep.subr.mxu0 0.0
    %4342 = vmatpush1.xpose.msra.mxu0 0.0
    %4343 = vmatprep.subr.mxu0 0.0
    %4344 = vmatpush1.xpose.msra.mxu0 0.0
    %4345 = vmatprep.subr.mxu0 0.0
    %4346 = vmatpush1.xpose.msra.mxu0 %v4313
    %4347 = vmatprep.subr.mxu0 0.0
    %4348 = vmatpush2.xpose.msra.mxu0 0.0
    %4349 = vmatprep.subr.mxu0 0.0
    %4350 = vmatpush2.xpose.msra.mxu0 0.0
    %4351 = vmatprep.subr.mxu0 0.0
    %4352 = vmatpush2.xpose.msra.mxu0 0.0
    %4353 = vmatprep.subr.mxu0 0.0
    %4354 = vmatpush2.xpose.msra.mxu0 0.0
    %4355 = vmatprep.subr.mxu0 0.0
    %4356 = vmatpush2.xpose.msra.mxu0 0.0
    %4357 = vmatprep.subr.mxu0 0.0
    %4358 = vmatpush2.xpose.msra.mxu0 0.0
    %4359 = vmatprep.subr.mxu0 0.0
    %4360 = vmatpush2.xpose.msra.mxu0 0.0
    %4361 = vmatprep.subr.mxu0 0.0
    %4362 = vmatpush2.xpose.msra.mxu0 0.0
    %4363 = vmatprep.subr.mxu0 0.0
    %4364 = vmatpush2.xpose.msra.mxu0 0.0
    %4365 = vmatprep.subr.mxu0 0.0
    %4366 = vmatpush2.xpose.msra.mxu0 0.0
    %4367 = vmatprep.subr.mxu0 0.0
    %4368 = vmatpush2.xpose.msra.mxu0 0.0
    %4369 = vmatprep.subr.mxu0 0.0
    %4370 = vmatpush2.xpose.msra.mxu0 0.0
    %4371 = vmatprep.subr.mxu0 0.0
    %4372 = vmatpush2.xpose.msra.mxu0 0.0
    %4373 = vmatprep.subr.mxu0 0.0
    %4374 = vmatpush2.xpose.msra.mxu0 0.0
    %4375 = vmatprep.subr.mxu0 0.0
    %4376 = vmatpush2.xpose.msra.mxu0 0.0
    %4377 = vmatprep.subr.mxu0 0.0
    %4378 = vmatpush2.xpose.msra.mxu0 0.0
    %4379 = vmatprep.mubr.f32.mxu0 0.0
    %4380 = vmatmul.mubr.f32.gmra.mxu0 %v4310
    %v4381 = vpop.f32.mrf.mxu0
    %v4382 = vadd.f32 0.0, %v4381
    %v4383 = vpop.f32.mrf.mxu0
    %4384 = vdwg.mxu0
    %v4386 = vsel %vm3168, %v1776, 0
    %v4389 = vsel %vm3168, %v2400, 0
    %4391 = vmatprep.subr.mxu0 0.0
    %4392 = vmatpush1.xpose.msra.mxu0 0.0
    %4393 = vmatprep.subr.mxu0 0.0
    %4394 = vmatpush1.xpose.msra.mxu0 0.0
    %4395 = vmatprep.subr.mxu0 0.0
    %4396 = vmatpush1.xpose.msra.mxu0 0.0
    %4397 = vmatprep.subr.mxu0 0.0
    %4398 = vmatpush1.xpose.msra.mxu0 0.0
    %4399 = vmatprep.subr.mxu0 0.0
    %4400 = vmatpush1.xpose.msra.mxu0 0.0
    %4401 = vmatprep.subr.mxu0 0.0
    %4402 = vmatpush1.xpose.msra.mxu0 0.0
    %4403 = vmatprep.subr.mxu0 0.0
    %4404 = vmatpush1.xpose.msra.mxu0 0.0
    %4405 = vmatprep.subr.mxu0 0.0
    %4406 = vmatpush1.xpose.msra.mxu0 0.0
    %4407 = vmatprep.subr.mxu0 0.0
    %4408 = vmatpush1.xpose.msra.mxu0 0.0
    %4409 = vmatprep.subr.mxu0 0.0
    %4410 = vmatpush1.xpose.msra.mxu0 0.0
    %4411 = vmatprep.subr.mxu0 0.0
    %4412 = vmatpush1.xpose.msra.mxu0 0.0
    %4413 = vmatprep.subr.mxu0 0.0
    %4414 = vmatpush1.xpose.msra.mxu0 0.0
    %4415 = vmatprep.subr.mxu0 0.0
    %4416 = vmatpush1.xpose.msra.mxu0 0.0
    %4417 = vmatprep.subr.mxu0 0.0
    %4418 = vmatpush1.xpose.msra.mxu0 0.0
    %4419 = vmatprep.subr.mxu0 0.0
    %4420 = vmatpush1.xpose.msra.mxu0 0.0
    %4421 = vmatprep.subr.mxu0 0.0
    %4422 = vmatpush1.xpose.msra.mxu0 %v4389
    %4423 = vmatprep.subr.mxu0 0.0
    %4424 = vmatpush2.xpose.msra.mxu0 0.0
    %4425 = vmatprep.subr.mxu0 0.0
    %4426 = vmatpush2.xpose.msra.mxu0 0.0
    %4427 = vmatprep.subr.mxu0 0.0
    %4428 = vmatpush2.xpose.msra.mxu0 0.0
    %4429 = vmatprep.subr.mxu0 0.0
    %4430 = vmatpush2.xpose.msra.mxu0 0.0
    %4431 = vmatprep.subr.mxu0 0.0
    %4432 = vmatpush2.xpose.msra.mxu0 0.0
    %4433 = vmatprep.subr.mxu0 0.0
    %4434 = vmatpush2.xpose.msra.mxu0 0.0
    %4435 = vmatprep.subr.mxu0 0.0
    %4436 = vmatpush2.xpose.msra.mxu0 0.0
    %4437 = vmatprep.subr.mxu0 0.0
    %4438 = vmatpush2.xpose.msra.mxu0 0.0
    %4439 = vmatprep.subr.mxu0 0.0
    %4440 = vmatpush2.xpose.msra.mxu0 0.0
    %4441 = vmatprep.subr.mxu0 0.0
    %4442 = vmatpush2.xpose.msra.mxu0 0.0
    %4443 = vmatprep.subr.mxu0 0.0
    %4444 = vmatpush2.xpose.msra.mxu0 0.0
    %4445 = vmatprep.subr.mxu0 0.0
    %4446 = vmatpush2.xpose.msra.mxu0 0.0
    %4447 = vmatprep.subr.mxu0 0.0
    %4448 = vmatpush2.xpose.msra.mxu0 0.0
    %4449 = vmatprep.subr.mxu0 0.0
    %4450 = vmatpush2.xpose.msra.mxu0 0.0
    %4451 = vmatprep.subr.mxu0 0.0
    %4452 = vmatpush2.xpose.msra.mxu0 0.0
    %4453 = vmatprep.subr.mxu0 0.0
    %4454 = vmatpush2.xpose.msra.mxu0 0.0
    %4455 = vmatprep.mubr.f32.mxu0 0.0
    %4456 = vmatmul.mubr.f32.gmra.mxu0 %v4386
    %v4457 = vpop.f32.mrf.mxu0
    %v4458 = vadd.f32 0.0, %v4457
    %v4459 = vpop.f32.mrf.mxu0
    %4460 = vdwg.mxu0
    %v4462 = vsel %vm3168, %v1777, 0
    %v4465 = vsel %vm3168, %v2401, 0
    %4467 = vmatprep.subr.mxu0 0.0
    %4468 = vmatpush1.xpose.msra.mxu0 0.0
    %4469 = vmatprep.subr.mxu0 0.0
    %4470 = vmatpush1.xpose.msra.mxu0 0.0
    %4471 = vmatprep.subr.mxu0 0.0
    %4472 = vmatpush1.xpose.msra.mxu0 0.0
    %4473 = vmatprep.subr.mxu0 0.0
    %4474 = vmatpush1.xpose.msra.mxu0 0.0
    %4475 = vmatprep.subr.mxu0 0.0
    %4476 = vmatpush1.xpose.msra.mxu0 0.0
    %4477 = vmatprep.subr.mxu0 0.0
    %4478 = vmatpush1.xpose.msra.mxu0 0.0
    %4479 = vmatprep.subr.mxu0 0.0
    %4480 = vmatpush1.xpose.msra.mxu0 0.0
    %4481 = vmatprep.subr.mxu0 0.0
    %4482 = vmatpush1.xpose.msra.mxu0 0.0
    %4483 = vmatprep.subr.mxu0 0.0
    %4484 = vmatpush1.xpose.msra.mxu0 0.0
    %4485 = vmatprep.subr.mxu0 0.0
    %4486 = vmatpush1.xpose.msra.mxu0 0.0
    %4487 = vmatprep.subr.mxu0 0.0
    %4488 = vmatpush1.xpose.msra.mxu0 0.0
    %4489 = vmatprep.subr.mxu0 0.0
    %4490 = vmatpush1.xpose.msra.mxu0 0.0
    %4491 = vmatprep.subr.mxu0 0.0
    %4492 = vmatpush1.xpose.msra.mxu0 0.0
    %4493 = vmatprep.subr.mxu0 0.0
    %4494 = vmatpush1.xpose.msra.mxu0 0.0
    %4495 = vmatprep.subr.mxu0 0.0
    %4496 = vmatpush1.xpose.msra.mxu0 0.0
    %4497 = vmatprep.subr.mxu0 0.0
    %4498 = vmatpush1.xpose.msra.mxu0 %v4465
    %4499 = vmatprep.subr.mxu0 0.0
    %4500 = vmatpush2.xpose.msra.mxu0 0.0
    %4501 = vmatprep.subr.mxu0 0.0
    %4502 = vmatpush2.xpose.msra.mxu0 0.0
    %4503 = vmatprep.subr.mxu0 0.0
    %4504 = vmatpush2.xpose.msra.mxu0 0.0
    %4505 = vmatprep.subr.mxu0 0.0
    %4506 = vmatpush2.xpose.msra.mxu0 0.0
    %4507 = vmatprep.subr.mxu0 0.0
    %4508 = vmatpush2.xpose.msra.mxu0 0.0
    %4509 = vmatprep.subr.mxu0 0.0
    %4510 = vmatpush2.xpose.msra.mxu0 0.0
    %4511 = vmatprep.subr.mxu0 0.0
    %4512 = vmatpush2.xpose.msra.mxu0 0.0
    %4513 = vmatprep.subr.mxu0 0.0
    %4514 = vmatpush2.xpose.msra.mxu0 0.0
    %4515 = vmatprep.subr.mxu0 0.0
    %4516 = vmatpush2.xpose.msra.mxu0 0.0
    %4517 = vmatprep.subr.mxu0 0.0
    %4518 = vmatpush2.xpose.msra.mxu0 0.0
    %4519 = vmatprep.subr.mxu0 0.0
    %4520 = vmatpush2.xpose.msra.mxu0 0.0
    %4521 = vmatprep.subr.mxu0 0.0
    %4522 = vmatpush2.xpose.msra.mxu0 0.0
    %4523 = vmatprep.subr.mxu0 0.0
    %4524 = vmatpush2.xpose.msra.mxu0 0.0
    %4525 = vmatprep.subr.mxu0 0.0
    %4526 = vmatpush2.xpose.msra.mxu0 0.0
    %4527 = vmatprep.subr.mxu0 0.0
    %4528 = vmatpush2.xpose.msra.mxu0 0.0
    %4529 = vmatprep.subr.mxu0 0.0
    %4530 = vmatpush2.xpose.msra.mxu0 0.0
    %4531 = vmatprep.mubr.f32.mxu0 0.0
    %4532 = vmatmul.mubr.f32.gmra.mxu0 %v4462
    %v4533 = vpop.f32.mrf.mxu0
    %v4534 = vadd.f32 0.0, %v4533
    %v4535 = vpop.f32.mrf.mxu0
    %4536 = vdwg.mxu0
    %v4538 = vsel %vm3168, %v1778, 0
    %v4541 = vsel %vm3168, %v2402, 0
    %4543 = vmatprep.subr.mxu0 0.0
    %4544 = vmatpush1.xpose.msra.mxu0 0.0
    %4545 = vmatprep.subr.mxu0 0.0
    %4546 = vmatpush1.xpose.msra.mxu0 0.0
    %4547 = vmatprep.subr.mxu0 0.0
    %4548 = vmatpush1.xpose.msra.mxu0 0.0
    %4549 = vmatprep.subr.mxu0 0.0
    %4550 = vmatpush1.xpose.msra.mxu0 0.0
    %4551 = vmatprep.subr.mxu0 0.0
    %4552 = vmatpush1.xpose.msra.mxu0 0.0
    %4553 = vmatprep.subr.mxu0 0.0
    %4554 = vmatpush1.xpose.msra.mxu0 0.0
    %4555 = vmatprep.subr.mxu0 0.0
    %4556 = vmatpush1.xpose.msra.mxu0 0.0
    %4557 = vmatprep.subr.mxu0 0.0
    %4558 = vmatpush1.xpose.msra.mxu0 0.0
    %4559 = vmatprep.subr.mxu0 0.0
    %4560 = vmatpush1.xpose.msra.mxu0 0.0
    %4561 = vmatprep.subr.mxu0 0.0
    %4562 = vmatpush1.xpose.msra.mxu0 0.0
    %4563 = vmatprep.subr.mxu0 0.0
    %4564 = vmatpush1.xpose.msra.mxu0 0.0
    %4565 = vmatprep.subr.mxu0 0.0
    %4566 = vmatpush1.xpose.msra.mxu0 0.0
    %4567 = vmatprep.subr.mxu0 0.0
    %4568 = vmatpush1.xpose.msra.mxu0 0.0
    %4569 = vmatprep.subr.mxu0 0.0
    %4570 = vmatpush1.xpose.msra.mxu0 0.0
    %4571 = vmatprep.subr.mxu0 0.0
    %4572 = vmatpush1.xpose.msra.mxu0 0.0
    %4573 = vmatprep.subr.mxu0 0.0
    %4574 = vmatpush1.xpose.msra.mxu0 %v4541
    %4575 = vmatprep.subr.mxu0 0.0
    %4576 = vmatpush2.xpose.msra.mxu0 0.0
    %4577 = vmatprep.subr.mxu0 0.0
    %4578 = vmatpush2.xpose.msra.mxu0 0.0
    %4579 = vmatprep.subr.mxu0 0.0
    %4580 = vmatpush2.xpose.msra.mxu0 0.0
    %4581 = vmatprep.subr.mxu0 0.0
    %4582 = vmatpush2.xpose.msra.mxu0 0.0
    %4583 = vmatprep.subr.mxu0 0.0
    %4584 = vmatpush2.xpose.msra.mxu0 0.0
    %4585 = vmatprep.subr.mxu0 0.0
    %4586 = vmatpush2.xpose.msra.mxu0 0.0
    %4587 = vmatprep.subr.mxu0 0.0
    %4588 = vmatpush2.xpose.msra.mxu0 0.0
    %4589 = vmatprep.subr.mxu0 0.0
    %4590 = vmatpush2.xpose.msra.mxu0 0.0
    %4591 = vmatprep.subr.mxu0 0.0
    %4592 = vmatpush2.xpose.msra.mxu0 0.0
    %4593 = vmatprep.subr.mxu0 0.0
    %4594 = vmatpush2.xpose.msra.mxu0 0.0
    %4595 = vmatprep.subr.mxu0 0.0
    %4596 = vmatpush2.xpose.msra.mxu0 0.0
    %4597 = vmatprep.subr.mxu0 0.0
    %4598 = vmatpush2.xpose.msra.mxu0 0.0
    %4599 = vmatprep.subr.mxu0 0.0
    %4600 = vmatpush2.xpose.msra.mxu0 0.0
    %4601 = vmatprep.subr.mxu0 0.0
    %4602 = vmatpush2.xpose.msra.mxu0 0.0
    %4603 = vmatprep.subr.mxu0 0.0
    %4604 = vmatpush2.xpose.msra.mxu0 0.0
    %4605 = vmatprep.subr.mxu0 0.0
    %4606 = vmatpush2.xpose.msra.mxu0 0.0
    %4607 = vmatprep.mubr.f32.mxu0 0.0
    %4608 = vmatmul.mubr.f32.gmra.mxu0 %v4538
    %v4609 = vpop.f32.mrf.mxu0
    %v4610 = vadd.f32 0.0, %v4609
    %v4611 = vpop.f32.mrf.mxu0
    %4612 = vdwg.mxu0
    %v4614 = vsel %vm3168, %v1779, 0
    %v4617 = vsel %vm3168, %v2403, 0
    %4619 = vmatprep.subr.mxu0 0.0
    %4620 = vmatpush1.xpose.msra.mxu0 0.0
    %4621 = vmatprep.subr.mxu0 0.0
    %4622 = vmatpush1.xpose.msra.mxu0 0.0
    %4623 = vmatprep.subr.mxu0 0.0
    %4624 = vmatpush1.xpose.msra.mxu0 0.0
    %4625 = vmatprep.subr.mxu0 0.0
    %4626 = vmatpush1.xpose.msra.mxu0 0.0
    %4627 = vmatprep.subr.mxu0 0.0
    %4628 = vmatpush1.xpose.msra.mxu0 0.0
    %4629 = vmatprep.subr.mxu0 0.0
    %4630 = vmatpush1.xpose.msra.mxu0 0.0
    %4631 = vmatprep.subr.mxu0 0.0
    %4632 = vmatpush1.xpose.msra.mxu0 0.0
    %4633 = vmatprep.subr.mxu0 0.0
    %4634 = vmatpush1.xpose.msra.mxu0 0.0
    %4635 = vmatprep.subr.mxu0 0.0
    %4636 = vmatpush1.xpose.msra.mxu0 0.0
    %4637 = vmatprep.subr.mxu0 0.0
    %4638 = vmatpush1.xpose.msra.mxu0 0.0
    %4639 = vmatprep.subr.mxu0 0.0
    %4640 = vmatpush1.xpose.msra.mxu0 0.0
    %4641 = vmatprep.subr.mxu0 0.0
    %4642 = vmatpush1.xpose.msra.mxu0 0.0
    %4643 = vmatprep.subr.mxu0 0.0
    %4644 = vmatpush1.xpose.msra.mxu0 0.0
    %4645 = vmatprep.subr.mxu0 0.0
    %4646 = vmatpush1.xpose.msra.mxu0 0.0
    %4647 = vmatprep.subr.mxu0 0.0
    %4648 = vmatpush1.xpose.msra.mxu0 0.0
    %4649 = vmatprep.subr.mxu0 0.0
    %4650 = vmatpush1.xpose.msra.mxu0 %v4617
    %4651 = vmatprep.subr.mxu0 0.0
    %4652 = vmatpush2.xpose.msra.mxu0 0.0
    %4653 = vmatprep.subr.mxu0 0.0
    %4654 = vmatpush2.xpose.msra.mxu0 0.0
    %4655 = vmatprep.subr.mxu0 0.0
    %4656 = vmatpush2.xpose.msra.mxu0 0.0
    %4657 = vmatprep.subr.mxu0 0.0
    %4658 = vmatpush2.xpose.msra.mxu0 0.0
    %4659 = vmatprep.subr.mxu0 0.0
    %4660 = vmatpush2.xpose.msra.mxu0 0.0
    %4661 = vmatprep.subr.mxu0 0.0
    %4662 = vmatpush2.xpose.msra.mxu0 0.0
    %4663 = vmatprep.subr.mxu0 0.0
    %4664 = vmatpush2.xpose.msra.mxu0 0.0
    %4665 = vmatprep.subr.mxu0 0.0
    %4666 = vmatpush2.xpose.msra.mxu0 0.0
    %4667 = vmatprep.subr.mxu0 0.0
    %4668 = vmatpush2.xpose.msra.mxu0 0.0
    %4669 = vmatprep.subr.mxu0 0.0
    %4670 = vmatpush2.xpose.msra.mxu0 0.0
    %4671 = vmatprep.subr.mxu0 0.0
    %4672 = vmatpush2.xpose.msra.mxu0 0.0
    %4673 = vmatprep.subr.mxu0 0.0
    %4674 = vmatpush2.xpose.msra.mxu0 0.0
    %4675 = vmatprep.subr.mxu0 0.0
    %4676 = vmatpush2.xpose.msra.mxu0 0.0
    %4677 = vmatprep.subr.mxu0 0.0
    %4678 = vmatpush2.xpose.msra.mxu0 0.0
    %4679 = vmatprep.subr.mxu0 0.0
    %4680 = vmatpush2.xpose.msra.mxu0 0.0
    %4681 = vmatprep.subr.mxu0 0.0
    %4682 = vmatpush2.xpose.msra.mxu0 0.0
    %4683 = vmatprep.mubr.f32.mxu0 0.0
    %4684 = vmatmul.mubr.f32.gmra.mxu0 %v4614
    %v4685 = vpop.f32.mrf.mxu0
    %v4686 = vadd.f32 0.0, %v4685
    %v4687 = vpop.f32.mrf.mxu0
    %4688 = vdwg.mxu0
    %v4690 = vsel %vm3168, %v1780, 0
    %v4693 = vsel %vm3168, %v2404, 0
    %4695 = vmatprep.subr.mxu0 0.0
    %4696 = vmatpush1.xpose.msra.mxu0 0.0
    %4697 = vmatprep.subr.mxu0 0.0
    %4698 = vmatpush1.xpose.msra.mxu0 0.0
    %4699 = vmatprep.subr.mxu0 0.0
    %4700 = vmatpush1.xpose.msra.mxu0 0.0
    %4701 = vmatprep.subr.mxu0 0.0
    %4702 = vmatpush1.xpose.msra.mxu0 0.0
    %4703 = vmatprep.subr.mxu0 0.0
    %4704 = vmatpush1.xpose.msra.mxu0 0.0
    %4705 = vmatprep.subr.mxu0 0.0
    %4706 = vmatpush1.xpose.msra.mxu0 0.0
    %4707 = vmatprep.subr.mxu0 0.0
    %4708 = vmatpush1.xpose.msra.mxu0 0.0
    %4709 = vmatprep.subr.mxu0 0.0
    %4710 = vmatpush1.xpose.msra.mxu0 0.0
    %4711 = vmatprep.subr.mxu0 0.0
    %4712 = vmatpush1.xpose.msra.mxu0 0.0
    %4713 = vmatprep.subr.mxu0 0.0
    %4714 = vmatpush1.xpose.msra.mxu0 0.0
    %4715 = vmatprep.subr.mxu0 0.0
    %4716 = vmatpush1.xpose.msra.mxu0 0.0
    %4717 = vmatprep.subr.mxu0 0.0
    %4718 = vmatpush1.xpose.msra.mxu0 0.0
    %4719 = vmatprep.subr.mxu0 0.0
    %4720 = vmatpush1.xpose.msra.mxu0 0.0
    %4721 = vmatprep.subr.mxu0 0.0
    %4722 = vmatpush1.xpose.msra.mxu0 0.0
    %4723 = vmatprep.subr.mxu0 0.0
    %4724 = vmatpush1.xpose.msra.mxu0 0.0
    %4725 = vmatprep.subr.mxu0 0.0
    %4726 = vmatpush1.xpose.msra.mxu0 %v4693
    %4727 = vmatprep.subr.mxu0 0.0
    %4728 = vmatpush2.xpose.msra.mxu0 0.0
    %4729 = vmatprep.subr.mxu0 0.0
    %4730 = vmatpush2.xpose.msra.mxu0 0.0
    %4731 = vmatprep.subr.mxu0 0.0
    %4732 = vmatpush2.xpose.msra.mxu0 0.0
    %4733 = vmatprep.subr.mxu0 0.0
    %4734 = vmatpush2.xpose.msra.mxu0 0.0
    %4735 = vmatprep.subr.mxu0 0.0
    %4736 = vmatpush2.xpose.msra.mxu0 0.0
    %4737 = vmatprep.subr.mxu0 0.0
    %4738 = vmatpush2.xpose.msra.mxu0 0.0
    %4739 = vmatprep.subr.mxu0 0.0
    %4740 = vmatpush2.xpose.msra.mxu0 0.0
    %4741 = vmatprep.subr.mxu0 0.0
    %4742 = vmatpush2.xpose.msra.mxu0 0.0
    %4743 = vmatprep.subr.mxu0 0.0
    %4744 = vmatpush2.xpose.msra.mxu0 0.0
    %4745 = vmatprep.subr.mxu0 0.0
    %4746 = vmatpush2.xpose.msra.mxu0 0.0
    %4747 = vmatprep.subr.mxu0 0.0
    %4748 = vmatpush2.xpose.msra.mxu0 0.0
    %4749 = vmatprep.subr.mxu0 0.0
    %4750 = vmatpush2.xpose.msra.mxu0 0.0
    %4751 = vmatprep.subr.mxu0 0.0
    %4752 = vmatpush2.xpose.msra.mxu0 0.0
    %4753 = vmatprep.subr.mxu0 0.0
    %4754 = vmatpush2.xpose.msra.mxu0 0.0
    %4755 = vmatprep.subr.mxu0 0.0
    %4756 = vmatpush2.xpose.msra.mxu0 0.0
    %4757 = vmatprep.subr.mxu0 0.0
    %4758 = vmatpush2.xpose.msra.mxu0 0.0
    %4759 = vmatprep.mubr.f32.mxu0 0.0
    %4760 = vmatmul.mubr.f32.gmra.mxu0 %v4690
    %v4761 = vpop.f32.mrf.mxu0
    %v4762 = vadd.f32 0.0, %v4761
    %v4763 = vpop.f32.mrf.mxu0
    %4764 = vdwg.mxu0
    %v4766 = vsel %vm3168, %v1781, 0
    %v4769 = vsel %vm3168, %v2405, 0
    %4771 = vmatprep.subr.mxu0 0.0
    %4772 = vmatpush1.xpose.msra.mxu0 0.0
    %4773 = vmatprep.subr.mxu0 0.0
    %4774 = vmatpush1.xpose.msra.mxu0 0.0
    %4775 = vmatprep.subr.mxu0 0.0
    %4776 = vmatpush1.xpose.msra.mxu0 0.0
    %4777 = vmatprep.subr.mxu0 0.0
    %4778 = vmatpush1.xpose.msra.mxu0 0.0
    %4779 = vmatprep.subr.mxu0 0.0
    %4780 = vmatpush1.xpose.msra.mxu0 0.0
    %4781 = vmatprep.subr.mxu0 0.0
    %4782 = vmatpush1.xpose.msra.mxu0 0.0
    %4783 = vmatprep.subr.mxu0 0.0
    %4784 = vmatpush1.xpose.msra.mxu0 0.0
    %4785 = vmatprep.subr.mxu0 0.0
    %4786 = vmatpush1.xpose.msra.mxu0 0.0
    %4787 = vmatprep.subr.mxu0 0.0
    %4788 = vmatpush1.xpose.msra.mxu0 0.0
    %4789 = vmatprep.subr.mxu0 0.0
    %4790 = vmatpush1.xpose.msra.mxu0 0.0
    %4791 = vmatprep.subr.mxu0 0.0
    %4792 = vmatpush1.xpose.msra.mxu0 0.0
    %4793 = vmatprep.subr.mxu0 0.0
    %4794 = vmatpush1.xpose.msra.mxu0 0.0
    %4795 = vmatprep.subr.mxu0 0.0
    %4796 = vmatpush1.xpose.msra.mxu0 0.0
    %4797 = vmatprep.subr.mxu0 0.0
    %4798 = vmatpush1.xpose.msra.mxu0 0.0
    %4799 = vmatprep.subr.mxu0 0.0
    %4800 = vmatpush1.xpose.msra.mxu0 0.0
    %4801 = vmatprep.subr.mxu0 0.0
    %4802 = vmatpush1.xpose.msra.mxu0 %v4769
    %4803 = vmatprep.subr.mxu0 0.0
    %4804 = vmatpush2.xpose.msra.mxu0 0.0
    %4805 = vmatprep.subr.mxu0 0.0
    %4806 = vmatpush2.xpose.msra.mxu0 0.0
    %4807 = vmatprep.subr.mxu0 0.0
    %4808 = vmatpush2.xpose.msra.mxu0 0.0
    %4809 = vmatprep.subr.mxu0 0.0
    %4810 = vmatpush2.xpose.msra.mxu0 0.0
    %4811 = vmatprep.subr.mxu0 0.0
    %4812 = vmatpush2.xpose.msra.mxu0 0.0
    %4813 = vmatprep.subr.mxu0 0.0
    %4814 = vmatpush2.xpose.msra.mxu0 0.0
    %4815 = vmatprep.subr.mxu0 0.0
    %4816 = vmatpush2.xpose.msra.mxu0 0.0
    %4817 = vmatprep.subr.mxu0 0.0
    %4818 = vmatpush2.xpose.msra.mxu0 0.0
    %4819 = vmatprep.subr.mxu0 0.0
    %4820 = vmatpush2.xpose.msra.mxu0 0.0
    %4821 = vmatprep.subr.mxu0 0.0
    %4822 = vmatpush2.xpose.msra.mxu0 0.0
    %4823 = vmatprep.subr.mxu0 0.0
    %4824 = vmatpush2.xpose.msra.mxu0 0.0
    %4825 = vmatprep.subr.mxu0 0.0
    %4826 = vmatpush2.xpose.msra.mxu0 0.0
    %4827 = vmatprep.subr.mxu0 0.0
    %4828 = vmatpush2.xpose.msra.mxu0 0.0
    %4829 = vmatprep.subr.mxu0 0.0
    %4830 = vmatpush2.xpose.msra.mxu0 0.0
    %4831 = vmatprep.subr.mxu0 0.0
    %4832 = vmatpush2.xpose.msra.mxu0 0.0
    %4833 = vmatprep.subr.mxu0 0.0
    %4834 = vmatpush2.xpose.msra.mxu0 0.0
    %4835 = vmatprep.mubr.f32.mxu0 0.0
    %4836 = vmatmul.mubr.f32.gmra.mxu0 %v4766
    %v4837 = vpop.f32.mrf.mxu0
    %v4838 = vadd.f32 0.0, %v4837
    %v4839 = vpop.f32.mrf.mxu0
    %4840 = vdwg.mxu0
    %v4842 = vsel %vm3168, %v1782, 0
    %v4845 = vsel %vm3168, %v2406, 0
    %4847 = vmatprep.subr.mxu0 0.0
    %4848 = vmatpush1.xpose.msra.mxu0 0.0
    %4849 = vmatprep.subr.mxu0 0.0
    %4850 = vmatpush1.xpose.msra.mxu0 0.0
    %4851 = vmatprep.subr.mxu0 0.0
    %4852 = vmatpush1.xpose.msra.mxu0 0.0
    %4853 = vmatprep.subr.mxu0 0.0
    %4854 = vmatpush1.xpose.msra.mxu0 0.0
    %4855 = vmatprep.subr.mxu0 0.0
    %4856 = vmatpush1.xpose.msra.mxu0 0.0
    %4857 = vmatprep.subr.mxu0 0.0
    %4858 = vmatpush1.xpose.msra.mxu0 0.0
    %4859 = vmatprep.subr.mxu0 0.0
    %4860 = vmatpush1.xpose.msra.mxu0 0.0
    %4861 = vmatprep.subr.mxu0 0.0
    %4862 = vmatpush1.xpose.msra.mxu0 0.0
    %4863 = vmatprep.subr.mxu0 0.0
    %4864 = vmatpush1.xpose.msra.mxu0 0.0
    %4865 = vmatprep.subr.mxu0 0.0
    %4866 = vmatpush1.xpose.msra.mxu0 0.0
    %4867 = vmatprep.subr.mxu0 0.0
    %4868 = vmatpush1.xpose.msra.mxu0 0.0
    %4869 = vmatprep.subr.mxu0 0.0
    %4870 = vmatpush1.xpose.msra.mxu0 0.0
    %4871 = vmatprep.subr.mxu0 0.0
    %4872 = vmatpush1.xpose.msra.mxu0 0.0
    %4873 = vmatprep.subr.mxu0 0.0
    %4874 = vmatpush1.xpose.msra.mxu0 0.0
    %4875 = vmatprep.subr.mxu0 0.0
    %4876 = vmatpush1.xpose.msra.mxu0 0.0
    %4877 = vmatprep.subr.mxu0 0.0
    %4878 = vmatpush1.xpose.msra.mxu0 %v4845
    %4879 = vmatprep.subr.mxu0 0.0
    %4880 = vmatpush2.xpose.msra.mxu0 0.0
    %4881 = vmatprep.subr.mxu0 0.0
    %4882 = vmatpush2.xpose.msra.mxu0 0.0
    %4883 = vmatprep.subr.mxu0 0.0
    %4884 = vmatpush2.xpose.msra.mxu0 0.0
    %4885 = vmatprep.subr.mxu0 0.0
    %4886 = vmatpush2.xpose.msra.mxu0 0.0
    %4887 = vmatprep.subr.mxu0 0.0
    %4888 = vmatpush2.xpose.msra.mxu0 0.0
    %4889 = vmatprep.subr.mxu0 0.0
    %4890 = vmatpush2.xpose.msra.mxu0 0.0
    %4891 = vmatprep.subr.mxu0 0.0
    %4892 = vmatpush2.xpose.msra.mxu0 0.0
    %4893 = vmatprep.subr.mxu0 0.0
    %4894 = vmatpush2.xpose.msra.mxu0 0.0
    %4895 = vmatprep.subr.mxu0 0.0
    %4896 = vmatpush2.xpose.msra.mxu0 0.0
    %4897 = vmatprep.subr.mxu0 0.0
    %4898 = vmatpush2.xpose.msra.mxu0 0.0
    %4899 = vmatprep.subr.mxu0 0.0
    %4900 = vmatpush2.xpose.msra.mxu0 0.0
    %4901 = vmatprep.subr.mxu0 0.0
    %4902 = vmatpush2.xpose.msra.mxu0 0.0
    %4903 = vmatprep.subr.mxu0 0.0
    %4904 = vmatpush2.xpose.msra.mxu0 0.0
    %4905 = vmatprep.subr.mxu0 0.0
    %4906 = vmatpush2.xpose.msra.mxu0 0.0
    %4907 = vmatprep.subr.mxu0 0.0
    %4908 = vmatpush2.xpose.msra.mxu0 0.0
    %4909 = vmatprep.subr.mxu0 0.0
    %4910 = vmatpush2.xpose.msra.mxu0 0.0
    %4911 = vmatprep.mubr.f32.mxu0 0.0
    %4912 = vmatmul.mubr.f32.gmra.mxu0 %v4842
    %v4913 = vpop.f32.mrf.mxu0
    %v4914 = vadd.f32 0.0, %v4913
    %v4915 = vpop.f32.mrf.mxu0
    %4916 = vdwg.mxu0
    %v4918 = vsel %vm3168, %v1783, 0
    %v4921 = vsel %vm3168, %v2407, 0
    %4923 = vmatprep.subr.mxu0 0.0
    %4924 = vmatpush1.xpose.msra.mxu0 0.0
    %4925 = vmatprep.subr.mxu0 0.0
    %4926 = vmatpush1.xpose.msra.mxu0 0.0
    %4927 = vmatprep.subr.mxu0 0.0
    %4928 = vmatpush1.xpose.msra.mxu0 0.0
    %4929 = vmatprep.subr.mxu0 0.0
    %4930 = vmatpush1.xpose.msra.mxu0 0.0
    %4931 = vmatprep.subr.mxu0 0.0
    %4932 = vmatpush1.xpose.msra.mxu0 0.0
    %4933 = vmatprep.subr.mxu0 0.0
    %4934 = vmatpush1.xpose.msra.mxu0 0.0
    %4935 = vmatprep.subr.mxu0 0.0
    %4936 = vmatpush1.xpose.msra.mxu0 0.0
    %4937 = vmatprep.subr.mxu0 0.0
    %4938 = vmatpush1.xpose.msra.mxu0 0.0
    %4939 = vmatprep.subr.mxu0 0.0
    %4940 = vmatpush1.xpose.msra.mxu0 0.0
    %4941 = vmatprep.subr.mxu0 0.0
    %4942 = vmatpush1.xpose.msra.mxu0 0.0
    %4943 = vmatprep.subr.mxu0 0.0
    %4944 = vmatpush1.xpose.msra.mxu0 0.0
    %4945 = vmatprep.subr.mxu0 0.0
    %4946 = vmatpush1.xpose.msra.mxu0 0.0
    %4947 = vmatprep.subr.mxu0 0.0
    %4948 = vmatpush1.xpose.msra.mxu0 0.0
    %4949 = vmatprep.subr.mxu0 0.0
    %4950 = vmatpush1.xpose.msra.mxu0 0.0
    %4951 = vmatprep.subr.mxu0 0.0
    %4952 = vmatpush1.xpose.msra.mxu0 0.0
    %4953 = vmatprep.subr.mxu0 0.0
    %4954 = vmatpush1.xpose.msra.mxu0 %v4921
    %4955 = vmatprep.subr.mxu0 0.0
    %4956 = vmatpush2.xpose.msra.mxu0 0.0
    %4957 = vmatprep.subr.mxu0 0.0
    %4958 = vmatpush2.xpose.msra.mxu0 0.0
    %4959 = vmatprep.subr.mxu0 0.0
    %4960 = vmatpush2.xpose.msra.mxu0 0.0
    %4961 = vmatprep.subr.mxu0 0.0
    %4962 = vmatpush2.xpose.msra.mxu0 0.0
    %4963 = vmatprep.subr.mxu0 0.0
    %4964 = vmatpush2.xpose.msra.mxu0 0.0
    %4965 = vmatprep.subr.mxu0 0.0
    %4966 = vmatpush2.xpose.msra.mxu0 0.0
    %4967 = vmatprep.subr.mxu0 0.0
    %4968 = vmatpush2.xpose.msra.mxu0 0.0
    %4969 = vmatprep.subr.mxu0 0.0
    %4970 = vmatpush2.xpose.msra.mxu0 0.0
    %4971 = vmatprep.subr.mxu0 0.0
    %4972 = vmatpush2.xpose.msra.mxu0 0.0
    %4973 = vmatprep.subr.mxu0 0.0
    %4974 = vmatpush2.xpose.msra.mxu0 0.0
    %4975 = vmatprep.subr.mxu0 0.0
    %4976 = vmatpush2.xpose.msra.mxu0 0.0
    %4977 = vmatprep.subr.mxu0 0.0
    %4978 = vmatpush2.xpose.msra.mxu0 0.0
    %4979 = vmatprep.subr.mxu0 0.0
    %4980 = vmatpush2.xpose.msra.mxu0 0.0
    %4981 = vmatprep.subr.mxu0 0.0
    %4982 = vmatpush2.xpose.msra.mxu0 0.0
    %4983 = vmatprep.subr.mxu0 0.0
    %4984 = vmatpush2.xpose.msra.mxu0 0.0
    %4985 = vmatprep.subr.mxu0 0.0
    %4986 = vmatpush2.xpose.msra.mxu0 0.0
    %4987 = vmatprep.mubr.f32.mxu0 0.0
    %4988 = vmatmul.mubr.f32.gmra.mxu0 %v4918
    %v4989 = vpop.f32.mrf.mxu0
    %v4990 = vadd.f32 0.0, %v4989
    %v4991 = vpop.f32.mrf.mxu0
    %4992 = vdwg.mxu0
    %v4994 = vsel %vm3168, %v1912, 0
    %v4997 = vsel %vm3168, %v2536, 0
    %4999 = vmatprep.subr.mxu0 0.0
    %5000 = vmatpush1.xpose.msra.mxu0 0.0
    %5001 = vmatprep.subr.mxu0 0.0
    %5002 = vmatpush1.xpose.msra.mxu0 0.0
    %5003 = vmatprep.subr.mxu0 0.0
    %5004 = vmatpush1.xpose.msra.mxu0 0.0
    %5005 = vmatprep.subr.mxu0 0.0
    %5006 = vmatpush1.xpose.msra.mxu0 0.0
    %5007 = vmatprep.subr.mxu0 0.0
    %5008 = vmatpush1.xpose.msra.mxu0 0.0
    %5009 = vmatprep.subr.mxu0 0.0
    %5010 = vmatpush1.xpose.msra.mxu0 0.0
    %5011 = vmatprep.subr.mxu0 0.0
    %5012 = vmatpush1.xpose.msra.mxu0 0.0
    %5013 = vmatprep.subr.mxu0 0.0
    %5014 = vmatpush1.xpose.msra.mxu0 0.0
    %5015 = vmatprep.subr.mxu0 0.0
    %5016 = vmatpush1.xpose.msra.mxu0 0.0
    %5017 = vmatprep.subr.mxu0 0.0
    %5018 = vmatpush1.xpose.msra.mxu0 0.0
    %5019 = vmatprep.subr.mxu0 0.0
    %5020 = vmatpush1.xpose.msra.mxu0 0.0
    %5021 = vmatprep.subr.mxu0 0.0
    %5022 = vmatpush1.xpose.msra.mxu0 0.0
    %5023 = vmatprep.subr.mxu0 0.0
    %5024 = vmatpush1.xpose.msra.mxu0 0.0
    %5025 = vmatprep.subr.mxu0 0.0
    %5026 = vmatpush1.xpose.msra.mxu0 0.0
    %5027 = vmatprep.subr.mxu0 0.0
    %5028 = vmatpush1.xpose.msra.mxu0 0.0
    %5029 = vmatprep.subr.mxu0 0.0
    %5030 = vmatpush1.xpose.msra.mxu0 %v4997
    %5031 = vmatprep.subr.mxu0 0.0
    %5032 = vmatpush2.xpose.msra.mxu0 0.0
    %5033 = vmatprep.subr.mxu0 0.0
    %5034 = vmatpush2.xpose.msra.mxu0 0.0
    %5035 = vmatprep.subr.mxu0 0.0
    %5036 = vmatpush2.xpose.msra.mxu0 0.0
    %5037 = vmatprep.subr.mxu0 0.0
    %5038 = vmatpush2.xpose.msra.mxu0 0.0
    %5039 = vmatprep.subr.mxu0 0.0
    %5040 = vmatpush2.xpose.msra.mxu0 0.0
    %5041 = vmatprep.subr.mxu0 0.0
    %5042 = vmatpush2.xpose.msra.mxu0 0.0
    %5043 = vmatprep.subr.mxu0 0.0
    %5044 = vmatpush2.xpose.msra.mxu0 0.0
    %5045 = vmatprep.subr.mxu0 0.0
    %5046 = vmatpush2.xpose.msra.mxu0 0.0
    %5047 = vmatprep.subr.mxu0 0.0
    %5048 = vmatpush2.xpose.msra.mxu0 0.0
    %5049 = vmatprep.subr.mxu0 0.0
    %5050 = vmatpush2.xpose.msra.mxu0 0.0
    %5051 = vmatprep.subr.mxu0 0.0
    %5052 = vmatpush2.xpose.msra.mxu0 0.0
    %5053 = vmatprep.subr.mxu0 0.0
    %5054 = vmatpush2.xpose.msra.mxu0 0.0
    %5055 = vmatprep.subr.mxu0 0.0
    %5056 = vmatpush2.xpose.msra.mxu0 0.0
    %5057 = vmatprep.subr.mxu0 0.0
    %5058 = vmatpush2.xpose.msra.mxu0 0.0
    %5059 = vmatprep.subr.mxu0 0.0
    %5060 = vmatpush2.xpose.msra.mxu0 0.0
    %5061 = vmatprep.subr.mxu0 0.0
    %5062 = vmatpush2.xpose.msra.mxu0 0.0
    %5063 = vmatprep.mubr.f32.mxu0 0.0
    %5064 = vmatmul.mubr.f32.gmra.mxu0 %v4994
    %v5065 = vpop.f32.mrf.mxu0
    %v5066 = vadd.f32 0.0, %v5065
    %v5067 = vpop.f32.mrf.mxu0
    %5068 = vdwg.mxu0
    %v5070 = vsel %vm3168, %v1913, 0
    %v5073 = vsel %vm3168, %v2537, 0
    %5075 = vmatprep.subr.mxu0 0.0
    %5076 = vmatpush1.xpose.msra.mxu0 0.0
    %5077 = vmatprep.subr.mxu0 0.0
    %5078 = vmatpush1.xpose.msra.mxu0 0.0
    %5079 = vmatprep.subr.mxu0 0.0
    %5080 = vmatpush1.xpose.msra.mxu0 0.0
    %5081 = vmatprep.subr.mxu0 0.0
    %5082 = vmatpush1.xpose.msra.mxu0 0.0
    %5083 = vmatprep.subr.mxu0 0.0
    %5084 = vmatpush1.xpose.msra.mxu0 0.0
    %5085 = vmatprep.subr.mxu0 0.0
    %5086 = vmatpush1.xpose.msra.mxu0 0.0
    %5087 = vmatprep.subr.mxu0 0.0
    %5088 = vmatpush1.xpose.msra.mxu0 0.0
    %5089 = vmatprep.subr.mxu0 0.0
    %5090 = vmatpush1.xpose.msra.mxu0 0.0
    %5091 = vmatprep.subr.mxu0 0.0
    %5092 = vmatpush1.xpose.msra.mxu0 0.0
    %5093 = vmatprep.subr.mxu0 0.0
    %5094 = vmatpush1.xpose.msra.mxu0 0.0
    %5095 = vmatprep.subr.mxu0 0.0
    %5096 = vmatpush1.xpose.msra.mxu0 0.0
    %5097 = vmatprep.subr.mxu0 0.0
    %5098 = vmatpush1.xpose.msra.mxu0 0.0
    %5099 = vmatprep.subr.mxu0 0.0
    %5100 = vmatpush1.xpose.msra.mxu0 0.0
    %5101 = vmatprep.subr.mxu0 0.0
    %5102 = vmatpush1.xpose.msra.mxu0 0.0
    %5103 = vmatprep.subr.mxu0 0.0
    %5104 = vmatpush1.xpose.msra.mxu0 0.0
    %5105 = vmatprep.subr.mxu0 0.0
    %5106 = vmatpush1.xpose.msra.mxu0 %v5073
    %5107 = vmatprep.subr.mxu0 0.0
    %5108 = vmatpush2.xpose.msra.mxu0 0.0
    %5109 = vmatprep.subr.mxu0 0.0
    %5110 = vmatpush2.xpose.msra.mxu0 0.0
    %5111 = vmatprep.subr.mxu0 0.0
    %5112 = vmatpush2.xpose.msra.mxu0 0.0
    %5113 = vmatprep.subr.mxu0 0.0
    %5114 = vmatpush2.xpose.msra.mxu0 0.0
    %5115 = vmatprep.subr.mxu0 0.0
    %5116 = vmatpush2.xpose.msra.mxu0 0.0
    %5117 = vmatprep.subr.mxu0 0.0
    %5118 = vmatpush2.xpose.msra.mxu0 0.0
    %5119 = vmatprep.subr.mxu0 0.0
    %5120 = vmatpush2.xpose.msra.mxu0 0.0
    %5121 = vmatprep.subr.mxu0 0.0
    %5122 = vmatpush2.xpose.msra.mxu0 0.0
    %5123 = vmatprep.subr.mxu0 0.0
    %5124 = vmatpush2.xpose.msra.mxu0 0.0
    %5125 = vmatprep.subr.mxu0 0.0
    %5126 = vmatpush2.xpose.msra.mxu0 0.0
    %5127 = vmatprep.subr.mxu0 0.0
    %5128 = vmatpush2.xpose.msra.mxu0 0.0
    %5129 = vmatprep.subr.mxu0 0.0
    %5130 = vmatpush2.xpose.msra.mxu0 0.0
    %5131 = vmatprep.subr.mxu0 0.0
    %5132 = vmatpush2.xpose.msra.mxu0 0.0
    %5133 = vmatprep.subr.mxu0 0.0
    %5134 = vmatpush2.xpose.msra.mxu0 0.0
    %5135 = vmatprep.subr.mxu0 0.0
    %5136 = vmatpush2.xpose.msra.mxu0 0.0
    %5137 = vmatprep.subr.mxu0 0.0
    %5138 = vmatpush2.xpose.msra.mxu0 0.0
    %5139 = vmatprep.mubr.f32.mxu0 0.0
    %5140 = vmatmul.mubr.f32.gmra.mxu0 %v5070
    %v5141 = vpop.f32.mrf.mxu0
    %v5142 = vadd.f32 0.0, %v5141
    %v5143 = vpop.f32.mrf.mxu0
    %5144 = vdwg.mxu0
    %v5146 = vsel %vm3168, %v1914, 0
    %v5149 = vsel %vm3168, %v2538, 0
    %5151 = vmatprep.subr.mxu0 0.0
    %5152 = vmatpush1.xpose.msra.mxu0 0.0
    %5153 = vmatprep.subr.mxu0 0.0
    %5154 = vmatpush1.xpose.msra.mxu0 0.0
    %5155 = vmatprep.subr.mxu0 0.0
    %5156 = vmatpush1.xpose.msra.mxu0 0.0
    %5157 = vmatprep.subr.mxu0 0.0
    %5158 = vmatpush1.xpose.msra.mxu0 0.0
    %5159 = vmatprep.subr.mxu0 0.0
    %5160 = vmatpush1.xpose.msra.mxu0 0.0
    %5161 = vmatprep.subr.mxu0 0.0
    %5162 = vmatpush1.xpose.msra.mxu0 0.0
    %5163 = vmatprep.subr.mxu0 0.0
    %5164 = vmatpush1.xpose.msra.mxu0 0.0
    %5165 = vmatprep.subr.mxu0 0.0
    %5166 = vmatpush1.xpose.msra.mxu0 0.0
    %5167 = vmatprep.subr.mxu0 0.0
    %5168 = vmatpush1.xpose.msra.mxu0 0.0
    %5169 = vmatprep.subr.mxu0 0.0
    %5170 = vmatpush1.xpose.msra.mxu0 0.0
    %5171 = vmatprep.subr.mxu0 0.0
    %5172 = vmatpush1.xpose.msra.mxu0 0.0
    %5173 = vmatprep.subr.mxu0 0.0
    %5174 = vmatpush1.xpose.msra.mxu0 0.0
    %5175 = vmatprep.subr.mxu0 0.0
    %5176 = vmatpush1.xpose.msra.mxu0 0.0
    %5177 = vmatprep.subr.mxu0 0.0
    %5178 = vmatpush1.xpose.msra.mxu0 0.0
    %5179 = vmatprep.subr.mxu0 0.0
    %5180 = vmatpush1.xpose.msra.mxu0 0.0
    %5181 = vmatprep.subr.mxu0 0.0
    %5182 = vmatpush1.xpose.msra.mxu0 %v5149
    %5183 = vmatprep.subr.mxu0 0.0
    %5184 = vmatpush2.xpose.msra.mxu0 0.0
    %5185 = vmatprep.subr.mxu0 0.0
    %5186 = vmatpush2.xpose.msra.mxu0 0.0
    %5187 = vmatprep.subr.mxu0 0.0
    %5188 = vmatpush2.xpose.msra.mxu0 0.0
    %5189 = vmatprep.subr.mxu0 0.0
    %5190 = vmatpush2.xpose.msra.mxu0 0.0
    %5191 = vmatprep.subr.mxu0 0.0
    %5192 = vmatpush2.xpose.msra.mxu0 0.0
    %5193 = vmatprep.subr.mxu0 0.0
    %5194 = vmatpush2.xpose.msra.mxu0 0.0
    %5195 = vmatprep.subr.mxu0 0.0
    %5196 = vmatpush2.xpose.msra.mxu0 0.0
    %5197 = vmatprep.subr.mxu0 0.0
    %5198 = vmatpush2.xpose.msra.mxu0 0.0
    %5199 = vmatprep.subr.mxu0 0.0
    %5200 = vmatpush2.xpose.msra.mxu0 0.0
    %5201 = vmatprep.subr.mxu0 0.0
    %5202 = vmatpush2.xpose.msra.mxu0 0.0
    %5203 = vmatprep.subr.mxu0 0.0
    %5204 = vmatpush2.xpose.msra.mxu0 0.0
    %5205 = vmatprep.subr.mxu0 0.0
    %5206 = vmatpush2.xpose.msra.mxu0 0.0
    %5207 = vmatprep.subr.mxu0 0.0
    %5208 = vmatpush2.xpose.msra.mxu0 0.0
    %5209 = vmatprep.subr.mxu0 0.0
    %5210 = vmatpush2.xpose.msra.mxu0 0.0
    %5211 = vmatprep.subr.mxu0 0.0
    %5212 = vmatpush2.xpose.msra.mxu0 0.0
    %5213 = vmatprep.subr.mxu0 0.0
    %5214 = vmatpush2.xpose.msra.mxu0 0.0
    %5215 = vmatprep.mubr.f32.mxu0 0.0
    %5216 = vmatmul.mubr.f32.gmra.mxu0 %v5146
    %v5217 = vpop.f32.mrf.mxu0
    %v5218 = vadd.f32 0.0, %v5217
    %v5219 = vpop.f32.mrf.mxu0
    %5220 = vdwg.mxu0
    %v5222 = vsel %vm3168, %v1915, 0
    %v5225 = vsel %vm3168, %v2539, 0
    %5227 = vmatprep.subr.mxu0 0.0
    %5228 = vmatpush1.xpose.msra.mxu0 0.0
    %5229 = vmatprep.subr.mxu0 0.0
    %5230 = vmatpush1.xpose.msra.mxu0 0.0
    %5231 = vmatprep.subr.mxu0 0.0
    %5232 = vmatpush1.xpose.msra.mxu0 0.0
    %5233 = vmatprep.subr.mxu0 0.0
    %5234 = vmatpush1.xpose.msra.mxu0 0.0
    %5235 = vmatprep.subr.mxu0 0.0
    %5236 = vmatpush1.xpose.msra.mxu0 0.0
    %5237 = vmatprep.subr.mxu0 0.0
    %5238 = vmatpush1.xpose.msra.mxu0 0.0
    %5239 = vmatprep.subr.mxu0 0.0
    %5240 = vmatpush1.xpose.msra.mxu0 0.0
    %5241 = vmatprep.subr.mxu0 0.0
    %5242 = vmatpush1.xpose.msra.mxu0 0.0
    %5243 = vmatprep.subr.mxu0 0.0
    %5244 = vmatpush1.xpose.msra.mxu0 0.0
    %5245 = vmatprep.subr.mxu0 0.0
    %5246 = vmatpush1.xpose.msra.mxu0 0.0
    %5247 = vmatprep.subr.mxu0 0.0
    %5248 = vmatpush1.xpose.msra.mxu0 0.0
    %5249 = vmatprep.subr.mxu0 0.0
    %5250 = vmatpush1.xpose.msra.mxu0 0.0
    %5251 = vmatprep.subr.mxu0 0.0
    %5252 = vmatpush1.xpose.msra.mxu0 0.0
    %5253 = vmatprep.subr.mxu0 0.0
    %5254 = vmatpush1.xpose.msra.mxu0 0.0
    %5255 = vmatprep.subr.mxu0 0.0
    %5256 = vmatpush1.xpose.msra.mxu0 0.0
    %5257 = vmatprep.subr.mxu0 0.0
    %5258 = vmatpush1.xpose.msra.mxu0 %v5225
    %5259 = vmatprep.subr.mxu0 0.0
    %5260 = vmatpush2.xpose.msra.mxu0 0.0
    %5261 = vmatprep.subr.mxu0 0.0
    %5262 = vmatpush2.xpose.msra.mxu0 0.0
    %5263 = vmatprep.subr.mxu0 0.0
    %5264 = vmatpush2.xpose.msra.mxu0 0.0
    %5265 = vmatprep.subr.mxu0 0.0
    %5266 = vmatpush2.xpose.msra.mxu0 0.0
    %5267 = vmatprep.subr.mxu0 0.0
    %5268 = vmatpush2.xpose.msra.mxu0 0.0
    %5269 = vmatprep.subr.mxu0 0.0
    %5270 = vmatpush2.xpose.msra.mxu0 0.0
    %5271 = vmatprep.subr.mxu0 0.0
    %5272 = vmatpush2.xpose.msra.mxu0 0.0
    %5273 = vmatprep.subr.mxu0 0.0
    %5274 = vmatpush2.xpose.msra.mxu0 0.0
    %5275 = vmatprep.subr.mxu0 0.0
    %5276 = vmatpush2.xpose.msra.mxu0 0.0
    %5277 = vmatprep.subr.mxu0 0.0
    %5278 = vmatpush2.xpose.msra.mxu0 0.0
    %5279 = vmatprep.subr.mxu0 0.0
    %5280 = vmatpush2.xpose.msra.mxu0 0.0
    %5281 = vmatprep.subr.mxu0 0.0
    %5282 = vmatpush2.xpose.msra.mxu0 0.0
    %5283 = vmatprep.subr.mxu0 0.0
    %5284 = vmatpush2.xpose.msra.mxu0 0.0
    %5285 = vmatprep.subr.mxu0 0.0
    %5286 = vmatpush2.xpose.msra.mxu0 0.0
    %5287 = vmatprep.subr.mxu0 0.0
    %5288 = vmatpush2.xpose.msra.mxu0 0.0
    %5289 = vmatprep.subr.mxu0 0.0
    %5290 = vmatpush2.xpose.msra.mxu0 0.0
    %5291 = vmatprep.mubr.f32.mxu0 0.0
    %5292 = vmatmul.mubr.f32.gmra.mxu0 %v5222
    %v5293 = vpop.f32.mrf.mxu0
    %v5294 = vadd.f32 0.0, %v5293
    %v5295 = vpop.f32.mrf.mxu0
    %5296 = vdwg.mxu0
    %v5298 = vsel %vm3168, %v1916, 0
    %v5301 = vsel %vm3168, %v2540, 0
    %5303 = vmatprep.subr.mxu0 0.0
    %5304 = vmatpush1.xpose.msra.mxu0 0.0
    %5305 = vmatprep.subr.mxu0 0.0
    %5306 = vmatpush1.xpose.msra.mxu0 0.0
    %5307 = vmatprep.subr.mxu0 0.0
    %5308 = vmatpush1.xpose.msra.mxu0 0.0
    %5309 = vmatprep.subr.mxu0 0.0
    %5310 = vmatpush1.xpose.msra.mxu0 0.0
    %5311 = vmatprep.subr.mxu0 0.0
    %5312 = vmatpush1.xpose.msra.mxu0 0.0
    %5313 = vmatprep.subr.mxu0 0.0
    %5314 = vmatpush1.xpose.msra.mxu0 0.0
    %5315 = vmatprep.subr.mxu0 0.0
    %5316 = vmatpush1.xpose.msra.mxu0 0.0
    %5317 = vmatprep.subr.mxu0 0.0
    %5318 = vmatpush1.xpose.msra.mxu0 0.0
    %5319 = vmatprep.subr.mxu0 0.0
    %5320 = vmatpush1.xpose.msra.mxu0 0.0
    %5321 = vmatprep.subr.mxu0 0.0
    %5322 = vmatpush1.xpose.msra.mxu0 0.0
    %5323 = vmatprep.subr.mxu0 0.0
    %5324 = vmatpush1.xpose.msra.mxu0 0.0
    %5325 = vmatprep.subr.mxu0 0.0
    %5326 = vmatpush1.xpose.msra.mxu0 0.0
    %5327 = vmatprep.subr.mxu0 0.0
    %5328 = vmatpush1.xpose.msra.mxu0 0.0
    %5329 = vmatprep.subr.mxu0 0.0
    %5330 = vmatpush1.xpose.msra.mxu0 0.0
    %5331 = vmatprep.subr.mxu0 0.0
    %5332 = vmatpush1.xpose.msra.mxu0 0.0
    %5333 = vmatprep.subr.mxu0 0.0
    %5334 = vmatpush1.xpose.msra.mxu0 %v5301
    %5335 = vmatprep.subr.mxu0 0.0
    %5336 = vmatpush2.xpose.msra.mxu0 0.0
    %5337 = vmatprep.subr.mxu0 0.0
    %5338 = vmatpush2.xpose.msra.mxu0 0.0
    %5339 = vmatprep.subr.mxu0 0.0
    %5340 = vmatpush2.xpose.msra.mxu0 0.0
    %5341 = vmatprep.subr.mxu0 0.0
    %5342 = vmatpush2.xpose.msra.mxu0 0.0
    %5343 = vmatprep.subr.mxu0 0.0
    %5344 = vmatpush2.xpose.msra.mxu0 0.0
    %5345 = vmatprep.subr.mxu0 0.0
    %5346 = vmatpush2.xpose.msra.mxu0 0.0
    %5347 = vmatprep.subr.mxu0 0.0
    %5348 = vmatpush2.xpose.msra.mxu0 0.0
    %5349 = vmatprep.subr.mxu0 0.0
    %5350 = vmatpush2.xpose.msra.mxu0 0.0
    %5351 = vmatprep.subr.mxu0 0.0
    %5352 = vmatpush2.xpose.msra.mxu0 0.0
    %5353 = vmatprep.subr.mxu0 0.0
    %5354 = vmatpush2.xpose.msra.mxu0 0.0
    %5355 = vmatprep.subr.mxu0 0.0
    %5356 = vmatpush2.xpose.msra.mxu0 0.0
    %5357 = vmatprep.subr.mxu0 0.0
    %5358 = vmatpush2.xpose.msra.mxu0 0.0
    %5359 = vmatprep.subr.mxu0 0.0
    %5360 = vmatpush2.xpose.msra.mxu0 0.0
    %5361 = vmatprep.subr.mxu0 0.0
    %5362 = vmatpush2.xpose.msra.mxu0 0.0
    %5363 = vmatprep.subr.mxu0 0.0
    %5364 = vmatpush2.xpose.msra.mxu0 0.0
    %5365 = vmatprep.subr.mxu0 0.0
    %5366 = vmatpush2.xpose.msra.mxu0 0.0
    %5367 = vmatprep.mubr.f32.mxu0 0.0
    %5368 = vmatmul.mubr.f32.gmra.mxu0 %v5298
    %v5369 = vpop.f32.mrf.mxu0
    %v5370 = vadd.f32 0.0, %v5369
    %v5371 = vpop.f32.mrf.mxu0
    %5372 = vdwg.mxu0
    %v5374 = vsel %vm3168, %v1917, 0
    %v5377 = vsel %vm3168, %v2541, 0
    %5379 = vmatprep.subr.mxu0 0.0
    %5380 = vmatpush1.xpose.msra.mxu0 0.0
    %5381 = vmatprep.subr.mxu0 0.0
    %5382 = vmatpush1.xpose.msra.mxu0 0.0
    %5383 = vmatprep.subr.mxu0 0.0
    %5384 = vmatpush1.xpose.msra.mxu0 0.0
    %5385 = vmatprep.subr.mxu0 0.0
    %5386 = vmatpush1.xpose.msra.mxu0 0.0
    %5387 = vmatprep.subr.mxu0 0.0
    %5388 = vmatpush1.xpose.msra.mxu0 0.0
    %5389 = vmatprep.subr.mxu0 0.0
    %5390 = vmatpush1.xpose.msra.mxu0 0.0
    %5391 = vmatprep.subr.mxu0 0.0
    %5392 = vmatpush1.xpose.msra.mxu0 0.0
    %5393 = vmatprep.subr.mxu0 0.0
    %5394 = vmatpush1.xpose.msra.mxu0 0.0
    %5395 = vmatprep.subr.mxu0 0.0
    %5396 = vmatpush1.xpose.msra.mxu0 0.0
    %5397 = vmatprep.subr.mxu0 0.0
    %5398 = vmatpush1.xpose.msra.mxu0 0.0
    %5399 = vmatprep.subr.mxu0 0.0
    %5400 = vmatpush1.xpose.msra.mxu0 0.0
    %5401 = vmatprep.subr.mxu0 0.0
    %5402 = vmatpush1.xpose.msra.mxu0 0.0
    %5403 = vmatprep.subr.mxu0 0.0
    %5404 = vmatpush1.xpose.msra.mxu0 0.0
    %5405 = vmatprep.subr.mxu0 0.0
    %5406 = vmatpush1.xpose.msra.mxu0 0.0
    %5407 = vmatprep.subr.mxu0 0.0
    %5408 = vmatpush1.xpose.msra.mxu0 0.0
    %5409 = vmatprep.subr.mxu0 0.0
    %5410 = vmatpush1.xpose.msra.mxu0 %v5377
    %5411 = vmatprep.subr.mxu0 0.0
    %5412 = vmatpush2.xpose.msra.mxu0 0.0
    %5413 = vmatprep.subr.mxu0 0.0
    %5414 = vmatpush2.xpose.msra.mxu0 0.0
    %5415 = vmatprep.subr.mxu0 0.0
    %5416 = vmatpush2.xpose.msra.mxu0 0.0
    %5417 = vmatprep.subr.mxu0 0.0
    %5418 = vmatpush2.xpose.msra.mxu0 0.0
    %5419 = vmatprep.subr.mxu0 0.0
    %5420 = vmatpush2.xpose.msra.mxu0 0.0
    %5421 = vmatprep.subr.mxu0 0.0
    %5422 = vmatpush2.xpose.msra.mxu0 0.0
    %5423 = vmatprep.subr.mxu0 0.0
    %5424 = vmatpush2.xpose.msra.mxu0 0.0
    %5425 = vmatprep.subr.mxu0 0.0
    %5426 = vmatpush2.xpose.msra.mxu0 0.0
    %5427 = vmatprep.subr.mxu0 0.0
    %5428 = vmatpush2.xpose.msra.mxu0 0.0
    %5429 = vmatprep.subr.mxu0 0.0
    %5430 = vmatpush2.xpose.msra.mxu0 0.0
    %5431 = vmatprep.subr.mxu0 0.0
    %5432 = vmatpush2.xpose.msra.mxu0 0.0
    %5433 = vmatprep.subr.mxu0 0.0
    %5434 = vmatpush2.xpose.msra.mxu0 0.0
    %5435 = vmatprep.subr.mxu0 0.0
    %5436 = vmatpush2.xpose.msra.mxu0 0.0
    %5437 = vmatprep.subr.mxu0 0.0
    %5438 = vmatpush2.xpose.msra.mxu0 0.0
    %5439 = vmatprep.subr.mxu0 0.0
    %5440 = vmatpush2.xpose.msra.mxu0 0.0
    %5441 = vmatprep.subr.mxu0 0.0
    %5442 = vmatpush2.xpose.msra.mxu0 0.0
    %5443 = vmatprep.mubr.f32.mxu0 0.0
    %5444 = vmatmul.mubr.f32.gmra.mxu0 %v5374
    %v5445 = vpop.f32.mrf.mxu0
    %v5446 = vadd.f32 0.0, %v5445
    %v5447 = vpop.f32.mrf.mxu0
    %5448 = vdwg.mxu0
    %v5450 = vsel %vm3168, %v1918, 0
    %v5453 = vsel %vm3168, %v2542, 0
    %5455 = vmatprep.subr.mxu0 0.0
    %5456 = vmatpush1.xpose.msra.mxu0 0.0
    %5457 = vmatprep.subr.mxu0 0.0
    %5458 = vmatpush1.xpose.msra.mxu0 0.0
    %5459 = vmatprep.subr.mxu0 0.0
    %5460 = vmatpush1.xpose.msra.mxu0 0.0
    %5461 = vmatprep.subr.mxu0 0.0
    %5462 = vmatpush1.xpose.msra.mxu0 0.0
    %5463 = vmatprep.subr.mxu0 0.0
    %5464 = vmatpush1.xpose.msra.mxu0 0.0
    %5465 = vmatprep.subr.mxu0 0.0
    %5466 = vmatpush1.xpose.msra.mxu0 0.0
    %5467 = vmatprep.subr.mxu0 0.0
    %5468 = vmatpush1.xpose.msra.mxu0 0.0
    %5469 = vmatprep.subr.mxu0 0.0
    %5470 = vmatpush1.xpose.msra.mxu0 0.0
    %5471 = vmatprep.subr.mxu0 0.0
    %5472 = vmatpush1.xpose.msra.mxu0 0.0
    %5473 = vmatprep.subr.mxu0 0.0
    %5474 = vmatpush1.xpose.msra.mxu0 0.0
    %5475 = vmatprep.subr.mxu0 0.0
    %5476 = vmatpush1.xpose.msra.mxu0 0.0
    %5477 = vmatprep.subr.mxu0 0.0
    %5478 = vmatpush1.xpose.msra.mxu0 0.0
    %5479 = vmatprep.subr.mxu0 0.0
    %5480 = vmatpush1.xpose.msra.mxu0 0.0
    %5481 = vmatprep.subr.mxu0 0.0
    %5482 = vmatpush1.xpose.msra.mxu0 0.0
    %5483 = vmatprep.subr.mxu0 0.0
    %5484 = vmatpush1.xpose.msra.mxu0 0.0
    %5485 = vmatprep.subr.mxu0 0.0
    %5486 = vmatpush1.xpose.msra.mxu0 %v5453
    %5487 = vmatprep.subr.mxu0 0.0
    %5488 = vmatpush2.xpose.msra.mxu0 0.0
    %5489 = vmatprep.subr.mxu0 0.0
    %5490 = vmatpush2.xpose.msra.mxu0 0.0
    %5491 = vmatprep.subr.mxu0 0.0
    %5492 = vmatpush2.xpose.msra.mxu0 0.0
    %5493 = vmatprep.subr.mxu0 0.0
    %5494 = vmatpush2.xpose.msra.mxu0 0.0
    %5495 = vmatprep.subr.mxu0 0.0
    %5496 = vmatpush2.xpose.msra.mxu0 0.0
    %5497 = vmatprep.subr.mxu0 0.0
    %5498 = vmatpush2.xpose.msra.mxu0 0.0
    %5499 = vmatprep.subr.mxu0 0.0
    %5500 = vmatpush2.xpose.msra.mxu0 0.0
    %5501 = vmatprep.subr.mxu0 0.0
    %5502 = vmatpush2.xpose.msra.mxu0 0.0
    %5503 = vmatprep.subr.mxu0 0.0
    %5504 = vmatpush2.xpose.msra.mxu0 0.0
    %5505 = vmatprep.subr.mxu0 0.0
    %5506 = vmatpush2.xpose.msra.mxu0 0.0
    %5507 = vmatprep.subr.mxu0 0.0
    %5508 = vmatpush2.xpose.msra.mxu0 0.0
    %5509 = vmatprep.subr.mxu0 0.0
    %5510 = vmatpush2.xpose.msra.mxu0 0.0
    %5511 = vmatprep.subr.mxu0 0.0
    %5512 = vmatpush2.xpose.msra.mxu0 0.0
    %5513 = vmatprep.subr.mxu0 0.0
    %5514 = vmatpush2.xpose.msra.mxu0 0.0
    %5515 = vmatprep.subr.mxu0 0.0
    %5516 = vmatpush2.xpose.msra.mxu0 0.0
    %5517 = vmatprep.subr.mxu0 0.0
    %5518 = vmatpush2.xpose.msra.mxu0 0.0
    %5519 = vmatprep.mubr.f32.mxu0 0.0
    %5520 = vmatmul.mubr.f32.gmra.mxu0 %v5450
    %v5521 = vpop.f32.mrf.mxu0
    %v5522 = vadd.f32 0.0, %v5521
    %v5523 = vpop.f32.mrf.mxu0
    %5524 = vdwg.mxu0
    %v5526 = vsel %vm3168, %v1919, 0
    %v5529 = vsel %vm3168, %v2543, 0
    %5531 = vmatprep.subr.mxu0 0.0
    %5532 = vmatpush1.xpose.msra.mxu0 0.0
    %5533 = vmatprep.subr.mxu0 0.0
    %5534 = vmatpush1.xpose.msra.mxu0 0.0
    %5535 = vmatprep.subr.mxu0 0.0
    %5536 = vmatpush1.xpose.msra.mxu0 0.0
    %5537 = vmatprep.subr.mxu0 0.0
    %5538 = vmatpush1.xpose.msra.mxu0 0.0
    %5539 = vmatprep.subr.mxu0 0.0
    %5540 = vmatpush1.xpose.msra.mxu0 0.0
    %5541 = vmatprep.subr.mxu0 0.0
    %5542 = vmatpush1.xpose.msra.mxu0 0.0
    %5543 = vmatprep.subr.mxu0 0.0
    %5544 = vmatpush1.xpose.msra.mxu0 0.0
    %5545 = vmatprep.subr.mxu0 0.0
    %5546 = vmatpush1.xpose.msra.mxu0 0.0
    %5547 = vmatprep.subr.mxu0 0.0
    %5548 = vmatpush1.xpose.msra.mxu0 0.0
    %5549 = vmatprep.subr.mxu0 0.0
    %5550 = vmatpush1.xpose.msra.mxu0 0.0
    %5551 = vmatprep.subr.mxu0 0.0
    %5552 = vmatpush1.xpose.msra.mxu0 0.0
    %5553 = vmatprep.subr.mxu0 0.0
    %5554 = vmatpush1.xpose.msra.mxu0 0.0
    %5555 = vmatprep.subr.mxu0 0.0
    %5556 = vmatpush1.xpose.msra.mxu0 0.0
    %5557 = vmatprep.subr.mxu0 0.0
    %5558 = vmatpush1.xpose.msra.mxu0 0.0
    %5559 = vmatprep.subr.mxu0 0.0
    %5560 = vmatpush1.xpose.msra.mxu0 0.0
    %5561 = vmatprep.subr.mxu0 0.0
    %5562 = vmatpush1.xpose.msra.mxu0 %v5529
    %5563 = vmatprep.subr.mxu0 0.0
    %5564 = vmatpush2.xpose.msra.mxu0 0.0
    %5565 = vmatprep.subr.mxu0 0.0
    %5566 = vmatpush2.xpose.msra.mxu0 0.0
    %5567 = vmatprep.subr.mxu0 0.0
    %5568 = vmatpush2.xpose.msra.mxu0 0.0
    %5569 = vmatprep.subr.mxu0 0.0
    %5570 = vmatpush2.xpose.msra.mxu0 0.0
    %5571 = vmatprep.subr.mxu0 0.0
    %5572 = vmatpush2.xpose.msra.mxu0 0.0
    %5573 = vmatprep.subr.mxu0 0.0
    %5574 = vmatpush2.xpose.msra.mxu0 0.0
    %5575 = vmatprep.subr.mxu0 0.0
    %5576 = vmatpush2.xpose.msra.mxu0 0.0
    %5577 = vmatprep.subr.mxu0 0.0
    %5578 = vmatpush2.xpose.msra.mxu0 0.0
    %5579 = vmatprep.subr.mxu0 0.0
    %5580 = vmatpush2.xpose.msra.mxu0 0.0
    %5581 = vmatprep.subr.mxu0 0.0
    %5582 = vmatpush2.xpose.msra.mxu0 0.0
    %5583 = vmatprep.subr.mxu0 0.0
    %5584 = vmatpush2.xpose.msra.mxu0 0.0
    %5585 = vmatprep.subr.mxu0 0.0
    %5586 = vmatpush2.xpose.msra.mxu0 0.0
    %5587 = vmatprep.subr.mxu0 0.0
    %5588 = vmatpush2.xpose.msra.mxu0 0.0
    %5589 = vmatprep.subr.mxu0 0.0
    %5590 = vmatpush2.xpose.msra.mxu0 0.0
    %5591 = vmatprep.subr.mxu0 0.0
    %5592 = vmatpush2.xpose.msra.mxu0 0.0
    %5593 = vmatprep.subr.mxu0 0.0
    %5594 = vmatpush2.xpose.msra.mxu0 0.0
    %5595 = vmatprep.mubr.f32.mxu0 0.0
    %5596 = vmatmul.mubr.f32.gmra.mxu0 %v5526
    %v5597 = vpop.f32.mrf.mxu0
    %v5598 = vadd.f32 0.0, %v5597
    %v5599 = vpop.f32.mrf.mxu0
    %5600 = vdwg.mxu0
    %vm5601 = vcmask 64512
    %v5602 = vsel %vm5601, %v3242, -inf
    %5603 = vmax.xlane.f32.xlu0 %v5602
    %v5604 = vpop.xlane.xlu0 %5603
    %v5605 = vsel %vm5601, %v3318, -inf
    %5606 = vmax.xlane.f32.xlu0 %v5605
    %v5607 = vpop.xlane.xlu0 %5606
    %v5608 = vsel %vm5601, %v3394, -inf
    %5609 = vmax.xlane.f32.xlu0 %v5608
    %v5610 = vpop.xlane.xlu0 %5609
    %v5611 = vsel %vm5601, %v3470, -inf
    %5612 = vmax.xlane.f32.xlu0 %v5611
    %v5613 = vpop.xlane.xlu0 %5612
    %v5614 = vsel %vm5601, %v3546, -inf
    %5615 = vmax.xlane.f32.xlu0 %v5614
    %v5616 = vpop.xlane.xlu0 %5615
    %v5617 = vsel %vm5601, %v3622, -inf
    %5618 = vmax.xlane.f32.xlu0 %v5617
    %v5619 = vpop.xlane.xlu0 %5618
    %v5620 = vsel %vm5601, %v3698, -inf
    %5621 = vmax.xlane.f32.xlu0 %v5620
    %v5622 = vpop.xlane.xlu0 %5621
    %v5623 = vsel %vm5601, %v3774, -inf
    %5624 = vmax.xlane.f32.xlu0 %v5623
    %v5625 = vpop.xlane.xlu0 %5624
    %v5626 = vsel %vm5601, %v3850, -inf
    %5627 = vmax.xlane.f32.xlu0 %v5626
    %v5628 = vpop.xlane.xlu0 %5627
    %v5629 = vsel %vm5601, %v3926, -inf
    %5630 = vmax.xlane.f32.xlu0 %v5629
    %v5631 = vpop.xlane.xlu0 %5630
    %v5632 = vsel %vm5601, %v4002, -inf
    %5633 = vmax.xlane.f32.xlu0 %v5632
    %v5634 = vpop.xlane.xlu0 %5633
    %v5635 = vsel %vm5601, %v4078, -inf
    %5636 = vmax.xlane.f32.xlu0 %v5635
    %v5637 = vpop.xlane.xlu0 %5636
    %v5638 = vsel %vm5601, %v4154, -inf
    %5639 = vmax.xlane.f32.xlu0 %v5638
    %v5640 = vpop.xlane.xlu0 %5639
    %v5641 = vsel %vm5601, %v4230, -inf
    %5642 = vmax.xlane.f32.xlu0 %v5641
    %v5643 = vpop.xlane.xlu0 %5642
    %v5644 = vsel %vm5601, %v4306, -inf
    %5645 = vmax.xlane.f32.xlu0 %v5644
    %v5646 = vpop.xlane.xlu0 %5645
    %v5647 = vsel %vm5601, %v4382, -inf
    %5648 = vmax.xlane.f32.xlu0 %v5647
    %v5649 = vpop.xlane.xlu0 %5648
    %v5650 = vsel %vm5601, %v4458, -inf
    %5651 = vmax.xlane.f32.xlu0 %v5650
    %v5652 = vpop.xlane.xlu0 %5651
    %v5653 = vsel %vm5601, %v4534, -inf
    %5654 = vmax.xlane.f32.xlu0 %v5653
    %v5655 = vpop.xlane.xlu0 %5654
    %v5656 = vsel %vm5601, %v4610, -inf
    %5657 = vmax.xlane.f32.xlu0 %v5656
    %v5658 = vpop.xlane.xlu0 %5657
    %v5659 = vsel %vm5601, %v4686, -inf
    %5660 = vmax.xlane.f32.xlu0 %v5659
    %v5661 = vpop.xlane.xlu0 %5660
    %v5662 = vsel %vm5601, %v4762, -inf
    %5663 = vmax.xlane.f32.xlu0 %v5662
    %v5664 = vpop.xlane.xlu0 %5663
    %v5665 = vsel %vm5601, %v4838, -inf
    %5666 = vmax.xlane.f32.xlu0 %v5665
    %v5667 = vpop.xlane.xlu0 %5666
    %v5668 = vsel %vm5601, %v4914, -inf
    %5669 = vmax.xlane.f32.xlu0 %v5668
    %v5670 = vpop.xlane.xlu0 %5669
    %v5671 = vsel %vm5601, %v4990, -inf
    %5672 = vmax.xlane.f32.xlu0 %v5671
    %v5673 = vpop.xlane.xlu0 %5672
    %v5674 = vsel %vm5601, %v5066, -inf
    %5675 = vmax.xlane.f32.xlu0 %v5674
    %v5676 = vpop.xlane.xlu0 %5675
    %v5677 = vsel %vm5601, %v5142, -inf
    %5678 = vmax.xlane.f32.xlu0 %v5677
    %v5679 = vpop.xlane.xlu0 %5678
    %v5680 = vsel %vm5601, %v5218, -inf
    %5681 = vmax.xlane.f32.xlu0 %v5680
    %v5682 = vpop.xlane.xlu0 %5681
    %v5683 = vsel %vm5601, %v5294, -inf
    %5684 = vmax.xlane.f32.xlu0 %v5683
    %v5685 = vpop.xlane.xlu0 %5684
    %v5686 = vsel %vm5601, %v5370, -inf
    %5687 = vmax.xlane.f32.xlu0 %v5686
    %v5688 = vpop.xlane.xlu0 %5687
    %v5689 = vsel %vm5601, %v5446, -inf
    %5690 = vmax.xlane.f32.xlu0 %v5689
    %v5691 = vpop.xlane.xlu0 %5690
    %v5692 = vsel %vm5601, %v5522, -inf
    %5693 = vmax.xlane.f32.xlu0 %v5692
    %v5694 = vpop.xlane.xlu0 %5693
    %v5695 = vsel %vm5601, %v5598, -inf
    %5696 = vmax.xlane.f32.xlu0 %v5695
    %v5697 = vpop.xlane.xlu0 %5696
    %v5698 = vsub.f32 %v3242, %v5604
    %v5699 = vsub.f32 %v3318, %v5607
    %v5700 = vsub.f32 %v3394, %v5610
    %v5701 = vsub.f32 %v3470, %v5613
    %v5702 = vsub.f32 %v3546, %v5616
    %v5703 = vsub.f32 %v3622, %v5619
    %v5704 = vsub.f32 %v3698, %v5622
    %v5705 = vsub.f32 %v3774, %v5625
    %v5706 = vsub.f32 %v3850, %v5628
    %v5707 = vsub.f32 %v3926, %v5631
    %v5708 = vsub.f32 %v4002, %v5634
    %v5709 = vsub.f32 %v4078, %v5637
    %v5710 = vsub.f32 %v4154, %v5640
    %v5711 = vsub.f32 %v4230, %v5643
    %v5712 = vsub.f32 %v4306, %v5646
    %v5713 = vsub.f32 %v4382, %v5649
    %v5714 = vsub.f32 %v4458, %v5652
    %v5715 = vsub.f32 %v4534, %v5655
    %v5716 = vsub.f32 %v4610, %v5658
    %v5717 = vsub.f32 %v4686, %v5661
    %v5718 = vsub.f32 %v4762, %v5664
    %v5719 = vsub.f32 %v4838, %v5667
    %v5720 = vsub.f32 %v4914, %v5670
    %v5721 = vsub.f32 %v4990, %v5673
    %v5722 = vsub.f32 %v5066, %v5676
    %v5723 = vsub.f32 %v5142, %v5679
    %v5724 = vsub.f32 %v5218, %v5682
    %v5725 = vsub.f32 %v5294, %v5685
    %v5726 = vsub.f32 %v5370, %v5688
    %v5727 = vsub.f32 %v5446, %v5691
    %v5728 = vsub.f32 %v5522, %v5694
    %v5729 = vsub.f32 %v5598, %v5697
    %v5730 = vmul.f32 %v5698, 1.442695
    %v5731 = vpow.pop %v5730
    %v5732 = vmul.f32 %v5699, 1.442695
    %v5733 = vpow.pop %v5732
    %v5734 = vmul.f32 %v5700, 1.442695
    %v5735 = vpow.pop %v5734
    %v5736 = vmul.f32 %v5701, 1.442695
    %v5737 = vpow.pop %v5736
    %v5738 = vmul.f32 %v5702, 1.442695
    %v5739 = vpow.pop %v5738
    %v5740 = vmul.f32 %v5703, 1.442695
    %v5741 = vpow.pop %v5740
    %v5742 = vmul.f32 %v5704, 1.442695
    %v5743 = vpow.pop %v5742
    %v5744 = vmul.f32 %v5705, 1.442695
    %v5745 = vpow.pop %v5744
    %v5746 = vmul.f32 %v5706, 1.442695
    %v5747 = vpow.pop %v5746
    %v5748 = vmul.f32 %v5707, 1.442695
    %v5749 = vpow.pop %v5748
    %v5750 = vmul.f32 %v5708, 1.442695
    %v5751 = vpow.pop %v5750
    %v5752 = vmul.f32 %v5709, 1.442695
    %v5753 = vpow.pop %v5752
    %v5754 = vmul.f32 %v5710, 1.442695
    %v5755 = vpow.pop %v5754
    %v5756 = vmul.f32 %v5711, 1.442695
    %v5757 = vpow.pop %v5756
    %v5758 = vmul.f32 %v5712, 1.442695
    %v5759 = vpow.pop %v5758
    %v5760 = vmul.f32 %v5713, 1.442695
    %v5761 = vpow.pop %v5760
    %v5762 = vmul.f32 %v5714, 1.442695
    %v5763 = vpow.pop %v5762
    %v5764 = vmul.f32 %v5715, 1.442695
    %v5765 = vpow.pop %v5764
    %v5766 = vmul.f32 %v5716, 1.442695
    %v5767 = vpow.pop %v5766
    %v5768 = vmul.f32 %v5717, 1.442695
    %v5769 = vpow.pop %v5768
    %v5770 = vmul.f32 %v5718, 1.442695
    %v5771 = vpow.pop %v5770
    %v5772 = vmul.f32 %v5719, 1.442695
    %v5773 = vpow.pop %v5772
    %v5774 = vmul.f32 %v5720, 1.442695
    %v5775 = vpow.pop %v5774
    %v5776 = vmul.f32 %v5721, 1.442695
    %v5777 = vpow.pop %v5776
    %v5778 = vmul.f32 %v5722, 1.442695
    %v5779 = vpow.pop %v5778
    %v5780 = vmul.f32 %v5723, 1.442695
    %v5781 = vpow.pop %v5780
    %v5782 = vmul.f32 %v5724, 1.442695
    %v5783 = vpow.pop %v5782
    %v5784 = vmul.f32 %v5725, 1.442695
    %v5785 = vpow.pop %v5784
    %v5786 = vmul.f32 %v5726, 1.442695
    %v5787 = vpow.pop %v5786
    %v5788 = vmul.f32 %v5727, 1.442695
    %v5789 = vpow.pop %v5788
    %v5790 = vmul.f32 %v5728, 1.442695
    %v5791 = vpow.pop %v5790
    %v5792 = vmul.f32 %v5729, 1.442695
    %v5793 = vpow.pop %v5792
    %v5794 = vsel %vm5601, %v5731, 0.0
    %5795 = vadd.xlane.f32.xlu0 %v5794
    %v5796 = vpop.xlane.xlu0 %5795
    %v5797 = vsel %vm5601, %v5733, 0.0
    %5798 = vadd.xlane.f32.xlu0 %v5797
    %v5799 = vpop.xlane.xlu0 %5798
    %v5800 = vsel %vm5601, %v5735, 0.0
    %5801 = vadd.xlane.f32.xlu0 %v5800
    %v5802 = vpop.xlane.xlu0 %5801
    %v5803 = vsel %vm5601, %v5737, 0.0
    %5804 = vadd.xlane.f32.xlu0 %v5803
    %v5805 = vpop.xlane.xlu0 %5804
    %v5806 = vsel %vm5601, %v5739, 0.0
    %5807 = vadd.xlane.f32.xlu0 %v5806
    %v5808 = vpop.xlane.xlu0 %5807
    %v5809 = vsel %vm5601, %v5741, 0.0
    %5810 = vadd.xlane.f32.xlu0 %v5809
    %v5811 = vpop.xlane.xlu0 %5810
    %v5812 = vsel %vm5601, %v5743, 0.0
    %5813 = vadd.xlane.f32.xlu0 %v5812
    %v5814 = vpop.xlane.xlu0 %5813
    %v5815 = vsel %vm5601, %v5745, 0.0
    %5816 = vadd.xlane.f32.xlu0 %v5815
    %v5817 = vpop.xlane.xlu0 %5816
    %v5818 = vsel %vm5601, %v5747, 0.0
    %5819 = vadd.xlane.f32.xlu0 %v5818
    %v5820 = vpop.xlane.xlu0 %5819
    %v5821 = vsel %vm5601, %v5749, 0.0
    %5822 = vadd.xlane.f32.xlu0 %v5821
    %v5823 = vpop.xlane.xlu0 %5822
    %v5824 = vsel %vm5601, %v5751, 0.0
    %5825 = vadd.xlane.f32.xlu0 %v5824
    %v5826 = vpop.xlane.xlu0 %5825
    %v5827 = vsel %vm5601, %v5753, 0.0
    %5828 = vadd.xlane.f32.xlu0 %v5827
    %v5829 = vpop.xlane.xlu0 %5828
    %v5830 = vsel %vm5601, %v5755, 0.0
    %5831 = vadd.xlane.f32.xlu0 %v5830
    %v5832 = vpop.xlane.xlu0 %5831
    %v5833 = vsel %vm5601, %v5757, 0.0
    %5834 = vadd.xlane.f32.xlu0 %v5833
    %v5835 = vpop.xlane.xlu0 %5834
    %v5836 = vsel %vm5601, %v5759, 0.0
    %5837 = vadd.xlane.f32.xlu0 %v5836
    %v5838 = vpop.xlane.xlu0 %5837
    %v5839 = vsel %vm5601, %v5761, 0.0
    %5840 = vadd.xlane.f32.xlu0 %v5839
    %v5841 = vpop.xlane.xlu0 %5840
    %v5842 = vsel %vm5601, %v5763, 0.0
    %5843 = vadd.xlane.f32.xlu0 %v5842
    %v5844 = vpop.xlane.xlu0 %5843
    %v5845 = vsel %vm5601, %v5765, 0.0
    %5846 = vadd.xlane.f32.xlu0 %v5845
    %v5847 = vpop.xlane.xlu0 %5846
    %v5848 = vsel %vm5601, %v5767, 0.0
    %5849 = vadd.xlane.f32.xlu0 %v5848
    %v5850 = vpop.xlane.xlu0 %5849
    %v5851 = vsel %vm5601, %v5769, 0.0
    %5852 = vadd.xlane.f32.xlu0 %v5851
    %v5853 = vpop.xlane.xlu0 %5852
    %v5854 = vsel %vm5601, %v5771, 0.0
    %5855 = vadd.xlane.f32.xlu0 %v5854
    %v5856 = vpop.xlane.xlu0 %5855
    %v5857 = vsel %vm5601, %v5773, 0.0
    %5858 = vadd.xlane.f32.xlu0 %v5857
    %v5859 = vpop.xlane.xlu0 %5858
    %v5860 = vsel %vm5601, %v5775, 0.0
    %5861 = vadd.xlane.f32.xlu0 %v5860
    %v5862 = vpop.xlane.xlu0 %5861
    %v5863 = vsel %vm5601, %v5777, 0.0
    %5864 = vadd.xlane.f32.xlu0 %v5863
    %v5865 = vpop.xlane.xlu0 %5864
    %v5866 = vsel %vm5601, %v5779, 0.0
    %5867 = vadd.xlane.f32.xlu0 %v5866
    %v5868 = vpop.xlane.xlu0 %5867
    %v5869 = vsel %vm5601, %v5781, 0.0
    %5870 = vadd.xlane.f32.xlu0 %v5869
    %v5871 = vpop.xlane.xlu0 %5870
    %v5872 = vsel %vm5601, %v5783, 0.0
    %5873 = vadd.xlane.f32.xlu0 %v5872
    %v5874 = vpop.xlane.xlu0 %5873
    %v5875 = vsel %vm5601, %v5785, 0.0
    %5876 = vadd.xlane.f32.xlu0 %v5875
    %v5877 = vpop.xlane.xlu0 %5876
    %v5878 = vsel %vm5601, %v5787, 0.0
    %5879 = vadd.xlane.f32.xlu0 %v5878
    %v5880 = vpop.xlane.xlu0 %5879
    %v5881 = vsel %vm5601, %v5789, 0.0
    %5882 = vadd.xlane.f32.xlu0 %v5881
    %v5883 = vpop.xlane.xlu0 %5882
    %v5884 = vsel %vm5601, %v5791, 0.0
    %5885 = vadd.xlane.f32.xlu0 %v5884
    %v5886 = vpop.xlane.xlu0 %5885
    %v5887 = vsel %vm5601, %v5793, 0.0
    %5888 = vadd.xlane.f32.xlu0 %v5887
    %v5889 = vpop.xlane.xlu0 %5888
    %v5890 = vrcp.pop %v5796
    %v5891 = vrcp.pop %v5799
    %v5892 = vrcp.pop %v5802
    %v5893 = vrcp.pop %v5805
    %v5894 = vrcp.pop %v5808
    %v5895 = vrcp.pop %v5811
    %v5896 = vrcp.pop %v5814
    %v5897 = vrcp.pop %v5817
    %v5898 = vrcp.pop %v5820
    %v5899 = vrcp.pop %v5823
    %v5900 = vrcp.pop %v5826
    %v5901 = vrcp.pop %v5829
    %v5902 = vrcp.pop %v5832
    %v5903 = vrcp.pop %v5835
    %v5904 = vrcp.pop %v5838
    %v5905 = vrcp.pop %v5841
    %v5906 = vrcp.pop %v5844
    %v5907 = vrcp.pop %v5847
    %v5908 = vrcp.pop %v5850
    %v5909 = vrcp.pop %v5853
    %v5910 = vrcp.pop %v5856
    %v5911 = vrcp.pop %v5859
    %v5912 = vrcp.pop %v5862
    %v5913 = vrcp.pop %v5865
    %v5914 = vrcp.pop %v5868
    %v5915 = vrcp.pop %v5871
    %v5916 = vrcp.pop %v5874
    %v5917 = vrcp.pop %v5877
    %v5918 = vrcp.pop %v5880
    %v5919 = vrcp.pop %v5883
    %v5920 = vrcp.pop %v5886
    %v5921 = vrcp.pop %v5889
    %v5922 = vmul.f32 %v5731, %v5890
    %v5923 = vmul.f32 %v5733, %v5891
    %v5924 = vmul.f32 %v5735, %v5892
    %v5925 = vmul.f32 %v5737, %v5893
    %v5926 = vmul.f32 %v5739, %v5894
    %v5927 = vmul.f32 %v5741, %v5895
    %v5928 = vmul.f32 %v5743, %v5896
    %v5929 = vmul.f32 %v5745, %v5897
    %v5930 = vmul.f32 %v5747, %v5898
    %v5931 = vmul.f32 %v5749, %v5899
    %v5932 = vmul.f32 %v5751, %v5900
    %v5933 = vmul.f32 %v5753, %v5901
    %v5934 = vmul.f32 %v5755, %v5902
    %v5935 = vmul.f32 %v5757, %v5903
    %v5936 = vmul.f32 %v5759, %v5904
    %v5937 = vmul.f32 %v5761, %v5905
    %v5938 = vmul.f32 %v5763, %v5906
    %v5939 = vmul.f32 %v5765, %v5907
    %v5940 = vmul.f32 %v5767, %v5908
    %v5941 = vmul.f32 %v5769, %v5909
    %v5942 = vmul.f32 %v5771, %v5910
    %v5943 = vmul.f32 %v5773, %v5911
    %v5944 = vmul.f32 %v5775, %v5912
    %v5945 = vmul.f32 %v5777, %v5913
    %v5946 = vmul.f32 %v5779, %v5914
    %v5947 = vmul.f32 %v5781, %v5915
    %v5948 = vmul.f32 %v5783, %v5916
    %v5949 = vmul.f32 %v5785, %v5917
    %v5950 = vmul.f32 %v5787, %v5918
    %v5951 = vmul.f32 %v5789, %v5919
    %v5952 = vmul.f32 %v5791, %v5920
    %v5953 = vmul.f32 %v5793, %v5921
    %v5955 = vsel %vm5601, %v5922, 0
    %5957 = vmatprep.subr.mxu0 0.0
    %5958 = vmatpush1.msra.mxu0 0.0
    %5959 = vmatprep.subr.mxu0 0.0
    %5960 = vmatpush1.msra.mxu0 0.0
    %5961 = vmatprep.subr.mxu0 0.0
    %5962 = vmatpush1.msra.mxu0 0.0
    %5963 = vmatprep.subr.mxu0 0.0
    %5964 = vmatpush1.msra.mxu0 0.0
    %5965 = vmatprep.subr.mxu0 0.0
    %5966 = vmatpush1.msra.mxu0 0.0
    %5967 = vmatprep.subr.mxu0 0.0
    %5968 = vmatpush1.msra.mxu0 0.0
    %5969 = vmatprep.subr.mxu0 0.0
    %5970 = vmatpush1.msra.mxu0 0.0
    %5971 = vmatprep.subr.mxu0 0.0
    %5972 = vmatpush1.msra.mxu0 0.0
    %5973 = vmatprep.subr.mxu0 0.0
    %5974 = vmatpush1.msra.mxu0 0.0
    %5975 = vmatprep.subr.mxu0 0.0
    %5976 = vmatpush1.msra.mxu0 0.0
    %5977 = vmatprep.subr.mxu0 0.0
    %5978 = vmatpush1.msra.mxu0 0.0
    %5979 = vmatprep.subr.mxu0 0.0
    %5980 = vmatpush1.msra.mxu0 0.0
    %5981 = vmatprep.subr.mxu0 0.0
    %5982 = vmatpush1.msra.mxu0 0.0
    %5983 = vmatprep.subr.mxu0 0.0
    %5984 = vmatpush1.msra.mxu0 0.0
    %5985 = vmatprep.subr.mxu0 0.0
    %5986 = vmatpush1.msra.mxu0 0.0
    %5987 = vmatprep.subr.mxu0 0.0
    %5988 = vmatpush1.msra.mxu0 %v2752
    %5989 = vmatprep.subr.mxu0 0.0
    %5990 = vmatpush2.msra.mxu0 0.0
    %5991 = vmatprep.subr.mxu0 0.0
    %5992 = vmatpush2.msra.mxu0 0.0
    %5993 = vmatprep.subr.mxu0 0.0
    %5994 = vmatpush2.msra.mxu0 0.0
    %5995 = vmatprep.subr.mxu0 0.0
    %5996 = vmatpush2.msra.mxu0 0.0
    %5997 = vmatprep.subr.mxu0 0.0
    %5998 = vmatpush2.msra.mxu0 0.0
    %5999 = vmatprep.subr.mxu0 0.0
    %6000 = vmatpush2.msra.mxu0 0.0
    %6001 = vmatprep.subr.mxu0 0.0
    %6002 = vmatpush2.msra.mxu0 0.0
    %6003 = vmatprep.subr.mxu0 0.0
    %6004 = vmatpush2.msra.mxu0 0.0
    %6005 = vmatprep.subr.mxu0 0.0
    %6006 = vmatpush2.msra.mxu0 0.0
    %6007 = vmatprep.subr.mxu0 0.0
    %6008 = vmatpush2.msra.mxu0 0.0
    %6009 = vmatprep.subr.mxu0 0.0
    %6010 = vmatpush2.msra.mxu0 0.0
    %6011 = vmatprep.subr.mxu0 0.0
    %6012 = vmatpush2.msra.mxu0 0.0
    %6013 = vmatprep.subr.mxu0 0.0
    %6014 = vmatpush2.msra.mxu0 0.0
    %6015 = vmatprep.subr.mxu0 0.0
    %6016 = vmatpush2.msra.mxu0 0.0
    %6017 = vmatprep.subr.mxu0 0.0
    %6018 = vmatpush2.msra.mxu0 0.0
    %6019 = vmatprep.subr.mxu0 0.0
    %6020 = vmatpush2.msra.mxu0 0.0
    %6021 = vmatprep.mubr.f32.mxu0 0.0
    %6022 = vmatmul.mubr.f32.gmra.mxu0 %v5955
    %v6023 = vpop.f32.mrf.mxu0
    %v6024 = vadd.f32 0.0, %v6023
    %v6025 = vpop.f32.mrf.mxu0
    %6026 = vdwg.mxu0
    %v6028 = vsel %vm5601, %v5923, 0
    %6030 = vmatprep.subr.mxu0 0.0
    %6031 = vmatpush1.msra.mxu0 0.0
    %6032 = vmatprep.subr.mxu0 0.0
    %6033 = vmatpush1.msra.mxu0 0.0
    %6034 = vmatprep.subr.mxu0 0.0
    %6035 = vmatpush1.msra.mxu0 0.0
    %6036 = vmatprep.subr.mxu0 0.0
    %6037 = vmatpush1.msra.mxu0 0.0
    %6038 = vmatprep.subr.mxu0 0.0
    %6039 = vmatpush1.msra.mxu0 0.0
    %6040 = vmatprep.subr.mxu0 0.0
    %6041 = vmatpush1.msra.mxu0 0.0
    %6042 = vmatprep.subr.mxu0 0.0
    %6043 = vmatpush1.msra.mxu0 0.0
    %6044 = vmatprep.subr.mxu0 0.0
    %6045 = vmatpush1.msra.mxu0 0.0
    %6046 = vmatprep.subr.mxu0 0.0
    %6047 = vmatpush1.msra.mxu0 0.0
    %6048 = vmatprep.subr.mxu0 0.0
    %6049 = vmatpush1.msra.mxu0 0.0
    %6050 = vmatprep.subr.mxu0 0.0
    %6051 = vmatpush1.msra.mxu0 0.0
    %6052 = vmatprep.subr.mxu0 0.0
    %6053 = vmatpush1.msra.mxu0 0.0
    %6054 = vmatprep.subr.mxu0 0.0
    %6055 = vmatpush1.msra.mxu0 0.0
    %6056 = vmatprep.subr.mxu0 0.0
    %6057 = vmatpush1.msra.mxu0 0.0
    %6058 = vmatprep.subr.mxu0 0.0
    %6059 = vmatpush1.msra.mxu0 0.0
    %6060 = vmatprep.subr.mxu0 0.0
    %6061 = vmatpush1.msra.mxu0 %v2753
    %6062 = vmatprep.subr.mxu0 0.0
    %6063 = vmatpush2.msra.mxu0 0.0
    %6064 = vmatprep.subr.mxu0 0.0
    %6065 = vmatpush2.msra.mxu0 0.0
    %6066 = vmatprep.subr.mxu0 0.0
    %6067 = vmatpush2.msra.mxu0 0.0
    %6068 = vmatprep.subr.mxu0 0.0
    %6069 = vmatpush2.msra.mxu0 0.0
    %6070 = vmatprep.subr.mxu0 0.0
    %6071 = vmatpush2.msra.mxu0 0.0
    %6072 = vmatprep.subr.mxu0 0.0
    %6073 = vmatpush2.msra.mxu0 0.0
    %6074 = vmatprep.subr.mxu0 0.0
    %6075 = vmatpush2.msra.mxu0 0.0
    %6076 = vmatprep.subr.mxu0 0.0
    %6077 = vmatpush2.msra.mxu0 0.0
    %6078 = vmatprep.subr.mxu0 0.0
    %6079 = vmatpush2.msra.mxu0 0.0
    %6080 = vmatprep.subr.mxu0 0.0
    %6081 = vmatpush2.msra.mxu0 0.0
    %6082 = vmatprep.subr.mxu0 0.0
    %6083 = vmatpush2.msra.mxu0 0.0
    %6084 = vmatprep.subr.mxu0 0.0
    %6085 = vmatpush2.msra.mxu0 0.0
    %6086 = vmatprep.subr.mxu0 0.0
    %6087 = vmatpush2.msra.mxu0 0.0
    %6088 = vmatprep.subr.mxu0 0.0
    %6089 = vmatpush2.msra.mxu0 0.0
    %6090 = vmatprep.subr.mxu0 0.0
    %6091 = vmatpush2.msra.mxu0 0.0
    %6092 = vmatprep.subr.mxu0 0.0
    %6093 = vmatpush2.msra.mxu0 0.0
    %6094 = vmatprep.mubr.f32.mxu0 0.0
    %6095 = vmatmul.mubr.f32.gmra.mxu0 %v6028
    %v6096 = vpop.f32.mrf.mxu0
    %v6097 = vadd.f32 0.0, %v6096
    %v6098 = vpop.f32.mrf.mxu0
    %6099 = vdwg.mxu0
    %v6101 = vsel %vm5601, %v5924, 0
    %6103 = vmatprep.subr.mxu0 0.0
    %6104 = vmatpush1.msra.mxu0 0.0
    %6105 = vmatprep.subr.mxu0 0.0
    %6106 = vmatpush1.msra.mxu0 0.0
    %6107 = vmatprep.subr.mxu0 0.0
    %6108 = vmatpush1.msra.mxu0 0.0
    %6109 = vmatprep.subr.mxu0 0.0
    %6110 = vmatpush1.msra.mxu0 0.0
    %6111 = vmatprep.subr.mxu0 0.0
    %6112 = vmatpush1.msra.mxu0 0.0
    %6113 = vmatprep.subr.mxu0 0.0
    %6114 = vmatpush1.msra.mxu0 0.0
    %6115 = vmatprep.subr.mxu0 0.0
    %6116 = vmatpush1.msra.mxu0 0.0
    %6117 = vmatprep.subr.mxu0 0.0
    %6118 = vmatpush1.msra.mxu0 0.0
    %6119 = vmatprep.subr.mxu0 0.0
    %6120 = vmatpush1.msra.mxu0 0.0
    %6121 = vmatprep.subr.mxu0 0.0
    %6122 = vmatpush1.msra.mxu0 0.0
    %6123 = vmatprep.subr.mxu0 0.0
    %6124 = vmatpush1.msra.mxu0 0.0
    %6125 = vmatprep.subr.mxu0 0.0
    %6126 = vmatpush1.msra.mxu0 0.0
    %6127 = vmatprep.subr.mxu0 0.0
    %6128 = vmatpush1.msra.mxu0 0.0
    %6129 = vmatprep.subr.mxu0 0.0
    %6130 = vmatpush1.msra.mxu0 0.0
    %6131 = vmatprep.subr.mxu0 0.0
    %6132 = vmatpush1.msra.mxu0 0.0
    %6133 = vmatprep.subr.mxu0 0.0
    %6134 = vmatpush1.msra.mxu0 %v2754
    %6135 = vmatprep.subr.mxu0 0.0
    %6136 = vmatpush2.msra.mxu0 0.0
    %6137 = vmatprep.subr.mxu0 0.0
    %6138 = vmatpush2.msra.mxu0 0.0
    %6139 = vmatprep.subr.mxu0 0.0
    %6140 = vmatpush2.msra.mxu0 0.0
    %6141 = vmatprep.subr.mxu0 0.0
    %6142 = vmatpush2.msra.mxu0 0.0
    %6143 = vmatprep.subr.mxu0 0.0
    %6144 = vmatpush2.msra.mxu0 0.0
    %6145 = vmatprep.subr.mxu0 0.0
    %6146 = vmatpush2.msra.mxu0 0.0
    %6147 = vmatprep.subr.mxu0 0.0
    %6148 = vmatpush2.msra.mxu0 0.0
    %6149 = vmatprep.subr.mxu0 0.0
    %6150 = vmatpush2.msra.mxu0 0.0
    %6151 = vmatprep.subr.mxu0 0.0
    %6152 = vmatpush2.msra.mxu0 0.0
    %6153 = vmatprep.subr.mxu0 0.0
    %6154 = vmatpush2.msra.mxu0 0.0
    %6155 = vmatprep.subr.mxu0 0.0
    %6156 = vmatpush2.msra.mxu0 0.0
    %6157 = vmatprep.subr.mxu0 0.0
    %6158 = vmatpush2.msra.mxu0 0.0
    %6159 = vmatprep.subr.mxu0 0.0
    %6160 = vmatpush2.msra.mxu0 0.0
    %6161 = vmatprep.subr.mxu0 0.0
    %6162 = vmatpush2.msra.mxu0 0.0
    %6163 = vmatprep.subr.mxu0 0.0
    %6164 = vmatpush2.msra.mxu0 0.0
    %6165 = vmatprep.subr.mxu0 0.0
    %6166 = vmatpush2.msra.mxu0 0.0
    %6167 = vmatprep.mubr.f32.mxu0 0.0
    %6168 = vmatmul.mubr.f32.gmra.mxu0 %v6101
    %v6169 = vpop.f32.mrf.mxu0
    %v6170 = vadd.f32 0.0, %v6169
    %v6171 = vpop.f32.mrf.mxu0
    %6172 = vdwg.mxu0
    %v6174 = vsel %vm5601, %v5925, 0
    %6176 = vmatprep.subr.mxu0 0.0
    %6177 = vmatpush1.msra.mxu0 0.0
    %6178 = vmatprep.subr.mxu0 0.0
    %6179 = vmatpush1.msra.mxu0 0.0
    %6180 = vmatprep.subr.mxu0 0.0
    %6181 = vmatpush1.msra.mxu0 0.0
    %6182 = vmatprep.subr.mxu0 0.0
    %6183 = vmatpush1.msra.mxu0 0.0
    %6184 = vmatprep.subr.mxu0 0.0
    %6185 = vmatpush1.msra.mxu0 0.0
    %6186 = vmatprep.subr.mxu0 0.0
    %6187 = vmatpush1.msra.mxu0 0.0
    %6188 = vmatprep.subr.mxu0 0.0
    %6189 = vmatpush1.msra.mxu0 0.0
    %6190 = vmatprep.subr.mxu0 0.0
    %6191 = vmatpush1.msra.mxu0 0.0
    %6192 = vmatprep.subr.mxu0 0.0
    %6193 = vmatpush1.msra.mxu0 0.0
    %6194 = vmatprep.subr.mxu0 0.0
    %6195 = vmatpush1.msra.mxu0 0.0
    %6196 = vmatprep.subr.mxu0 0.0
    %6197 = vmatpush1.msra.mxu0 0.0
    %6198 = vmatprep.subr.mxu0 0.0
    %6199 = vmatpush1.msra.mxu0 0.0
    %6200 = vmatprep.subr.mxu0 0.0
    %6201 = vmatpush1.msra.mxu0 0.0
    %6202 = vmatprep.subr.mxu0 0.0
    %6203 = vmatpush1.msra.mxu0 0.0
    %6204 = vmatprep.subr.mxu0 0.0
    %6205 = vmatpush1.msra.mxu0 0.0
    %6206 = vmatprep.subr.mxu0 0.0
    %6207 = vmatpush1.msra.mxu0 %v2755
    %6208 = vmatprep.subr.mxu0 0.0
    %6209 = vmatpush2.msra.mxu0 0.0
    %6210 = vmatprep.subr.mxu0 0.0
    %6211 = vmatpush2.msra.mxu0 0.0
    %6212 = vmatprep.subr.mxu0 0.0
    %6213 = vmatpush2.msra.mxu0 0.0
    %6214 = vmatprep.subr.mxu0 0.0
    %6215 = vmatpush2.msra.mxu0 0.0
    %6216 = vmatprep.subr.mxu0 0.0
    %6217 = vmatpush2.msra.mxu0 0.0
    %6218 = vmatprep.subr.mxu0 0.0
    %6219 = vmatpush2.msra.mxu0 0.0
    %6220 = vmatprep.subr.mxu0 0.0
    %6221 = vmatpush2.msra.mxu0 0.0
    %6222 = vmatprep.subr.mxu0 0.0
    %6223 = vmatpush2.msra.mxu0 0.0
    %6224 = vmatprep.subr.mxu0 0.0
    %6225 = vmatpush2.msra.mxu0 0.0
    %6226 = vmatprep.subr.mxu0 0.0
    %6227 = vmatpush2.msra.mxu0 0.0
    %6228 = vmatprep.subr.mxu0 0.0
    %6229 = vmatpush2.msra.mxu0 0.0
    %6230 = vmatprep.subr.mxu0 0.0
    %6231 = vmatpush2.msra.mxu0 0.0
    %6232 = vmatprep.subr.mxu0 0.0
    %6233 = vmatpush2.msra.mxu0 0.0
    %6234 = vmatprep.subr.mxu0 0.0
    %6235 = vmatpush2.msra.mxu0 0.0
    %6236 = vmatprep.subr.mxu0 0.0
    %6237 = vmatpush2.msra.mxu0 0.0
    %6238 = vmatprep.subr.mxu0 0.0
    %6239 = vmatpush2.msra.mxu0 0.0
    %6240 = vmatprep.mubr.f32.mxu0 0.0
    %6241 = vmatmul.mubr.f32.gmra.mxu0 %v6174
    %v6242 = vpop.f32.mrf.mxu0
    %v6243 = vadd.f32 0.0, %v6242
    %v6244 = vpop.f32.mrf.mxu0
    %6245 = vdwg.mxu0
    %v6247 = vsel %vm5601, %v5926, 0
    %6249 = vmatprep.subr.mxu0 0.0
    %6250 = vmatpush1.msra.mxu0 0.0
    %6251 = vmatprep.subr.mxu0 0.0
    %6252 = vmatpush1.msra.mxu0 0.0
    %6253 = vmatprep.subr.mxu0 0.0
    %6254 = vmatpush1.msra.mxu0 0.0
    %6255 = vmatprep.subr.mxu0 0.0
    %6256 = vmatpush1.msra.mxu0 0.0
    %6257 = vmatprep.subr.mxu0 0.0
    %6258 = vmatpush1.msra.mxu0 0.0
    %6259 = vmatprep.subr.mxu0 0.0
    %6260 = vmatpush1.msra.mxu0 0.0
    %6261 = vmatprep.subr.mxu0 0.0
    %6262 = vmatpush1.msra.mxu0 0.0
    %6263 = vmatprep.subr.mxu0 0.0
    %6264 = vmatpush1.msra.mxu0 0.0
    %6265 = vmatprep.subr.mxu0 0.0
    %6266 = vmatpush1.msra.mxu0 0.0
    %6267 = vmatprep.subr.mxu0 0.0
    %6268 = vmatpush1.msra.mxu0 0.0
    %6269 = vmatprep.subr.mxu0 0.0
    %6270 = vmatpush1.msra.mxu0 0.0
    %6271 = vmatprep.subr.mxu0 0.0
    %6272 = vmatpush1.msra.mxu0 0.0
    %6273 = vmatprep.subr.mxu0 0.0
    %6274 = vmatpush1.msra.mxu0 0.0
    %6275 = vmatprep.subr.mxu0 0.0
    %6276 = vmatpush1.msra.mxu0 0.0
    %6277 = vmatprep.subr.mxu0 0.0
    %6278 = vmatpush1.msra.mxu0 0.0
    %6279 = vmatprep.subr.mxu0 0.0
    %6280 = vmatpush1.msra.mxu0 %v2756
    %6281 = vmatprep.subr.mxu0 0.0
    %6282 = vmatpush2.msra.mxu0 0.0
    %6283 = vmatprep.subr.mxu0 0.0
    %6284 = vmatpush2.msra.mxu0 0.0
    %6285 = vmatprep.subr.mxu0 0.0
    %6286 = vmatpush2.msra.mxu0 0.0
    %6287 = vmatprep.subr.mxu0 0.0
    %6288 = vmatpush2.msra.mxu0 0.0
    %6289 = vmatprep.subr.mxu0 0.0
    %6290 = vmatpush2.msra.mxu0 0.0
    %6291 = vmatprep.subr.mxu0 0.0
    %6292 = vmatpush2.msra.mxu0 0.0
    %6293 = vmatprep.subr.mxu0 0.0
    %6294 = vmatpush2.msra.mxu0 0.0
    %6295 = vmatprep.subr.mxu0 0.0
    %6296 = vmatpush2.msra.mxu0 0.0
    %6297 = vmatprep.subr.mxu0 0.0
    %6298 = vmatpush2.msra.mxu0 0.0
    %6299 = vmatprep.subr.mxu0 0.0
    %6300 = vmatpush2.msra.mxu0 0.0
    %6301 = vmatprep.subr.mxu0 0.0
    %6302 = vmatpush2.msra.mxu0 0.0
    %6303 = vmatprep.subr.mxu0 0.0
    %6304 = vmatpush2.msra.mxu0 0.0
    %6305 = vmatprep.subr.mxu0 0.0
    %6306 = vmatpush2.msra.mxu0 0.0
    %6307 = vmatprep.subr.mxu0 0.0
    %6308 = vmatpush2.msra.mxu0 0.0
    %6309 = vmatprep.subr.mxu0 0.0
    %6310 = vmatpush2.msra.mxu0 0.0
    %6311 = vmatprep.subr.mxu0 0.0
    %6312 = vmatpush2.msra.mxu0 0.0
    %6313 = vmatprep.mubr.f32.mxu0 0.0
    %6314 = vmatmul.mubr.f32.gmra.mxu0 %v6247
    %v6315 = vpop.f32.mrf.mxu0
    %v6316 = vadd.f32 0.0, %v6315
    %v6317 = vpop.f32.mrf.mxu0
    %6318 = vdwg.mxu0
    %v6320 = vsel %vm5601, %v5927, 0
    %6322 = vmatprep.subr.mxu0 0.0
    %6323 = vmatpush1.msra.mxu0 0.0
    %6324 = vmatprep.subr.mxu0 0.0
    %6325 = vmatpush1.msra.mxu0 0.0
    %6326 = vmatprep.subr.mxu0 0.0
    %6327 = vmatpush1.msra.mxu0 0.0
    %6328 = vmatprep.subr.mxu0 0.0
    %6329 = vmatpush1.msra.mxu0 0.0
    %6330 = vmatprep.subr.mxu0 0.0
    %6331 = vmatpush1.msra.mxu0 0.0
    %6332 = vmatprep.subr.mxu0 0.0
    %6333 = vmatpush1.msra.mxu0 0.0
    %6334 = vmatprep.subr.mxu0 0.0
    %6335 = vmatpush1.msra.mxu0 0.0
    %6336 = vmatprep.subr.mxu0 0.0
    %6337 = vmatpush1.msra.mxu0 0.0
    %6338 = vmatprep.subr.mxu0 0.0
    %6339 = vmatpush1.msra.mxu0 0.0
    %6340 = vmatprep.subr.mxu0 0.0
    %6341 = vmatpush1.msra.mxu0 0.0
    %6342 = vmatprep.subr.mxu0 0.0
    %6343 = vmatpush1.msra.mxu0 0.0
    %6344 = vmatprep.subr.mxu0 0.0
    %6345 = vmatpush1.msra.mxu0 0.0
    %6346 = vmatprep.subr.mxu0 0.0
    %6347 = vmatpush1.msra.mxu0 0.0
    %6348 = vmatprep.subr.mxu0 0.0
    %6349 = vmatpush1.msra.mxu0 0.0
    %6350 = vmatprep.subr.mxu0 0.0
    %6351 = vmatpush1.msra.mxu0 0.0
    %6352 = vmatprep.subr.mxu0 0.0
    %6353 = vmatpush1.msra.mxu0 %v2757
    %6354 = vmatprep.subr.mxu0 0.0
    %6355 = vmatpush2.msra.mxu0 0.0
    %6356 = vmatprep.subr.mxu0 0.0
    %6357 = vmatpush2.msra.mxu0 0.0
    %6358 = vmatprep.subr.mxu0 0.0
    %6359 = vmatpush2.msra.mxu0 0.0
    %6360 = vmatprep.subr.mxu0 0.0
    %6361 = vmatpush2.msra.mxu0 0.0
    %6362 = vmatprep.subr.mxu0 0.0
    %6363 = vmatpush2.msra.mxu0 0.0
    %6364 = vmatprep.subr.mxu0 0.0
    %6365 = vmatpush2.msra.mxu0 0.0
    %6366 = vmatprep.subr.mxu0 0.0
    %6367 = vmatpush2.msra.mxu0 0.0
    %6368 = vmatprep.subr.mxu0 0.0
    %6369 = vmatpush2.msra.mxu0 0.0
    %6370 = vmatprep.subr.mxu0 0.0
    %6371 = vmatpush2.msra.mxu0 0.0
    %6372 = vmatprep.subr.mxu0 0.0
    %6373 = vmatpush2.msra.mxu0 0.0
    %6374 = vmatprep.subr.mxu0 0.0
    %6375 = vmatpush2.msra.mxu0 0.0
    %6376 = vmatprep.subr.mxu0 0.0
    %6377 = vmatpush2.msra.mxu0 0.0
    %6378 = vmatprep.subr.mxu0 0.0
    %6379 = vmatpush2.msra.mxu0 0.0
    %6380 = vmatprep.subr.mxu0 0.0
    %6381 = vmatpush2.msra.mxu0 0.0
    %6382 = vmatprep.subr.mxu0 0.0
    %6383 = vmatpush2.msra.mxu0 0.0
    %6384 = vmatprep.subr.mxu0 0.0
    %6385 = vmatpush2.msra.mxu0 0.0
    %6386 = vmatprep.mubr.f32.mxu0 0.0
    %6387 = vmatmul.mubr.f32.gmra.mxu0 %v6320
    %v6388 = vpop.f32.mrf.mxu0
    %v6389 = vadd.f32 0.0, %v6388
    %v6390 = vpop.f32.mrf.mxu0
    %6391 = vdwg.mxu0
    %v6393 = vsel %vm5601, %v5928, 0
    %6395 = vmatprep.subr.mxu0 0.0
    %6396 = vmatpush1.msra.mxu0 0.0
    %6397 = vmatprep.subr.mxu0 0.0
    %6398 = vmatpush1.msra.mxu0 0.0
    %6399 = vmatprep.subr.mxu0 0.0
    %6400 = vmatpush1.msra.mxu0 0.0
    %6401 = vmatprep.subr.mxu0 0.0
    %6402 = vmatpush1.msra.mxu0 0.0
    %6403 = vmatprep.subr.mxu0 0.0
    %6404 = vmatpush1.msra.mxu0 0.0
    %6405 = vmatprep.subr.mxu0 0.0
    %6406 = vmatpush1.msra.mxu0 0.0
    %6407 = vmatprep.subr.mxu0 0.0
    %6408 = vmatpush1.msra.mxu0 0.0
    %6409 = vmatprep.subr.mxu0 0.0
    %6410 = vmatpush1.msra.mxu0 0.0
    %6411 = vmatprep.subr.mxu0 0.0
    %6412 = vmatpush1.msra.mxu0 0.0
    %6413 = vmatprep.subr.mxu0 0.0
    %6414 = vmatpush1.msra.mxu0 0.0
    %6415 = vmatprep.subr.mxu0 0.0
    %6416 = vmatpush1.msra.mxu0 0.0
    %6417 = vmatprep.subr.mxu0 0.0
    %6418 = vmatpush1.msra.mxu0 0.0
    %6419 = vmatprep.subr.mxu0 0.0
    %6420 = vmatpush1.msra.mxu0 0.0
    %6421 = vmatprep.subr.mxu0 0.0
    %6422 = vmatpush1.msra.mxu0 0.0
    %6423 = vmatprep.subr.mxu0 0.0
    %6424 = vmatpush1.msra.mxu0 0.0
    %6425 = vmatprep.subr.mxu0 0.0
    %6426 = vmatpush1.msra.mxu0 %v2758
    %6427 = vmatprep.subr.mxu0 0.0
    %6428 = vmatpush2.msra.mxu0 0.0
    %6429 = vmatprep.subr.mxu0 0.0
    %6430 = vmatpush2.msra.mxu0 0.0
    %6431 = vmatprep.subr.mxu0 0.0
    %6432 = vmatpush2.msra.mxu0 0.0
    %6433 = vmatprep.subr.mxu0 0.0
    %6434 = vmatpush2.msra.mxu0 0.0
    %6435 = vmatprep.subr.mxu0 0.0
    %6436 = vmatpush2.msra.mxu0 0.0
    %6437 = vmatprep.subr.mxu0 0.0
    %6438 = vmatpush2.msra.mxu0 0.0
    %6439 = vmatprep.subr.mxu0 0.0
    %6440 = vmatpush2.msra.mxu0 0.0
    %6441 = vmatprep.subr.mxu0 0.0
    %6442 = vmatpush2.msra.mxu0 0.0
    %6443 = vmatprep.subr.mxu0 0.0
    %6444 = vmatpush2.msra.mxu0 0.0
    %6445 = vmatprep.subr.mxu0 0.0
    %6446 = vmatpush2.msra.mxu0 0.0
    %6447 = vmatprep.subr.mxu0 0.0
    %6448 = vmatpush2.msra.mxu0 0.0
    %6449 = vmatprep.subr.mxu0 0.0
    %6450 = vmatpush2.msra.mxu0 0.0
    %6451 = vmatprep.subr.mxu0 0.0
    %6452 = vmatpush2.msra.mxu0 0.0
    %6453 = vmatprep.subr.mxu0 0.0
    %6454 = vmatpush2.msra.mxu0 0.0
    %6455 = vmatprep.subr.mxu0 0.0
    %6456 = vmatpush2.msra.mxu0 0.0
    %6457 = vmatprep.subr.mxu0 0.0
    %6458 = vmatpush2.msra.mxu0 0.0
    %6459 = vmatprep.mubr.f32.mxu0 0.0
    %6460 = vmatmul.mubr.f32.gmra.mxu0 %v6393
    %v6461 = vpop.f32.mrf.mxu0
    %v6462 = vadd.f32 0.0, %v6461
    %v6463 = vpop.f32.mrf.mxu0
    %6464 = vdwg.mxu0
    %v6466 = vsel %vm5601, %v5929, 0
    %6468 = vmatprep.subr.mxu0 0.0
    %6469 = vmatpush1.msra.mxu0 0.0
    %6470 = vmatprep.subr.mxu0 0.0
    %6471 = vmatpush1.msra.mxu0 0.0
    %6472 = vmatprep.subr.mxu0 0.0
    %6473 = vmatpush1.msra.mxu0 0.0
    %6474 = vmatprep.subr.mxu0 0.0
    %6475 = vmatpush1.msra.mxu0 0.0
    %6476 = vmatprep.subr.mxu0 0.0
    %6477 = vmatpush1.msra.mxu0 0.0
    %6478 = vmatprep.subr.mxu0 0.0
    %6479 = vmatpush1.msra.mxu0 0.0
    %6480 = vmatprep.subr.mxu0 0.0
    %6481 = vmatpush1.msra.mxu0 0.0
    %6482 = vmatprep.subr.mxu0 0.0
    %6483 = vmatpush1.msra.mxu0 0.0
    %6484 = vmatprep.subr.mxu0 0.0
    %6485 = vmatpush1.msra.mxu0 0.0
    %6486 = vmatprep.subr.mxu0 0.0
    %6487 = vmatpush1.msra.mxu0 0.0
    %6488 = vmatprep.subr.mxu0 0.0
    %6489 = vmatpush1.msra.mxu0 0.0
    %6490 = vmatprep.subr.mxu0 0.0
    %6491 = vmatpush1.msra.mxu0 0.0
    %6492 = vmatprep.subr.mxu0 0.0
    %6493 = vmatpush1.msra.mxu0 0.0
    %6494 = vmatprep.subr.mxu0 0.0
    %6495 = vmatpush1.msra.mxu0 0.0
    %6496 = vmatprep.subr.mxu0 0.0
    %6497 = vmatpush1.msra.mxu0 0.0
    %6498 = vmatprep.subr.mxu0 0.0
    %6499 = vmatpush1.msra.mxu0 %v2759
    %6500 = vmatprep.subr.mxu0 0.0
    %6501 = vmatpush2.msra.mxu0 0.0
    %6502 = vmatprep.subr.mxu0 0.0
    %6503 = vmatpush2.msra.mxu0 0.0
    %6504 = vmatprep.subr.mxu0 0.0
    %6505 = vmatpush2.msra.mxu0 0.0
    %6506 = vmatprep.subr.mxu0 0.0
    %6507 = vmatpush2.msra.mxu0 0.0
    %6508 = vmatprep.subr.mxu0 0.0
    %6509 = vmatpush2.msra.mxu0 0.0
    %6510 = vmatprep.subr.mxu0 0.0
    %6511 = vmatpush2.msra.mxu0 0.0
    %6512 = vmatprep.subr.mxu0 0.0
    %6513 = vmatpush2.msra.mxu0 0.0
    %6514 = vmatprep.subr.mxu0 0.0
    %6515 = vmatpush2.msra.mxu0 0.0
    %6516 = vmatprep.subr.mxu0 0.0
    %6517 = vmatpush2.msra.mxu0 0.0
    %6518 = vmatprep.subr.mxu0 0.0
    %6519 = vmatpush2.msra.mxu0 0.0
    %6520 = vmatprep.subr.mxu0 0.0
    %6521 = vmatpush2.msra.mxu0 0.0
    %6522 = vmatprep.subr.mxu0 0.0
    %6523 = vmatpush2.msra.mxu0 0.0
    %6524 = vmatprep.subr.mxu0 0.0
    %6525 = vmatpush2.msra.mxu0 0.0
    %6526 = vmatprep.subr.mxu0 0.0
    %6527 = vmatpush2.msra.mxu0 0.0
    %6528 = vmatprep.subr.mxu0 0.0
    %6529 = vmatpush2.msra.mxu0 0.0
    %6530 = vmatprep.subr.mxu0 0.0
    %6531 = vmatpush2.msra.mxu0 0.0
    %6532 = vmatprep.mubr.f32.mxu0 0.0
    %6533 = vmatmul.mubr.f32.gmra.mxu0 %v6466
    %v6534 = vpop.f32.mrf.mxu0
    %v6535 = vadd.f32 0.0, %v6534
    %v6536 = vpop.f32.mrf.mxu0
    %6537 = vdwg.mxu0
    %v6539 = vsel %vm5601, %v5930, 0
    %6541 = vmatprep.subr.mxu0 0.0
    %6542 = vmatpush1.msra.mxu0 0.0
    %6543 = vmatprep.subr.mxu0 0.0
    %6544 = vmatpush1.msra.mxu0 0.0
    %6545 = vmatprep.subr.mxu0 0.0
    %6546 = vmatpush1.msra.mxu0 0.0
    %6547 = vmatprep.subr.mxu0 0.0
    %6548 = vmatpush1.msra.mxu0 0.0
    %6549 = vmatprep.subr.mxu0 0.0
    %6550 = vmatpush1.msra.mxu0 0.0
    %6551 = vmatprep.subr.mxu0 0.0
    %6552 = vmatpush1.msra.mxu0 0.0
    %6553 = vmatprep.subr.mxu0 0.0
    %6554 = vmatpush1.msra.mxu0 0.0
    %6555 = vmatprep.subr.mxu0 0.0
    %6556 = vmatpush1.msra.mxu0 0.0
    %6557 = vmatprep.subr.mxu0 0.0
    %6558 = vmatpush1.msra.mxu0 0.0
    %6559 = vmatprep.subr.mxu0 0.0
    %6560 = vmatpush1.msra.mxu0 0.0
    %6561 = vmatprep.subr.mxu0 0.0
    %6562 = vmatpush1.msra.mxu0 0.0
    %6563 = vmatprep.subr.mxu0 0.0
    %6564 = vmatpush1.msra.mxu0 0.0
    %6565 = vmatprep.subr.mxu0 0.0
    %6566 = vmatpush1.msra.mxu0 0.0
    %6567 = vmatprep.subr.mxu0 0.0
    %6568 = vmatpush1.msra.mxu0 0.0
    %6569 = vmatprep.subr.mxu0 0.0
    %6570 = vmatpush1.msra.mxu0 0.0
    %6571 = vmatprep.subr.mxu0 0.0
    %6572 = vmatpush1.msra.mxu0 %v2888
    %6573 = vmatprep.subr.mxu0 0.0
    %6574 = vmatpush2.msra.mxu0 0.0
    %6575 = vmatprep.subr.mxu0 0.0
    %6576 = vmatpush2.msra.mxu0 0.0
    %6577 = vmatprep.subr.mxu0 0.0
    %6578 = vmatpush2.msra.mxu0 0.0
    %6579 = vmatprep.subr.mxu0 0.0
    %6580 = vmatpush2.msra.mxu0 0.0
    %6581 = vmatprep.subr.mxu0 0.0
    %6582 = vmatpush2.msra.mxu0 0.0
    %6583 = vmatprep.subr.mxu0 0.0
    %6584 = vmatpush2.msra.mxu0 0.0
    %6585 = vmatprep.subr.mxu0 0.0
    %6586 = vmatpush2.msra.mxu0 0.0
    %6587 = vmatprep.subr.mxu0 0.0
    %6588 = vmatpush2.msra.mxu0 0.0
    %6589 = vmatprep.subr.mxu0 0.0
    %6590 = vmatpush2.msra.mxu0 0.0
    %6591 = vmatprep.subr.mxu0 0.0
    %6592 = vmatpush2.msra.mxu0 0.0
    %6593 = vmatprep.subr.mxu0 0.0
    %6594 = vmatpush2.msra.mxu0 0.0
    %6595 = vmatprep.subr.mxu0 0.0
    %6596 = vmatpush2.msra.mxu0 0.0
    %6597 = vmatprep.subr.mxu0 0.0
    %6598 = vmatpush2.msra.mxu0 0.0
    %6599 = vmatprep.subr.mxu0 0.0
    %6600 = vmatpush2.msra.mxu0 0.0
    %6601 = vmatprep.subr.mxu0 0.0
    %6602 = vmatpush2.msra.mxu0 0.0
    %6603 = vmatprep.subr.mxu0 0.0
    %6604 = vmatpush2.msra.mxu0 0.0
    %6605 = vmatprep.mubr.f32.mxu0 0.0
    %6606 = vmatmul.mubr.f32.gmra.mxu0 %v6539
    %v6607 = vpop.f32.mrf.mxu0
    %v6608 = vadd.f32 0.0, %v6607
    %v6609 = vpop.f32.mrf.mxu0
    %6610 = vdwg.mxu0
    %v6612 = vsel %vm5601, %v5931, 0
    %6614 = vmatprep.subr.mxu0 0.0
    %6615 = vmatpush1.msra.mxu0 0.0
    %6616 = vmatprep.subr.mxu0 0.0
    %6617 = vmatpush1.msra.mxu0 0.0
    %6618 = vmatprep.subr.mxu0 0.0
    %6619 = vmatpush1.msra.mxu0 0.0
    %6620 = vmatprep.subr.mxu0 0.0
    %6621 = vmatpush1.msra.mxu0 0.0
    %6622 = vmatprep.subr.mxu0 0.0
    %6623 = vmatpush1.msra.mxu0 0.0
    %6624 = vmatprep.subr.mxu0 0.0
    %6625 = vmatpush1.msra.mxu0 0.0
    %6626 = vmatprep.subr.mxu0 0.0
    %6627 = vmatpush1.msra.mxu0 0.0
    %6628 = vmatprep.subr.mxu0 0.0
    %6629 = vmatpush1.msra.mxu0 0.0
    %6630 = vmatprep.subr.mxu0 0.0
    %6631 = vmatpush1.msra.mxu0 0.0
    %6632 = vmatprep.subr.mxu0 0.0
    %6633 = vmatpush1.msra.mxu0 0.0
    %6634 = vmatprep.subr.mxu0 0.0
    %6635 = vmatpush1.msra.mxu0 0.0
    %6636 = vmatprep.subr.mxu0 0.0
    %6637 = vmatpush1.msra.mxu0 0.0
    %6638 = vmatprep.subr.mxu0 0.0
    %6639 = vmatpush1.msra.mxu0 0.0
    %6640 = vmatprep.subr.mxu0 0.0
    %6641 = vmatpush1.msra.mxu0 0.0
    %6642 = vmatprep.subr.mxu0 0.0
    %6643 = vmatpush1.msra.mxu0 0.0
    %6644 = vmatprep.subr.mxu0 0.0
    %6645 = vmatpush1.msra.mxu0 %v2889
    %6646 = vmatprep.subr.mxu0 0.0
    %6647 = vmatpush2.msra.mxu0 0.0
    %6648 = vmatprep.subr.mxu0 0.0
    %6649 = vmatpush2.msra.mxu0 0.0
    %6650 = vmatprep.subr.mxu0 0.0
    %6651 = vmatpush2.msra.mxu0 0.0
    %6652 = vmatprep.subr.mxu0 0.0
    %6653 = vmatpush2.msra.mxu0 0.0
    %6654 = vmatprep.subr.mxu0 0.0
    %6655 = vmatpush2.msra.mxu0 0.0
    %6656 = vmatprep.subr.mxu0 0.0
    %6657 = vmatpush2.msra.mxu0 0.0
    %6658 = vmatprep.subr.mxu0 0.0
    %6659 = vmatpush2.msra.mxu0 0.0
    %6660 = vmatprep.subr.mxu0 0.0
    %6661 = vmatpush2.msra.mxu0 0.0
    %6662 = vmatprep.subr.mxu0 0.0
    %6663 = vmatpush2.msra.mxu0 0.0
    %6664 = vmatprep.subr.mxu0 0.0
    %6665 = vmatpush2.msra.mxu0 0.0
    %6666 = vmatprep.subr.mxu0 0.0
    %6667 = vmatpush2.msra.mxu0 0.0
    %6668 = vmatprep.subr.mxu0 0.0
    %6669 = vmatpush2.msra.mxu0 0.0
    %6670 = vmatprep.subr.mxu0 0.0
    %6671 = vmatpush2.msra.mxu0 0.0
    %6672 = vmatprep.subr.mxu0 0.0
    %6673 = vmatpush2.msra.mxu0 0.0
    %6674 = vmatprep.subr.mxu0 0.0
    %6675 = vmatpush2.msra.mxu0 0.0
    %6676 = vmatprep.subr.mxu0 0.0
    %6677 = vmatpush2.msra.mxu0 0.0
    %6678 = vmatprep.mubr.f32.mxu0 0.0
    %6679 = vmatmul.mubr.f32.gmra.mxu0 %v6612
    %v6680 = vpop.f32.mrf.mxu0
    %v6681 = vadd.f32 0.0, %v6680
    %v6682 = vpop.f32.mrf.mxu0
    %6683 = vdwg.mxu0
    %v6685 = vsel %vm5601, %v5932, 0
    %6687 = vmatprep.subr.mxu0 0.0
    %6688 = vmatpush1.msra.mxu0 0.0
    %6689 = vmatprep.subr.mxu0 0.0
    %6690 = vmatpush1.msra.mxu0 0.0
    %6691 = vmatprep.subr.mxu0 0.0
    %6692 = vmatpush1.msra.mxu0 0.0
    %6693 = vmatprep.subr.mxu0 0.0
    %6694 = vmatpush1.msra.mxu0 0.0
    %6695 = vmatprep.subr.mxu0 0.0
    %6696 = vmatpush1.msra.mxu0 0.0
    %6697 = vmatprep.subr.mxu0 0.0
    %6698 = vmatpush1.msra.mxu0 0.0
    %6699 = vmatprep.subr.mxu0 0.0
    %6700 = vmatpush1.msra.mxu0 0.0
    %6701 = vmatprep.subr.mxu0 0.0
    %6702 = vmatpush1.msra.mxu0 0.0
    %6703 = vmatprep.subr.mxu0 0.0
    %6704 = vmatpush1.msra.mxu0 0.0
    %6705 = vmatprep.subr.mxu0 0.0
    %6706 = vmatpush1.msra.mxu0 0.0
    %6707 = vmatprep.subr.mxu0 0.0
    %6708 = vmatpush1.msra.mxu0 0.0
    %6709 = vmatprep.subr.mxu0 0.0
    %6710 = vmatpush1.msra.mxu0 0.0
    %6711 = vmatprep.subr.mxu0 0.0
    %6712 = vmatpush1.msra.mxu0 0.0
    %6713 = vmatprep.subr.mxu0 0.0
    %6714 = vmatpush1.msra.mxu0 0.0
    %6715 = vmatprep.subr.mxu0 0.0
    %6716 = vmatpush1.msra.mxu0 0.0
    %6717 = vmatprep.subr.mxu0 0.0
    %6718 = vmatpush1.msra.mxu0 %v2890
    %6719 = vmatprep.subr.mxu0 0.0
    %6720 = vmatpush2.msra.mxu0 0.0
    %6721 = vmatprep.subr.mxu0 0.0
    %6722 = vmatpush2.msra.mxu0 0.0
    %6723 = vmatprep.subr.mxu0 0.0
    %6724 = vmatpush2.msra.mxu0 0.0
    %6725 = vmatprep.subr.mxu0 0.0
    %6726 = vmatpush2.msra.mxu0 0.0
    %6727 = vmatprep.subr.mxu0 0.0
    %6728 = vmatpush2.msra.mxu0 0.0
    %6729 = vmatprep.subr.mxu0 0.0
    %6730 = vmatpush2.msra.mxu0 0.0
    %6731 = vmatprep.subr.mxu0 0.0
    %6732 = vmatpush2.msra.mxu0 0.0
    %6733 = vmatprep.subr.mxu0 0.0
    %6734 = vmatpush2.msra.mxu0 0.0
    %6735 = vmatprep.subr.mxu0 0.0
    %6736 = vmatpush2.msra.mxu0 0.0
    %6737 = vmatprep.subr.mxu0 0.0
    %6738 = vmatpush2.msra.mxu0 0.0
    %6739 = vmatprep.subr.mxu0 0.0
    %6740 = vmatpush2.msra.mxu0 0.0
    %6741 = vmatprep.subr.mxu0 0.0
    %6742 = vmatpush2.msra.mxu0 0.0
    %6743 = vmatprep.subr.mxu0 0.0
    %6744 = vmatpush2.msra.mxu0 0.0
    %6745 = vmatprep.subr.mxu0 0.0
    %6746 = vmatpush2.msra.mxu0 0.0
    %6747 = vmatprep.subr.mxu0 0.0
    %6748 = vmatpush2.msra.mxu0 0.0
    %6749 = vmatprep.subr.mxu0 0.0
    %6750 = vmatpush2.msra.mxu0 0.0
    %6751 = vmatprep.mubr.f32.mxu0 0.0
    %6752 = vmatmul.mubr.f32.gmra.mxu0 %v6685
    %v6753 = vpop.f32.mrf.mxu0
    %v6754 = vadd.f32 0.0, %v6753
    %v6755 = vpop.f32.mrf.mxu0
    %6756 = vdwg.mxu0
    %v6758 = vsel %vm5601, %v5933, 0
    %6760 = vmatprep.subr.mxu0 0.0
    %6761 = vmatpush1.msra.mxu0 0.0
    %6762 = vmatprep.subr.mxu0 0.0
    %6763 = vmatpush1.msra.mxu0 0.0
    %6764 = vmatprep.subr.mxu0 0.0
    %6765 = vmatpush1.msra.mxu0 0.0
    %6766 = vmatprep.subr.mxu0 0.0
    %6767 = vmatpush1.msra.mxu0 0.0
    %6768 = vmatprep.subr.mxu0 0.0
    %6769 = vmatpush1.msra.mxu0 0.0
    %6770 = vmatprep.subr.mxu0 0.0
    %6771 = vmatpush1.msra.mxu0 0.0
    %6772 = vmatprep.subr.mxu0 0.0
    %6773 = vmatpush1.msra.mxu0 0.0
    %6774 = vmatprep.subr.mxu0 0.0
    %6775 = vmatpush1.msra.mxu0 0.0
    %6776 = vmatprep.subr.mxu0 0.0
    %6777 = vmatpush1.msra.mxu0 0.0
    %6778 = vmatprep.subr.mxu0 0.0
    %6779 = vmatpush1.msra.mxu0 0.0
    %6780 = vmatprep.subr.mxu0 0.0
    %6781 = vmatpush1.msra.mxu0 0.0
    %6782 = vmatprep.subr.mxu0 0.0
    %6783 = vmatpush1.msra.mxu0 0.0
    %6784 = vmatprep.subr.mxu0 0.0
    %6785 = vmatpush1.msra.mxu0 0.0
    %6786 = vmatprep.subr.mxu0 0.0
    %6787 = vmatpush1.msra.mxu0 0.0
    %6788 = vmatprep.subr.mxu0 0.0
    %6789 = vmatpush1.msra.mxu0 0.0
    %6790 = vmatprep.subr.mxu0 0.0
    %6791 = vmatpush1.msra.mxu0 %v2891
    %6792 = vmatprep.subr.mxu0 0.0
    %6793 = vmatpush2.msra.mxu0 0.0
    %6794 = vmatprep.subr.mxu0 0.0
    %6795 = vmatpush2.msra.mxu0 0.0
    %6796 = vmatprep.subr.mxu0 0.0
    %6797 = vmatpush2.msra.mxu0 0.0
    %6798 = vmatprep.subr.mxu0 0.0
    %6799 = vmatpush2.msra.mxu0 0.0
    %6800 = vmatprep.subr.mxu0 0.0
    %6801 = vmatpush2.msra.mxu0 0.0
    %6802 = vmatprep.subr.mxu0 0.0
    %6803 = vmatpush2.msra.mxu0 0.0
    %6804 = vmatprep.subr.mxu0 0.0
    %6805 = vmatpush2.msra.mxu0 0.0
    %6806 = vmatprep.subr.mxu0 0.0
    %6807 = vmatpush2.msra.mxu0 0.0
    %6808 = vmatprep.subr.mxu0 0.0
    %6809 = vmatpush2.msra.mxu0 0.0
    %6810 = vmatprep.subr.mxu0 0.0
    %6811 = vmatpush2.msra.mxu0 0.0
    %6812 = vmatprep.subr.mxu0 0.0
    %6813 = vmatpush2.msra.mxu0 0.0
    %6814 = vmatprep.subr.mxu0 0.0
    %6815 = vmatpush2.msra.mxu0 0.0
    %6816 = vmatprep.subr.mxu0 0.0
    %6817 = vmatpush2.msra.mxu0 0.0
    %6818 = vmatprep.subr.mxu0 0.0
    %6819 = vmatpush2.msra.mxu0 0.0
    %6820 = vmatprep.subr.mxu0 0.0
    %6821 = vmatpush2.msra.mxu0 0.0
    %6822 = vmatprep.subr.mxu0 0.0
    %6823 = vmatpush2.msra.mxu0 0.0
    %6824 = vmatprep.mubr.f32.mxu0 0.0
    %6825 = vmatmul.mubr.f32.gmra.mxu0 %v6758
    %v6826 = vpop.f32.mrf.mxu0
    %v6827 = vadd.f32 0.0, %v6826
    %v6828 = vpop.f32.mrf.mxu0
    %6829 = vdwg.mxu0
    %v6831 = vsel %vm5601, %v5934, 0
    %6833 = vmatprep.subr.mxu0 0.0
    %6834 = vmatpush1.msra.mxu0 0.0
    %6835 = vmatprep.subr.mxu0 0.0
    %6836 = vmatpush1.msra.mxu0 0.0
    %6837 = vmatprep.subr.mxu0 0.0
    %6838 = vmatpush1.msra.mxu0 0.0
    %6839 = vmatprep.subr.mxu0 0.0
    %6840 = vmatpush1.msra.mxu0 0.0
    %6841 = vmatprep.subr.mxu0 0.0
    %6842 = vmatpush1.msra.mxu0 0.0
    %6843 = vmatprep.subr.mxu0 0.0
    %6844 = vmatpush1.msra.mxu0 0.0
    %6845 = vmatprep.subr.mxu0 0.0
    %6846 = vmatpush1.msra.mxu0 0.0
    %6847 = vmatprep.subr.mxu0 0.0
    %6848 = vmatpush1.msra.mxu0 0.0
    %6849 = vmatprep.subr.mxu0 0.0
    %6850 = vmatpush1.msra.mxu0 0.0
    %6851 = vmatprep.subr.mxu0 0.0
    %6852 = vmatpush1.msra.mxu0 0.0
    %6853 = vmatprep.subr.mxu0 0.0
    %6854 = vmatpush1.msra.mxu0 0.0
    %6855 = vmatprep.subr.mxu0 0.0
    %6856 = vmatpush1.msra.mxu0 0.0
    %6857 = vmatprep.subr.mxu0 0.0
    %6858 = vmatpush1.msra.mxu0 0.0
    %6859 = vmatprep.subr.mxu0 0.0
    %6860 = vmatpush1.msra.mxu0 0.0
    %6861 = vmatprep.subr.mxu0 0.0
    %6862 = vmatpush1.msra.mxu0 0.0
    %6863 = vmatprep.subr.mxu0 0.0
    %6864 = vmatpush1.msra.mxu0 %v2892
    %6865 = vmatprep.subr.mxu0 0.0
    %6866 = vmatpush2.msra.mxu0 0.0
    %6867 = vmatprep.subr.mxu0 0.0
    %6868 = vmatpush2.msra.mxu0 0.0
    %6869 = vmatprep.subr.mxu0 0.0
    %6870 = vmatpush2.msra.mxu0 0.0
    %6871 = vmatprep.subr.mxu0 0.0
    %6872 = vmatpush2.msra.mxu0 0.0
    %6873 = vmatprep.subr.mxu0 0.0
    %6874 = vmatpush2.msra.mxu0 0.0
    %6875 = vmatprep.subr.mxu0 0.0
    %6876 = vmatpush2.msra.mxu0 0.0
    %6877 = vmatprep.subr.mxu0 0.0
    %6878 = vmatpush2.msra.mxu0 0.0
    %6879 = vmatprep.subr.mxu0 0.0
    %6880 = vmatpush2.msra.mxu0 0.0
    %6881 = vmatprep.subr.mxu0 0.0
    %6882 = vmatpush2.msra.mxu0 0.0
    %6883 = vmatprep.subr.mxu0 0.0
    %6884 = vmatpush2.msra.mxu0 0.0
    %6885 = vmatprep.subr.mxu0 0.0
    %6886 = vmatpush2.msra.mxu0 0.0
    %6887 = vmatprep.subr.mxu0 0.0
    %6888 = vmatpush2.msra.mxu0 0.0
    %6889 = vmatprep.subr.mxu0 0.0
    %6890 = vmatpush2.msra.mxu0 0.0
    %6891 = vmatprep.subr.mxu0 0.0
    %6892 = vmatpush2.msra.mxu0 0.0
    %6893 = vmatprep.subr.mxu0 0.0
    %6894 = vmatpush2.msra.mxu0 0.0
    %6895 = vmatprep.subr.mxu0 0.0
    %6896 = vmatpush2.msra.mxu0 0.0
    %6897 = vmatprep.mubr.f32.mxu0 0.0
    %6898 = vmatmul.mubr.f32.gmra.mxu0 %v6831
    %v6899 = vpop.f32.mrf.mxu0
    %v6900 = vadd.f32 0.0, %v6899
    %v6901 = vpop.f32.mrf.mxu0
    %6902 = vdwg.mxu0
    %v6904 = vsel %vm5601, %v5935, 0
    %6906 = vmatprep.subr.mxu0 0.0
    %6907 = vmatpush1.msra.mxu0 0.0
    %6908 = vmatprep.subr.mxu0 0.0
    %6909 = vmatpush1.msra.mxu0 0.0
    %6910 = vmatprep.subr.mxu0 0.0
    %6911 = vmatpush1.msra.mxu0 0.0
    %6912 = vmatprep.subr.mxu0 0.0
    %6913 = vmatpush1.msra.mxu0 0.0
    %6914 = vmatprep.subr.mxu0 0.0
    %6915 = vmatpush1.msra.mxu0 0.0
    %6916 = vmatprep.subr.mxu0 0.0
    %6917 = vmatpush1.msra.mxu0 0.0
    %6918 = vmatprep.subr.mxu0 0.0
    %6919 = vmatpush1.msra.mxu0 0.0
    %6920 = vmatprep.subr.mxu0 0.0
    %6921 = vmatpush1.msra.mxu0 0.0
    %6922 = vmatprep.subr.mxu0 0.0
    %6923 = vmatpush1.msra.mxu0 0.0
    %6924 = vmatprep.subr.mxu0 0.0
    %6925 = vmatpush1.msra.mxu0 0.0
    %6926 = vmatprep.subr.mxu0 0.0
    %6927 = vmatpush1.msra.mxu0 0.0
    %6928 = vmatprep.subr.mxu0 0.0
    %6929 = vmatpush1.msra.mxu0 0.0
    %6930 = vmatprep.subr.mxu0 0.0
    %6931 = vmatpush1.msra.mxu0 0.0
    %6932 = vmatprep.subr.mxu0 0.0
    %6933 = vmatpush1.msra.mxu0 0.0
    %6934 = vmatprep.subr.mxu0 0.0
    %6935 = vmatpush1.msra.mxu0 0.0
    %6936 = vmatprep.subr.mxu0 0.0
    %6937 = vmatpush1.msra.mxu0 %v2893
    %6938 = vmatprep.subr.mxu0 0.0
    %6939 = vmatpush2.msra.mxu0 0.0
    %6940 = vmatprep.subr.mxu0 0.0
    %6941 = vmatpush2.msra.mxu0 0.0
    %6942 = vmatprep.subr.mxu0 0.0
    %6943 = vmatpush2.msra.mxu0 0.0
    %6944 = vmatprep.subr.mxu0 0.0
    %6945 = vmatpush2.msra.mxu0 0.0
    %6946 = vmatprep.subr.mxu0 0.0
    %6947 = vmatpush2.msra.mxu0 0.0
    %6948 = vmatprep.subr.mxu0 0.0
    %6949 = vmatpush2.msra.mxu0 0.0
    %6950 = vmatprep.subr.mxu0 0.0
    %6951 = vmatpush2.msra.mxu0 0.0
    %6952 = vmatprep.subr.mxu0 0.0
    %6953 = vmatpush2.msra.mxu0 0.0
    %6954 = vmatprep.subr.mxu0 0.0
    %6955 = vmatpush2.msra.mxu0 0.0
    %6956 = vmatprep.subr.mxu0 0.0
    %6957 = vmatpush2.msra.mxu0 0.0
    %6958 = vmatprep.subr.mxu0 0.0
    %6959 = vmatpush2.msra.mxu0 0.0
    %6960 = vmatprep.subr.mxu0 0.0
    %6961 = vmatpush2.msra.mxu0 0.0
    %6962 = vmatprep.subr.mxu0 0.0
    %6963 = vmatpush2.msra.mxu0 0.0
    %6964 = vmatprep.subr.mxu0 0.0
    %6965 = vmatpush2.msra.mxu0 0.0
    %6966 = vmatprep.subr.mxu0 0.0
    %6967 = vmatpush2.msra.mxu0 0.0
    %6968 = vmatprep.subr.mxu0 0.0
    %6969 = vmatpush2.msra.mxu0 0.0
    %6970 = vmatprep.mubr.f32.mxu0 0.0
    %6971 = vmatmul.mubr.f32.gmra.mxu0 %v6904
    %v6972 = vpop.f32.mrf.mxu0
    %v6973 = vadd.f32 0.0, %v6972
    %v6974 = vpop.f32.mrf.mxu0
    %6975 = vdwg.mxu0
    %v6977 = vsel %vm5601, %v5936, 0
    %6979 = vmatprep.subr.mxu0 0.0
    %6980 = vmatpush1.msra.mxu0 0.0
    %6981 = vmatprep.subr.mxu0 0.0
    %6982 = vmatpush1.msra.mxu0 0.0
    %6983 = vmatprep.subr.mxu0 0.0
    %6984 = vmatpush1.msra.mxu0 0.0
    %6985 = vmatprep.subr.mxu0 0.0
    %6986 = vmatpush1.msra.mxu0 0.0
    %6987 = vmatprep.subr.mxu0 0.0
    %6988 = vmatpush1.msra.mxu0 0.0
    %6989 = vmatprep.subr.mxu0 0.0
    %6990 = vmatpush1.msra.mxu0 0.0
    %6991 = vmatprep.subr.mxu0 0.0
    %6992 = vmatpush1.msra.mxu0 0.0
    %6993 = vmatprep.subr.mxu0 0.0
    %6994 = vmatpush1.msra.mxu0 0.0
    %6995 = vmatprep.subr.mxu0 0.0
    %6996 = vmatpush1.msra.mxu0 0.0
    %6997 = vmatprep.subr.mxu0 0.0
    %6998 = vmatpush1.msra.mxu0 0.0
    %6999 = vmatprep.subr.mxu0 0.0
    %7000 = vmatpush1.msra.mxu0 0.0
    %7001 = vmatprep.subr.mxu0 0.0
    %7002 = vmatpush1.msra.mxu0 0.0
    %7003 = vmatprep.subr.mxu0 0.0
    %7004 = vmatpush1.msra.mxu0 0.0
    %7005 = vmatprep.subr.mxu0 0.0
    %7006 = vmatpush1.msra.mxu0 0.0
    %7007 = vmatprep.subr.mxu0 0.0
    %7008 = vmatpush1.msra.mxu0 0.0
    %7009 = vmatprep.subr.mxu0 0.0
    %7010 = vmatpush1.msra.mxu0 %v2894
    %7011 = vmatprep.subr.mxu0 0.0
    %7012 = vmatpush2.msra.mxu0 0.0
    %7013 = vmatprep.subr.mxu0 0.0
    %7014 = vmatpush2.msra.mxu0 0.0
    %7015 = vmatprep.subr.mxu0 0.0
    %7016 = vmatpush2.msra.mxu0 0.0
    %7017 = vmatprep.subr.mxu0 0.0
    %7018 = vmatpush2.msra.mxu0 0.0
    %7019 = vmatprep.subr.mxu0 0.0
    %7020 = vmatpush2.msra.mxu0 0.0
    %7021 = vmatprep.subr.mxu0 0.0
    %7022 = vmatpush2.msra.mxu0 0.0
    %7023 = vmatprep.subr.mxu0 0.0
    %7024 = vmatpush2.msra.mxu0 0.0
    %7025 = vmatprep.subr.mxu0 0.0
    %7026 = vmatpush2.msra.mxu0 0.0
    %7027 = vmatprep.subr.mxu0 0.0
    %7028 = vmatpush2.msra.mxu0 0.0
    %7029 = vmatprep.subr.mxu0 0.0
    %7030 = vmatpush2.msra.mxu0 0.0
    %7031 = vmatprep.subr.mxu0 0.0
    %7032 = vmatpush2.msra.mxu0 0.0
    %7033 = vmatprep.subr.mxu0 0.0
    %7034 = vmatpush2.msra.mxu0 0.0
    %7035 = vmatprep.subr.mxu0 0.0
    %7036 = vmatpush2.msra.mxu0 0.0
    %7037 = vmatprep.subr.mxu0 0.0
    %7038 = vmatpush2.msra.mxu0 0.0
    %7039 = vmatprep.subr.mxu0 0.0
    %7040 = vmatpush2.msra.mxu0 0.0
    %7041 = vmatprep.subr.mxu0 0.0
    %7042 = vmatpush2.msra.mxu0 0.0
    %7043 = vmatprep.mubr.f32.mxu0 0.0
    %7044 = vmatmul.mubr.f32.gmra.mxu0 %v6977
    %v7045 = vpop.f32.mrf.mxu0
    %v7046 = vadd.f32 0.0, %v7045
    %v7047 = vpop.f32.mrf.mxu0
    %7048 = vdwg.mxu0
    %v7050 = vsel %vm5601, %v5937, 0
    %7052 = vmatprep.subr.mxu0 0.0
    %7053 = vmatpush1.msra.mxu0 0.0
    %7054 = vmatprep.subr.mxu0 0.0
    %7055 = vmatpush1.msra.mxu0 0.0
    %7056 = vmatprep.subr.mxu0 0.0
    %7057 = vmatpush1.msra.mxu0 0.0
    %7058 = vmatprep.subr.mxu0 0.0
    %7059 = vmatpush1.msra.mxu0 0.0
    %7060 = vmatprep.subr.mxu0 0.0
    %7061 = vmatpush1.msra.mxu0 0.0
    %7062 = vmatprep.subr.mxu0 0.0
    %7063 = vmatpush1.msra.mxu0 0.0
    %7064 = vmatprep.subr.mxu0 0.0
    %7065 = vmatpush1.msra.mxu0 0.0
    %7066 = vmatprep.subr.mxu0 0.0
    %7067 = vmatpush1.msra.mxu0 0.0
    %7068 = vmatprep.subr.mxu0 0.0
    %7069 = vmatpush1.msra.mxu0 0.0
    %7070 = vmatprep.subr.mxu0 0.0
    %7071 = vmatpush1.msra.mxu0 0.0
    %7072 = vmatprep.subr.mxu0 0.0
    %7073 = vmatpush1.msra.mxu0 0.0
    %7074 = vmatprep.subr.mxu0 0.0
    %7075 = vmatpush1.msra.mxu0 0.0
    %7076 = vmatprep.subr.mxu0 0.0
    %7077 = vmatpush1.msra.mxu0 0.0
    %7078 = vmatprep.subr.mxu0 0.0
    %7079 = vmatpush1.msra.mxu0 0.0
    %7080 = vmatprep.subr.mxu0 0.0
    %7081 = vmatpush1.msra.mxu0 0.0
    %7082 = vmatprep.subr.mxu0 0.0
    %7083 = vmatpush1.msra.mxu0 %v2895
    %7084 = vmatprep.subr.mxu0 0.0
    %7085 = vmatpush2.msra.mxu0 0.0
    %7086 = vmatprep.subr.mxu0 0.0
    %7087 = vmatpush2.msra.mxu0 0.0
    %7088 = vmatprep.subr.mxu0 0.0
    %7089 = vmatpush2.msra.mxu0 0.0
    %7090 = vmatprep.subr.mxu0 0.0
    %7091 = vmatpush2.msra.mxu0 0.0
    %7092 = vmatprep.subr.mxu0 0.0
    %7093 = vmatpush2.msra.mxu0 0.0
    %7094 = vmatprep.subr.mxu0 0.0
    %7095 = vmatpush2.msra.mxu0 0.0
    %7096 = vmatprep.subr.mxu0 0.0
    %7097 = vmatpush2.msra.mxu0 0.0
    %7098 = vmatprep.subr.mxu0 0.0
    %7099 = vmatpush2.msra.mxu0 0.0
    %7100 = vmatprep.subr.mxu0 0.0
    %7101 = vmatpush2.msra.mxu0 0.0
    %7102 = vmatprep.subr.mxu0 0.0
    %7103 = vmatpush2.msra.mxu0 0.0
    %7104 = vmatprep.subr.mxu0 0.0
    %7105 = vmatpush2.msra.mxu0 0.0
    %7106 = vmatprep.subr.mxu0 0.0
    %7107 = vmatpush2.msra.mxu0 0.0
    %7108 = vmatprep.subr.mxu0 0.0
    %7109 = vmatpush2.msra.mxu0 0.0
    %7110 = vmatprep.subr.mxu0 0.0
    %7111 = vmatpush2.msra.mxu0 0.0
    %7112 = vmatprep.subr.mxu0 0.0
    %7113 = vmatpush2.msra.mxu0 0.0
    %7114 = vmatprep.subr.mxu0 0.0
    %7115 = vmatpush2.msra.mxu0 0.0
    %7116 = vmatprep.mubr.f32.mxu0 0.0
    %7117 = vmatmul.mubr.f32.gmra.mxu0 %v7050
    %v7118 = vpop.f32.mrf.mxu0
    %v7119 = vadd.f32 0.0, %v7118
    %v7120 = vpop.f32.mrf.mxu0
    %7121 = vdwg.mxu0
    %v7123 = vsel %vm5601, %v5938, 0
    %7125 = vmatprep.subr.mxu0 0.0
    %7126 = vmatpush1.msra.mxu0 0.0
    %7127 = vmatprep.subr.mxu0 0.0
    %7128 = vmatpush1.msra.mxu0 0.0
    %7129 = vmatprep.subr.mxu0 0.0
    %7130 = vmatpush1.msra.mxu0 0.0
    %7131 = vmatprep.subr.mxu0 0.0
    %7132 = vmatpush1.msra.mxu0 0.0
    %7133 = vmatprep.subr.mxu0 0.0
    %7134 = vmatpush1.msra.mxu0 0.0
    %7135 = vmatprep.subr.mxu0 0.0
    %7136 = vmatpush1.msra.mxu0 0.0
    %7137 = vmatprep.subr.mxu0 0.0
    %7138 = vmatpush1.msra.mxu0 0.0
    %7139 = vmatprep.subr.mxu0 0.0
    %7140 = vmatpush1.msra.mxu0 0.0
    %7141 = vmatprep.subr.mxu0 0.0
    %7142 = vmatpush1.msra.mxu0 0.0
    %7143 = vmatprep.subr.mxu0 0.0
    %7144 = vmatpush1.msra.mxu0 0.0
    %7145 = vmatprep.subr.mxu0 0.0
    %7146 = vmatpush1.msra.mxu0 0.0
    %7147 = vmatprep.subr.mxu0 0.0
    %7148 = vmatpush1.msra.mxu0 0.0
    %7149 = vmatprep.subr.mxu0 0.0
    %7150 = vmatpush1.msra.mxu0 0.0
    %7151 = vmatprep.subr.mxu0 0.0
    %7152 = vmatpush1.msra.mxu0 0.0
    %7153 = vmatprep.subr.mxu0 0.0
    %7154 = vmatpush1.msra.mxu0 0.0
    %7155 = vmatprep.subr.mxu0 0.0
    %7156 = vmatpush1.msra.mxu0 %v3024
    %7157 = vmatprep.subr.mxu0 0.0
    %7158 = vmatpush2.msra.mxu0 0.0
    %7159 = vmatprep.subr.mxu0 0.0
    %7160 = vmatpush2.msra.mxu0 0.0
    %7161 = vmatprep.subr.mxu0 0.0
    %7162 = vmatpush2.msra.mxu0 0.0
    %7163 = vmatprep.subr.mxu0 0.0
    %7164 = vmatpush2.msra.mxu0 0.0
    %7165 = vmatprep.subr.mxu0 0.0
    %7166 = vmatpush2.msra.mxu0 0.0
    %7167 = vmatprep.subr.mxu0 0.0
    %7168 = vmatpush2.msra.mxu0 0.0
    %7169 = vmatprep.subr.mxu0 0.0
    %7170 = vmatpush2.msra.mxu0 0.0
    %7171 = vmatprep.subr.mxu0 0.0
    %7172 = vmatpush2.msra.mxu0 0.0
    %7173 = vmatprep.subr.mxu0 0.0
    %7174 = vmatpush2.msra.mxu0 0.0
    %7175 = vmatprep.subr.mxu0 0.0
    %7176 = vmatpush2.msra.mxu0 0.0
    %7177 = vmatprep.subr.mxu0 0.0
    %7178 = vmatpush2.msra.mxu0 0.0
    %7179 = vmatprep.subr.mxu0 0.0
    %7180 = vmatpush2.msra.mxu0 0.0
    %7181 = vmatprep.subr.mxu0 0.0
    %7182 = vmatpush2.msra.mxu0 0.0
    %7183 = vmatprep.subr.mxu0 0.0
    %7184 = vmatpush2.msra.mxu0 0.0
    %7185 = vmatprep.subr.mxu0 0.0
    %7186 = vmatpush2.msra.mxu0 0.0
    %7187 = vmatprep.subr.mxu0 0.0
    %7188 = vmatpush2.msra.mxu0 0.0
    %7189 = vmatprep.mubr.f32.mxu0 0.0
    %7190 = vmatmul.mubr.f32.gmra.mxu0 %v7123
    %v7191 = vpop.f32.mrf.mxu0
    %v7192 = vadd.f32 0.0, %v7191
    %v7193 = vpop.f32.mrf.mxu0
    %7194 = vdwg.mxu0
    %v7196 = vsel %vm5601, %v5939, 0
    %7198 = vmatprep.subr.mxu0 0.0
    %7199 = vmatpush1.msra.mxu0 0.0
    %7200 = vmatprep.subr.mxu0 0.0
    %7201 = vmatpush1.msra.mxu0 0.0
    %7202 = vmatprep.subr.mxu0 0.0
    %7203 = vmatpush1.msra.mxu0 0.0
    %7204 = vmatprep.subr.mxu0 0.0
    %7205 = vmatpush1.msra.mxu0 0.0
    %7206 = vmatprep.subr.mxu0 0.0
    %7207 = vmatpush1.msra.mxu0 0.0
    %7208 = vmatprep.subr.mxu0 0.0
    %7209 = vmatpush1.msra.mxu0 0.0
    %7210 = vmatprep.subr.mxu0 0.0
    %7211 = vmatpush1.msra.mxu0 0.0
    %7212 = vmatprep.subr.mxu0 0.0
    %7213 = vmatpush1.msra.mxu0 0.0
    %7214 = vmatprep.subr.mxu0 0.0
    %7215 = vmatpush1.msra.mxu0 0.0
    %7216 = vmatprep.subr.mxu0 0.0
    %7217 = vmatpush1.msra.mxu0 0.0
    %7218 = vmatprep.subr.mxu0 0.0
    %7219 = vmatpush1.msra.mxu0 0.0
    %7220 = vmatprep.subr.mxu0 0.0
    %7221 = vmatpush1.msra.mxu0 0.0
    %7222 = vmatprep.subr.mxu0 0.0
    %7223 = vmatpush1.msra.mxu0 0.0
    %7224 = vmatprep.subr.mxu0 0.0
    %7225 = vmatpush1.msra.mxu0 0.0
    %7226 = vmatprep.subr.mxu0 0.0
    %7227 = vmatpush1.msra.mxu0 0.0
    %7228 = vmatprep.subr.mxu0 0.0
    %7229 = vmatpush1.msra.mxu0 %v3025
    %7230 = vmatprep.subr.mxu0 0.0
    %7231 = vmatpush2.msra.mxu0 0.0
    %7232 = vmatprep.subr.mxu0 0.0
    %7233 = vmatpush2.msra.mxu0 0.0
    %7234 = vmatprep.subr.mxu0 0.0
    %7235 = vmatpush2.msra.mxu0 0.0
    %7236 = vmatprep.subr.mxu0 0.0
    %7237 = vmatpush2.msra.mxu0 0.0
    %7238 = vmatprep.subr.mxu0 0.0
    %7239 = vmatpush2.msra.mxu0 0.0
    %7240 = vmatprep.subr.mxu0 0.0
    %7241 = vmatpush2.msra.mxu0 0.0
    %7242 = vmatprep.subr.mxu0 0.0
    %7243 = vmatpush2.msra.mxu0 0.0
    %7244 = vmatprep.subr.mxu0 0.0
    %7245 = vmatpush2.msra.mxu0 0.0
    %7246 = vmatprep.subr.mxu0 0.0
    %7247 = vmatpush2.msra.mxu0 0.0
    %7248 = vmatprep.subr.mxu0 0.0
    %7249 = vmatpush2.msra.mxu0 0.0
    %7250 = vmatprep.subr.mxu0 0.0
    %7251 = vmatpush2.msra.mxu0 0.0
    %7252 = vmatprep.subr.mxu0 0.0
    %7253 = vmatpush2.msra.mxu0 0.0
    %7254 = vmatprep.subr.mxu0 0.0
    %7255 = vmatpush2.msra.mxu0 0.0
    %7256 = vmatprep.subr.mxu0 0.0
    %7257 = vmatpush2.msra.mxu0 0.0
    %7258 = vmatprep.subr.mxu0 0.0
    %7259 = vmatpush2.msra.mxu0 0.0
    %7260 = vmatprep.subr.mxu0 0.0
    %7261 = vmatpush2.msra.mxu0 0.0
    %7262 = vmatprep.mubr.f32.mxu0 0.0
    %7263 = vmatmul.mubr.f32.gmra.mxu0 %v7196
    %v7264 = vpop.f32.mrf.mxu0
    %v7265 = vadd.f32 0.0, %v7264
    %v7266 = vpop.f32.mrf.mxu0
    %7267 = vdwg.mxu0
    %v7269 = vsel %vm5601, %v5940, 0
    %7271 = vmatprep.subr.mxu0 0.0
    %7272 = vmatpush1.msra.mxu0 0.0
    %7273 = vmatprep.subr.mxu0 0.0
    %7274 = vmatpush1.msra.mxu0 0.0
    %7275 = vmatprep.subr.mxu0 0.0
    %7276 = vmatpush1.msra.mxu0 0.0
    %7277 = vmatprep.subr.mxu0 0.0
    %7278 = vmatpush1.msra.mxu0 0.0
    %7279 = vmatprep.subr.mxu0 0.0
    %7280 = vmatpush1.msra.mxu0 0.0
    %7281 = vmatprep.subr.mxu0 0.0
    %7282 = vmatpush1.msra.mxu0 0.0
    %7283 = vmatprep.subr.mxu0 0.0
    %7284 = vmatpush1.msra.mxu0 0.0
    %7285 = vmatprep.subr.mxu0 0.0
    %7286 = vmatpush1.msra.mxu0 0.0
    %7287 = vmatprep.subr.mxu0 0.0
    %7288 = vmatpush1.msra.mxu0 0.0
    %7289 = vmatprep.subr.mxu0 0.0
    %7290 = vmatpush1.msra.mxu0 0.0
    %7291 = vmatprep.subr.mxu0 0.0
    %7292 = vmatpush1.msra.mxu0 0.0
    %7293 = vmatprep.subr.mxu0 0.0
    %7294 = vmatpush1.msra.mxu0 0.0
    %7295 = vmatprep.subr.mxu0 0.0
    %7296 = vmatpush1.msra.mxu0 0.0
    %7297 = vmatprep.subr.mxu0 0.0
    %7298 = vmatpush1.msra.mxu0 0.0
    %7299 = vmatprep.subr.mxu0 0.0
    %7300 = vmatpush1.msra.mxu0 0.0
    %7301 = vmatprep.subr.mxu0 0.0
    %7302 = vmatpush1.msra.mxu0 %v3026
    %7303 = vmatprep.subr.mxu0 0.0
    %7304 = vmatpush2.msra.mxu0 0.0
    %7305 = vmatprep.subr.mxu0 0.0
    %7306 = vmatpush2.msra.mxu0 0.0
    %7307 = vmatprep.subr.mxu0 0.0
    %7308 = vmatpush2.msra.mxu0 0.0
    %7309 = vmatprep.subr.mxu0 0.0
    %7310 = vmatpush2.msra.mxu0 0.0
    %7311 = vmatprep.subr.mxu0 0.0
    %7312 = vmatpush2.msra.mxu0 0.0
    %7313 = vmatprep.subr.mxu0 0.0
    %7314 = vmatpush2.msra.mxu0 0.0
    %7315 = vmatprep.subr.mxu0 0.0
    %7316 = vmatpush2.msra.mxu0 0.0
    %7317 = vmatprep.subr.mxu0 0.0
    %7318 = vmatpush2.msra.mxu0 0.0
    %7319 = vmatprep.subr.mxu0 0.0
    %7320 = vmatpush2.msra.mxu0 0.0
    %7321 = vmatprep.subr.mxu0 0.0
    %7322 = vmatpush2.msra.mxu0 0.0
    %7323 = vmatprep.subr.mxu0 0.0
    %7324 = vmatpush2.msra.mxu0 0.0
    %7325 = vmatprep.subr.mxu0 0.0
    %7326 = vmatpush2.msra.mxu0 0.0
    %7327 = vmatprep.subr.mxu0 0.0
    %7328 = vmatpush2.msra.mxu0 0.0
    %7329 = vmatprep.subr.mxu0 0.0
    %7330 = vmatpush2.msra.mxu0 0.0
    %7331 = vmatprep.subr.mxu0 0.0
    %7332 = vmatpush2.msra.mxu0 0.0
    %7333 = vmatprep.subr.mxu0 0.0
    %7334 = vmatpush2.msra.mxu0 0.0
    %7335 = vmatprep.mubr.f32.mxu0 0.0
    %7336 = vmatmul.mubr.f32.gmra.mxu0 %v7269
    %v7337 = vpop.f32.mrf.mxu0
    %v7338 = vadd.f32 0.0, %v7337
    %v7339 = vpop.f32.mrf.mxu0
    %7340 = vdwg.mxu0
    %v7342 = vsel %vm5601, %v5941, 0
    %7344 = vmatprep.subr.mxu0 0.0
    %7345 = vmatpush1.msra.mxu0 0.0
    %7346 = vmatprep.subr.mxu0 0.0
    %7347 = vmatpush1.msra.mxu0 0.0
    %7348 = vmatprep.subr.mxu0 0.0
    %7349 = vmatpush1.msra.mxu0 0.0
    %7350 = vmatprep.subr.mxu0 0.0
    %7351 = vmatpush1.msra.mxu0 0.0
    %7352 = vmatprep.subr.mxu0 0.0
    %7353 = vmatpush1.msra.mxu0 0.0
    %7354 = vmatprep.subr.mxu0 0.0
    %7355 = vmatpush1.msra.mxu0 0.0
    %7356 = vmatprep.subr.mxu0 0.0
    %7357 = vmatpush1.msra.mxu0 0.0
    %7358 = vmatprep.subr.mxu0 0.0
    %7359 = vmatpush1.msra.mxu0 0.0
    %7360 = vmatprep.subr.mxu0 0.0
    %7361 = vmatpush1.msra.mxu0 0.0
    %7362 = vmatprep.subr.mxu0 0.0
    %7363 = vmatpush1.msra.mxu0 0.0
    %7364 = vmatprep.subr.mxu0 0.0
    %7365 = vmatpush1.msra.mxu0 0.0
    %7366 = vmatprep.subr.mxu0 0.0
    %7367 = vmatpush1.msra.mxu0 0.0
    %7368 = vmatprep.subr.mxu0 0.0
    %7369 = vmatpush1.msra.mxu0 0.0
    %7370 = vmatprep.subr.mxu0 0.0
    %7371 = vmatpush1.msra.mxu0 0.0
    %7372 = vmatprep.subr.mxu0 0.0
    %7373 = vmatpush1.msra.mxu0 0.0
    %7374 = vmatprep.subr.mxu0 0.0
    %7375 = vmatpush1.msra.mxu0 %v3027
    %7376 = vmatprep.subr.mxu0 0.0
    %7377 = vmatpush2.msra.mxu0 0.0
    %7378 = vmatprep.subr.mxu0 0.0
    %7379 = vmatpush2.msra.mxu0 0.0
    %7380 = vmatprep.subr.mxu0 0.0
    %7381 = vmatpush2.msra.mxu0 0.0
    %7382 = vmatprep.subr.mxu0 0.0
    %7383 = vmatpush2.msra.mxu0 0.0
    %7384 = vmatprep.subr.mxu0 0.0
    %7385 = vmatpush2.msra.mxu0 0.0
    %7386 = vmatprep.subr.mxu0 0.0
    %7387 = vmatpush2.msra.mxu0 0.0
    %7388 = vmatprep.subr.mxu0 0.0
    %7389 = vmatpush2.msra.mxu0 0.0
    %7390 = vmatprep.subr.mxu0 0.0
    %7391 = vmatpush2.msra.mxu0 0.0
    %7392 = vmatprep.subr.mxu0 0.0
    %7393 = vmatpush2.msra.mxu0 0.0
    %7394 = vmatprep.subr.mxu0 0.0
    %7395 = vmatpush2.msra.mxu0 0.0
    %7396 = vmatprep.subr.mxu0 0.0
    %7397 = vmatpush2.msra.mxu0 0.0
    %7398 = vmatprep.subr.mxu0 0.0
    %7399 = vmatpush2.msra.mxu0 0.0
    %7400 = vmatprep.subr.mxu0 0.0
    %7401 = vmatpush2.msra.mxu0 0.0
    %7402 = vmatprep.subr.mxu0 0.0
    %7403 = vmatpush2.msra.mxu0 0.0
    %7404 = vmatprep.subr.mxu0 0.0
    %7405 = vmatpush2.msra.mxu0 0.0
    %7406 = vmatprep.subr.mxu0 0.0
    %7407 = vmatpush2.msra.mxu0 0.0
    %7408 = vmatprep.mubr.f32.mxu0 0.0
    %7409 = vmatmul.mubr.f32.gmra.mxu0 %v7342
    %v7410 = vpop.f32.mrf.mxu0
    %v7411 = vadd.f32 0.0, %v7410
    %v7412 = vpop.f32.mrf.mxu0
    %7413 = vdwg.mxu0
    %v7415 = vsel %vm5601, %v5942, 0
    %7417 = vmatprep.subr.mxu0 0.0
    %7418 = vmatpush1.msra.mxu0 0.0
    %7419 = vmatprep.subr.mxu0 0.0
    %7420 = vmatpush1.msra.mxu0 0.0
    %7421 = vmatprep.subr.mxu0 0.0
    %7422 = vmatpush1.msra.mxu0 0.0
    %7423 = vmatprep.subr.mxu0 0.0
    %7424 = vmatpush1.msra.mxu0 0.0
    %7425 = vmatprep.subr.mxu0 0.0
    %7426 = vmatpush1.msra.mxu0 0.0
    %7427 = vmatprep.subr.mxu0 0.0
    %7428 = vmatpush1.msra.mxu0 0.0
    %7429 = vmatprep.subr.mxu0 0.0
    %7430 = vmatpush1.msra.mxu0 0.0
    %7431 = vmatprep.subr.mxu0 0.0
    %7432 = vmatpush1.msra.mxu0 0.0
    %7433 = vmatprep.subr.mxu0 0.0
    %7434 = vmatpush1.msra.mxu0 0.0
    %7435 = vmatprep.subr.mxu0 0.0
    %7436 = vmatpush1.msra.mxu0 0.0
    %7437 = vmatprep.subr.mxu0 0.0
    %7438 = vmatpush1.msra.mxu0 0.0
    %7439 = vmatprep.subr.mxu0 0.0
    %7440 = vmatpush1.msra.mxu0 0.0
    %7441 = vmatprep.subr.mxu0 0.0
    %7442 = vmatpush1.msra.mxu0 0.0
    %7443 = vmatprep.subr.mxu0 0.0
    %7444 = vmatpush1.msra.mxu0 0.0
    %7445 = vmatprep.subr.mxu0 0.0
    %7446 = vmatpush1.msra.mxu0 0.0
    %7447 = vmatprep.subr.mxu0 0.0
    %7448 = vmatpush1.msra.mxu0 %v3028
    %7449 = vmatprep.subr.mxu0 0.0
    %7450 = vmatpush2.msra.mxu0 0.0
    %7451 = vmatprep.subr.mxu0 0.0
    %7452 = vmatpush2.msra.mxu0 0.0
    %7453 = vmatprep.subr.mxu0 0.0
    %7454 = vmatpush2.msra.mxu0 0.0
    %7455 = vmatprep.subr.mxu0 0.0
    %7456 = vmatpush2.msra.mxu0 0.0
    %7457 = vmatprep.subr.mxu0 0.0
    %7458 = vmatpush2.msra.mxu0 0.0
    %7459 = vmatprep.subr.mxu0 0.0
    %7460 = vmatpush2.msra.mxu0 0.0
    %7461 = vmatprep.subr.mxu0 0.0
    %7462 = vmatpush2.msra.mxu0 0.0
    %7463 = vmatprep.subr.mxu0 0.0
    %7464 = vmatpush2.msra.mxu0 0.0
    %7465 = vmatprep.subr.mxu0 0.0
    %7466 = vmatpush2.msra.mxu0 0.0
    %7467 = vmatprep.subr.mxu0 0.0
    %7468 = vmatpush2.msra.mxu0 0.0
    %7469 = vmatprep.subr.mxu0 0.0
    %7470 = vmatpush2.msra.mxu0 0.0
    %7471 = vmatprep.subr.mxu0 0.0
    %7472 = vmatpush2.msra.mxu0 0.0
    %7473 = vmatprep.subr.mxu0 0.0
    %7474 = vmatpush2.msra.mxu0 0.0
    %7475 = vmatprep.subr.mxu0 0.0
    %7476 = vmatpush2.msra.mxu0 0.0
    %7477 = vmatprep.subr.mxu0 0.0
    %7478 = vmatpush2.msra.mxu0 0.0
    %7479 = vmatprep.subr.mxu0 0.0
    %7480 = vmatpush2.msra.mxu0 0.0
    %7481 = vmatprep.mubr.f32.mxu0 0.0
    %7482 = vmatmul.mubr.f32.gmra.mxu0 %v7415
    %v7483 = vpop.f32.mrf.mxu0
    %v7484 = vadd.f32 0.0, %v7483
    %v7485 = vpop.f32.mrf.mxu0
    %7486 = vdwg.mxu0
    %v7488 = vsel %vm5601, %v5943, 0
    %7490 = vmatprep.subr.mxu0 0.0
    %7491 = vmatpush1.msra.mxu0 0.0
    %7492 = vmatprep.subr.mxu0 0.0
    %7493 = vmatpush1.msra.mxu0 0.0
    %7494 = vmatprep.subr.mxu0 0.0
    %7495 = vmatpush1.msra.mxu0 0.0
    %7496 = vmatprep.subr.mxu0 0.0
    %7497 = vmatpush1.msra.mxu0 0.0
    %7498 = vmatprep.subr.mxu0 0.0
    %7499 = vmatpush1.msra.mxu0 0.0
    %7500 = vmatprep.subr.mxu0 0.0
    %7501 = vmatpush1.msra.mxu0 0.0
    %7502 = vmatprep.subr.mxu0 0.0
    %7503 = vmatpush1.msra.mxu0 0.0
    %7504 = vmatprep.subr.mxu0 0.0
    %7505 = vmatpush1.msra.mxu0 0.0
    %7506 = vmatprep.subr.mxu0 0.0
    %7507 = vmatpush1.msra.mxu0 0.0
    %7508 = vmatprep.subr.mxu0 0.0
    %7509 = vmatpush1.msra.mxu0 0.0
    %7510 = vmatprep.subr.mxu0 0.0
    %7511 = vmatpush1.msra.mxu0 0.0
    %7512 = vmatprep.subr.mxu0 0.0
    %7513 = vmatpush1.msra.mxu0 0.0
    %7514 = vmatprep.subr.mxu0 0.0
    %7515 = vmatpush1.msra.mxu0 0.0
    %7516 = vmatprep.subr.mxu0 0.0
    %7517 = vmatpush1.msra.mxu0 0.0
    %7518 = vmatprep.subr.mxu0 0.0
    %7519 = vmatpush1.msra.mxu0 0.0
    %7520 = vmatprep.subr.mxu0 0.0
    %7521 = vmatpush1.msra.mxu0 %v3029
    %7522 = vmatprep.subr.mxu0 0.0
    %7523 = vmatpush2.msra.mxu0 0.0
    %7524 = vmatprep.subr.mxu0 0.0
    %7525 = vmatpush2.msra.mxu0 0.0
    %7526 = vmatprep.subr.mxu0 0.0
    %7527 = vmatpush2.msra.mxu0 0.0
    %7528 = vmatprep.subr.mxu0 0.0
    %7529 = vmatpush2.msra.mxu0 0.0
    %7530 = vmatprep.subr.mxu0 0.0
    %7531 = vmatpush2.msra.mxu0 0.0
    %7532 = vmatprep.subr.mxu0 0.0
    %7533 = vmatpush2.msra.mxu0 0.0
    %7534 = vmatprep.subr.mxu0 0.0
    %7535 = vmatpush2.msra.mxu0 0.0
    %7536 = vmatprep.subr.mxu0 0.0
    %7537 = vmatpush2.msra.mxu0 0.0
    %7538 = vmatprep.subr.mxu0 0.0
    %7539 = vmatpush2.msra.mxu0 0.0
    %7540 = vmatprep.subr.mxu0 0.0
    %7541 = vmatpush2.msra.mxu0 0.0
    %7542 = vmatprep.subr.mxu0 0.0
    %7543 = vmatpush2.msra.mxu0 0.0
    %7544 = vmatprep.subr.mxu0 0.0
    %7545 = vmatpush2.msra.mxu0 0.0
    %7546 = vmatprep.subr.mxu0 0.0
    %7547 = vmatpush2.msra.mxu0 0.0
    %7548 = vmatprep.subr.mxu0 0.0
    %7549 = vmatpush2.msra.mxu0 0.0
    %7550 = vmatprep.subr.mxu0 0.0
    %7551 = vmatpush2.msra.mxu0 0.0
    %7552 = vmatprep.subr.mxu0 0.0
    %7553 = vmatpush2.msra.mxu0 0.0
    %7554 = vmatprep.mubr.f32.mxu0 0.0
    %7555 = vmatmul.mubr.f32.gmra.mxu0 %v7488
    %v7556 = vpop.f32.mrf.mxu0
    %v7557 = vadd.f32 0.0, %v7556
    %v7558 = vpop.f32.mrf.mxu0
    %7559 = vdwg.mxu0
    %v7561 = vsel %vm5601, %v5944, 0
    %7563 = vmatprep.subr.mxu0 0.0
    %7564 = vmatpush1.msra.mxu0 0.0
    %7565 = vmatprep.subr.mxu0 0.0
    %7566 = vmatpush1.msra.mxu0 0.0
    %7567 = vmatprep.subr.mxu0 0.0
    %7568 = vmatpush1.msra.mxu0 0.0
    %7569 = vmatprep.subr.mxu0 0.0
    %7570 = vmatpush1.msra.mxu0 0.0
    %7571 = vmatprep.subr.mxu0 0.0
    %7572 = vmatpush1.msra.mxu0 0.0
    %7573 = vmatprep.subr.mxu0 0.0
    %7574 = vmatpush1.msra.mxu0 0.0
    %7575 = vmatprep.subr.mxu0 0.0
    %7576 = vmatpush1.msra.mxu0 0.0
    %7577 = vmatprep.subr.mxu0 0.0
    %7578 = vmatpush1.msra.mxu0 0.0
    %7579 = vmatprep.subr.mxu0 0.0
    %7580 = vmatpush1.msra.mxu0 0.0
    %7581 = vmatprep.subr.mxu0 0.0
    %7582 = vmatpush1.msra.mxu0 0.0
    %7583 = vmatprep.subr.mxu0 0.0
    %7584 = vmatpush1.msra.mxu0 0.0
    %7585 = vmatprep.subr.mxu0 0.0
    %7586 = vmatpush1.msra.mxu0 0.0
    %7587 = vmatprep.subr.mxu0 0.0
    %7588 = vmatpush1.msra.mxu0 0.0
    %7589 = vmatprep.subr.mxu0 0.0
    %7590 = vmatpush1.msra.mxu0 0.0
    %7591 = vmatprep.subr.mxu0 0.0
    %7592 = vmatpush1.msra.mxu0 0.0
    %7593 = vmatprep.subr.mxu0 0.0
    %7594 = vmatpush1.msra.mxu0 %v3030
    %7595 = vmatprep.subr.mxu0 0.0
    %7596 = vmatpush2.msra.mxu0 0.0
    %7597 = vmatprep.subr.mxu0 0.0
    %7598 = vmatpush2.msra.mxu0 0.0
    %7599 = vmatprep.subr.mxu0 0.0
    %7600 = vmatpush2.msra.mxu0 0.0
    %7601 = vmatprep.subr.mxu0 0.0
    %7602 = vmatpush2.msra.mxu0 0.0
    %7603 = vmatprep.subr.mxu0 0.0
    %7604 = vmatpush2.msra.mxu0 0.0
    %7605 = vmatprep.subr.mxu0 0.0
    %7606 = vmatpush2.msra.mxu0 0.0
    %7607 = vmatprep.subr.mxu0 0.0
    %7608 = vmatpush2.msra.mxu0 0.0
    %7609 = vmatprep.subr.mxu0 0.0
    %7610 = vmatpush2.msra.mxu0 0.0
    %7611 = vmatprep.subr.mxu0 0.0
    %7612 = vmatpush2.msra.mxu0 0.0
    %7613 = vmatprep.subr.mxu0 0.0
    %7614 = vmatpush2.msra.mxu0 0.0
    %7615 = vmatprep.subr.mxu0 0.0
    %7616 = vmatpush2.msra.mxu0 0.0
    %7617 = vmatprep.subr.mxu0 0.0
    %7618 = vmatpush2.msra.mxu0 0.0
    %7619 = vmatprep.subr.mxu0 0.0
    %7620 = vmatpush2.msra.mxu0 0.0
    %7621 = vmatprep.subr.mxu0 0.0
    %7622 = vmatpush2.msra.mxu0 0.0
    %7623 = vmatprep.subr.mxu0 0.0
    %7624 = vmatpush2.msra.mxu0 0.0
    %7625 = vmatprep.subr.mxu0 0.0
    %7626 = vmatpush2.msra.mxu0 0.0
    %7627 = vmatprep.mubr.f32.mxu0 0.0
    %7628 = vmatmul.mubr.f32.gmra.mxu0 %v7561
    %v7629 = vpop.f32.mrf.mxu0
    %v7630 = vadd.f32 0.0, %v7629
    %v7631 = vpop.f32.mrf.mxu0
    %7632 = vdwg.mxu0
    %v7634 = vsel %vm5601, %v5945, 0
    %7636 = vmatprep.subr.mxu0 0.0
    %7637 = vmatpush1.msra.mxu0 0.0
    %7638 = vmatprep.subr.mxu0 0.0
    %7639 = vmatpush1.msra.mxu0 0.0
    %7640 = vmatprep.subr.mxu0 0.0
    %7641 = vmatpush1.msra.mxu0 0.0
    %7642 = vmatprep.subr.mxu0 0.0
    %7643 = vmatpush1.msra.mxu0 0.0
    %7644 = vmatprep.subr.mxu0 0.0
    %7645 = vmatpush1.msra.mxu0 0.0
    %7646 = vmatprep.subr.mxu0 0.0
    %7647 = vmatpush1.msra.mxu0 0.0
    %7648 = vmatprep.subr.mxu0 0.0
    %7649 = vmatpush1.msra.mxu0 0.0
    %7650 = vmatprep.subr.mxu0 0.0
    %7651 = vmatpush1.msra.mxu0 0.0
    %7652 = vmatprep.subr.mxu0 0.0
    %7653 = vmatpush1.msra.mxu0 0.0
    %7654 = vmatprep.subr.mxu0 0.0
    %7655 = vmatpush1.msra.mxu0 0.0
    %7656 = vmatprep.subr.mxu0 0.0
    %7657 = vmatpush1.msra.mxu0 0.0
    %7658 = vmatprep.subr.mxu0 0.0
    %7659 = vmatpush1.msra.mxu0 0.0
    %7660 = vmatprep.subr.mxu0 0.0
    %7661 = vmatpush1.msra.mxu0 0.0
    %7662 = vmatprep.subr.mxu0 0.0
    %7663 = vmatpush1.msra.mxu0 0.0
    %7664 = vmatprep.subr.mxu0 0.0
    %7665 = vmatpush1.msra.mxu0 0.0
    %7666 = vmatprep.subr.mxu0 0.0
    %7667 = vmatpush1.msra.mxu0 %v3031
    %7668 = vmatprep.subr.mxu0 0.0
    %7669 = vmatpush2.msra.mxu0 0.0
    %7670 = vmatprep.subr.mxu0 0.0
    %7671 = vmatpush2.msra.mxu0 0.0
    %7672 = vmatprep.subr.mxu0 0.0
    %7673 = vmatpush2.msra.mxu0 0.0
    %7674 = vmatprep.subr.mxu0 0.0
    %7675 = vmatpush2.msra.mxu0 0.0
    %7676 = vmatprep.subr.mxu0 0.0
    %7677 = vmatpush2.msra.mxu0 0.0
    %7678 = vmatprep.subr.mxu0 0.0
    %7679 = vmatpush2.msra.mxu0 0.0
    %7680 = vmatprep.subr.mxu0 0.0
    %7681 = vmatpush2.msra.mxu0 0.0
    %7682 = vmatprep.subr.mxu0 0.0
    %7683 = vmatpush2.msra.mxu0 0.0
    %7684 = vmatprep.subr.mxu0 0.0
    %7685 = vmatpush2.msra.mxu0 0.0
    %7686 = vmatprep.subr.mxu0 0.0
    %7687 = vmatpush2.msra.mxu0 0.0
    %7688 = vmatprep.subr.mxu0 0.0
    %7689 = vmatpush2.msra.mxu0 0.0
    %7690 = vmatprep.subr.mxu0 0.0
    %7691 = vmatpush2.msra.mxu0 0.0
    %7692 = vmatprep.subr.mxu0 0.0
    %7693 = vmatpush2.msra.mxu0 0.0
    %7694 = vmatprep.subr.mxu0 0.0
    %7695 = vmatpush2.msra.mxu0 0.0
    %7696 = vmatprep.subr.mxu0 0.0
    %7697 = vmatpush2.msra.mxu0 0.0
    %7698 = vmatprep.subr.mxu0 0.0
    %7699 = vmatpush2.msra.mxu0 0.0
    %7700 = vmatprep.mubr.f32.mxu0 0.0
    %7701 = vmatmul.mubr.f32.gmra.mxu0 %v7634
    %v7702 = vpop.f32.mrf.mxu0
    %v7703 = vadd.f32 0.0, %v7702
    %v7704 = vpop.f32.mrf.mxu0
    %7705 = vdwg.mxu0
    %v7707 = vsel %vm5601, %v5946, 0
    %7709 = vmatprep.subr.mxu0 0.0
    %7710 = vmatpush1.msra.mxu0 0.0
    %7711 = vmatprep.subr.mxu0 0.0
    %7712 = vmatpush1.msra.mxu0 0.0
    %7713 = vmatprep.subr.mxu0 0.0
    %7714 = vmatpush1.msra.mxu0 0.0
    %7715 = vmatprep.subr.mxu0 0.0
    %7716 = vmatpush1.msra.mxu0 0.0
    %7717 = vmatprep.subr.mxu0 0.0
    %7718 = vmatpush1.msra.mxu0 0.0
    %7719 = vmatprep.subr.mxu0 0.0
    %7720 = vmatpush1.msra.mxu0 0.0
    %7721 = vmatprep.subr.mxu0 0.0
    %7722 = vmatpush1.msra.mxu0 0.0
    %7723 = vmatprep.subr.mxu0 0.0
    %7724 = vmatpush1.msra.mxu0 0.0
    %7725 = vmatprep.subr.mxu0 0.0
    %7726 = vmatpush1.msra.mxu0 0.0
    %7727 = vmatprep.subr.mxu0 0.0
    %7728 = vmatpush1.msra.mxu0 0.0
    %7729 = vmatprep.subr.mxu0 0.0
    %7730 = vmatpush1.msra.mxu0 0.0
    %7731 = vmatprep.subr.mxu0 0.0
    %7732 = vmatpush1.msra.mxu0 0.0
    %7733 = vmatprep.subr.mxu0 0.0
    %7734 = vmatpush1.msra.mxu0 0.0
    %7735 = vmatprep.subr.mxu0 0.0
    %7736 = vmatpush1.msra.mxu0 0.0
    %7737 = vmatprep.subr.mxu0 0.0
    %7738 = vmatpush1.msra.mxu0 0.0
    %7739 = vmatprep.subr.mxu0 0.0
    %7740 = vmatpush1.msra.mxu0 %v3160
    %7741 = vmatprep.subr.mxu0 0.0
    %7742 = vmatpush2.msra.mxu0 0.0
    %7743 = vmatprep.subr.mxu0 0.0
    %7744 = vmatpush2.msra.mxu0 0.0
    %7745 = vmatprep.subr.mxu0 0.0
    %7746 = vmatpush2.msra.mxu0 0.0
    %7747 = vmatprep.subr.mxu0 0.0
    %7748 = vmatpush2.msra.mxu0 0.0
    %7749 = vmatprep.subr.mxu0 0.0
    %7750 = vmatpush2.msra.mxu0 0.0
    %7751 = vmatprep.subr.mxu0 0.0
    %7752 = vmatpush2.msra.mxu0 0.0
    %7753 = vmatprep.subr.mxu0 0.0
    %7754 = vmatpush2.msra.mxu0 0.0
    %7755 = vmatprep.subr.mxu0 0.0
    %7756 = vmatpush2.msra.mxu0 0.0
    %7757 = vmatprep.subr.mxu0 0.0
    %7758 = vmatpush2.msra.mxu0 0.0
    %7759 = vmatprep.subr.mxu0 0.0
    %7760 = vmatpush2.msra.mxu0 0.0
    %7761 = vmatprep.subr.mxu0 0.0
    %7762 = vmatpush2.msra.mxu0 0.0
    %7763 = vmatprep.subr.mxu0 0.0
    %7764 = vmatpush2.msra.mxu0 0.0
    %7765 = vmatprep.subr.mxu0 0.0
    %7766 = vmatpush2.msra.mxu0 0.0
    %7767 = vmatprep.subr.mxu0 0.0
    %7768 = vmatpush2.msra.mxu0 0.0
    %7769 = vmatprep.subr.mxu0 0.0
    %7770 = vmatpush2.msra.mxu0 0.0
    %7771 = vmatprep.subr.mxu0 0.0
    %7772 = vmatpush2.msra.mxu0 0.0
    %7773 = vmatprep.mubr.f32.mxu0 0.0
    %7774 = vmatmul.mubr.f32.gmra.mxu0 %v7707
    %v7775 = vpop.f32.mrf.mxu0
    %v7776 = vadd.f32 0.0, %v7775
    %v7777 = vpop.f32.mrf.mxu0
    %7778 = vdwg.mxu0
    %v7780 = vsel %vm5601, %v5947, 0
    %7782 = vmatprep.subr.mxu0 0.0
    %7783 = vmatpush1.msra.mxu0 0.0
    %7784 = vmatprep.subr.mxu0 0.0
    %7785 = vmatpush1.msra.mxu0 0.0
    %7786 = vmatprep.subr.mxu0 0.0
    %7787 = vmatpush1.msra.mxu0 0.0
    %7788 = vmatprep.subr.mxu0 0.0
    %7789 = vmatpush1.msra.mxu0 0.0
    %7790 = vmatprep.subr.mxu0 0.0
    %7791 = vmatpush1.msra.mxu0 0.0
    %7792 = vmatprep.subr.mxu0 0.0
    %7793 = vmatpush1.msra.mxu0 0.0
    %7794 = vmatprep.subr.mxu0 0.0
    %7795 = vmatpush1.msra.mxu0 0.0
    %7796 = vmatprep.subr.mxu0 0.0
    %7797 = vmatpush1.msra.mxu0 0.0
    %7798 = vmatprep.subr.mxu0 0.0
    %7799 = vmatpush1.msra.mxu0 0.0
    %7800 = vmatprep.subr.mxu0 0.0
    %7801 = vmatpush1.msra.mxu0 0.0
    %7802 = vmatprep.subr.mxu0 0.0
    %7803 = vmatpush1.msra.mxu0 0.0
    %7804 = vmatprep.subr.mxu0 0.0
    %7805 = vmatpush1.msra.mxu0 0.0
    %7806 = vmatprep.subr.mxu0 0.0
    %7807 = vmatpush1.msra.mxu0 0.0
    %7808 = vmatprep.subr.mxu0 0.0
    %7809 = vmatpush1.msra.mxu0 0.0
    %7810 = vmatprep.subr.mxu0 0.0
    %7811 = vmatpush1.msra.mxu0 0.0
    %7812 = vmatprep.subr.mxu0 0.0
    %7813 = vmatpush1.msra.mxu0 %v3161
    %7814 = vmatprep.subr.mxu0 0.0
    %7815 = vmatpush2.msra.mxu0 0.0
    %7816 = vmatprep.subr.mxu0 0.0
    %7817 = vmatpush2.msra.mxu0 0.0
    %7818 = vmatprep.subr.mxu0 0.0
    %7819 = vmatpush2.msra.mxu0 0.0
    %7820 = vmatprep.subr.mxu0 0.0
    %7821 = vmatpush2.msra.mxu0 0.0
    %7822 = vmatprep.subr.mxu0 0.0
    %7823 = vmatpush2.msra.mxu0 0.0
    %7824 = vmatprep.subr.mxu0 0.0
    %7825 = vmatpush2.msra.mxu0 0.0
    %7826 = vmatprep.subr.mxu0 0.0
    %7827 = vmatpush2.msra.mxu0 0.0
    %7828 = vmatprep.subr.mxu0 0.0
    %7829 = vmatpush2.msra.mxu0 0.0
    %7830 = vmatprep.subr.mxu0 0.0
    %7831 = vmatpush2.msra.mxu0 0.0
    %7832 = vmatprep.subr.mxu0 0.0
    %7833 = vmatpush2.msra.mxu0 0.0
    %7834 = vmatprep.subr.mxu0 0.0
    %7835 = vmatpush2.msra.mxu0 0.0
    %7836 = vmatprep.subr.mxu0 0.0
    %7837 = vmatpush2.msra.mxu0 0.0
    %7838 = vmatprep.subr.mxu0 0.0
    %7839 = vmatpush2.msra.mxu0 0.0
    %7840 = vmatprep.subr.mxu0 0.0
    %7841 = vmatpush2.msra.mxu0 0.0
    %7842 = vmatprep.subr.mxu0 0.0
    %7843 = vmatpush2.msra.mxu0 0.0
    %7844 = vmatprep.subr.mxu0 0.0
    %7845 = vmatpush2.msra.mxu0 0.0
    %7846 = vmatprep.mubr.f32.mxu0 0.0
    %7847 = vmatmul.mubr.f32.gmra.mxu0 %v7780
    %v7848 = vpop.f32.mrf.mxu0
    %v7849 = vadd.f32 0.0, %v7848
    %v7850 = vpop.f32.mrf.mxu0
    %7851 = vdwg.mxu0
    %v7853 = vsel %vm5601, %v5948, 0
    %7855 = vmatprep.subr.mxu0 0.0
    %7856 = vmatpush1.msra.mxu0 0.0
    %7857 = vmatprep.subr.mxu0 0.0
    %7858 = vmatpush1.msra.mxu0 0.0
    %7859 = vmatprep.subr.mxu0 0.0
    %7860 = vmatpush1.msra.mxu0 0.0
    %7861 = vmatprep.subr.mxu0 0.0
    %7862 = vmatpush1.msra.mxu0 0.0
    %7863 = vmatprep.subr.mxu0 0.0
    %7864 = vmatpush1.msra.mxu0 0.0
    %7865 = vmatprep.subr.mxu0 0.0
    %7866 = vmatpush1.msra.mxu0 0.0
    %7867 = vmatprep.subr.mxu0 0.0
    %7868 = vmatpush1.msra.mxu0 0.0
    %7869 = vmatprep.subr.mxu0 0.0
    %7870 = vmatpush1.msra.mxu0 0.0
    %7871 = vmatprep.subr.mxu0 0.0
    %7872 = vmatpush1.msra.mxu0 0.0
    %7873 = vmatprep.subr.mxu0 0.0
    %7874 = vmatpush1.msra.mxu0 0.0
    %7875 = vmatprep.subr.mxu0 0.0
    %7876 = vmatpush1.msra.mxu0 0.0
    %7877 = vmatprep.subr.mxu0 0.0
    %7878 = vmatpush1.msra.mxu0 0.0
    %7879 = vmatprep.subr.mxu0 0.0
    %7880 = vmatpush1.msra.mxu0 0.0
    %7881 = vmatprep.subr.mxu0 0.0
    %7882 = vmatpush1.msra.mxu0 0.0
    %7883 = vmatprep.subr.mxu0 0.0
    %7884 = vmatpush1.msra.mxu0 0.0
    %7885 = vmatprep.subr.mxu0 0.0
    %7886 = vmatpush1.msra.mxu0 %v3162
    %7887 = vmatprep.subr.mxu0 0.0
    %7888 = vmatpush2.msra.mxu0 0.0
    %7889 = vmatprep.subr.mxu0 0.0
    %7890 = vmatpush2.msra.mxu0 0.0
    %7891 = vmatprep.subr.mxu0 0.0
    %7892 = vmatpush2.msra.mxu0 0.0
    %7893 = vmatprep.subr.mxu0 0.0
    %7894 = vmatpush2.msra.mxu0 0.0
    %7895 = vmatprep.subr.mxu0 0.0
    %7896 = vmatpush2.msra.mxu0 0.0
    %7897 = vmatprep.subr.mxu0 0.0
    %7898 = vmatpush2.msra.mxu0 0.0
    %7899 = vmatprep.subr.mxu0 0.0
    %7900 = vmatpush2.msra.mxu0 0.0
    %7901 = vmatprep.subr.mxu0 0.0
    %7902 = vmatpush2.msra.mxu0 0.0
    %7903 = vmatprep.subr.mxu0 0.0
    %7904 = vmatpush2.msra.mxu0 0.0
    %7905 = vmatprep.subr.mxu0 0.0
    %7906 = vmatpush2.msra.mxu0 0.0
    %7907 = vmatprep.subr.mxu0 0.0
    %7908 = vmatpush2.msra.mxu0 0.0
    %7909 = vmatprep.subr.mxu0 0.0
    %7910 = vmatpush2.msra.mxu0 0.0
    %7911 = vmatprep.subr.mxu0 0.0
    %7912 = vmatpush2.msra.mxu0 0.0
    %7913 = vmatprep.subr.mxu0 0.0
    %7914 = vmatpush2.msra.mxu0 0.0
    %7915 = vmatprep.subr.mxu0 0.0
    %7916 = vmatpush2.msra.mxu0 0.0
    %7917 = vmatprep.subr.mxu0 0.0
    %7918 = vmatpush2.msra.mxu0 0.0
    %7919 = vmatprep.mubr.f32.mxu0 0.0
    %7920 = vmatmul.mubr.f32.gmra.mxu0 %v7853
    %v7921 = vpop.f32.mrf.mxu0
    %v7922 = vadd.f32 0.0, %v7921
    %v7923 = vpop.f32.mrf.mxu0
    %7924 = vdwg.mxu0
    %v7926 = vsel %vm5601, %v5949, 0
    %7928 = vmatprep.subr.mxu0 0.0
    %7929 = vmatpush1.msra.mxu0 0.0
    %7930 = vmatprep.subr.mxu0 0.0
    %7931 = vmatpush1.msra.mxu0 0.0
    %7932 = vmatprep.subr.mxu0 0.0
    %7933 = vmatpush1.msra.mxu0 0.0
    %7934 = vmatprep.subr.mxu0 0.0
    %7935 = vmatpush1.msra.mxu0 0.0
    %7936 = vmatprep.subr.mxu0 0.0
    %7937 = vmatpush1.msra.mxu0 0.0
    %7938 = vmatprep.subr.mxu0 0.0
    %7939 = vmatpush1.msra.mxu0 0.0
    %7940 = vmatprep.subr.mxu0 0.0
    %7941 = vmatpush1.msra.mxu0 0.0
    %7942 = vmatprep.subr.mxu0 0.0
    %7943 = vmatpush1.msra.mxu0 0.0
    %7944 = vmatprep.subr.mxu0 0.0
    %7945 = vmatpush1.msra.mxu0 0.0
    %7946 = vmatprep.subr.mxu0 0.0
    %7947 = vmatpush1.msra.mxu0 0.0
    %7948 = vmatprep.subr.mxu0 0.0
    %7949 = vmatpush1.msra.mxu0 0.0
    %7950 = vmatprep.subr.mxu0 0.0
    %7951 = vmatpush1.msra.mxu0 0.0
    %7952 = vmatprep.subr.mxu0 0.0
    %7953 = vmatpush1.msra.mxu0 0.0
    %7954 = vmatprep.subr.mxu0 0.0
    %7955 = vmatpush1.msra.mxu0 0.0
    %7956 = vmatprep.subr.mxu0 0.0
    %7957 = vmatpush1.msra.mxu0 0.0
    %7958 = vmatprep.subr.mxu0 0.0
    %7959 = vmatpush1.msra.mxu0 %v3163
    %7960 = vmatprep.subr.mxu0 0.0
    %7961 = vmatpush2.msra.mxu0 0.0
    %7962 = vmatprep.subr.mxu0 0.0
    %7963 = vmatpush2.msra.mxu0 0.0
    %7964 = vmatprep.subr.mxu0 0.0
    %7965 = vmatpush2.msra.mxu0 0.0
    %7966 = vmatprep.subr.mxu0 0.0
    %7967 = vmatpush2.msra.mxu0 0.0
    %7968 = vmatprep.subr.mxu0 0.0
    %7969 = vmatpush2.msra.mxu0 0.0
    %7970 = vmatprep.subr.mxu0 0.0
    %7971 = vmatpush2.msra.mxu0 0.0
    %7972 = vmatprep.subr.mxu0 0.0
    %7973 = vmatpush2.msra.mxu0 0.0
    %7974 = vmatprep.subr.mxu0 0.0
    %7975 = vmatpush2.msra.mxu0 0.0
    %7976 = vmatprep.subr.mxu0 0.0
    %7977 = vmatpush2.msra.mxu0 0.0
    %7978 = vmatprep.subr.mxu0 0.0
    %7979 = vmatpush2.msra.mxu0 0.0
    %7980 = vmatprep.subr.mxu0 0.0
    %7981 = vmatpush2.msra.mxu0 0.0
    %7982 = vmatprep.subr.mxu0 0.0
    %7983 = vmatpush2.msra.mxu0 0.0
    %7984 = vmatprep.subr.mxu0 0.0
    %7985 = vmatpush2.msra.mxu0 0.0
    %7986 = vmatprep.subr.mxu0 0.0
    %7987 = vmatpush2.msra.mxu0 0.0
    %7988 = vmatprep.subr.mxu0 0.0
    %7989 = vmatpush2.msra.mxu0 0.0
    %7990 = vmatprep.subr.mxu0 0.0
    %7991 = vmatpush2.msra.mxu0 0.0
    %7992 = vmatprep.mubr.f32.mxu0 0.0
    %7993 = vmatmul.mubr.f32.gmra.mxu0 %v7926
    %v7994 = vpop.f32.mrf.mxu0
    %v7995 = vadd.f32 0.0, %v7994
    %v7996 = vpop.f32.mrf.mxu0
    %7997 = vdwg.mxu0
    %v7999 = vsel %vm5601, %v5950, 0
    %8001 = vmatprep.subr.mxu0 0.0
    %8002 = vmatpush1.msra.mxu0 0.0
    %8003 = vmatprep.subr.mxu0 0.0
    %8004 = vmatpush1.msra.mxu0 0.0
    %8005 = vmatprep.subr.mxu0 0.0
    %8006 = vmatpush1.msra.mxu0 0.0
    %8007 = vmatprep.subr.mxu0 0.0
    %8008 = vmatpush1.msra.mxu0 0.0
    %8009 = vmatprep.subr.mxu0 0.0
    %8010 = vmatpush1.msra.mxu0 0.0
    %8011 = vmatprep.subr.mxu0 0.0
    %8012 = vmatpush1.msra.mxu0 0.0
    %8013 = vmatprep.subr.mxu0 0.0
    %8014 = vmatpush1.msra.mxu0 0.0
    %8015 = vmatprep.subr.mxu0 0.0
    %8016 = vmatpush1.msra.mxu0 0.0
    %8017 = vmatprep.subr.mxu0 0.0
    %8018 = vmatpush1.msra.mxu0 0.0
    %8019 = vmatprep.subr.mxu0 0.0
    %8020 = vmatpush1.msra.mxu0 0.0
    %8021 = vmatprep.subr.mxu0 0.0
    %8022 = vmatpush1.msra.mxu0 0.0
    %8023 = vmatprep.subr.mxu0 0.0
    %8024 = vmatpush1.msra.mxu0 0.0
    %8025 = vmatprep.subr.mxu0 0.0
    %8026 = vmatpush1.msra.mxu0 0.0
    %8027 = vmatprep.subr.mxu0 0.0
    %8028 = vmatpush1.msra.mxu0 0.0
    %8029 = vmatprep.subr.mxu0 0.0
    %8030 = vmatpush1.msra.mxu0 0.0
    %8031 = vmatprep.subr.mxu0 0.0
    %8032 = vmatpush1.msra.mxu0 %v3164
    %8033 = vmatprep.subr.mxu0 0.0
    %8034 = vmatpush2.msra.mxu0 0.0
    %8035 = vmatprep.subr.mxu0 0.0
    %8036 = vmatpush2.msra.mxu0 0.0
    %8037 = vmatprep.subr.mxu0 0.0
    %8038 = vmatpush2.msra.mxu0 0.0
    %8039 = vmatprep.subr.mxu0 0.0
    %8040 = vmatpush2.msra.mxu0 0.0
    %8041 = vmatprep.subr.mxu0 0.0
    %8042 = vmatpush2.msra.mxu0 0.0
    %8043 = vmatprep.subr.mxu0 0.0
    %8044 = vmatpush2.msra.mxu0 0.0
    %8045 = vmatprep.subr.mxu0 0.0
    %8046 = vmatpush2.msra.mxu0 0.0
    %8047 = vmatprep.subr.mxu0 0.0
    %8048 = vmatpush2.msra.mxu0 0.0
    %8049 = vmatprep.subr.mxu0 0.0
    %8050 = vmatpush2.msra.mxu0 0.0
    %8051 = vmatprep.subr.mxu0 0.0
    %8052 = vmatpush2.msra.mxu0 0.0
    %8053 = vmatprep.subr.mxu0 0.0
    %8054 = vmatpush2.msra.mxu0 0.0
    %8055 = vmatprep.subr.mxu0 0.0
    %8056 = vmatpush2.msra.mxu0 0.0
    %8057 = vmatprep.subr.mxu0 0.0
    %8058 = vmatpush2.msra.mxu0 0.0
    %8059 = vmatprep.subr.mxu0 0.0
    %8060 = vmatpush2.msra.mxu0 0.0
    %8061 = vmatprep.subr.mxu0 0.0
    %8062 = vmatpush2.msra.mxu0 0.0
    %8063 = vmatprep.subr.mxu0 0.0
    %8064 = vmatpush2.msra.mxu0 0.0
    %8065 = vmatprep.mubr.f32.mxu0 0.0
    %8066 = vmatmul.mubr.f32.gmra.mxu0 %v7999
    %v8067 = vpop.f32.mrf.mxu0
    %v8068 = vadd.f32 0.0, %v8067
    %v8069 = vpop.f32.mrf.mxu0
    %8070 = vdwg.mxu0
    %v8072 = vsel %vm5601, %v5951, 0
    %8074 = vmatprep.subr.mxu0 0.0
    %8075 = vmatpush1.msra.mxu0 0.0
    %8076 = vmatprep.subr.mxu0 0.0
    %8077 = vmatpush1.msra.mxu0 0.0
    %8078 = vmatprep.subr.mxu0 0.0
    %8079 = vmatpush1.msra.mxu0 0.0
    %8080 = vmatprep.subr.mxu0 0.0
    %8081 = vmatpush1.msra.mxu0 0.0
    %8082 = vmatprep.subr.mxu0 0.0
    %8083 = vmatpush1.msra.mxu0 0.0
    %8084 = vmatprep.subr.mxu0 0.0
    %8085 = vmatpush1.msra.mxu0 0.0
    %8086 = vmatprep.subr.mxu0 0.0
    %8087 = vmatpush1.msra.mxu0 0.0
    %8088 = vmatprep.subr.mxu0 0.0
    %8089 = vmatpush1.msra.mxu0 0.0
    %8090 = vmatprep.subr.mxu0 0.0
    %8091 = vmatpush1.msra.mxu0 0.0
    %8092 = vmatprep.subr.mxu0 0.0
    %8093 = vmatpush1.msra.mxu0 0.0
    %8094 = vmatprep.subr.mxu0 0.0
    %8095 = vmatpush1.msra.mxu0 0.0
    %8096 = vmatprep.subr.mxu0 0.0
    %8097 = vmatpush1.msra.mxu0 0.0
    %8098 = vmatprep.subr.mxu0 0.0
    %8099 = vmatpush1.msra.mxu0 0.0
    %8100 = vmatprep.subr.mxu0 0.0
    %8101 = vmatpush1.msra.mxu0 0.0
    %8102 = vmatprep.subr.mxu0 0.0
    %8103 = vmatpush1.msra.mxu0 0.0
    %8104 = vmatprep.subr.mxu0 0.0
    %8105 = vmatpush1.msra.mxu0 %v3165
    %8106 = vmatprep.subr.mxu0 0.0
    %8107 = vmatpush2.msra.mxu0 0.0
    %8108 = vmatprep.subr.mxu0 0.0
    %8109 = vmatpush2.msra.mxu0 0.0
    %8110 = vmatprep.subr.mxu0 0.0
    %8111 = vmatpush2.msra.mxu0 0.0
    %8112 = vmatprep.subr.mxu0 0.0
    %8113 = vmatpush2.msra.mxu0 0.0
    %8114 = vmatprep.subr.mxu0 0.0
    %8115 = vmatpush2.msra.mxu0 0.0
    %8116 = vmatprep.subr.mxu0 0.0
    %8117 = vmatpush2.msra.mxu0 0.0
    %8118 = vmatprep.subr.mxu0 0.0
    %8119 = vmatpush2.msra.mxu0 0.0
    %8120 = vmatprep.subr.mxu0 0.0
    %8121 = vmatpush2.msra.mxu0 0.0
    %8122 = vmatprep.subr.mxu0 0.0
    %8123 = vmatpush2.msra.mxu0 0.0
    %8124 = vmatprep.subr.mxu0 0.0
    %8125 = vmatpush2.msra.mxu0 0.0
    %8126 = vmatprep.subr.mxu0 0.0
    %8127 = vmatpush2.msra.mxu0 0.0
    %8128 = vmatprep.subr.mxu0 0.0
    %8129 = vmatpush2.msra.mxu0 0.0
    %8130 = vmatprep.subr.mxu0 0.0
    %8131 = vmatpush2.msra.mxu0 0.0
    %8132 = vmatprep.subr.mxu0 0.0
    %8133 = vmatpush2.msra.mxu0 0.0
    %8134 = vmatprep.subr.mxu0 0.0
    %8135 = vmatpush2.msra.mxu0 0.0
    %8136 = vmatprep.subr.mxu0 0.0
    %8137 = vmatpush2.msra.mxu0 0.0
    %8138 = vmatprep.mubr.f32.mxu0 0.0
    %8139 = vmatmul.mubr.f32.gmra.mxu0 %v8072
    %v8140 = vpop.f32.mrf.mxu0
    %v8141 = vadd.f32 0.0, %v8140
    %v8142 = vpop.f32.mrf.mxu0
    %8143 = vdwg.mxu0
    %v8145 = vsel %vm5601, %v5952, 0
    %8147 = vmatprep.subr.mxu0 0.0
    %8148 = vmatpush1.msra.mxu0 0.0
    %8149 = vmatprep.subr.mxu0 0.0
    %8150 = vmatpush1.msra.mxu0 0.0
    %8151 = vmatprep.subr.mxu0 0.0
    %8152 = vmatpush1.msra.mxu0 0.0
    %8153 = vmatprep.subr.mxu0 0.0
    %8154 = vmatpush1.msra.mxu0 0.0
    %8155 = vmatprep.subr.mxu0 0.0
    %8156 = vmatpush1.msra.mxu0 0.0
    %8157 = vmatprep.subr.mxu0 0.0
    %8158 = vmatpush1.msra.mxu0 0.0
    %8159 = vmatprep.subr.mxu0 0.0
    %8160 = vmatpush1.msra.mxu0 0.0
    %8161 = vmatprep.subr.mxu0 0.0
    %8162 = vmatpush1.msra.mxu0 0.0
    %8163 = vmatprep.subr.mxu0 0.0
    %8164 = vmatpush1.msra.mxu0 0.0
    %8165 = vmatprep.subr.mxu0 0.0
    %8166 = vmatpush1.msra.mxu0 0.0
    %8167 = vmatprep.subr.mxu0 0.0
    %8168 = vmatpush1.msra.mxu0 0.0
    %8169 = vmatprep.subr.mxu0 0.0
    %8170 = vmatpush1.msra.mxu0 0.0
    %8171 = vmatprep.subr.mxu0 0.0
    %8172 = vmatpush1.msra.mxu0 0.0
    %8173 = vmatprep.subr.mxu0 0.0
    %8174 = vmatpush1.msra.mxu0 0.0
    %8175 = vmatprep.subr.mxu0 0.0
    %8176 = vmatpush1.msra.mxu0 0.0
    %8177 = vmatprep.subr.mxu0 0.0
    %8178 = vmatpush1.msra.mxu0 %v3166
    %8179 = vmatprep.subr.mxu0 0.0
    %8180 = vmatpush2.msra.mxu0 0.0
    %8181 = vmatprep.subr.mxu0 0.0
    %8182 = vmatpush2.msra.mxu0 0.0
    %8183 = vmatprep.subr.mxu0 0.0
    %8184 = vmatpush2.msra.mxu0 0.0
    %8185 = vmatprep.subr.mxu0 0.0
    %8186 = vmatpush2.msra.mxu0 0.0
    %8187 = vmatprep.subr.mxu0 0.0
    %8188 = vmatpush2.msra.mxu0 0.0
    %8189 = vmatprep.subr.mxu0 0.0
    %8190 = vmatpush2.msra.mxu0 0.0
    %8191 = vmatprep.subr.mxu0 0.0
    %8192 = vmatpush2.msra.mxu0 0.0
    %8193 = vmatprep.subr.mxu0 0.0
    %8194 = vmatpush2.msra.mxu0 0.0
    %8195 = vmatprep.subr.mxu0 0.0
    %8196 = vmatpush2.msra.mxu0 0.0
    %8197 = vmatprep.subr.mxu0 0.0
    %8198 = vmatpush2.msra.mxu0 0.0
    %8199 = vmatprep.subr.mxu0 0.0
    %8200 = vmatpush2.msra.mxu0 0.0
    %8201 = vmatprep.subr.mxu0 0.0
    %8202 = vmatpush2.msra.mxu0 0.0
    %8203 = vmatprep.subr.mxu0 0.0
    %8204 = vmatpush2.msra.mxu0 0.0
    %8205 = vmatprep.subr.mxu0 0.0
    %8206 = vmatpush2.msra.mxu0 0.0
    %8207 = vmatprep.subr.mxu0 0.0
    %8208 = vmatpush2.msra.mxu0 0.0
    %8209 = vmatprep.subr.mxu0 0.0
    %8210 = vmatpush2.msra.mxu0 0.0
    %8211 = vmatprep.mubr.f32.mxu0 0.0
    %8212 = vmatmul.mubr.f32.gmra.mxu0 %v8145
    %v8213 = vpop.f32.mrf.mxu0
    %v8214 = vadd.f32 0.0, %v8213
    %v8215 = vpop.f32.mrf.mxu0
    %8216 = vdwg.mxu0
    %v8218 = vsel %vm5601, %v5953, 0
    %8220 = vmatprep.subr.mxu0 0.0
    %8221 = vmatpush1.msra.mxu0 0.0
    %8222 = vmatprep.subr.mxu0 0.0
    %8223 = vmatpush1.msra.mxu0 0.0
    %8224 = vmatprep.subr.mxu0 0.0
    %8225 = vmatpush1.msra.mxu0 0.0
    %8226 = vmatprep.subr.mxu0 0.0
    %8227 = vmatpush1.msra.mxu0 0.0
    %8228 = vmatprep.subr.mxu0 0.0
    %8229 = vmatpush1.msra.mxu0 0.0
    %8230 = vmatprep.subr.mxu0 0.0
    %8231 = vmatpush1.msra.mxu0 0.0
    %8232 = vmatprep.subr.mxu0 0.0
    %8233 = vmatpush1.msra.mxu0 0.0
    %8234 = vmatprep.subr.mxu0 0.0
    %8235 = vmatpush1.msra.mxu0 0.0
    %8236 = vmatprep.subr.mxu0 0.0
    %8237 = vmatpush1.msra.mxu0 0.0
    %8238 = vmatprep.subr.mxu0 0.0
    %8239 = vmatpush1.msra.mxu0 0.0
    %8240 = vmatprep.subr.mxu0 0.0
    %8241 = vmatpush1.msra.mxu0 0.0
    %8242 = vmatprep.subr.mxu0 0.0
    %8243 = vmatpush1.msra.mxu0 0.0
    %8244 = vmatprep.subr.mxu0 0.0
    %8245 = vmatpush1.msra.mxu0 0.0
    %8246 = vmatprep.subr.mxu0 0.0
    %8247 = vmatpush1.msra.mxu0 0.0
    %8248 = vmatprep.subr.mxu0 0.0
    %8249 = vmatpush1.msra.mxu0 0.0
    %8250 = vmatprep.subr.mxu0 0.0
    %8251 = vmatpush1.msra.mxu0 %v3167
    %8252 = vmatprep.subr.mxu0 0.0
    %8253 = vmatpush2.msra.mxu0 0.0
    %8254 = vmatprep.subr.mxu0 0.0
    %8255 = vmatpush2.msra.mxu0 0.0
    %8256 = vmatprep.subr.mxu0 0.0
    %8257 = vmatpush2.msra.mxu0 0.0
    %8258 = vmatprep.subr.mxu0 0.0
    %8259 = vmatpush2.msra.mxu0 0.0
    %8260 = vmatprep.subr.mxu0 0.0
    %8261 = vmatpush2.msra.mxu0 0.0
    %8262 = vmatprep.subr.mxu0 0.0
    %8263 = vmatpush2.msra.mxu0 0.0
    %8264 = vmatprep.subr.mxu0 0.0
    %8265 = vmatpush2.msra.mxu0 0.0
    %8266 = vmatprep.subr.mxu0 0.0
    %8267 = vmatpush2.msra.mxu0 0.0
    %8268 = vmatprep.subr.mxu0 0.0
    %8269 = vmatpush2.msra.mxu0 0.0
    %8270 = vmatprep.subr.mxu0 0.0
    %8271 = vmatpush2.msra.mxu0 0.0
    %8272 = vmatprep.subr.mxu0 0.0
    %8273 = vmatpush2.msra.mxu0 0.0
    %8274 = vmatprep.subr.mxu0 0.0
    %8275 = vmatpush2.msra.mxu0 0.0
    %8276 = vmatprep.subr.mxu0 0.0
    %8277 = vmatpush2.msra.mxu0 0.0
    %8278 = vmatprep.subr.mxu0 0.0
    %8279 = vmatpush2.msra.mxu0 0.0
    %8280 = vmatprep.subr.mxu0 0.0
    %8281 = vmatpush2.msra.mxu0 0.0
    %8282 = vmatprep.subr.mxu0 0.0
    %8283 = vmatpush2.msra.mxu0 0.0
    %8284 = vmatprep.mubr.f32.mxu0 0.0
    %8285 = vmatmul.mubr.f32.gmra.mxu0 %v8218
    %v8286 = vpop.f32.mrf.mxu0
    %v8287 = vadd.f32 0.0, %v8286
    %v8288 = vpop.f32.mrf.mxu0
    %8289 = vdwg.mxu0
    %v8290 = vcombine.low %v6024, %v6170
    %v8291 = vcombine.high %v6024, %v6170
    %v8293 = vunpack.c.l.s4 1983009808
    %v8294 = vunpack.c.0.s8 %v8293
    %v8295 = vlaneseq
    %v8296 = vshrl.u32 %v8295, 7
    %v8297 = vsub.s32 %v8294, %v8296
    %v8298 = vrot.slane %v8290, %v8297
    %v8300 = vunpack.c.l.s4 1983009808
    %v8301 = vunpack.c.0.s8 %v8300
    %v8302 = vlaneseq
    %v8303 = vshrl.u32 %v8302, 7
    %v8304 = vsub.s32 %v8301, %v8303
    %v8305 = vrot.slane %v8291, %v8304
    %v8306 = vcombine.low %v6097, %v6243
    %v8307 = vcombine.high %v6097, %v6243
    %v8309 = vunpack.c.l.s4 1983009808
    %v8310 = vunpack.c.0.s8 %v8309
    %v8311 = vlaneseq
    %v8312 = vshrl.u32 %v8311, 7
    %v8313 = vsub.s32 %v8310, %v8312
    %v8314 = vrot.slane %v8306, %v8313
    %v8316 = vunpack.c.l.s4 1983009808
    %v8317 = vunpack.c.0.s8 %v8316
    %v8318 = vlaneseq
    %v8319 = vshrl.u32 %v8318, 7
    %v8320 = vsub.s32 %v8317, %v8319
    %v8321 = vrot.slane %v8307, %v8320
    %v8322 = vcombine.low %v6316, %v6462
    %v8323 = vcombine.high %v6316, %v6462
    %v8325 = vunpack.c.l.s4 1983009808
    %v8326 = vunpack.c.0.s8 %v8325
    %v8327 = vlaneseq
    %v8328 = vshrl.u32 %v8327, 7
    %v8329 = vsub.s32 %v8326, %v8328
    %v8330 = vrot.slane %v8322, %v8329
    %v8332 = vunpack.c.l.s4 1983009808
    %v8333 = vunpack.c.0.s8 %v8332
    %v8334 = vlaneseq
    %v8335 = vshrl.u32 %v8334, 7
    %v8336 = vsub.s32 %v8333, %v8335
    %v8337 = vrot.slane %v8323, %v8336
    %v8338 = vcombine.low %v6389, %v6535
    %v8339 = vcombine.high %v6389, %v6535
    %v8341 = vunpack.c.l.s4 1983009808
    %v8342 = vunpack.c.0.s8 %v8341
    %v8343 = vlaneseq
    %v8344 = vshrl.u32 %v8343, 7
    %v8345 = vsub.s32 %v8342, %v8344
    %v8346 = vrot.slane %v8338, %v8345
    %v8348 = vunpack.c.l.s4 1983009808
    %v8349 = vunpack.c.0.s8 %v8348
    %v8350 = vlaneseq
    %v8351 = vshrl.u32 %v8350, 7
    %v8352 = vsub.s32 %v8349, %v8351
    %v8353 = vrot.slane %v8339, %v8352
    %v8354 = vcombine.low %v8298, %v8314
    %v8355 = vcombine.high %v8298, %v8314
    %v8357 = vunpack.c.l.s4 1934713408
    %v8358 = vunpack.c.0.s8 %v8357
    %v8359 = vlaneseq
    %v8360 = vshrl.u32 %v8359, 7
    %v8361 = vsub.s32 %v8358, %v8360
    %v8362 = vrot.slane %v8354, %v8361
    %v8364 = vunpack.c.l.s4 1934713408
    %v8365 = vunpack.c.0.s8 %v8364
    %v8366 = vlaneseq
    %v8367 = vshrl.u32 %v8366, 7
    %v8368 = vsub.s32 %v8365, %v8367
    %v8369 = vrot.slane %v8355, %v8368
    %v8370 = vcombine.low %v8305, %v8321
    %v8371 = vcombine.high %v8305, %v8321
    %v8373 = vunpack.c.l.s4 1934713408
    %v8374 = vunpack.c.0.s8 %v8373
    %v8375 = vlaneseq
    %v8376 = vshrl.u32 %v8375, 7
    %v8377 = vsub.s32 %v8374, %v8376
    %v8378 = vrot.slane %v8370, %v8377
    %v8380 = vunpack.c.l.s4 1934713408
    %v8381 = vunpack.c.0.s8 %v8380
    %v8382 = vlaneseq
    %v8383 = vshrl.u32 %v8382, 7
    %v8384 = vsub.s32 %v8381, %v8383
    %v8385 = vrot.slane %v8371, %v8384
    %v8386 = vcombine.low %v8330, %v8346
    %v8387 = vcombine.high %v8330, %v8346
    %v8389 = vunpack.c.l.s4 1934713408
    %v8390 = vunpack.c.0.s8 %v8389
    %v8391 = vlaneseq
    %v8392 = vshrl.u32 %v8391, 7
    %v8393 = vsub.s32 %v8390, %v8392
    %v8394 = vrot.slane %v8386, %v8393
    %v8396 = vunpack.c.l.s4 1934713408
    %v8397 = vunpack.c.0.s8 %v8396
    %v8398 = vlaneseq
    %v8399 = vshrl.u32 %v8398, 7
    %v8400 = vsub.s32 %v8397, %v8399
    %v8401 = vrot.slane %v8387, %v8400
    %v8402 = vcombine.low %v8337, %v8353
    %v8403 = vcombine.high %v8337, %v8353
    %v8405 = vunpack.c.l.s4 1934713408
    %v8406 = vunpack.c.0.s8 %v8405
    %v8407 = vlaneseq
    %v8408 = vshrl.u32 %v8407, 7
    %v8409 = vsub.s32 %v8406, %v8408
    %v8410 = vrot.slane %v8402, %v8409
    %v8412 = vunpack.c.l.s4 1934713408
    %v8413 = vunpack.c.0.s8 %v8412
    %v8414 = vlaneseq
    %v8415 = vshrl.u32 %v8414, 7
    %v8416 = vsub.s32 %v8413, %v8415
    %v8417 = vrot.slane %v8403, %v8416
    %v8418 = vcombine.low %v8362, %v8394
    %v8419 = vcombine.high %v8362, %v8394
    %v8420 = vcombine.low %v8369, %v8401
    %v8421 = vcombine.high %v8369, %v8401
    %v8422 = vcombine.low %v8378, %v8410
    %v8423 = vcombine.high %v8378, %v8410
    %v8424 = vcombine.low %v8385, %v8417
    %v8425 = vcombine.high %v8385, %v8417
    %v8426 = vcombine.low %v6608, %v6754
    %v8427 = vcombine.high %v6608, %v6754
    %v8429 = vunpack.c.l.s4 1983009808
    %v8430 = vunpack.c.0.s8 %v8429
    %v8431 = vlaneseq
    %v8432 = vshrl.u32 %v8431, 7
    %v8433 = vsub.s32 %v8430, %v8432
    %v8434 = vrot.slane %v8426, %v8433
    %v8436 = vunpack.c.l.s4 1983009808
    %v8437 = vunpack.c.0.s8 %v8436
    %v8438 = vlaneseq
    %v8439 = vshrl.u32 %v8438, 7
    %v8440 = vsub.s32 %v8437, %v8439
    %v8441 = vrot.slane %v8427, %v8440
    %v8442 = vcombine.low %v6681, %v6827
    %v8443 = vcombine.high %v6681, %v6827
    %v8445 = vunpack.c.l.s4 1983009808
    %v8446 = vunpack.c.0.s8 %v8445
    %v8447 = vlaneseq
    %v8448 = vshrl.u32 %v8447, 7
    %v8449 = vsub.s32 %v8446, %v8448
    %v8450 = vrot.slane %v8442, %v8449
    %v8452 = vunpack.c.l.s4 1983009808
    %v8453 = vunpack.c.0.s8 %v8452
    %v8454 = vlaneseq
    %v8455 = vshrl.u32 %v8454, 7
    %v8456 = vsub.s32 %v8453, %v8455
    %v8457 = vrot.slane %v8443, %v8456
    %v8458 = vcombine.low %v6900, %v7046
    %v8459 = vcombine.high %v6900, %v7046
    %v8461 = vunpack.c.l.s4 1983009808
    %v8462 = vunpack.c.0.s8 %v8461
    %v8463 = vlaneseq
    %v8464 = vshrl.u32 %v8463, 7
    %v8465 = vsub.s32 %v8462, %v8464
    %v8466 = vrot.slane %v8458, %v8465
    %v8468 = vunpack.c.l.s4 1983009808
    %v8469 = vunpack.c.0.s8 %v8468
    %v8470 = vlaneseq
    %v8471 = vshrl.u32 %v8470, 7
    %v8472 = vsub.s32 %v8469, %v8471
    %v8473 = vrot.slane %v8459, %v8472
    %v8474 = vcombine.low %v6973, %v7119
    %v8475 = vcombine.high %v6973, %v7119
    %v8477 = vunpack.c.l.s4 1983009808
    %v8478 = vunpack.c.0.s8 %v8477
    %v8479 = vlaneseq
    %v8480 = vshrl.u32 %v8479, 7
    %v8481 = vsub.s32 %v8478, %v8480
    %v8482 = vrot.slane %v8474, %v8481
    %v8484 = vunpack.c.l.s4 1983009808
    %v8485 = vunpack.c.0.s8 %v8484
    %v8486 = vlaneseq
    %v8487 = vshrl.u32 %v8486, 7
    %v8488 = vsub.s32 %v8485, %v8487
    %v8489 = vrot.slane %v8475, %v8488
    %v8490 = vcombine.low %v8434, %v8450
    %v8491 = vcombine.high %v8434, %v8450
    %v8493 = vunpack.c.l.s4 1934713408
    %v8494 = vunpack.c.0.s8 %v8493
    %v8495 = vlaneseq
    %v8496 = vshrl.u32 %v8495, 7
    %v8497 = vsub.s32 %v8494, %v8496
    %v8498 = vrot.slane %v8490, %v8497
    %v8500 = vunpack.c.l.s4 1934713408
    %v8501 = vunpack.c.0.s8 %v8500
    %v8502 = vlaneseq
    %v8503 = vshrl.u32 %v8502, 7
    %v8504 = vsub.s32 %v8501, %v8503
    %v8505 = vrot.slane %v8491, %v8504
    %v8506 = vcombine.low %v8441, %v8457
    %v8507 = vcombine.high %v8441, %v8457
    %v8509 = vunpack.c.l.s4 1934713408
    %v8510 = vunpack.c.0.s8 %v8509
    %v8511 = vlaneseq
    %v8512 = vshrl.u32 %v8511, 7
    %v8513 = vsub.s32 %v8510, %v8512
    %v8514 = vrot.slane %v8506, %v8513
    %v8516 = vunpack.c.l.s4 1934713408
    %v8517 = vunpack.c.0.s8 %v8516
    %v8518 = vlaneseq
    %v8519 = vshrl.u32 %v8518, 7
    %v8520 = vsub.s32 %v8517, %v8519
    %v8521 = vrot.slane %v8507, %v8520
    %v8522 = vcombine.low %v8466, %v8482
    %v8523 = vcombine.high %v8466, %v8482
    %v8525 = vunpack.c.l.s4 1934713408
    %v8526 = vunpack.c.0.s8 %v8525
    %v8527 = vlaneseq
    %v8528 = vshrl.u32 %v8527, 7
    %v8529 = vsub.s32 %v8526, %v8528
    %v8530 = vrot.slane %v8522, %v8529
    %v8532 = vunpack.c.l.s4 1934713408
    %v8533 = vunpack.c.0.s8 %v8532
    %v8534 = vlaneseq
    %v8535 = vshrl.u32 %v8534, 7
    %v8536 = vsub.s32 %v8533, %v8535
    %v8537 = vrot.slane %v8523, %v8536
    %v8538 = vcombine.low %v8473, %v8489
    %v8539 = vcombine.high %v8473, %v8489
    %v8541 = vunpack.c.l.s4 1934713408
    %v8542 = vunpack.c.0.s8 %v8541
    %v8543 = vlaneseq
    %v8544 = vshrl.u32 %v8543, 7
    %v8545 = vsub.s32 %v8542, %v8544
    %v8546 = vrot.slane %v8538, %v8545
    %v8548 = vunpack.c.l.s4 1934713408
    %v8549 = vunpack.c.0.s8 %v8548
    %v8550 = vlaneseq
    %v8551 = vshrl.u32 %v8550, 7
    %v8552 = vsub.s32 %v8549, %v8551
    %v8553 = vrot.slane %v8539, %v8552
    %v8554 = vcombine.low %v8498, %v8530
    %v8555 = vcombine.high %v8498, %v8530
    %v8556 = vcombine.low %v8505, %v8537
    %v8557 = vcombine.high %v8505, %v8537
    %v8558 = vcombine.low %v8514, %v8546
    %v8559 = vcombine.high %v8514, %v8546
    %v8560 = vcombine.low %v8521, %v8553
    %v8561 = vcombine.high %v8521, %v8553
    %v8562 = vcombine.low %v7192, %v7338
    %v8563 = vcombine.high %v7192, %v7338
    %v8565 = vunpack.c.l.s4 1983009808
    %v8566 = vunpack.c.0.s8 %v8565
    %v8567 = vlaneseq
    %v8568 = vshrl.u32 %v8567, 7
    %v8569 = vsub.s32 %v8566, %v8568
    %v8570 = vrot.slane %v8562, %v8569
    %v8572 = vunpack.c.l.s4 1983009808
    %v8573 = vunpack.c.0.s8 %v8572
    %v8574 = vlaneseq
    %v8575 = vshrl.u32 %v8574, 7
    %v8576 = vsub.s32 %v8573, %v8575
    %v8577 = vrot.slane %v8563, %v8576
    %v8578 = vcombine.low %v7265, %v7411
    %v8579 = vcombine.high %v7265, %v7411
    %v8581 = vunpack.c.l.s4 1983009808
    %v8582 = vunpack.c.0.s8 %v8581
    %v8583 = vlaneseq
    %v8584 = vshrl.u32 %v8583, 7
    %v8585 = vsub.s32 %v8582, %v8584
    %v8586 = vrot.slane %v8578, %v8585
    %v8588 = vunpack.c.l.s4 1983009808
    %v8589 = vunpack.c.0.s8 %v8588
    %v8590 = vlaneseq
    %v8591 = vshrl.u32 %v8590, 7
    %v8592 = vsub.s32 %v8589, %v8591
    %v8593 = vrot.slane %v8579, %v8592
    %v8594 = vcombine.low %v7484, %v7630
    %v8595 = vcombine.high %v7484, %v7630
    %v8597 = vunpack.c.l.s4 1983009808
    %v8598 = vunpack.c.0.s8 %v8597
    %v8599 = vlaneseq
    %v8600 = vshrl.u32 %v8599, 7
    %v8601 = vsub.s32 %v8598, %v8600
    %v8602 = vrot.slane %v8594, %v8601
    %v8604 = vunpack.c.l.s4 1983009808
    %v8605 = vunpack.c.0.s8 %v8604
    %v8606 = vlaneseq
    %v8607 = vshrl.u32 %v8606, 7
    %v8608 = vsub.s32 %v8605, %v8607
    %v8609 = vrot.slane %v8595, %v8608
    %v8610 = vcombine.low %v7557, %v7703
    %v8611 = vcombine.high %v7557, %v7703
    %v8613 = vunpack.c.l.s4 1983009808
    %v8614 = vunpack.c.0.s8 %v8613
    %v8615 = vlaneseq
    %v8616 = vshrl.u32 %v8615, 7
    %v8617 = vsub.s32 %v8614, %v8616
    %v8618 = vrot.slane %v8610, %v8617
    %v8620 = vunpack.c.l.s4 1983009808
    %v8621 = vunpack.c.0.s8 %v8620
    %v8622 = vlaneseq
    %v8623 = vshrl.u32 %v8622, 7
    %v8624 = vsub.s32 %v8621, %v8623
    %v8625 = vrot.slane %v8611, %v8624
    %v8626 = vcombine.low %v8570, %v8586
    %v8627 = vcombine.high %v8570, %v8586
    %v8629 = vunpack.c.l.s4 1934713408
    %v8630 = vunpack.c.0.s8 %v8629
    %v8631 = vlaneseq
    %v8632 = vshrl.u32 %v8631, 7
    %v8633 = vsub.s32 %v8630, %v8632
    %v8634 = vrot.slane %v8626, %v8633
    %v8636 = vunpack.c.l.s4 1934713408
    %v8637 = vunpack.c.0.s8 %v8636
    %v8638 = vlaneseq
    %v8639 = vshrl.u32 %v8638, 7
    %v8640 = vsub.s32 %v8637, %v8639
    %v8641 = vrot.slane %v8627, %v8640
    %v8642 = vcombine.low %v8577, %v8593
    %v8643 = vcombine.high %v8577, %v8593
    %v8645 = vunpack.c.l.s4 1934713408
    %v8646 = vunpack.c.0.s8 %v8645
    %v8647 = vlaneseq
    %v8648 = vshrl.u32 %v8647, 7
    %v8649 = vsub.s32 %v8646, %v8648
    %v8650 = vrot.slane %v8642, %v8649
    %v8652 = vunpack.c.l.s4 1934713408
    %v8653 = vunpack.c.0.s8 %v8652
    %v8654 = vlaneseq
    %v8655 = vshrl.u32 %v8654, 7
    %v8656 = vsub.s32 %v8653, %v8655
    %v8657 = vrot.slane %v8643, %v8656
    %v8658 = vcombine.low %v8602, %v8618
    %v8659 = vcombine.high %v8602, %v8618
    %v8661 = vunpack.c.l.s4 1934713408
    %v8662 = vunpack.c.0.s8 %v8661
    %v8663 = vlaneseq
    %v8664 = vshrl.u32 %v8663, 7
    %v8665 = vsub.s32 %v8662, %v8664
    %v8666 = vrot.slane %v8658, %v8665
    %v8668 = vunpack.c.l.s4 1934713408
    %v8669 = vunpack.c.0.s8 %v8668
    %v8670 = vlaneseq
    %v8671 = vshrl.u32 %v8670, 7
    %v8672 = vsub.s32 %v8669, %v8671
    %v8673 = vrot.slane %v8659, %v8672
    %v8674 = vcombine.low %v8609, %v8625
    %v8675 = vcombine.high %v8609, %v8625
    %v8677 = vunpack.c.l.s4 1934713408
    %v8678 = vunpack.c.0.s8 %v8677
    %v8679 = vlaneseq
    %v8680 = vshrl.u32 %v8679, 7
    %v8681 = vsub.s32 %v8678, %v8680
    %v8682 = vrot.slane %v8674, %v8681
    %v8684 = vunpack.c.l.s4 1934713408
    %v8685 = vunpack.c.0.s8 %v8684
    %v8686 = vlaneseq
    %v8687 = vshrl.u32 %v8686, 7
    %v8688 = vsub.s32 %v8685, %v8687
    %v8689 = vrot.slane %v8675, %v8688
    %v8690 = vcombine.low %v8634, %v8666
    %v8691 = vcombine.high %v8634, %v8666
    %v8692 = vcombine.low %v8641, %v8673
    %v8693 = vcombine.high %v8641, %v8673
    %v8694 = vcombine.low %v8650, %v8682
    %v8695 = vcombine.high %v8650, %v8682
    %v8696 = vcombine.low %v8657, %v8689
    %v8697 = vcombine.high %v8657, %v8689
    %v8698 = vcombine.low %v7776, %v7922
    %v8699 = vcombine.high %v7776, %v7922
    %v8701 = vunpack.c.l.s4 1983009808
    %v8702 = vunpack.c.0.s8 %v8701
    %v8703 = vlaneseq
    %v8704 = vshrl.u32 %v8703, 7
    %v8705 = vsub.s32 %v8702, %v8704
    %v8706 = vrot.slane %v8698, %v8705
    %v8708 = vunpack.c.l.s4 1983009808
    %v8709 = vunpack.c.0.s8 %v8708
    %v8710 = vlaneseq
    %v8711 = vshrl.u32 %v8710, 7
    %v8712 = vsub.s32 %v8709, %v8711
    %v8713 = vrot.slane %v8699, %v8712
    %v8714 = vcombine.low %v7849, %v7995
    %v8715 = vcombine.high %v7849, %v7995
    %v8717 = vunpack.c.l.s4 1983009808
    %v8718 = vunpack.c.0.s8 %v8717
    %v8719 = vlaneseq
    %v8720 = vshrl.u32 %v8719, 7
    %v8721 = vsub.s32 %v8718, %v8720
    %v8722 = vrot.slane %v8714, %v8721
    %v8724 = vunpack.c.l.s4 1983009808
    %v8725 = vunpack.c.0.s8 %v8724
    %v8726 = vlaneseq
    %v8727 = vshrl.u32 %v8726, 7
    %v8728 = vsub.s32 %v8725, %v8727
    %v8729 = vrot.slane %v8715, %v8728
    %v8730 = vcombine.low %v8068, %v8214
    %v8731 = vcombine.high %v8068, %v8214
    %v8733 = vunpack.c.l.s4 1983009808
    %v8734 = vunpack.c.0.s8 %v8733
    %v8735 = vlaneseq
    %v8736 = vshrl.u32 %v8735, 7
    %v8737 = vsub.s32 %v8734, %v8736
    %v8738 = vrot.slane %v8730, %v8737
    %v8740 = vunpack.c.l.s4 1983009808
    %v8741 = vunpack.c.0.s8 %v8740
    %v8742 = vlaneseq
    %v8743 = vshrl.u32 %v8742, 7
    %v8744 = vsub.s32 %v8741, %v8743
    %v8745 = vrot.slane %v8731, %v8744
    %v8746 = vcombine.low %v8141, %v8287
    %v8747 = vcombine.high %v8141, %v8287
    %v8749 = vunpack.c.l.s4 1983009808
    %v8750 = vunpack.c.0.s8 %v8749
    %v8751 = vlaneseq
    %v8752 = vshrl.u32 %v8751, 7
    %v8753 = vsub.s32 %v8750, %v8752
    %v8754 = vrot.slane %v8746, %v8753
    %v8756 = vunpack.c.l.s4 1983009808
    %v8757 = vunpack.c.0.s8 %v8756
    %v8758 = vlaneseq
    %v8759 = vshrl.u32 %v8758, 7
    %v8760 = vsub.s32 %v8757, %v8759
    %v8761 = vrot.slane %v8747, %v8760
    %v8762 = vcombine.low %v8706, %v8722
    %v8763 = vcombine.high %v8706, %v8722
    %v8765 = vunpack.c.l.s4 1934713408
    %v8766 = vunpack.c.0.s8 %v8765
    %v8767 = vlaneseq
    %v8768 = vshrl.u32 %v8767, 7
    %v8769 = vsub.s32 %v8766, %v8768
    %v8770 = vrot.slane %v8762, %v8769
    %v8772 = vunpack.c.l.s4 1934713408
    %v8773 = vunpack.c.0.s8 %v8772
    %v8774 = vlaneseq
    %v8775 = vshrl.u32 %v8774, 7
    %v8776 = vsub.s32 %v8773, %v8775
    %v8777 = vrot.slane %v8763, %v8776
    %v8778 = vcombine.low %v8713, %v8729
    %v8779 = vcombine.high %v8713, %v8729
    %v8781 = vunpack.c.l.s4 1934713408
    %v8782 = vunpack.c.0.s8 %v8781
    %v8783 = vlaneseq
    %v8784 = vshrl.u32 %v8783, 7
    %v8785 = vsub.s32 %v8782, %v8784
    %v8786 = vrot.slane %v8778, %v8785
    %v8788 = vunpack.c.l.s4 1934713408
    %v8789 = vunpack.c.0.s8 %v8788
    %v8790 = vlaneseq
    %v8791 = vshrl.u32 %v8790, 7
    %v8792 = vsub.s32 %v8789, %v8791
    %v8793 = vrot.slane %v8779, %v8792
    %v8794 = vcombine.low %v8738, %v8754
    %v8795 = vcombine.high %v8738, %v8754
    %v8797 = vunpack.c.l.s4 1934713408
    %v8798 = vunpack.c.0.s8 %v8797
    %v8799 = vlaneseq
    %v8800 = vshrl.u32 %v8799, 7
    %v8801 = vsub.s32 %v8798, %v8800
    %v8802 = vrot.slane %v8794, %v8801
    %v8804 = vunpack.c.l.s4 1934713408
    %v8805 = vunpack.c.0.s8 %v8804
    %v8806 = vlaneseq
    %v8807 = vshrl.u32 %v8806, 7
    %v8808 = vsub.s32 %v8805, %v8807
    %v8809 = vrot.slane %v8795, %v8808
    %v8810 = vcombine.low %v8745, %v8761
    %v8811 = vcombine.high %v8745, %v8761
    %v8813 = vunpack.c.l.s4 1934713408
    %v8814 = vunpack.c.0.s8 %v8813
    %v8815 = vlaneseq
    %v8816 = vshrl.u32 %v8815, 7
    %v8817 = vsub.s32 %v8814, %v8816
    %v8818 = vrot.slane %v8810, %v8817
    %v8820 = vunpack.c.l.s4 1934713408
    %v8821 = vunpack.c.0.s8 %v8820
    %v8822 = vlaneseq
    %v8823 = vshrl.u32 %v8822, 7
    %v8824 = vsub.s32 %v8821, %v8823
    %v8825 = vrot.slane %v8811, %v8824
    %v8826 = vcombine.low %v8770, %v8802
    %v8827 = vcombine.high %v8770, %v8802
    %v8828 = vcombine.low %v8777, %v8809
    %v8829 = vcombine.high %v8777, %v8809
    %v8830 = vcombine.low %v8786, %v8818
    %v8831 = vcombine.high %v8786, %v8818
    %v8832 = vcombine.low %v8793, %v8825
    %v8833 = vcombine.high %v8793, %v8825
    %8838 = vrot.lane.b32.xlu0 %v8419, 32
    %v8839 = vpop.permute.xlu0 %8838
    %8840 = vrot.lane.b32.xlu0 %v8555, 32
    %v8841 = vpop.permute.xlu0 %8840
    %8842 = vrot.lane.b32.xlu0 %v8691, 32
    %v8843 = vpop.permute.xlu0 %8842
    %8844 = vrot.lane.b32.xlu0 %v8827, 32
    %v8845 = vpop.permute.xlu0 %8844
    %8854 = vrot.lane.b32.xlu0 %v8420, 64
    %v8855 = vpop.permute.xlu0 %8854
    %8856 = vrot.lane.b32.xlu0 %v8556, 64
    %v8857 = vpop.permute.xlu0 %8856
    %8858 = vrot.lane.b32.xlu0 %v8692, 64
    %v8859 = vpop.permute.xlu0 %8858
    %8860 = vrot.lane.b32.xlu0 %v8828, 64
    %v8861 = vpop.permute.xlu0 %8860
    %8870 = vrot.lane.b32.xlu0 %v8421, 96
    %v8871 = vpop.permute.xlu0 %8870
    %8872 = vrot.lane.b32.xlu0 %v8557, 96
    %v8873 = vpop.permute.xlu0 %8872
    %8874 = vrot.lane.b32.xlu0 %v8693, 96
    %v8875 = vpop.permute.xlu0 %8874
    %8876 = vrot.lane.b32.xlu0 %v8829, 96
    %v8877 = vpop.permute.xlu0 %8876
    %8886 = vrot.lane.b32.xlu0 %v8423, 32
    %v8887 = vpop.permute.xlu0 %8886
    %8888 = vrot.lane.b32.xlu0 %v8559, 32
    %v8889 = vpop.permute.xlu0 %8888
    %8890 = vrot.lane.b32.xlu0 %v8695, 32
    %v8891 = vpop.permute.xlu0 %8890
    %8892 = vrot.lane.b32.xlu0 %v8831, 32
    %v8893 = vpop.permute.xlu0 %8892
    %8902 = vrot.lane.b32.xlu0 %v8424, 64
    %v8903 = vpop.permute.xlu0 %8902
    %8904 = vrot.lane.b32.xlu0 %v8560, 64
    %v8905 = vpop.permute.xlu0 %8904
    %8906 = vrot.lane.b32.xlu0 %v8696, 64
    %v8907 = vpop.permute.xlu0 %8906
    %8908 = vrot.lane.b32.xlu0 %v8832, 64
    %v8909 = vpop.permute.xlu0 %8908
    %8918 = vrot.lane.b32.xlu0 %v8425, 96
    %v8919 = vpop.permute.xlu0 %8918
    %8920 = vrot.lane.b32.xlu0 %v8561, 96
    %v8921 = vpop.permute.xlu0 %8920
    %8922 = vrot.lane.b32.xlu0 %v8697, 96
    %v8923 = vpop.permute.xlu0 %8922
    %8924 = vrot.lane.b32.xlu0 %v8833, 96
    %v8925 = vpop.permute.xlu0 %8924
    %v8930 = vsel %vm3168, %v8418, %v8839
    %v8931 = vsel %vm3168, %v8554, %v8841
    %v8932 = vsel %vm3168, %v8690, %v8843
    %v8933 = vsel %vm3168, %v8826, %v8845
    %vm8934 = vcmask 523264
    %v8935 = vsel %vm8934, %v8930, %v8855
    %v8936 = vsel %vm8934, %v8931, %v8857
    %v8937 = vsel %vm8934, %v8932, %v8859
    %v8938 = vsel %vm8934, %v8933, %v8861
    %vm8939 = vcmask 785408
    %v8940 = vsel %vm8939, %v8935, %v8871
    %v8941 = vsel %vm8939, %v8936, %v8873
    %v8942 = vsel %vm8939, %v8937, %v8875
    %v8943 = vsel %vm8939, %v8938, %v8877
    %v8944 = vsel %vm3168, %v8422, %v8887
    %v8945 = vsel %vm3168, %v8558, %v8889
    %v8946 = vsel %vm3168, %v8694, %v8891
    %v8947 = vsel %vm3168, %v8830, %v8893
    %v8948 = vsel %vm8934, %v8944, %v8903
    %v8949 = vsel %vm8934, %v8945, %v8905
    %v8950 = vsel %vm8934, %v8946, %v8907
    %v8951 = vsel %vm8934, %v8947, %v8909
    %v8952 = vsel %vm8939, %v8948, %v8919
    %v8953 = vsel %vm8939, %v8949, %v8921
    %v8954 = vsel %vm8939, %v8950, %v8923
    %v8955 = vsel %vm8939, %v8951, %v8925
    %v8956 = vpack.c.bf16 %v8941, %v8940
    %v8957 = vpack.c.bf16 %v8953, %v8952
    %v8958 = vpack.c.bf16 %v8943, %v8942
    %v8959 = vpack.c.bf16 %v8955, %v8954
    %v8960 = vld [vmem:[#allocation11] sm:$0xff]
    %v8961 = vld [vmem:[#allocation11 + $0x8] sm:$0xff]
    %v8962 = vld [vmem:[#allocation11 + $0x10] sm:$0xff]
    %v8963 = vld [vmem:[#allocation11 + $0x18] sm:$0xff]
    %v8964 = vld [vmem:[#allocation11 + $0x20] sm:$0xff]
    %v8965 = vld [vmem:[#allocation11 + $0x28] sm:$0xff]
    %v8966 = vld [vmem:[#allocation11 + $0x30] sm:$0xff]
    %v8967 = vld [vmem:[#allocation11 + $0x38] sm:$0xff]
    %v8968 = vld [vmem:[#allocation11 + $0x40] sm:$0xff]
    %v8969 = vld [vmem:[#allocation11 + $0x48] sm:$0xff]
    %v8970 = vld [vmem:[#allocation11 + $0x50] sm:$0xff]
    %v8971 = vld [vmem:[#allocation11 + $0x58] sm:$0xff]
    %v8972 = vld [vmem:[#allocation11 + $0x60] sm:$0xff]
    %v8973 = vld [vmem:[#allocation11 + $0x68] sm:$0xff]
    %v8974 = vld [vmem:[#allocation11 + $0x70] sm:$0xff]
    %v8975 = vld [vmem:[#allocation11 + $0x78] sm:$0xff]
    %v8976 = vld [vmem:[#allocation11 + $0x80] sm:$0xff]
    %v8977 = vld [vmem:[#allocation11 + $0x88] sm:$0xff]
    %v8978 = vld [vmem:[#allocation11 + $0x90] sm:$0xff]
    %v8979 = vld [vmem:[#allocation11 + $0x98] sm:$0xff]
    %v8980 = vld [vmem:[#allocation11 + $0xa0] sm:$0xff]
    %v8981 = vld [vmem:[#allocation11 + $0xa8] sm:$0xff]
    %v8982 = vld [vmem:[#allocation11 + $0xb0] sm:$0xff]
    %v8983 = vld [vmem:[#allocation11 + $0xb8] sm:$0xff]
    %v8984 = vld [vmem:[#allocation11 + $0xc0] sm:$0xff]
    %v8985 = vld [vmem:[#allocation11 + $0xc8] sm:$0xff]
    %v8986 = vld [vmem:[#allocation11 + $0xd0] sm:$0xff]
    %v8987 = vld [vmem:[#allocation11 + $0xd8] sm:$0xff]
    %v8988 = vld [vmem:[#allocation11 + $0xe0] sm:$0xff]
    %v8989 = vld [vmem:[#allocation11 + $0xe8] sm:$0xff]
    %v8990 = vld [vmem:[#allocation11 + $0xf0] sm:$0xff]
    %v8991 = vld [vmem:[#allocation11 + $0xf8] sm:$0xff]
    %v8992 = vld [vmem:[%s8] sm:$0x3]
    %v8994 = vlaneseq
    %v8995 = vshrl.u32 %v8994, 7
    %v8996 = vsub.s32 0, %v8995
    %v8997 = vrot.slane %v8992, %v8996
    %v8998 = vlaneseq
    %v8999 = vshrl.u32 %v8998, 7
    %v9000 = vsub.s32 1, %v8999
    %v9001 = vrot.slane %v8992, %v9000
    %v9036 = vunpack.c.l.b16 %v8960
    %v9037 = vunpack.c.h.b16 %v8960
    %v9038 = vunpack.c.l.b16 %v8961
    %v9039 = vunpack.c.h.b16 %v8961
    %v9040 = vunpack.c.l.b16 %v8962
    %v9041 = vunpack.c.h.b16 %v8962
    %v9042 = vunpack.c.l.b16 %v8963
    %v9043 = vunpack.c.h.b16 %v8963
    %v9044 = vunpack.c.l.b16 %v8964
    %v9045 = vunpack.c.h.b16 %v8964
    %v9046 = vunpack.c.l.b16 %v8965
    %v9047 = vunpack.c.h.b16 %v8965
    %v9048 = vunpack.c.l.b16 %v8966
    %v9049 = vunpack.c.h.b16 %v8966
    %v9050 = vunpack.c.l.b16 %v8967
    %v9051 = vunpack.c.h.b16 %v8967
    %v9052 = vunpack.c.l.b16 %v8968
    %v9053 = vunpack.c.h.b16 %v8968
    %v9054 = vunpack.c.l.b16 %v8969
    %v9055 = vunpack.c.h.b16 %v8969
    %v9056 = vunpack.c.l.b16 %v8970
    %v9057 = vunpack.c.h.b16 %v8970
    %v9058 = vunpack.c.l.b16 %v8971
    %v9059 = vunpack.c.h.b16 %v8971
    %v9060 = vunpack.c.l.b16 %v8972
    %v9061 = vunpack.c.h.b16 %v8972
    %v9062 = vunpack.c.l.b16 %v8973
    %v9063 = vunpack.c.h.b16 %v8973
    %v9064 = vunpack.c.l.b16 %v8974
    %v9065 = vunpack.c.h.b16 %v8974
    %v9066 = vunpack.c.l.b16 %v8975
    %v9067 = vunpack.c.h.b16 %v8975
    %v9068 = vunpack.c.l.b16 %v8976
    %v9069 = vunpack.c.h.b16 %v8976
    %v9070 = vunpack.c.l.b16 %v8977
    %v9071 = vunpack.c.h.b16 %v8977
    %v9072 = vunpack.c.l.b16 %v8978
    %v9073 = vunpack.c.h.b16 %v8978
    %v9074 = vunpack.c.l.b16 %v8979
    %v9075 = vunpack.c.h.b16 %v8979
    %v9076 = vunpack.c.l.b16 %v8980
    %v9077 = vunpack.c.h.b16 %v8980
    %v9078 = vunpack.c.l.b16 %v8981
    %v9079 = vunpack.c.h.b16 %v8981
    %v9080 = vunpack.c.l.b16 %v8982
    %v9081 = vunpack.c.h.b16 %v8982
    %v9082 = vunpack.c.l.b16 %v8983
    %v9083 = vunpack.c.h.b16 %v8983
    %v9084 = vunpack.c.l.b16 %v8984
    %v9085 = vunpack.c.h.b16 %v8984
    %v9086 = vunpack.c.l.b16 %v8985
    %v9087 = vunpack.c.h.b16 %v8985
    %v9088 = vunpack.c.l.b16 %v8986
    %v9089 = vunpack.c.h.b16 %v8986
    %v9090 = vunpack.c.l.b16 %v8987
    %v9091 = vunpack.c.h.b16 %v8987
    %v9092 = vunpack.c.l.b16 %v8988
    %v9093 = vunpack.c.h.b16 %v8988
    %v9094 = vunpack.c.l.b16 %v8989
    %v9095 = vunpack.c.h.b16 %v8989
    %v9096 = vunpack.c.l.b16 %v8990
    %v9097 = vunpack.c.h.b16 %v8990
    %v9098 = vunpack.c.l.b16 %v8991
    %v9099 = vunpack.c.h.b16 %v8991
    %v9100 = vpack.c.b16 %v9038, %v9036
    %v9101 = vpack.c.b16 %v9039, %v9037
    %v9102 = vpack.c.b16 %v9042, %v9040
    %v9103 = vpack.c.b16 %v9043, %v9041
    %v9104 = vpack.c.b16 %v9046, %v9044
    %v9105 = vpack.c.b16 %v9047, %v9045
    %v9106 = vpack.c.b16 %v9050, %v9048
    %v9107 = vpack.c.b16 %v9051, %v9049
    %v9108 = vpack.c.b16 %v9054, %v9052
    %v9109 = vpack.c.b16 %v9055, %v9053
    %v9110 = vpack.c.b16 %v9058, %v9056
    %v9111 = vpack.c.b16 %v9059, %v9057
    %v9112 = vpack.c.b16 %v9062, %v9060
    %v9113 = vpack.c.b16 %v9063, %v9061
    %v9114 = vpack.c.b16 %v9066, %v9064
    %v9115 = vpack.c.b16 %v9067, %v9065
    %v9116 = vpack.c.b16 %v9070, %v9068
    %v9117 = vpack.c.b16 %v9071, %v9069
    %v9118 = vpack.c.b16 %v9074, %v9072
    %v9119 = vpack.c.b16 %v9075, %v9073
    %v9120 = vpack.c.b16 %v9078, %v9076
    %v9121 = vpack.c.b16 %v9079, %v9077
    %v9122 = vpack.c.b16 %v9082, %v9080
    %v9123 = vpack.c.b16 %v9083, %v9081
    %v9124 = vpack.c.b16 %v9086, %v9084
    %v9125 = vpack.c.b16 %v9087, %v9085
    %v9126 = vpack.c.b16 %v9090, %v9088
    %v9127 = vpack.c.b16 %v9091, %v9089
    %v9128 = vpack.c.b16 %v9094, %v9092
    %v9129 = vpack.c.b16 %v9095, %v9093
    %v9130 = vpack.c.b16 %v9098, %v9096
    %v9131 = vpack.c.b16 %v9099, %v9097
    %9164 = vmatprep.subr.bf16.mxu0 %v9115
    %9165 = vmatpush1.bf16.msra.mxu0 %v9114
    %9166 = vmatprep.subr.bf16.mxu0 %v9113
    %9167 = vmatpush1.bf16.msra.mxu0 %v9112
    %9168 = vmatprep.subr.bf16.mxu0 %v9111
    %9169 = vmatpush1.bf16.msra.mxu0 %v9110
    %9170 = vmatprep.subr.bf16.mxu0 %v9109
    %9171 = vmatpush1.bf16.msra.mxu0 %v9108
    %9172 = vmatprep.subr.bf16.mxu0 %v9107
    %9173 = vmatpush1.bf16.msra.mxu0 %v9106
    %9174 = vmatprep.subr.bf16.mxu0 %v9105
    %9175 = vmatpush1.bf16.msra.mxu0 %v9104
    %9176 = vmatprep.subr.bf16.mxu0 %v9103
    %9177 = vmatpush1.bf16.msra.mxu0 %v9102
    %9178 = vmatprep.subr.bf16.mxu0 %v9101
    %9179 = vmatpush1.bf16.msra.mxu0 %v9100
    %9180 = vmatprep.subr.bf16.mxu0 %v9131
    %9181 = vmatpush2.bf16.msra.mxu0 %v9130
    %9182 = vmatprep.subr.bf16.mxu0 %v9129
    %9183 = vmatpush2.bf16.msra.mxu0 %v9128
    %9184 = vmatprep.subr.bf16.mxu0 %v9127
    %9185 = vmatpush2.bf16.msra.mxu0 %v9126
    %9186 = vmatprep.subr.bf16.mxu0 %v9125
    %9187 = vmatpush2.bf16.msra.mxu0 %v9124
    %9188 = vmatprep.subr.bf16.mxu0 %v9123
    %9189 = vmatpush2.bf16.msra.mxu0 %v9122
    %9190 = vmatprep.subr.bf16.mxu0 %v9121
    %9191 = vmatpush2.bf16.msra.mxu0 %v9120
    %9192 = vmatprep.subr.bf16.mxu0 %v9119
    %9193 = vmatpush2.bf16.msra.mxu0 %v9118
    %9194 = vmatprep.subr.bf16.mxu0 %v9117
    %9195 = vmatpush2.bf16.msra.mxu0 %v9116
    %9196 = vmatprep.mubr.bf16.mxu0 %v8957
    %9197 = vmatmul.mubr.bf16.gmra.mxu0 %v8956
    %v9198 = vpop.f32.mrf.mxu0
    %v9199 = vadd.f32 %v8997, %v9198
    %v9200 = vpop.f32.mrf.mxu0
    %v9201 = vadd.f32 %v9001, %v9200
    %v9202 = vpop.f32.mrf.mxu0
    %v9203 = vadd.f32 %v8997, %v9202
    %v9204 = vpop.f32.mrf.mxu0
    %v9205 = vadd.f32 %v9001, %v9204
    %9206 = vmatprep.mubr.bf16.mxu0 %v8959
    %9207 = vmatmul.mubr.bf16.gmra.mxu0 %v8958
    %v9208 = vpop.f32.mrf.mxu0
    %v9209 = vadd.f32 %v8997, %v9208
    %v9210 = vpop.f32.mrf.mxu0
    %v9211 = vadd.f32 %v9001, %v9210
    %v9212 = vpop.f32.mrf.mxu0
    %v9213 = vadd.f32 %v8997, %v9212
    %v9214 = vpop.f32.mrf.mxu0
    %v9215 = vadd.f32 %v9001, %v9214
    %9216 = vdwg.mxu0
    %v9217 = vadd.f32 %v9199, %v517
    %v9218 = vadd.f32 %v9201, %v518
    %v9219 = vadd.f32 %v9203, %v519
    %v9220 = vadd.f32 %v9205, %v520
    %v9221 = vadd.f32 %v9209, %v521
    %v9222 = vadd.f32 %v9211, %v522
    %v9223 = vadd.f32 %v9213, %v523
    %v9224 = vadd.f32 %v9215, %v524
    %9225 = vst [vmem:[#allocation13] sm:$0xff] %v9217
    %9226 = vst [vmem:[#allocation13 + $0x8] sm:$0xff] %v9218
    %9227 = vst [vmem:[#allocation13 + $0x10] sm:$0xff] %v9219
    %9228 = vst [vmem:[#allocation13 + $0x18] sm:$0xff] %v9220
    %9229 = vst [vmem:[#allocation13 + $0x20] sm:$0xff] %v9221
    %9230 = vst [vmem:[#allocation13 + $0x28] sm:$0xff] %v9222
    %9231 = vst [vmem:[#allocation13 + $0x30] sm:$0xff] %v9223
    %9232 = vst [vmem:[#allocation13 + $0x38] sm:$0xff] %v9224
    // Predicated region
    $region62: #{tpu_custom_call.1} parent=1 // pred_check
      _
    $region63: #{tpu_custom_call.1} parent=1 // pred_check_branch
      %9234 = sbr.rel (0) target = $region65
    $region64: #{tpu_custom_call.1} parent=1 // pred_region
      %s9236 = ssub.s32 1024, 1024
      %9237 = vsyncadd [#allocation4], %s9236
      %s9238 = sshll.u32 [#allocation13], 4
      %s9239 = int_to_ptr.vmem [resolvable:$true] %s9238
      %9244 = dma.vmem_to_hbm [thread:$0]  %s9239, 1024, %s9, [#allocation4], 256, 256, 16
    $region65: #{tpu_custom_call.1} parent=1 // pred_fallthru
      _
    // Predicated region
    $region66: #{tpu_custom_call.1} parent=1 // pred_check
      _
    $region67: #{tpu_custom_call.1} parent=1 // pred_check_branch
      %9246 = sbr.rel (0) target = $region69
    $region68: #{tpu_custom_call.1} parent=1 // pred_region
      %9247 = dma.done [#allocation4], 1024
    $region69: #{tpu_custom_call.1} parent=1 // pred_fallthru
      _
    %9248 = vsyncpa [#allocation3], 1
    %9249 = vsyncpa [#allocation6], 1
    %9250 = vsyncpa [#allocation9], 1
    %9251 = vsyncpa [#allocation12], 1
    %9252 = vsyncpa [#allocation4], 1

</llo_original>
